<compile_context>
chip_gen: v7x
topology: tpu7x:2x2x1
jax: 0.10.0
libtpu: 0.0.40
codegen_flags: <defaults>
</compile_context>

<pallas_src>
import jax
import jax.numpy as jnp
from jax import lax
from jax.experimental import pallas as pl
from jax.experimental.pallas import tpu as pltpu


_DILATIONS = (6, 12, 18)


def _make_aspp_kernel(H, W, Cin, pad, dilations):
    """Main ASPP kernel: one grid step == one image."""
    HW = H * W

    def kernel(x_ref, wbig_ref, wg_ref, y_ref, ysum_ref, ysq_ref, xpad_ref):
        f32 = jnp.float32

        # Build the zero-padded tile in VMEM (no padded HBM copy).  The border
        # is re-zeroed every step (cheap VMEM fill, keeps "parallel" semantics
        # safe on multi-core parts); the interior store is sublane-aligned
        # because pad is a multiple of 8.
        xpad_ref[...] = jnp.zeros_like(xpad_ref)
        x_in = x_ref[0]                                            # (H, W, Cin)
        xpad_ref[pad:pad + H, pad:pad + W, :] = x_in
        xp = xpad_ref[...]                                         # (Hp, Wp, Cin)

        # global-average-pool branch (concat-1x1 already folded into wg);
        # bilinear upsample from (1,1) back to (H,W) is just a broadcast.
        gp = jnp.sum(x_in.reshape(HW, Cin), axis=0, keepdims=True) * (1.0 / HW)
        y = jnp.dot(gp, wg_ref[...], preferred_element_type=f32)   # (1, Cout)

        # all three dilated 3x3 branches (+ folded 1x1 branch + folded concat
        # 1x1 conv) as a single K = 27*Cin matmul: build the 27-tap im2col in
        # VMEM by static slicing of the padded tile.
        taps = [xp[pad + (ky - 1) * d: pad + (ky - 1) * d + H,
                   pad + (kx - 1) * d: pad + (kx - 1) * d + W, :]
                for d in dilations for ky in range(3) for kx in range(3)]
        tmat = jnp.concatenate(taps, axis=-1).reshape(HW, 27 * Cin)
        y = y + jnp.dot(tmat, wbig_ref[...], preferred_element_type=f32)

        # single streaming epilogue: store y once, emit per-image BN partials.
        y_ref[0] = y
        ysum_ref[0] = jnp.sum(y, axis=0, keepdims=True)
        ysq_ref[0] = jnp.sum(y * y, axis=0, keepdims=True)

    return kernel


def _bn_relu_kernel(y_ref, scale_ref, shift_ref, o_ref):
    o_ref[0] = jnp.maximum(y_ref[0] * scale_ref[...] + shift_ref[...], 0.0)


def _spatial_tile(hw, cap=2048):
    """Largest spatial tile: a divisor of hw, multiple of 8, not exceeding cap."""
    if hw <= cap:
        return hw
    for t in range(cap - cap % 8, 7, -8):
        if hw % t == 0:
            return t
    return hw


def aspp_forward(x_nchw, params, *, eps=1e-5):
    N, Cin, H, W = x_nchw.shape
    Cout = params['w1'].shape[0]
    HW = H * W
    dilations = _DILATIONS
    pad = ((max(dilations) + 7) // 8) * 8          # sublane-aligned, >= 18
    Hp, Wp = H + 2 * pad, W + 2 * pad

    x = jnp.transpose(x_nchw, (0, 2, 3, 1)).astype(jnp.float32)        # NHWC

    # ---- fold the concat + final 1x1 conv into the branch weights (exact:
    # no per-branch BN/ReLU/bias in this module) --------------------------------
    wc = params['wc'][:, :, 0, 0].T                                    # (5*Cout, Cout)
    wc_k = [wc[k * Cout:(k + 1) * Cout] for k in range(5)]             # (Cout, Cout) each

    def pack_dilated(w, wck):
        # (Cout, Cin, 3, 3) -> (9*Cin, Cout), tap-major rows (t = ky*3 + kx)
        wp = jnp.transpose(w, (2, 3, 1, 0)).reshape(9 * Cin, Cout)
        return wp @ wck

    w1f = params['w1'][:, :, 0, 0].T @ wc_k[0]                         # (Cin, Cout)
    wd6 = pack_dilated(params['w2'], wc_k[1])
    wd12 = pack_dilated(params['w3'], wc_k[2])
    wd18 = pack_dilated(params['w4'], wc_k[3])
    wgf = params['wg'][:, :, 0, 0].T @ wc_k[4]                         # (Cin, Cout)

    # the centre tap (ky = kx = 1 -> tap 4) of the dilation-6 branch sees the
    # unshifted input, so the 1x1 branch folds exactly into those weight rows.
    wd6 = wd6.at[4 * Cin:5 * Cin].add(w1f)
    wbig = jnp.concatenate([wd6, wd12, wd18], axis=0)                  # (27*Cin, Cout)

    kernel = _make_aspp_kernel(H, W, Cin, pad, dilations)

    y, ysum, ysq = pl.pallas_call(
        kernel,
        out_shape=(jax.ShapeDtypeStruct((N, HW, Cout), jnp.float32),
                   jax.ShapeDtypeStruct((N, 1, Cout), jnp.float32),
                   jax.ShapeDtypeStruct((N, 1, Cout), jnp.float32)),
        grid_spec=pltpu.PrefetchScalarGridSpec(
            num_scalar_prefetch=0, grid=(N,),
            in_specs=[
                pl.BlockSpec((1, H, W, Cin), lambda n: (n, 0, 0, 0)),
                pl.BlockSpec((27 * Cin, Cout), lambda n: (0, 0)),
                pl.BlockSpec((Cin, Cout), lambda n: (0, 0)),
            ],
            out_specs=[
                pl.BlockSpec((1, HW, Cout), lambda n: (n, 0, 0)),
                pl.BlockSpec((1, 1, Cout), lambda n: (n, 0, 0)),
                pl.BlockSpec((1, 1, Cout), lambda n: (n, 0, 0)),
            ],
            scratch_shapes=[pltpu.VMEM((Hp, Wp, Cin), jnp.float32)]),
        # per-image work is fully independent (BN partials reduced in glue)
        compiler_params=pltpu.CompilerParams(dimension_semantics=("parallel",)),
    )(x, wbig, wgf)

    # BatchNorm2d, training-mode batch statistics (module default state);
    # the N-length reduction is tiny glue.
    count = N * HW
    mean = jnp.sum(ysum, axis=(0, 1)) / count
    var = jnp.sum(ysq, axis=(0, 1)) / count - mean * mean
    inv = lax.rsqrt(var + eps)
    scale = (params['gamma'] * inv).reshape(1, Cout)
    shift = (params['beta'] - mean * params['gamma'] * inv).reshape(1, Cout)

    t_hw = _spatial_tile(HW)
    out = pl.pallas_call(
        _bn_relu_kernel,
        out_shape=jax.ShapeDtypeStruct((N, HW, Cout), jnp.float32),
        grid_spec=pltpu.PrefetchScalarGridSpec(
            num_scalar_prefetch=0, grid=(N, HW // t_hw),
            in_specs=[
                pl.BlockSpec((1, t_hw, Cout), lambda n, t: (n, t, 0)),
                pl.BlockSpec((1, Cout), lambda n, t: (0, 0)),
                pl.BlockSpec((1, Cout), lambda n, t: (0, 0)),
            ],
            out_specs=pl.BlockSpec((1, t_hw, Cout), lambda n, t: (n, t, 0))),
        compiler_params=pltpu.CompilerParams(
            dimension_semantics=("parallel", "parallel")),
        input_output_aliases={0: 0},          # normalize + ReLU in place of y
    )(y, scale, shift)

    return jnp.transpose(out.reshape(N, H, W, Cout), (0, 3, 1, 2))      # back to NCHW


def aspp_reference(x, params, eps=1e-5):
    """Pure-JAX reference mirroring the PyTorch forward (training-mode BN)."""
    dn = ('NCHW', 'OIHW', 'NCHW')

    def conv(inp, w, d):
        k = w.shape[2]
        pad = [(d, d), (d, d)] if k == 3 else [(0, 0), (0, 0)]
        return lax.conv_general_dilated(inp, w, (1, 1), pad,
                                        rhs_dilation=(d, d), dimension_numbers=dn)

    b1 = conv(x, params['w1'], 1)
    b2 = conv(x, params['w2'], 6)
    b3 = conv(x, params['w3'], 12)
    b4 = conv(x, params['w4'], 18)
    gp = jnp.mean(x, axis=(2, 3), keepdims=True)
    gp = conv(gp, params['wg'], 1)
    gp = jnp.broadcast_to(gp, b1.shape)   # bilinear upsample from (1,1) == broadcast
    cat = jnp.concatenate([b1, b2, b3, b4, gp], axis=1)
    y = conv(cat, params['wc'], 1)
    mean = jnp.mean(y, axis=(0, 2, 3), keepdims=True)
    var = jnp.var(y, axis=(0, 2, 3), keepdims=True)
    yn = (y - mean) * lax.rsqrt(var + eps)
    yn = yn * params['gamma'][None, :, None, None] + params['beta'][None, :, None, None]
    return jnp.maximum(yn, 0.0)


if __name__ == "__main__":
    key = jax.random.PRNGKey(0)
    N, Cin, Cout, H, W = 2, 8, 8, 16, 16
    ks = jax.random.split(key, 9)
    params = {
        'w1': 0.1 * jax.random.normal(ks[0], (Cout, Cin, 1, 1), jnp.float32),
        'w2': 0.1 * jax.random.normal(ks[1], (Cout, Cin, 3, 3), jnp.float32),
        'w3': 0.1 * jax.random.normal(ks[2], (Cout, Cin, 3, 3), jnp.float32),
        'w4': 0.1 * jax.random.normal(ks[3], (Cout, Cin, 3, 3), jnp.float32),
        'wg': 0.1 * jax.random.normal(ks[4], (Cout, Cin, 1, 1), jnp.float32),
        'wc': 0.1 * jax.random.normal(ks[5], (Cout, 5 * Cout, 1, 1), jnp.float32),
        'gamma': 1.0 + 0.1 * jax.random.normal(ks[6], (Cout,), jnp.float32),
        'beta': 0.1 * jax.random.normal(ks[7], (Cout,), jnp.float32),
    }
    x = jax.random.normal(ks[8], (N, Cin, H, W), jnp.float32)

    out = jax.block_until_ready(jax.jit(aspp_forward)(x, params))
    assert out.shape == (N, Cout, H, W)

    ref = aspp_reference(x, params)
    err = float(jnp.max(jnp.abs(out - ref)))
    if err > 1e-3:
        raise AssertionError(f"mismatch vs reference: max abs err = {err}")
    print("KERNEL_OK")
</pallas_src>

<mosaic_0001>
module attributes {stable_mosaic.version = 11 : i64} {
  func.func @kernel(%arg0: i32, %arg1: memref<1x16x16x8xf32, #tpu.memory_space<vmem>>, %arg2: memref<216x8xf32, #tpu.memory_space<vmem>>, %arg3: memref<8x8xf32, #tpu.memory_space<vmem>>, %arg4: memref<1x256x8xf32, #tpu.memory_space<vmem>>, %arg5: memref<1x1x8xf32, #tpu.memory_space<vmem>>, %arg6: memref<1x1x8xf32, #tpu.memory_space<vmem>>, %arg7: memref<64x64x8xf32, #tpu.memory_space<vmem>>) attributes {dimension_semantics = [#tpu.dimension_semantics<parallel>], iteration_bounds = array<i64: 2>, scalar_prefetch = 0 : i64, scratch_operands = 1 : i64, tpu.core_type = #tpu.core_type<tc>, window_params = [{transform_indices = @transform_0, window_bounds = array<i64: 1, 16, 16, 8>}, {pipeline_mode = #tpu.pipeline_mode<synchronous>, transform_indices = @transform_1, window_bounds = array<i64: 216, 8>}, {pipeline_mode = #tpu.pipeline_mode<synchronous>, transform_indices = @transform_2, window_bounds = array<i64: 8, 8>}, {transform_indices = @transform_3, window_bounds = array<i64: 1, 256, 8>}, {transform_indices = @transform_4, window_bounds = array<i64: 1, 1, 8>}, {transform_indices = @transform_5, window_bounds = array<i64: 1, 1, 8>}]} {
    %cst = arith.constant 0.000000e+00 : f32
    %0 = vector.broadcast %cst : f32 to vector<64x64x8xf32>
    %c0 = arith.constant 0 : index
    %c0_0 = arith.constant 0 : index
    %c0_1 = arith.constant 0 : index
    %1 = vector.load %arg7[%c0, %c0_0, %c0_1] : memref<64x64x8xf32, #tpu.memory_space<vmem>>, vector<64x64x8xf32>
    tpu.vector_store %arg7[%c0, %c0_0, %c0_1], %0 {strides = array<i32>} : memref<64x64x8xf32, #tpu.memory_space<vmem>>, vector<64x64x8xf32>,
    %c0_2 = arith.constant 0 : index
    %c0_3 = arith.constant 0 : index
    %c0_4 = arith.constant 0 : index
    %c0_5 = arith.constant 0 : index
    %2 = vector.load %arg1[%c0_2, %c0_3, %c0_4, %c0_5] : memref<1x16x16x8xf32, #tpu.memory_space<vmem>>, vector<1x16x16x8xf32>
    %3 = vector.shape_cast %2 : vector<1x16x16x8xf32> to vector<16x16x8xf32>
    %c24 = arith.constant 24 : index
    %c24_6 = arith.constant 24 : index
    %c0_7 = arith.constant 0 : index
    %4 = vector.load %arg7[%c24, %c24_6, %c0_7] : memref<64x64x8xf32, #tpu.memory_space<vmem>>, vector<16x16x8xf32>
    tpu.vector_store %arg7[%c24, %c24_6, %c0_7], %3 {strides = array<i32>} : memref<64x64x8xf32, #tpu.memory_space<vmem>>, vector<16x16x8xf32>,
    %c0_8 = arith.constant 0 : index
    %c0_9 = arith.constant 0 : index
    %c0_10 = arith.constant 0 : index
    %5 = vector.load %arg7[%c0_8, %c0_9, %c0_10] : memref<64x64x8xf32, #tpu.memory_space<vmem>>, vector<64x64x8xf32>
    %6 = vector.shape_cast %3 : vector<16x16x8xf32> to vector<256x8xf32>
    %cst_11 = arith.constant dense<0.000000e+00> : vector<8xf32>
    %7 = vector.multi_reduction <add>, %6, %cst_11 [0] : vector<256x8xf32> to vector<8xf32>
    %8 = vector.shape_cast %7 : vector<8xf32> to vector<1x8xf32>
    %cst_12 = arith.constant 3.906250e-03 : f32
    %9 = vector.broadcast %cst_12 : f32 to vector<1x8xf32>
    %10 = arith.mulf %8, %9 : vector<1x8xf32>
    %c0_13 = arith.constant 0 : index
    %c0_14 = arith.constant 0 : index
    %11 = vector.load %arg3[%c0_13, %c0_14] : memref<8x8xf32, #tpu.memory_space<vmem>>, vector<8x8xf32>
    %cst_15 = arith.constant dense<0.000000e+00> : vector<1x8xf32>
    %12 = tpu.matmul %10, %11, %cst_15 {dimension_numbers = #tpu.dot_dimension_numbers<[1], [0], [0], [1], [0, 0, 1, 1], [], []>} : vector<1x8xf32>, vector<8x8xf32>, vector<1x8xf32> -> vector<1x8xf32>
    %13 = vector.extract_strided_slice %5 {offsets = [18, 18, 0], sizes = [16, 16, 8], strides = [1, 1, 1]} : vector<64x64x8xf32> to vector<16x16x8xf32>
    %14 = vector.extract_strided_slice %5 {offsets = [18, 24, 0], sizes = [16, 16, 8], strides = [1, 1, 1]} : vector<64x64x8xf32> to vector<16x16x8xf32>
    %15 = vector.extract_strided_slice %5 {offsets = [18, 30, 0], sizes = [16, 16, 8], strides = [1, 1, 1]} : vector<64x64x8xf32> to vector<16x16x8xf32>
    %16 = vector.extract_strided_slice %5 {offsets = [24, 18, 0], sizes = [16, 16, 8], strides = [1, 1, 1]} : vector<64x64x8xf32> to vector<16x16x8xf32>
    %17 = vector.extract_strided_slice %5 {offsets = [24, 24, 0], sizes = [16, 16, 8], strides = [1, 1, 1]} : vector<64x64x8xf32> to vector<16x16x8xf32>
    %18 = vector.extract_strided_slice %5 {offsets = [24, 30, 0], sizes = [16, 16, 8], strides = [1, 1, 1]} : vector<64x64x8xf32> to vector<16x16x8xf32>
    %19 = vector.extract_strided_slice %5 {offsets = [30, 18, 0], sizes = [16, 16, 8], strides = [1, 1, 1]} : vector<64x64x8xf32> to vector<16x16x8xf32>
    %20 = vector.extract_strided_slice %5 {offsets = [30, 24, 0], sizes = [16, 16, 8], strides = [1, 1, 1]} : vector<64x64x8xf32> to vector<16x16x8xf32>
    %21 = vector.extract_strided_slice %5 {offsets = [30, 30, 0], sizes = [16, 16, 8], strides = [1, 1, 1]} : vector<64x64x8xf32> to vector<16x16x8xf32>
    %22 = vector.extract_strided_slice %5 {offsets = [12, 12, 0], sizes = [16, 16, 8], strides = [1, 1, 1]} : vector<64x64x8xf32> to vector<16x16x8xf32>
    %23 = vector.extract_strided_slice %5 {offsets = [12, 24, 0], sizes = [16, 16, 8], strides = [1, 1, 1]} : vector<64x64x8xf32> to vector<16x16x8xf32>
    %24 = vector.extract_strided_slice %5 {offsets = [12, 36, 0], sizes = [16, 16, 8], strides = [1, 1, 1]} : vector<64x64x8xf32> to vector<16x16x8xf32>
    %25 = vector.extract_strided_slice %5 {offsets = [24, 12, 0], sizes = [16, 16, 8], strides = [1, 1, 1]} : vector<64x64x8xf32> to vector<16x16x8xf32>
    %26 = vector.extract_strided_slice %5 {offsets = [24, 24, 0], sizes = [16, 16, 8], strides = [1, 1, 1]} : vector<64x64x8xf32> to vector<16x16x8xf32>
    %27 = vector.extract_strided_slice %5 {offsets = [24, 36, 0], sizes = [16, 16, 8], strides = [1, 1, 1]} : vector<64x64x8xf32> to vector<16x16x8xf32>
    %28 = vector.extract_strided_slice %5 {offsets = [36, 12, 0], sizes = [16, 16, 8], strides = [1, 1, 1]} : vector<64x64x8xf32> to vector<16x16x8xf32>
    %29 = vector.extract_strided_slice %5 {offsets = [36, 24, 0], sizes = [16, 16, 8], strides = [1, 1, 1]} : vector<64x64x8xf32> to vector<16x16x8xf32>
    %30 = vector.extract_strided_slice %5 {offsets = [36, 36, 0], sizes = [16, 16, 8], strides = [1, 1, 1]} : vector<64x64x8xf32> to vector<16x16x8xf32>
    %31 = vector.extract_strided_slice %5 {offsets = [6, 6, 0], sizes = [16, 16, 8], strides = [1, 1, 1]} : vector<64x64x8xf32> to vector<16x16x8xf32>
    %32 = vector.extract_strided_slice %5 {offsets = [6, 24, 0], sizes = [16, 16, 8], strides = [1, 1, 1]} : vector<64x64x8xf32> to vector<16x16x8xf32>
    %33 = vector.extract_strided_slice %5 {offsets = [6, 42, 0], sizes = [16, 16, 8], strides = [1, 1, 1]} : vector<64x64x8xf32> to vector<16x16x8xf32>
    %34 = vector.extract_strided_slice %5 {offsets = [24, 6, 0], sizes = [16, 16, 8], strides = [1, 1, 1]} : vector<64x64x8xf32> to vector<16x16x8xf32>
    %35 = vector.extract_strided_slice %5 {offsets = [24, 24, 0], sizes = [16, 16, 8], strides = [1, 1, 1]} : vector<64x64x8xf32> to vector<16x16x8xf32>
    %36 = vector.extract_strided_slice %5 {offsets = [24, 42, 0], sizes = [16, 16, 8], strides = [1, 1, 1]} : vector<64x64x8xf32> to vector<16x16x8xf32>
    %37 = vector.extract_strided_slice %5 {offsets = [42, 6, 0], sizes = [16, 16, 8], strides = [1, 1, 1]} : vector<64x64x8xf32> to vector<16x16x8xf32>
    %38 = vector.extract_strided_slice %5 {offsets = [42, 24, 0], sizes = [16, 16, 8], strides = [1, 1, 1]} : vector<64x64x8xf32> to vector<16x16x8xf32>
    %39 = vector.extract_strided_slice %5 {offsets = [42, 42, 0], sizes = [16, 16, 8], strides = [1, 1, 1]} : vector<64x64x8xf32> to vector<16x16x8xf32>
    %40 = tpu.concatenate %13, %14, %15, %16, %17, %18, %19, %20, %21, %22, %23, %24, %25, %26, %27, %28 in 2 : vector<16x16x8xf32>, vector<16x16x8xf32>, vector<16x16x8xf32>, vector<16x16x8xf32>, vector<16x16x8xf32>, vector<16x16x8xf32>, vector<16x16x8xf32>, vector<16x16x8xf32>, vector<16x16x8xf32>, vector<16x16x8xf32>, vector<16x16x8xf32>, vector<16x16x8xf32>, vector<16x16x8xf32>, vector<16x16x8xf32>, vector<16x16x8xf32>, vector<16x16x8xf32> -> vector<16x16x128xf32>
    %41 = tpu.concatenate %29, %30, %31, %32, %33, %34, %35, %36, %37, %38, %39 in 2 : vector<16x16x8xf32>, vector<16x16x8xf32>, vector<16x16x8xf32>, vector<16x16x8xf32>, vector<16x16x8xf32>, vector<16x16x8xf32>, vector<16x16x8xf32>, vector<16x16x8xf32>, vector<16x16x8xf32>, vector<16x16x8xf32>, vector<16x16x8xf32> -> vector<16x16x88xf32>
    %42 = tpu.concatenate %40, %41 in 2 : vector<16x16x128xf32>, vector<16x16x88xf32> -> vector<16x16x216xf32>
    %43 = vector.shape_cast %42 : vector<16x16x216xf32> to vector<256x216xf32>
    %c0_16 = arith.constant 0 : index
    %c0_17 = arith.constant 0 : index
    %44 = vector.load %arg2[%c0_16, %c0_17] : memref<216x8xf32, #tpu.memory_space<vmem>>, vector<216x8xf32>
    %cst_18 = arith.constant dense<0.000000e+00> : vector<256x8xf32>
    %45 = tpu.matmul %43, %44, %cst_18 {dimension_numbers = #tpu.dot_dimension_numbers<[1], [0], [0], [1], [0, 0, 1, 1], [], []>} : vector<256x216xf32>, vector<216x8xf32>, vector<256x8xf32> -> vector<256x8xf32>
    %46 = vector.broadcast %12 : vector<1x8xf32> to vector<256x8xf32>
    %47 = arith.addf %46, %45 : vector<256x8xf32>
    %c0_19 = arith.constant 0 : index
    %c0_20 = arith.constant 0 : index
    %c0_21 = arith.constant 0 : index
    %48 = vector.load %arg4[%c0_19, %c0_20, %c0_21] : memref<1x256x8xf32, #tpu.memory_space<vmem>>, vector<1x256x8xf32>
    %49 = vector.shape_cast %48 : vector<1x256x8xf32> to vector<256x8xf32>
    %50 = vector.shape_cast %47 : vector<256x8xf32> to vector<1x256x8xf32>
    tpu.vector_store %arg4[%c0_19, %c0_20, %c0_21], %50 {strides = array<i32>} : memref<1x256x8xf32, #tpu.memory_space<vmem>>, vector<1x256x8xf32>,
    %cst_22 = arith.constant dense<0.000000e+00> : vector<8xf32>
    %51 = vector.multi_reduction <add>, %47, %cst_22 [0] : vector<256x8xf32> to vector<8xf32>
    %52 = vector.shape_cast %51 : vector<8xf32> to vector<1x8xf32>
    %c0_23 = arith.constant 0 : index
    %c0_24 = arith.constant 0 : index
    %c0_25 = arith.constant 0 : index
    %53 = vector.load %arg5[%c0_23, %c0_24, %c0_25] : memref<1x1x8xf32, #tpu.memory_space<vmem>>, vector<1x1x8xf32>
    %54 = vector.shape_cast %53 : vector<1x1x8xf32> to vector<1x8xf32>
    %55 = vector.shape_cast %52 : vector<1x8xf32> to vector<1x1x8xf32>
    tpu.vector_store %arg5[%c0_23, %c0_24, %c0_25], %55 {strides = array<i32>} : memref<1x1x8xf32, #tpu.memory_space<vmem>>, vector<1x1x8xf32>,
    %56 = arith.mulf %47, %47 : vector<256x8xf32>
    %cst_26 = arith.constant dense<0.000000e+00> : vector<8xf32>
    %57 = vector.multi_reduction <add>, %56, %cst_26 [0] : vector<256x8xf32> to vector<8xf32>
    %58 = vector.shape_cast %57 : vector<8xf32> to vector<1x8xf32>
    %c0_27 = arith.constant 0 : index
    %c0_28 = arith.constant 0 : index
    %c0_29 = arith.constant 0 : index
    %59 = vector.load %arg6[%c0_27, %c0_28, %c0_29] : memref<1x1x8xf32, #tpu.memory_space<vmem>>, vector<1x1x8xf32>
    %60 = vector.shape_cast %59 : vector<1x1x8xf32> to vector<1x8xf32>
    %61 = vector.shape_cast %58 : vector<1x8xf32> to vector<1x1x8xf32>
    tpu.vector_store %arg6[%c0_27, %c0_28, %c0_29], %61 {strides = array<i32>} : memref<1x1x8xf32, #tpu.memory_space<vmem>>, vector<1x1x8xf32>,
    return
  }
  func.func @transform_0(%arg0: i32) -> (i32, i32, i32, i32) {
    %c0_i32 = arith.constant 0 : i32
    %c0_i32_0 = arith.constant 0 : i32
    %c0_i32_1 = arith.constant 0 : i32
    %c0_i32_2 = arith.constant 0 : i32
    return %arg0, %c0_i32, %c0_i32_0, %c0_i32_1 : i32, i32, i32, i32
  }
  func.func @transform_1(%arg0: i32) -> (i32, i32) {
    %c0_i32 = arith.constant 0 : i32
    %c0_i32_0 = arith.constant 0 : i32
    %c0_i32_1 = arith.constant 0 : i32
    return %c0_i32, %c0_i32_0 : i32, i32
  }
  func.func @transform_2(%arg0: i32) -> (i32, i32) {
    %c0_i32 = arith.constant 0 : i32
    %c0_i32_0 = arith.constant 0 : i32
    %c0_i32_1 = arith.constant 0 : i32
    return %c0_i32, %c0_i32_0 : i32, i32
  }
  func.func @transform_3(%arg0: i32) -> (i32, i32, i32) {
    %c0_i32 = arith.constant 0 : i32
    %c0_i32_0 = arith.constant 0 : i32
    %c0_i32_1 = arith.constant 0 : i32
    return %arg0, %c0_i32, %c0_i32_0 : i32, i32, i32
  }
  func.func @transform_4(%arg0: i32) -> (i32, i32, i32) {
    %c0_i32 = arith.constant 0 : i32
    %c0_i32_0 = arith.constant 0 : i32
    %c0_i32_1 = arith.constant 0 : i32
    return %arg0, %c0_i32, %c0_i32_0 : i32, i32, i32
  }
  func.func @transform_5(%arg0: i32) -> (i32, i32, i32) {
    %c0_i32 = arith.constant 0 : i32
    %c0_i32_0 = arith.constant 0 : i32
    %c0_i32_1 = arith.constant 0 : i32
    return %arg0, %c0_i32, %c0_i32_0 : i32, i32, i32
  }
}

module attributes {stable_mosaic.version = 11 : i64} {
  func.func @_bn_relu_kernel(%arg0: i32, %arg1: i32, %arg2: memref<1x256x8xf32, #tpu.memory_space<vmem>>, %arg3: memref<1x8xf32, #tpu.memory_space<vmem>>, %arg4: memref<1x8xf32, #tpu.memory_space<vmem>>, %arg5: memref<1x256x8xf32, #tpu.memory_space<vmem>>) attributes {dimension_semantics = [#tpu.dimension_semantics<parallel>, #tpu.dimension_semantics<parallel>], iteration_bounds = array<i64: 2, 1>, scalar_prefetch = 0 : i64, scratch_operands = 0 : i64, tpu.core_type = #tpu.core_type<tc>, window_params = [{transform_indices = @transform_0, window_bounds = array<i64: 1, 256, 8>}, {pipeline_mode = #tpu.pipeline_mode<synchronous>, transform_indices = @transform_1, window_bounds = array<i64: 1, 8>}, {pipeline_mode = #tpu.pipeline_mode<synchronous>, transform_indices = @transform_2, window_bounds = array<i64: 1, 8>}, {transform_indices = @transform_3, window_bounds = array<i64: 1, 256, 8>}]} {
    %c0 = arith.constant 0 : index
    %c0_0 = arith.constant 0 : index
    %c0_1 = arith.constant 0 : index
    %0 = vector.load %arg2[%c0, %c0_0, %c0_1] : memref<1x256x8xf32, #tpu.memory_space<vmem>>, vector<1x256x8xf32>
    %1 = vector.shape_cast %0 : vector<1x256x8xf32> to vector<256x8xf32>
    %c0_2 = arith.constant 0 : index
    %c0_3 = arith.constant 0 : index
    %2 = vector.load %arg3[%c0_2, %c0_3] : memref<1x8xf32, #tpu.memory_space<vmem>>, vector<1x8xf32>
    %3 = vector.broadcast %2 : vector<1x8xf32> to vector<256x8xf32>
    %4 = arith.mulf %1, %3 : vector<256x8xf32>
    %c0_4 = arith.constant 0 : index
    %c0_5 = arith.constant 0 : index
    %5 = vector.load %arg4[%c0_4, %c0_5] : memref<1x8xf32, #tpu.memory_space<vmem>>, vector<1x8xf32>
    %6 = vector.broadcast %5 : vector<1x8xf32> to vector<256x8xf32>
    %7 = arith.addf %4, %6 : vector<256x8xf32>
    %cst = arith.constant 0.000000e+00 : f32
    %8 = vector.broadcast %cst : f32 to vector<256x8xf32>
    %9 = arith.maximumf %7, %8 : vector<256x8xf32>
    %c0_6 = arith.constant 0 : index
    %c0_7 = arith.constant 0 : index
    %c0_8 = arith.constant 0 : index
    %10 = vector.load %arg5[%c0_6, %c0_7, %c0_8] : memref<1x256x8xf32, #tpu.memory_space<vmem>>, vector<1x256x8xf32>
    %11 = vector.shape_cast %10 : vector<1x256x8xf32> to vector<256x8xf32>
    %12 = vector.shape_cast %9 : vector<256x8xf32> to vector<1x256x8xf32>
    tpu.vector_store %arg5[%c0_6, %c0_7, %c0_8], %12 {strides = array<i32>} : memref<1x256x8xf32, #tpu.memory_space<vmem>>, vector<1x256x8xf32>,
    return
  }
  func.func @transform_0(%arg0: i32, %arg1: i32) -> (i32, i32, i32) {
    %c0_i32 = arith.constant 0 : i32
    %c0_i32_0 = arith.constant 0 : i32
    return %arg0, %arg1, %c0_i32 : i32, i32, i32
  }
  func.func @transform_1(%arg0: i32, %arg1: i32) -> (i32, i32) {
    %c0_i32 = arith.constant 0 : i32
    %c0_i32_0 = arith.constant 0 : i32
    %c0_i32_1 = arith.constant 0 : i32
    return %c0_i32, %c0_i32_0 : i32, i32
  }
  func.func @transform_2(%arg0: i32, %arg1: i32) -> (i32, i32) {
    %c0_i32 = arith.constant 0 : i32
    %c0_i32_0 = arith.constant 0 : i32
    %c0_i32_1 = arith.constant 0 : i32
    return %c0_i32, %c0_i32_0 : i32, i32
  }
  func.func @transform_3(%arg0: i32, %arg1: i32) -> (i32, i32, i32) {
    %c0_i32 = arith.constant 0 : i32
    %c0_i32_0 = arith.constant 0 : i32
    return %arg0, %arg1, %c0_i32 : i32, i32, i32
  }
}

</mosaic_0001>

<llo_original>
// kernel: aspp_forward.3
$region0: #{aspp_forward.3}
  #allocation0 [shape = 'u32[]', space=smem, size = 0x4, offset = 0x4, fixed_abs, tag = 'smem constant byte address 0x4 - core index']
  #allocation1 [shape = 'u32[144,128]{1,0:T(1,128)}', space=vmem, size = 0x12000, scoped, tag = 'internal scratch']
  %s0 = inlined_call_operand.vmem [shape: f32[2,256,8], index: 0, kind: input, shape index: {}, may-alias: {0,3}]
  %s1 = inlined_call_operand.vmem [shape: f32[1,8], index: 1, kind: input, shape index: {}]
  %s2 = inlined_call_operand.vmem [shape: f32[1,8], index: 2, kind: input, shape index: {}]
  %s3 = inlined_call_operand.vmem [shape: f32[2,256,8], index: 3, kind: output, shape index: {}, may-alias: {0,3}]
  %s4 = sld [smem:[#allocation0]]
  $region45: #{aspp_forward.3} parent=0
    _
  %s6 = ssub.s32 1, %s4
  %s7 = scalar_select 0, %s6, %s4
  loop: start=0, step=1, limit=4
  $region2: #{aspp_forward.3} parent=0 // loop_pre_header
    _
  $region3: #{aspp_forward.3} parent=0 // loop_header
    %s9 = sphi 0, %s13
    %p10 = scmp.ge.s32.totalorder %s9, 4
    %s16 = sphi 0, %s28
    %s17 = sphi 0, %s24
    %s18 = sphi 0, %s16
    %s19 = sphi 0, %s17
    %s20 = sphi 0, %s18
    %s21 = sphi 0, %s19
    %s33 = sphi 0, %s35
    %s36 = sphi 0, %s33
    %s37 = sphi 0, %s36
    %s53 = sphi 0, %s37
    %s57 = sphi 0, %s57
    %s59 = sphi 0, %s57
    %s60 = sphi 0, %s59
    %s74 = sphi 0, %s60
    %s78 = sphi 0, %s78
    %s80 = sphi 0, %s78
    %s81 = sphi 0, %s80
    %s95 = sphi 0, %s81
    %s103 = sphi 0, %s105
    %s106 = sphi 0, %s103
    %s107 = sphi 0, %s106
    %s123 = sphi 0, %s107
  $region4: #{aspp_forward.3} parent=0 // loop_header_branch
    %12 = sbr.rel (%p10) target = $region8
  $region5: #{aspp_forward.3} parent=0 // loop_body
    %s14 = ssub.s32 %s9, 1
    %s15 = ssub.s32 %s9, 2
    %s22 = sadd.s32 1, %s17
    %p23 = scmp.ge.s32.totalorder %s22, 1
    %s24 = scalar_select %p23, 0, %s22
    %s25 = sadd.s32 1, %s16
    %s26 = scalar_select %p23, %s25, %s16
    %p27 = scmp.ge.s32.totalorder %s26, 2
    %s28 = scalar_select %p27, 0, %s26
    %s29 = ssub.s32 %s16, %s28
    %s30 = ssub.s32 %s17, %s24
    %s31 = sor.u32 %s29, %s30
    %p32 = scmp.eq.s32.totalorder %s31, 0
    %s34 = sadd.s32 %s33, 1
    %s35 = scalar_select %p32, %s33, %s34
    %p38 = pneg %p32
    %p39 = scmp.eq.s32.totalorder %s9, 1
    %p40 = por %p38, %p39
    %p41 = scmp.ne.s32.totalorder %s33, %s36
    %p42 = scmp.eq.s32.totalorder %s9, 0
    %p43 = por %p41, %p42
    %p44 = scmp.ne.s32.totalorder %s33, %s36
    %p45 = scmp.eq.s32.totalorder %s14, 1
    %p46 = por %p44, %p45
    %p47 = scmp.ne.s32.totalorder %s36, %s37
    %p48 = scmp.eq.s32.totalorder %s14, 0
    %p49 = por %p47, %p48
    %p50 = scmp.ne.s32.totalorder %s36, %s37
    %p51 = scmp.eq.s32.totalorder %s15, 1
    %p52 = por %p50, %p51
    %p54 = scmp.ne.s32.totalorder %s37, %s53
    %p55 = scmp.eq.s32.totalorder %s15, 0
    %p56 = por %p54, %p55
    %s58 = sadd.s32 %s57, 1
    %p61 = scmp.eq.s32.totalorder %s9, 1
    %p62 = scmp.ne.s32.totalorder %s57, %s59
    %p63 = scmp.eq.s32.totalorder %s9, 0
    %p64 = por %p62, %p63
    %p65 = scmp.ne.s32.totalorder %s57, %s59
    %p66 = scmp.eq.s32.totalorder %s14, 1
    %p67 = por %p65, %p66
    %p68 = scmp.ne.s32.totalorder %s59, %s60
    %p69 = scmp.eq.s32.totalorder %s14, 0
    %p70 = por %p68, %p69
    %p71 = scmp.ne.s32.totalorder %s59, %s60
    %p72 = scmp.eq.s32.totalorder %s15, 1
    %p73 = por %p71, %p72
    %p75 = scmp.ne.s32.totalorder %s60, %s74
    %p76 = scmp.eq.s32.totalorder %s15, 0
    %p77 = por %p75, %p76
    %s79 = sadd.s32 %s78, 1
    %p82 = scmp.eq.s32.totalorder %s9, 1
    %p83 = scmp.ne.s32.totalorder %s78, %s80
    %p84 = scmp.eq.s32.totalorder %s9, 0
    %p85 = por %p83, %p84
    %p86 = scmp.ne.s32.totalorder %s78, %s80
    %p87 = scmp.eq.s32.totalorder %s14, 1
    %p88 = por %p86, %p87
    %p89 = scmp.ne.s32.totalorder %s80, %s81
    %p90 = scmp.eq.s32.totalorder %s14, 0
    %p91 = por %p89, %p90
    %p92 = scmp.ne.s32.totalorder %s80, %s81
    %p93 = scmp.eq.s32.totalorder %s15, 1
    %p94 = por %p92, %p93
    %p96 = scmp.ne.s32.totalorder %s81, %s95
    %p97 = scmp.eq.s32.totalorder %s15, 0
    %p98 = por %p96, %p97
    %s99 = ssub.s32 %s16, %s28
    %s100 = ssub.s32 %s17, %s24
    %s101 = sor.u32 %s99, %s100
    %p102 = scmp.eq.s32.totalorder %s101, 0
    %s104 = sadd.s32 %s103, 1
    %s105 = scalar_select %p102, %s103, %s104
    %p108 = pneg %p102
    %p109 = scmp.eq.s32.totalorder %s9, 1
    %p110 = por %p108, %p109
    %p111 = scmp.ne.s32.totalorder %s103, %s106
    %p112 = scmp.eq.s32.totalorder %s9, 0
    %p113 = por %p111, %p112
    %p114 = scmp.ne.s32.totalorder %s103, %s106
    %p115 = scmp.eq.s32.totalorder %s14, 1
    %p116 = por %p114, %p115
    %p117 = scmp.ne.s32.totalorder %s106, %s107
    %p118 = scmp.eq.s32.totalorder %s14, 0
    %p119 = por %p117, %p118
    %p120 = scmp.ne.s32.totalorder %s106, %s107
    %p121 = scmp.eq.s32.totalorder %s15, 1
    %p122 = por %p120, %p121
    %p124 = scmp.ne.s32.totalorder %s107, %s123
    %p125 = scmp.eq.s32.totalorder %s15, 0
    %p126 = por %p124, %p125
    %p127 = scmp.le.s32.totalorder 1, %s9
    %p128 = scmp.lt.s32.totalorder %s9, 3
    %p129 = pnand %p127, %p128
    %p130 = pneg %p129
    // Predicated region
    $region9: #{aspp_forward.3} parent=5 // pred_check
      _
    $region10: #{aspp_forward.3} parent=5 // pred_check_branch
      %132 = sbr.rel (%p129) target = $region12
    $region11: #{aspp_forward.3} parent=5 // pred_region
      %s133 = ssub.s32 %s9, 1
      // Predicated region
      $region13: #{aspp_forward.3} parent=11 // pred_check
        %p134 = pneg %p70
      $region14: #{aspp_forward.3} parent=11 // pred_check_branch
        %136 = sbr.rel (%p134) target = $region16
      $region15: #{aspp_forward.3} parent=11 // pred_region
        _
      $region16: #{aspp_forward.3} parent=11 // pred_fallthru
        _
      // Predicated region
      $region17: #{aspp_forward.3} parent=11 // pred_check
        %p137 = pneg %p91
      $region18: #{aspp_forward.3} parent=11 // pred_check_branch
        %139 = sbr.rel (%p137) target = $region20
      $region19: #{aspp_forward.3} parent=11 // pred_region
        _
      $region20: #{aspp_forward.3} parent=11 // pred_fallthru
        _
    $region12: #{aspp_forward.3} parent=5 // pred_fallthru
      _
    %p140 = scmp.lt.s32.totalorder %s9, 2
    // Predicated region
    $region21: #{aspp_forward.3} parent=5 // pred_check
      %p141 = pneg %p140
    $region22: #{aspp_forward.3} parent=5 // pred_check_branch
      %143 = sbr.rel (%p141) target = $region24
    $region23: #{aspp_forward.3} parent=5 // pred_region
      // Predicated region
      $region25: #{aspp_forward.3} parent=23 // pred_check
        %p144 = pneg %p43
      $region26: #{aspp_forward.3} parent=23 // pred_check_branch
        %146 = sbr.rel (%p144) target = $region28
      $region27: #{aspp_forward.3} parent=23 // pred_region
        %s147 = smul.u32 32, %s17
        %p148 = scmp.lt.s32.totalorder %s16, 1
        %s149 = scalar_select %p148, %s16, 1
        %p150 = scmp.lt.s32.totalorder %s147, 31
        %s151 = scalar_select %p150, %s147, 31
        %s152 = smul.addr %s149, 32
        %s153 = sadd.s32 %s151, %s152
        %s154 = smul.addr %s153, 8
        %s155 = scalar_lea.vmem %s0, %s154
        %s156 = smul.u32 32, %s17
      $region28: #{aspp_forward.3} parent=23 // pred_fallthru
        _
    $region24: #{aspp_forward.3} parent=5 // pred_fallthru
      _
    %p157 = scmp.le.s32.totalorder 1, %s9
    %p158 = scmp.lt.s32.totalorder %s9, 3
    %p159 = pnand %p157, %p158
    %p160 = pneg %p159
    // Predicated region
    $region29: #{aspp_forward.3} parent=5 // pred_check
      _
    $region30: #{aspp_forward.3} parent=5 // pred_check_branch
      %162 = sbr.rel (%p159) target = $region32
    $region31: #{aspp_forward.3} parent=5 // pred_region
      %s163 = ssub.s32 %s9, 1
      %s164 = smul.u32 32, %s19
      %p165 = scmp.lt.s32.totalorder %s18, 1
      %s166 = scalar_select %p165, %s18, 1
      %p167 = scmp.lt.s32.totalorder %s164, 31
      %s168 = scalar_select %p167, %s164, 31
      %s169 = smul.addr %s166, 32
      %s170 = sadd.s32 %s168, %s169
      %s171 = smul.addr %s170, 8
      %s172 = scalar_lea.vmem %s0, %s171
      %p173 = pneg %p49
      %p174 = pneg %p46
      %p175 = pneg %p70
      %p176 = pneg %p67
      %p177 = pneg %p91
      %p178 = pneg %p88
      %p179 = pneg %p119
      %p180 = pneg %p116
      %s181 = smul.u32 32, %s19
      %p182 = scmp.lt.s32.totalorder %s18, 1
      %s183 = scalar_select %p182, %s18, 1
      %p184 = scmp.lt.s32.totalorder %s181, 31
      %s185 = scalar_select %p184, %s181, 31
      %s186 = smul.addr %s183, 32
      %s187 = sadd.s32 %s185, %s186
      %s188 = smul.addr %s187, 8
      %s189 = scalar_lea.vmem %s3, %s188
      %s190 = smul.u32 32, %s19
      %p191 = scmp.lt.s32.totalorder %s18, 1
      %s192 = scalar_select %p191, %s18, 1
      %p193 = scmp.lt.s32.totalorder %s190, 31
      %s194 = scalar_select %p193, %s190, 31
      %s195 = smul.addr %s192, 32
      %s196 = sadd.s32 %s194, %s195
      %s197 = smul.addr %s196, 8
      %s198 = scalar_lea.vmem %s0, %s197
      %s199 = smul.u32 32, %s19
      %s200 = smul.u32 32, %s19
      %p201 = scmp.lt.s32.totalorder %s18, 1
      %s202 = scalar_select %p201, %s18, 1
      %p203 = scmp.lt.s32.totalorder %s200, 31
      %s204 = scalar_select %p203, %s200, 31
      %s205 = smul.addr %s202, 32
      %s206 = sadd.s32 %s204, %s205
      %s207 = smul.addr %s206, 8
      %s208 = scalar_lea.vmem %s3, %s207
      %s209 = smul.u32 32, %s19
      %v210 = vld [vmem:[%s198] sm:$0xff]
      %v211 = vld [vmem:[%s198 + $0x8] sm:$0xff]
      %v212 = vld [vmem:[%s198 + $0x10] sm:$0xff]
      %v213 = vld [vmem:[%s198 + $0x18] sm:$0xff]
      %v214 = vld [vmem:[%s198 + $0x20] sm:$0xff]
      %v215 = vld [vmem:[%s198 + $0x28] sm:$0xff]
      %v216 = vld [vmem:[%s198 + $0x30] sm:$0xff]
      %v217 = vld [vmem:[%s198 + $0x38] sm:$0xff]
      %v218 = vld [vmem:[%s198 + $0x40] sm:$0xff]
      %v219 = vld [vmem:[%s198 + $0x48] sm:$0xff]
      %v220 = vld [vmem:[%s198 + $0x50] sm:$0xff]
      %v221 = vld [vmem:[%s198 + $0x58] sm:$0xff]
      %v222 = vld [vmem:[%s198 + $0x60] sm:$0xff]
      %v223 = vld [vmem:[%s198 + $0x68] sm:$0xff]
      %v224 = vld [vmem:[%s198 + $0x70] sm:$0xff]
      %v225 = vld [vmem:[%s198 + $0x78] sm:$0xff]
      %v226 = vld [vmem:[%s198 + $0x80] sm:$0xff]
      %v227 = vld [vmem:[%s198 + $0x88] sm:$0xff]
      %v228 = vld [vmem:[%s198 + $0x90] sm:$0xff]
      %v229 = vld [vmem:[%s198 + $0x98] sm:$0xff]
      %v230 = vld [vmem:[%s198 + $0xa0] sm:$0xff]
      %v231 = vld [vmem:[%s198 + $0xa8] sm:$0xff]
      %v232 = vld [vmem:[%s198 + $0xb0] sm:$0xff]
      %v233 = vld [vmem:[%s198 + $0xb8] sm:$0xff]
      %v234 = vld [vmem:[%s198 + $0xc0] sm:$0xff]
      %v235 = vld [vmem:[%s198 + $0xc8] sm:$0xff]
      %v236 = vld [vmem:[%s198 + $0xd0] sm:$0xff]
      %v237 = vld [vmem:[%s198 + $0xd8] sm:$0xff]
      %v238 = vld [vmem:[%s198 + $0xe0] sm:$0xff]
      %v239 = vld [vmem:[%s198 + $0xe8] sm:$0xff]
      %v240 = vld [vmem:[%s198 + $0xf0] sm:$0xff]
      %v241 = vld [vmem:[%s198 + $0xf8] sm:$0xff]
      %v242 = vld [vmem:[%s1] sm:$0x1]
      %v244 = vlaneseq
      %v245 = vshrl.u32 %v244, 7
      %v246 = vsub.s32 0, %v245
      %v247 = vrot.slane %v242, %v246
      %v249 = vmul.f32 %v210, %v247
      %v250 = vmul.f32 %v211, %v247
      %v251 = vmul.f32 %v212, %v247
      %v252 = vmul.f32 %v213, %v247
      %v253 = vmul.f32 %v214, %v247
      %v254 = vmul.f32 %v215, %v247
      %v255 = vmul.f32 %v216, %v247
      %v256 = vmul.f32 %v217, %v247
      %v257 = vmul.f32 %v218, %v247
      %v258 = vmul.f32 %v219, %v247
      %v259 = vmul.f32 %v220, %v247
      %v260 = vmul.f32 %v221, %v247
      %v261 = vmul.f32 %v222, %v247
      %v262 = vmul.f32 %v223, %v247
      %v263 = vmul.f32 %v224, %v247
      %v264 = vmul.f32 %v225, %v247
      %v265 = vmul.f32 %v226, %v247
      %v266 = vmul.f32 %v227, %v247
      %v267 = vmul.f32 %v228, %v247
      %v268 = vmul.f32 %v229, %v247
      %v269 = vmul.f32 %v230, %v247
      %v270 = vmul.f32 %v231, %v247
      %v271 = vmul.f32 %v232, %v247
      %v272 = vmul.f32 %v233, %v247
      %v273 = vmul.f32 %v234, %v247
      %v274 = vmul.f32 %v235, %v247
      %v275 = vmul.f32 %v236, %v247
      %v276 = vmul.f32 %v237, %v247
      %v277 = vmul.f32 %v238, %v247
      %v278 = vmul.f32 %v239, %v247
      %v279 = vmul.f32 %v240, %v247
      %v280 = vmul.f32 %v241, %v247
      %v281 = vld [vmem:[%s2] sm:$0x1]
      %v283 = vlaneseq
      %v284 = vshrl.u32 %v283, 7
      %v285 = vsub.s32 0, %v284
      %v286 = vrot.slane %v281, %v285
      %v288 = vadd.f32 %v249, %v286
      %v289 = vadd.f32 %v250, %v286
      %v290 = vadd.f32 %v251, %v286
      %v291 = vadd.f32 %v252, %v286
      %v292 = vadd.f32 %v253, %v286
      %v293 = vadd.f32 %v254, %v286
      %v294 = vadd.f32 %v255, %v286
      %v295 = vadd.f32 %v256, %v286
      %v296 = vadd.f32 %v257, %v286
      %v297 = vadd.f32 %v258, %v286
      %v298 = vadd.f32 %v259, %v286
      %v299 = vadd.f32 %v260, %v286
      %v300 = vadd.f32 %v261, %v286
      %v301 = vadd.f32 %v262, %v286
      %v302 = vadd.f32 %v263, %v286
      %v303 = vadd.f32 %v264, %v286
      %v304 = vadd.f32 %v265, %v286
      %v305 = vadd.f32 %v266, %v286
      %v306 = vadd.f32 %v267, %v286
      %v307 = vadd.f32 %v268, %v286
      %v308 = vadd.f32 %v269, %v286
      %v309 = vadd.f32 %v270, %v286
      %v310 = vadd.f32 %v271, %v286
      %v311 = vadd.f32 %v272, %v286
      %v312 = vadd.f32 %v273, %v286
      %v313 = vadd.f32 %v274, %v286
      %v314 = vadd.f32 %v275, %v286
      %v315 = vadd.f32 %v276, %v286
      %v316 = vadd.f32 %v277, %v286
      %v317 = vadd.f32 %v278, %v286
      %v318 = vadd.f32 %v279, %v286
      %v319 = vadd.f32 %v280, %v286
      %v320 = vmax.f32 %v288, 0.0
      %v321 = vmax.f32 %v289, 0.0
      %v322 = vmax.f32 %v290, 0.0
      %v323 = vmax.f32 %v291, 0.0
      %v324 = vmax.f32 %v292, 0.0
      %v325 = vmax.f32 %v293, 0.0
      %v326 = vmax.f32 %v294, 0.0
      %v327 = vmax.f32 %v295, 0.0
      %v328 = vmax.f32 %v296, 0.0
      %v329 = vmax.f32 %v297, 0.0
      %v330 = vmax.f32 %v298, 0.0
      %v331 = vmax.f32 %v299, 0.0
      %v332 = vmax.f32 %v300, 0.0
      %v333 = vmax.f32 %v301, 0.0
      %v334 = vmax.f32 %v302, 0.0
      %v335 = vmax.f32 %v303, 0.0
      %v336 = vmax.f32 %v304, 0.0
      %v337 = vmax.f32 %v305, 0.0
      %v338 = vmax.f32 %v306, 0.0
      %v339 = vmax.f32 %v307, 0.0
      %v340 = vmax.f32 %v308, 0.0
      %v341 = vmax.f32 %v309, 0.0
      %v342 = vmax.f32 %v310, 0.0
      %v343 = vmax.f32 %v311, 0.0
      %v344 = vmax.f32 %v312, 0.0
      %v345 = vmax.f32 %v313, 0.0
      %v346 = vmax.f32 %v314, 0.0
      %v347 = vmax.f32 %v315, 0.0
      %v348 = vmax.f32 %v316, 0.0
      %v349 = vmax.f32 %v317, 0.0
      %v350 = vmax.f32 %v318, 0.0
      %v351 = vmax.f32 %v319, 0.0
      %vm352 = vcmask 64512
      %353 = vst.msk [vmem:[%s208] sm:$0xff] %vm352, %v320
      %354 = vst.msk [vmem:[%s208 + $0x8] sm:$0xff] %vm352, %v321
      %355 = vst.msk [vmem:[%s208 + $0x10] sm:$0xff] %vm352, %v322
      %356 = vst.msk [vmem:[%s208 + $0x18] sm:$0xff] %vm352, %v323
      %357 = vst.msk [vmem:[%s208 + $0x20] sm:$0xff] %vm352, %v324
      %358 = vst.msk [vmem:[%s208 + $0x28] sm:$0xff] %vm352, %v325
      %359 = vst.msk [vmem:[%s208 + $0x30] sm:$0xff] %vm352, %v326
      %360 = vst.msk [vmem:[%s208 + $0x38] sm:$0xff] %vm352, %v327
      %361 = vst.msk [vmem:[%s208 + $0x40] sm:$0xff] %vm352, %v328
      %362 = vst.msk [vmem:[%s208 + $0x48] sm:$0xff] %vm352, %v329
      %363 = vst.msk [vmem:[%s208 + $0x50] sm:$0xff] %vm352, %v330
      %364 = vst.msk [vmem:[%s208 + $0x58] sm:$0xff] %vm352, %v331
      %365 = vst.msk [vmem:[%s208 + $0x60] sm:$0xff] %vm352, %v332
      %366 = vst.msk [vmem:[%s208 + $0x68] sm:$0xff] %vm352, %v333
      %367 = vst.msk [vmem:[%s208 + $0x70] sm:$0xff] %vm352, %v334
      %368 = vst.msk [vmem:[%s208 + $0x78] sm:$0xff] %vm352, %v335
      %369 = vst.msk [vmem:[%s208 + $0x80] sm:$0xff] %vm352, %v336
      %370 = vst.msk [vmem:[%s208 + $0x88] sm:$0xff] %vm352, %v337
      %371 = vst.msk [vmem:[%s208 + $0x90] sm:$0xff] %vm352, %v338
      %372 = vst.msk [vmem:[%s208 + $0x98] sm:$0xff] %vm352, %v339
      %373 = vst.msk [vmem:[%s208 + $0xa0] sm:$0xff] %vm352, %v340
      %374 = vst.msk [vmem:[%s208 + $0xa8] sm:$0xff] %vm352, %v341
      %375 = vst.msk [vmem:[%s208 + $0xb0] sm:$0xff] %vm352, %v342
      %376 = vst.msk [vmem:[%s208 + $0xb8] sm:$0xff] %vm352, %v343
      %377 = vst.msk [vmem:[%s208 + $0xc0] sm:$0xff] %vm352, %v344
      %378 = vst.msk [vmem:[%s208 + $0xc8] sm:$0xff] %vm352, %v345
      %379 = vst.msk [vmem:[%s208 + $0xd0] sm:$0xff] %vm352, %v346
      %380 = vst.msk [vmem:[%s208 + $0xd8] sm:$0xff] %vm352, %v347
      %381 = vst.msk [vmem:[%s208 + $0xe0] sm:$0xff] %vm352, %v348
      %382 = vst.msk [vmem:[%s208 + $0xe8] sm:$0xff] %vm352, %v349
      %383 = vst.msk [vmem:[%s208 + $0xf0] sm:$0xff] %vm352, %v350
      %384 = vst.msk [vmem:[%s208 + $0xf8] sm:$0xff] %vm352, %v351
      %s385 = smul.u32 32, %s19
      %p386 = scmp.lt.s32.totalorder %s18, 1
      %s387 = scalar_select %p386, %s18, 1
      %p388 = scmp.lt.s32.totalorder %s385, 31
      %s389 = scalar_select %p388, %s385, 31
      %s390 = smul.addr %s387, 32
      %s391 = sadd.s32 %s389, %s390
      %s392 = smul.addr %s391, 8
      %s393 = scalar_lea.vmem %s3, %s392
      // Predicated region
      $region33: #{aspp_forward.3} parent=31 // pred_check
        %p394 = pneg %p116
      $region34: #{aspp_forward.3} parent=31 // pred_check_branch
        %396 = sbr.rel (%p394) target = $region36
      $region35: #{aspp_forward.3} parent=31 // pred_region
        %s397 = smul.u32 32, %s19
      $region36: #{aspp_forward.3} parent=31 // pred_fallthru
        _
    $region32: #{aspp_forward.3} parent=5 // pred_fallthru
      _
    %p398 = scmp.le.s32.totalorder 2, %s9
    // Predicated region
    $region37: #{aspp_forward.3} parent=5 // pred_check
      %p399 = pneg %p398
    $region38: #{aspp_forward.3} parent=5 // pred_check_branch
      %401 = sbr.rel (%p399) target = $region40
    $region39: #{aspp_forward.3} parent=5 // pred_region
      %s402 = ssub.s32 %s9, 2
      // Predicated region
      $region41: #{aspp_forward.3} parent=39 // pred_check
        %p403 = pneg %p122
      $region42: #{aspp_forward.3} parent=39 // pred_check_branch
        %405 = sbr.rel (%p403) target = $region44
      $region43: #{aspp_forward.3} parent=39 // pred_region
        %s406 = smul.u32 32, %s21
        %p407 = scmp.lt.s32.totalorder %s20, 1
        %s408 = scalar_select %p407, %s20, 1
        %p409 = scmp.lt.s32.totalorder %s406, 31
        %s410 = scalar_select %p409, %s406, 31
        %s411 = smul.addr %s408, 32
        %s412 = sadd.s32 %s410, %s411
        %s413 = smul.addr %s412, 8
        %s414 = scalar_lea.vmem %s3, %s413
      $region44: #{aspp_forward.3} parent=39 // pred_fallthru
        _
    $region40: #{aspp_forward.3} parent=5 // pred_fallthru
      _
  $region6: #{aspp_forward.3} parent=0 // loop_footer
    %s13 = sadd.s32 1, %s9
  $region7: #{aspp_forward.3} parent=0 // loop_footer_branch
    %8 = sbr.rel target = $region3
  $region8: #{aspp_forward.3} parent=0 // loop_exit
    _

// kernel: aspp_forward.2
$region0: #{aspp_forward.2}
  #allocation0 [shape = 'u32[]', space=smem, size = 0x4, offset = 0x4, fixed_abs, tag = 'smem constant byte address 0x4 - core index']
  #allocation1 [shape = 'u32[144,128]{1,0:T(1,128)}', space=vmem, size = 0x12000, scoped, tag = 'internal scratch']
  #allocation2 [shape = 'f32[64,64,8]{2,1,0:T(8,128)}', space=vmem, size = 0x200000, scoped, tag = 'scratch operand']
  %s0 = inlined_call_operand.vmem [shape: f32[2,16,16,8], index: 0, kind: input, shape index: {}]
  %s1 = inlined_call_operand.vmem [shape: f32[216,8], index: 1, kind: input, shape index: {}]
  %s2 = inlined_call_operand.vmem [shape: f32[8,8], index: 2, kind: input, shape index: {}]
  %s3 = inlined_call_operand.vmem [shape: f32[2,256,8], index: 3, kind: output, shape index: {0}]
  %s4 = inlined_call_operand.vmem [shape: f32[2,1,8], index: 4, kind: output, shape index: {1}]
  %s5 = inlined_call_operand.vmem [shape: f32[2,1,8], index: 5, kind: output, shape index: {2}]
  %6 = xla_tuple %s3, %s4, %s5
  %s7 = sld [smem:[#allocation0]]
  $region61: #{aspp_forward.2} parent=0
    _
  %s9 = ssub.s32 1, %s7
  %s10 = scalar_select 0, %s9, %s7
  loop: start=0, step=1, limit=4
  $region2: #{aspp_forward.2} parent=0 // loop_pre_header
    _
  $region3: #{aspp_forward.2} parent=0 // loop_header
    %s12 = sphi 0, %s16
    %p13 = scmp.ge.s32.totalorder %s12, 4
    %s22 = sphi 0, %s24
    %s25 = sphi 0, %s22
    %s26 = sphi 0, %s25
    %s42 = sphi 0, %s26
    %s46 = sphi 0, %s46
    %s48 = sphi 0, %s46
    %s49 = sphi 0, %s48
    %s63 = sphi 0, %s49
    %s67 = sphi 0, %s67
    %s69 = sphi 0, %s67
    %s70 = sphi 0, %s69
    %s84 = sphi 0, %s70
    %s90 = sphi 0, %s92
    %s93 = sphi 0, %s90
    %s94 = sphi 0, %s93
    %s110 = sphi 0, %s94
    %s116 = sphi 0, %s118
    %s119 = sphi 0, %s116
    %s120 = sphi 0, %s119
    %s136 = sphi 0, %s120
    %s142 = sphi 0, %s144
    %s145 = sphi 0, %s142
    %s146 = sphi 0, %s145
    %s162 = sphi 0, %s146
  $region4: #{aspp_forward.2} parent=0 // loop_header_branch
    %15 = sbr.rel (%p13) target = $region8
  $region5: #{aspp_forward.2} parent=0 // loop_body
    %s17 = ssub.s32 %s12, 1
    %s18 = ssub.s32 %s12, 2
    %s19 = sadd.s32 %s12, 1
    %s20 = ssub.s32 %s12, %s19
    %p21 = scmp.eq.s32.totalorder %s20, 0
    %s23 = sadd.s32 %s22, 1
    %s24 = scalar_select %p21, %s22, %s23
    %p27 = pneg %p21
    %p28 = scmp.eq.s32.totalorder %s12, 1
    %p29 = por %p27, %p28
    %p30 = scmp.ne.s32.totalorder %s22, %s25
    %p31 = scmp.eq.s32.totalorder %s12, 0
    %p32 = por %p30, %p31
    %p33 = scmp.ne.s32.totalorder %s22, %s25
    %p34 = scmp.eq.s32.totalorder %s17, 1
    %p35 = por %p33, %p34
    %p36 = scmp.ne.s32.totalorder %s25, %s26
    %p37 = scmp.eq.s32.totalorder %s17, 0
    %p38 = por %p36, %p37
    %p39 = scmp.ne.s32.totalorder %s25, %s26
    %p40 = scmp.eq.s32.totalorder %s18, 1
    %p41 = por %p39, %p40
    %p43 = scmp.ne.s32.totalorder %s26, %s42
    %p44 = scmp.eq.s32.totalorder %s18, 0
    %p45 = por %p43, %p44
    %s47 = sadd.s32 %s46, 1
    %p50 = scmp.eq.s32.totalorder %s12, 1
    %p51 = scmp.ne.s32.totalorder %s46, %s48
    %p52 = scmp.eq.s32.totalorder %s12, 0
    %p53 = por %p51, %p52
    %p54 = scmp.ne.s32.totalorder %s46, %s48
    %p55 = scmp.eq.s32.totalorder %s17, 1
    %p56 = por %p54, %p55
    %p57 = scmp.ne.s32.totalorder %s48, %s49
    %p58 = scmp.eq.s32.totalorder %s17, 0
    %p59 = por %p57, %p58
    %p60 = scmp.ne.s32.totalorder %s48, %s49
    %p61 = scmp.eq.s32.totalorder %s18, 1
    %p62 = por %p60, %p61
    %p64 = scmp.ne.s32.totalorder %s49, %s63
    %p65 = scmp.eq.s32.totalorder %s18, 0
    %p66 = por %p64, %p65
    %s68 = sadd.s32 %s67, 1
    %p71 = scmp.eq.s32.totalorder %s12, 1
    %p72 = scmp.ne.s32.totalorder %s67, %s69
    %p73 = scmp.eq.s32.totalorder %s12, 0
    %p74 = por %p72, %p73
    %p75 = scmp.ne.s32.totalorder %s67, %s69
    %p76 = scmp.eq.s32.totalorder %s17, 1
    %p77 = por %p75, %p76
    %p78 = scmp.ne.s32.totalorder %s69, %s70
    %p79 = scmp.eq.s32.totalorder %s17, 0
    %p80 = por %p78, %p79
    %p81 = scmp.ne.s32.totalorder %s69, %s70
    %p82 = scmp.eq.s32.totalorder %s18, 1
    %p83 = por %p81, %p82
    %p85 = scmp.ne.s32.totalorder %s70, %s84
    %p86 = scmp.eq.s32.totalorder %s18, 0
    %p87 = por %p85, %p86
    %s88 = ssub.s32 %s12, %s19
    %p89 = scmp.eq.s32.totalorder %s88, 0
    %s91 = sadd.s32 %s90, 1
    %s92 = scalar_select %p89, %s90, %s91
    %p95 = pneg %p89
    %p96 = scmp.eq.s32.totalorder %s12, 1
    %p97 = por %p95, %p96
    %p98 = scmp.ne.s32.totalorder %s90, %s93
    %p99 = scmp.eq.s32.totalorder %s12, 0
    %p100 = por %p98, %p99
    %p101 = scmp.ne.s32.totalorder %s90, %s93
    %p102 = scmp.eq.s32.totalorder %s17, 1
    %p103 = por %p101, %p102
    %p104 = scmp.ne.s32.totalorder %s93, %s94
    %p105 = scmp.eq.s32.totalorder %s17, 0
    %p106 = por %p104, %p105
    %p107 = scmp.ne.s32.totalorder %s93, %s94
    %p108 = scmp.eq.s32.totalorder %s18, 1
    %p109 = por %p107, %p108
    %p111 = scmp.ne.s32.totalorder %s94, %s110
    %p112 = scmp.eq.s32.totalorder %s18, 0
    %p113 = por %p111, %p112
    %s114 = ssub.s32 %s12, %s19
    %p115 = scmp.eq.s32.totalorder %s114, 0
    %s117 = sadd.s32 %s116, 1
    %s118 = scalar_select %p115, %s116, %s117
    %p121 = pneg %p115
    %p122 = scmp.eq.s32.totalorder %s12, 1
    %p123 = por %p121, %p122
    %p124 = scmp.ne.s32.totalorder %s116, %s119
    %p125 = scmp.eq.s32.totalorder %s12, 0
    %p126 = por %p124, %p125
    %p127 = scmp.ne.s32.totalorder %s116, %s119
    %p128 = scmp.eq.s32.totalorder %s17, 1
    %p129 = por %p127, %p128
    %p130 = scmp.ne.s32.totalorder %s119, %s120
    %p131 = scmp.eq.s32.totalorder %s17, 0
    %p132 = por %p130, %p131
    %p133 = scmp.ne.s32.totalorder %s119, %s120
    %p134 = scmp.eq.s32.totalorder %s18, 1
    %p135 = por %p133, %p134
    %p137 = scmp.ne.s32.totalorder %s120, %s136
    %p138 = scmp.eq.s32.totalorder %s18, 0
    %p139 = por %p137, %p138
    %s140 = ssub.s32 %s12, %s19
    %p141 = scmp.eq.s32.totalorder %s140, 0
    %s143 = sadd.s32 %s142, 1
    %s144 = scalar_select %p141, %s142, %s143
    %p147 = pneg %p141
    %p148 = scmp.eq.s32.totalorder %s12, 1
    %p149 = por %p147, %p148
    %p150 = scmp.ne.s32.totalorder %s142, %s145
    %p151 = scmp.eq.s32.totalorder %s12, 0
    %p152 = por %p150, %p151
    %p153 = scmp.ne.s32.totalorder %s142, %s145
    %p154 = scmp.eq.s32.totalorder %s17, 1
    %p155 = por %p153, %p154
    %p156 = scmp.ne.s32.totalorder %s145, %s146
    %p157 = scmp.eq.s32.totalorder %s17, 0
    %p158 = por %p156, %p157
    %p159 = scmp.ne.s32.totalorder %s145, %s146
    %p160 = scmp.eq.s32.totalorder %s18, 1
    %p161 = por %p159, %p160
    %p163 = scmp.ne.s32.totalorder %s146, %s162
    %p164 = scmp.eq.s32.totalorder %s18, 0
    %p165 = por %p163, %p164
    %p166 = scmp.le.s32.totalorder 1, %s12
    %p167 = scmp.lt.s32.totalorder %s12, 3
    %p168 = pnand %p166, %p167
    %p169 = pneg %p168
    // Predicated region
    $region9: #{aspp_forward.2} parent=5 // pred_check
      _
    $region10: #{aspp_forward.2} parent=5 // pred_check_branch
      %171 = sbr.rel (%p168) target = $region12
    $region11: #{aspp_forward.2} parent=5 // pred_region
      %s172 = ssub.s32 %s12, 1
      // Predicated region
      $region13: #{aspp_forward.2} parent=11 // pred_check
        %p173 = pneg %p59
      $region14: #{aspp_forward.2} parent=11 // pred_check_branch
        %175 = sbr.rel (%p173) target = $region16
      $region15: #{aspp_forward.2} parent=11 // pred_region
        _
      $region16: #{aspp_forward.2} parent=11 // pred_fallthru
        _
      // Predicated region
      $region17: #{aspp_forward.2} parent=11 // pred_check
        %p176 = pneg %p80
      $region18: #{aspp_forward.2} parent=11 // pred_check_branch
        %178 = sbr.rel (%p176) target = $region20
      $region19: #{aspp_forward.2} parent=11 // pred_region
        _
      $region20: #{aspp_forward.2} parent=11 // pred_fallthru
        _
    $region12: #{aspp_forward.2} parent=5 // pred_fallthru
      _
    %p179 = scmp.lt.s32.totalorder %s12, 2
    // Predicated region
    $region21: #{aspp_forward.2} parent=5 // pred_check
      %p180 = pneg %p179
    $region22: #{aspp_forward.2} parent=5 // pred_check_branch
      %182 = sbr.rel (%p180) target = $region24
    $region23: #{aspp_forward.2} parent=5 // pred_region
      // Predicated region
      $region25: #{aspp_forward.2} parent=23 // pred_check
        %p183 = pneg %p32
      $region26: #{aspp_forward.2} parent=23 // pred_check_branch
        %185 = sbr.rel (%p183) target = $region28
      $region27: #{aspp_forward.2} parent=23 // pred_region
        %p186 = scmp.lt.s32.totalorder %s12, 1
        %s187 = scalar_select %p186, %s12, 1
        %s188 = smul.addr %s187, 32
        %s189 = smul.addr %s188, 8
        %s190 = scalar_lea.vmem %s0, %s189
      $region28: #{aspp_forward.2} parent=23 // pred_fallthru
        _
    $region24: #{aspp_forward.2} parent=5 // pred_fallthru
      _
    %p191 = scmp.le.s32.totalorder 1, %s12
    %p192 = scmp.lt.s32.totalorder %s12, 3
    %p193 = pnand %p191, %p192
    %p194 = pneg %p193
    // Predicated region
    $region29: #{aspp_forward.2} parent=5 // pred_check
      _
    $region30: #{aspp_forward.2} parent=5 // pred_check_branch
      %196 = sbr.rel (%p193) target = $region32
    $region31: #{aspp_forward.2} parent=5 // pred_region
      %s197 = ssub.s32 %s12, 1
      %p198 = scmp.lt.s32.totalorder %s17, 1
      %s199 = scalar_select %p198, %s17, 1
      %s200 = smul.addr %s199, 32
      %s201 = smul.addr %s200, 8
      %s202 = scalar_lea.vmem %s0, %s201
      %p203 = pneg %p38
      %p204 = pneg %p35
      %p205 = pneg %p59
      %p206 = pneg %p56
      %p207 = pneg %p80
      %p208 = pneg %p77
      %p209 = pneg %p106
      %p210 = pneg %p103
      %p211 = scmp.lt.s32.totalorder %s17, 1
      %s212 = scalar_select %p211, %s17, 1
      %s213 = smul.addr %s212, 32
      %s214 = smul.addr %s213, 8
      %s215 = scalar_lea.vmem %s3, %s214
      %p216 = pneg %p132
      %p217 = pneg %p129
      %p218 = scmp.lt.s32.totalorder %s17, 1
      %s219 = scalar_select %p218, %s17, 1
      %s220 = scalar_lea.vmem %s4, %s219
      %p221 = pneg %p158
      %p222 = pneg %p155
      %p223 = scmp.lt.s32.totalorder %s17, 1
      %s224 = scalar_select %p223, %s17, 1
      %s225 = scalar_lea.vmem %s5, %s224
      %p226 = scmp.lt.s32.totalorder %s17, 1
      %s227 = scalar_select %p226, %s17, 1
      %s228 = smul.addr %s227, 32
      %s229 = smul.addr %s228, 8
      %s230 = scalar_lea.vmem %s0, %s229
      %p231 = scmp.lt.s32.totalorder %s17, 1
      %s232 = scalar_select %p231, %s17, 1
      %s233 = smul.addr %s232, 32
      %s234 = smul.addr %s233, 8
      %s235 = scalar_lea.vmem %s3, %s234
      %p236 = scmp.lt.s32.totalorder %s17, 1
      %s237 = scalar_select %p236, %s17, 1
      %s238 = scalar_lea.vmem %s4, %s237
      %p239 = scmp.lt.s32.totalorder %s17, 1
      %s240 = scalar_select %p239, %s17, 1
      %s241 = scalar_lea.vmem %s5, %s240
      %vm242 = vcmask 64512
      %243 = vst.msk [vmem:[#allocation2] sm:$0xff] %vm242, 0.0
      %244 = vst.msk [vmem:[#allocation2 + $0x8] sm:$0xff] %vm242, 0.0
      %245 = vst.msk [vmem:[#allocation2 + $0x10] sm:$0xff] %vm242, 0.0
      %246 = vst.msk [vmem:[#allocation2 + $0x18] sm:$0xff] %vm242, 0.0
      %247 = vst.msk [vmem:[#allocation2 + $0x20] sm:$0xff] %vm242, 0.0
      %248 = vst.msk [vmem:[#allocation2 + $0x28] sm:$0xff] %vm242, 0.0
      %249 = vst.msk [vmem:[#allocation2 + $0x30] sm:$0xff] %vm242, 0.0
      %250 = vst.msk [vmem:[#allocation2 + $0x38] sm:$0xff] %vm242, 0.0
      %251 = vst.msk [vmem:[#allocation2 + $0x40] sm:$0xff] %vm242, 0.0
      %252 = vst.msk [vmem:[#allocation2 + $0x48] sm:$0xff] %vm242, 0.0
      %253 = vst.msk [vmem:[#allocation2 + $0x50] sm:$0xff] %vm242, 0.0
      %254 = vst.msk [vmem:[#allocation2 + $0x58] sm:$0xff] %vm242, 0.0
      %255 = vst.msk [vmem:[#allocation2 + $0x60] sm:$0xff] %vm242, 0.0
      %256 = vst.msk [vmem:[#allocation2 + $0x68] sm:$0xff] %vm242, 0.0
      %257 = vst.msk [vmem:[#allocation2 + $0x70] sm:$0xff] %vm242, 0.0
      %258 = vst.msk [vmem:[#allocation2 + $0x78] sm:$0xff] %vm242, 0.0
      %259 = vst.msk [vmem:[#allocation2 + $0x80] sm:$0xff] %vm242, 0.0
      %260 = vst.msk [vmem:[#allocation2 + $0x88] sm:$0xff] %vm242, 0.0
      %261 = vst.msk [vmem:[#allocation2 + $0x90] sm:$0xff] %vm242, 0.0
      %262 = vst.msk [vmem:[#allocation2 + $0x98] sm:$0xff] %vm242, 0.0
      %263 = vst.msk [vmem:[#allocation2 + $0xa0] sm:$0xff] %vm242, 0.0
      %264 = vst.msk [vmem:[#allocation2 + $0xa8] sm:$0xff] %vm242, 0.0
      %265 = vst.msk [vmem:[#allocation2 + $0xb0] sm:$0xff] %vm242, 0.0
      %266 = vst.msk [vmem:[#allocation2 + $0xb8] sm:$0xff] %vm242, 0.0
      %267 = vst.msk [vmem:[#allocation2 + $0xc0] sm:$0xff] %vm242, 0.0
      %268 = vst.msk [vmem:[#allocation2 + $0xc8] sm:$0xff] %vm242, 0.0
      %269 = vst.msk [vmem:[#allocation2 + $0xd0] sm:$0xff] %vm242, 0.0
      %270 = vst.msk [vmem:[#allocation2 + $0xd8] sm:$0xff] %vm242, 0.0
      %271 = vst.msk [vmem:[#allocation2 + $0xe0] sm:$0xff] %vm242, 0.0
      %272 = vst.msk [vmem:[#allocation2 + $0xe8] sm:$0xff] %vm242, 0.0
      %273 = vst.msk [vmem:[#allocation2 + $0xf0] sm:$0xff] %vm242, 0.0
      %274 = vst.msk [vmem:[#allocation2 + $0xf8] sm:$0xff] %vm242, 0.0
      %275 = vst.msk [vmem:[#allocation2 + $0x100] sm:$0xff] %vm242, 0.0
      %276 = vst.msk [vmem:[#allocation2 + $0x108] sm:$0xff] %vm242, 0.0
      %277 = vst.msk [vmem:[#allocation2 + $0x110] sm:$0xff] %vm242, 0.0
      %278 = vst.msk [vmem:[#allocation2 + $0x118] sm:$0xff] %vm242, 0.0
      %279 = vst.msk [vmem:[#allocation2 + $0x120] sm:$0xff] %vm242, 0.0
      %280 = vst.msk [vmem:[#allocation2 + $0x128] sm:$0xff] %vm242, 0.0
      %281 = vst.msk [vmem:[#allocation2 + $0x130] sm:$0xff] %vm242, 0.0
      %282 = vst.msk [vmem:[#allocation2 + $0x138] sm:$0xff] %vm242, 0.0
      %283 = vst.msk [vmem:[#allocation2 + $0x140] sm:$0xff] %vm242, 0.0
      %284 = vst.msk [vmem:[#allocation2 + $0x148] sm:$0xff] %vm242, 0.0
      %285 = vst.msk [vmem:[#allocation2 + $0x150] sm:$0xff] %vm242, 0.0
      %286 = vst.msk [vmem:[#allocation2 + $0x158] sm:$0xff] %vm242, 0.0
      %287 = vst.msk [vmem:[#allocation2 + $0x160] sm:$0xff] %vm242, 0.0
      %288 = vst.msk [vmem:[#allocation2 + $0x168] sm:$0xff] %vm242, 0.0
      %289 = vst.msk [vmem:[#allocation2 + $0x170] sm:$0xff] %vm242, 0.0
      %290 = vst.msk [vmem:[#allocation2 + $0x178] sm:$0xff] %vm242, 0.0
      %291 = vst.msk [vmem:[#allocation2 + $0x180] sm:$0xff] %vm242, 0.0
      %292 = vst.msk [vmem:[#allocation2 + $0x188] sm:$0xff] %vm242, 0.0
      %293 = vst.msk [vmem:[#allocation2 + $0x190] sm:$0xff] %vm242, 0.0
      %294 = vst.msk [vmem:[#allocation2 + $0x198] sm:$0xff] %vm242, 0.0
      %295 = vst.msk [vmem:[#allocation2 + $0x1a0] sm:$0xff] %vm242, 0.0
      %296 = vst.msk [vmem:[#allocation2 + $0x1a8] sm:$0xff] %vm242, 0.0
      %297 = vst.msk [vmem:[#allocation2 + $0x1b0] sm:$0xff] %vm242, 0.0
      %298 = vst.msk [vmem:[#allocation2 + $0x1b8] sm:$0xff] %vm242, 0.0
      %299 = vst.msk [vmem:[#allocation2 + $0x1c0] sm:$0xff] %vm242, 0.0
      %300 = vst.msk [vmem:[#allocation2 + $0x1c8] sm:$0xff] %vm242, 0.0
      %301 = vst.msk [vmem:[#allocation2 + $0x1d0] sm:$0xff] %vm242, 0.0
      %302 = vst.msk [vmem:[#allocation2 + $0x1d8] sm:$0xff] %vm242, 0.0
      %303 = vst.msk [vmem:[#allocation2 + $0x1e0] sm:$0xff] %vm242, 0.0
      %304 = vst.msk [vmem:[#allocation2 + $0x1e8] sm:$0xff] %vm242, 0.0
      %305 = vst.msk [vmem:[#allocation2 + $0x1f0] sm:$0xff] %vm242, 0.0
      %306 = vst.msk [vmem:[#allocation2 + $0x1f8] sm:$0xff] %vm242, 0.0
      %307 = vst.msk [vmem:[#allocation2 + $0x200] sm:$0xff] %vm242, 0.0
      %308 = vst.msk [vmem:[#allocation2 + $0x208] sm:$0xff] %vm242, 0.0
      %309 = vst.msk [vmem:[#allocation2 + $0x210] sm:$0xff] %vm242, 0.0
      %310 = vst.msk [vmem:[#allocation2 + $0x218] sm:$0xff] %vm242, 0.0
      %311 = vst.msk [vmem:[#allocation2 + $0x220] sm:$0xff] %vm242, 0.0
      %312 = vst.msk [vmem:[#allocation2 + $0x228] sm:$0xff] %vm242, 0.0
      %313 = vst.msk [vmem:[#allocation2 + $0x230] sm:$0xff] %vm242, 0.0
      %314 = vst.msk [vmem:[#allocation2 + $0x238] sm:$0xff] %vm242, 0.0
      %315 = vst.msk [vmem:[#allocation2 + $0x240] sm:$0xff] %vm242, 0.0
      %316 = vst.msk [vmem:[#allocation2 + $0x248] sm:$0xff] %vm242, 0.0
      %317 = vst.msk [vmem:[#allocation2 + $0x250] sm:$0xff] %vm242, 0.0
      %318 = vst.msk [vmem:[#allocation2 + $0x258] sm:$0xff] %vm242, 0.0
      %319 = vst.msk [vmem:[#allocation2 + $0x260] sm:$0xff] %vm242, 0.0
      %320 = vst.msk [vmem:[#allocation2 + $0x268] sm:$0xff] %vm242, 0.0
      %321 = vst.msk [vmem:[#allocation2 + $0x270] sm:$0xff] %vm242, 0.0
      %322 = vst.msk [vmem:[#allocation2 + $0x278] sm:$0xff] %vm242, 0.0
      %323 = vst.msk [vmem:[#allocation2 + $0x280] sm:$0xff] %vm242, 0.0
      %324 = vst.msk [vmem:[#allocation2 + $0x288] sm:$0xff] %vm242, 0.0
      %325 = vst.msk [vmem:[#allocation2 + $0x290] sm:$0xff] %vm242, 0.0
      %326 = vst.msk [vmem:[#allocation2 + $0x298] sm:$0xff] %vm242, 0.0
      %327 = vst.msk [vmem:[#allocation2 + $0x2a0] sm:$0xff] %vm242, 0.0
      %328 = vst.msk [vmem:[#allocation2 + $0x2a8] sm:$0xff] %vm242, 0.0
      %329 = vst.msk [vmem:[#allocation2 + $0x2b0] sm:$0xff] %vm242, 0.0
      %330 = vst.msk [vmem:[#allocation2 + $0x2b8] sm:$0xff] %vm242, 0.0
      %331 = vst.msk [vmem:[#allocation2 + $0x2c0] sm:$0xff] %vm242, 0.0
      %332 = vst.msk [vmem:[#allocation2 + $0x2c8] sm:$0xff] %vm242, 0.0
      %333 = vst.msk [vmem:[#allocation2 + $0x2d0] sm:$0xff] %vm242, 0.0
      %334 = vst.msk [vmem:[#allocation2 + $0x2d8] sm:$0xff] %vm242, 0.0
      %335 = vst.msk [vmem:[#allocation2 + $0x2e0] sm:$0xff] %vm242, 0.0
      %336 = vst.msk [vmem:[#allocation2 + $0x2e8] sm:$0xff] %vm242, 0.0
      %337 = vst.msk [vmem:[#allocation2 + $0x2f0] sm:$0xff] %vm242, 0.0
      %338 = vst.msk [vmem:[#allocation2 + $0x2f8] sm:$0xff] %vm242, 0.0
      %339 = vst.msk [vmem:[#allocation2 + $0x300] sm:$0xff] %vm242, 0.0
      %340 = vst.msk [vmem:[#allocation2 + $0x308] sm:$0xff] %vm242, 0.0
      %341 = vst.msk [vmem:[#allocation2 + $0x310] sm:$0xff] %vm242, 0.0
      %342 = vst.msk [vmem:[#allocation2 + $0x318] sm:$0xff] %vm242, 0.0
      %343 = vst.msk [vmem:[#allocation2 + $0x320] sm:$0xff] %vm242, 0.0
      %344 = vst.msk [vmem:[#allocation2 + $0x328] sm:$0xff] %vm242, 0.0
      %345 = vst.msk [vmem:[#allocation2 + $0x330] sm:$0xff] %vm242, 0.0
      %346 = vst.msk [vmem:[#allocation2 + $0x338] sm:$0xff] %vm242, 0.0
      %347 = vst.msk [vmem:[#allocation2 + $0x340] sm:$0xff] %vm242, 0.0
      %348 = vst.msk [vmem:[#allocation2 + $0x348] sm:$0xff] %vm242, 0.0
      %349 = vst.msk [vmem:[#allocation2 + $0x350] sm:$0xff] %vm242, 0.0
      %350 = vst.msk [vmem:[#allocation2 + $0x358] sm:$0xff] %vm242, 0.0
      %351 = vst.msk [vmem:[#allocation2 + $0x360] sm:$0xff] %vm242, 0.0
      %352 = vst.msk [vmem:[#allocation2 + $0x368] sm:$0xff] %vm242, 0.0
      %353 = vst.msk [vmem:[#allocation2 + $0x370] sm:$0xff] %vm242, 0.0
      %354 = vst.msk [vmem:[#allocation2 + $0x378] sm:$0xff] %vm242, 0.0
      %355 = vst.msk [vmem:[#allocation2 + $0x380] sm:$0xff] %vm242, 0.0
      %356 = vst.msk [vmem:[#allocation2 + $0x388] sm:$0xff] %vm242, 0.0
      %357 = vst.msk [vmem:[#allocation2 + $0x390] sm:$0xff] %vm242, 0.0
      %358 = vst.msk [vmem:[#allocation2 + $0x398] sm:$0xff] %vm242, 0.0
      %359 = vst.msk [vmem:[#allocation2 + $0x3a0] sm:$0xff] %vm242, 0.0
      %360 = vst.msk [vmem:[#allocation2 + $0x3a8] sm:$0xff] %vm242, 0.0
      %361 = vst.msk [vmem:[#allocation2 + $0x3b0] sm:$0xff] %vm242, 0.0
      %362 = vst.msk [vmem:[#allocation2 + $0x3b8] sm:$0xff] %vm242, 0.0
      %363 = vst.msk [vmem:[#allocation2 + $0x3c0] sm:$0xff] %vm242, 0.0
      %364 = vst.msk [vmem:[#allocation2 + $0x3c8] sm:$0xff] %vm242, 0.0
      %365 = vst.msk [vmem:[#allocation2 + $0x3d0] sm:$0xff] %vm242, 0.0
      %366 = vst.msk [vmem:[#allocation2 + $0x3d8] sm:$0xff] %vm242, 0.0
      %367 = vst.msk [vmem:[#allocation2 + $0x3e0] sm:$0xff] %vm242, 0.0
      %368 = vst.msk [vmem:[#allocation2 + $0x3e8] sm:$0xff] %vm242, 0.0
      %369 = vst.msk [vmem:[#allocation2 + $0x3f0] sm:$0xff] %vm242, 0.0
      %370 = vst.msk [vmem:[#allocation2 + $0x3f8] sm:$0xff] %vm242, 0.0
      %371 = vst.msk [vmem:[#allocation2 + $0x400] sm:$0xff] %vm242, 0.0
      %372 = vst.msk [vmem:[#allocation2 + $0x408] sm:$0xff] %vm242, 0.0
      %373 = vst.msk [vmem:[#allocation2 + $0x410] sm:$0xff] %vm242, 0.0
      %374 = vst.msk [vmem:[#allocation2 + $0x418] sm:$0xff] %vm242, 0.0
      %375 = vst.msk [vmem:[#allocation2 + $0x420] sm:$0xff] %vm242, 0.0
      %376 = vst.msk [vmem:[#allocation2 + $0x428] sm:$0xff] %vm242, 0.0
      %377 = vst.msk [vmem:[#allocation2 + $0x430] sm:$0xff] %vm242, 0.0
      %378 = vst.msk [vmem:[#allocation2 + $0x438] sm:$0xff] %vm242, 0.0
      %379 = vst.msk [vmem:[#allocation2 + $0x440] sm:$0xff] %vm242, 0.0
      %380 = vst.msk [vmem:[#allocation2 + $0x448] sm:$0xff] %vm242, 0.0
      %381 = vst.msk [vmem:[#allocation2 + $0x450] sm:$0xff] %vm242, 0.0
      %382 = vst.msk [vmem:[#allocation2 + $0x458] sm:$0xff] %vm242, 0.0
      %383 = vst.msk [vmem:[#allocation2 + $0x460] sm:$0xff] %vm242, 0.0
      %384 = vst.msk [vmem:[#allocation2 + $0x468] sm:$0xff] %vm242, 0.0
      %385 = vst.msk [vmem:[#allocation2 + $0x470] sm:$0xff] %vm242, 0.0
      %386 = vst.msk [vmem:[#allocation2 + $0x478] sm:$0xff] %vm242, 0.0
      %387 = vst.msk [vmem:[#allocation2 + $0x480] sm:$0xff] %vm242, 0.0
      %388 = vst.msk [vmem:[#allocation2 + $0x488] sm:$0xff] %vm242, 0.0
      %389 = vst.msk [vmem:[#allocation2 + $0x490] sm:$0xff] %vm242, 0.0
      %390 = vst.msk [vmem:[#allocation2 + $0x498] sm:$0xff] %vm242, 0.0
      %391 = vst.msk [vmem:[#allocation2 + $0x4a0] sm:$0xff] %vm242, 0.0
      %392 = vst.msk [vmem:[#allocation2 + $0x4a8] sm:$0xff] %vm242, 0.0
      %393 = vst.msk [vmem:[#allocation2 + $0x4b0] sm:$0xff] %vm242, 0.0
      %394 = vst.msk [vmem:[#allocation2 + $0x4b8] sm:$0xff] %vm242, 0.0
      %395 = vst.msk [vmem:[#allocation2 + $0x4c0] sm:$0xff] %vm242, 0.0
      %396 = vst.msk [vmem:[#allocation2 + $0x4c8] sm:$0xff] %vm242, 0.0
      %397 = vst.msk [vmem:[#allocation2 + $0x4d0] sm:$0xff] %vm242, 0.0
      %398 = vst.msk [vmem:[#allocation2 + $0x4d8] sm:$0xff] %vm242, 0.0
      %399 = vst.msk [vmem:[#allocation2 + $0x4e0] sm:$0xff] %vm242, 0.0
      %400 = vst.msk [vmem:[#allocation2 + $0x4e8] sm:$0xff] %vm242, 0.0
      %401 = vst.msk [vmem:[#allocation2 + $0x4f0] sm:$0xff] %vm242, 0.0
      %402 = vst.msk [vmem:[#allocation2 + $0x4f8] sm:$0xff] %vm242, 0.0
      %403 = vst.msk [vmem:[#allocation2 + $0x500] sm:$0xff] %vm242, 0.0
      %404 = vst.msk [vmem:[#allocation2 + $0x508] sm:$0xff] %vm242, 0.0
      %405 = vst.msk [vmem:[#allocation2 + $0x510] sm:$0xff] %vm242, 0.0
      %406 = vst.msk [vmem:[#allocation2 + $0x518] sm:$0xff] %vm242, 0.0
      %407 = vst.msk [vmem:[#allocation2 + $0x520] sm:$0xff] %vm242, 0.0
      %408 = vst.msk [vmem:[#allocation2 + $0x528] sm:$0xff] %vm242, 0.0
      %409 = vst.msk [vmem:[#allocation2 + $0x530] sm:$0xff] %vm242, 0.0
      %410 = vst.msk [vmem:[#allocation2 + $0x538] sm:$0xff] %vm242, 0.0
      %411 = vst.msk [vmem:[#allocation2 + $0x540] sm:$0xff] %vm242, 0.0
      %412 = vst.msk [vmem:[#allocation2 + $0x548] sm:$0xff] %vm242, 0.0
      %413 = vst.msk [vmem:[#allocation2 + $0x550] sm:$0xff] %vm242, 0.0
      %414 = vst.msk [vmem:[#allocation2 + $0x558] sm:$0xff] %vm242, 0.0
      %415 = vst.msk [vmem:[#allocation2 + $0x560] sm:$0xff] %vm242, 0.0
      %416 = vst.msk [vmem:[#allocation2 + $0x568] sm:$0xff] %vm242, 0.0
      %417 = vst.msk [vmem:[#allocation2 + $0x570] sm:$0xff] %vm242, 0.0
      %418 = vst.msk [vmem:[#allocation2 + $0x578] sm:$0xff] %vm242, 0.0
      %419 = vst.msk [vmem:[#allocation2 + $0x580] sm:$0xff] %vm242, 0.0
      %420 = vst.msk [vmem:[#allocation2 + $0x588] sm:$0xff] %vm242, 0.0
      %421 = vst.msk [vmem:[#allocation2 + $0x590] sm:$0xff] %vm242, 0.0
      %422 = vst.msk [vmem:[#allocation2 + $0x598] sm:$0xff] %vm242, 0.0
      %423 = vst.msk [vmem:[#allocation2 + $0x5a0] sm:$0xff] %vm242, 0.0
      %424 = vst.msk [vmem:[#allocation2 + $0x5a8] sm:$0xff] %vm242, 0.0
      %425 = vst.msk [vmem:[#allocation2 + $0x5b0] sm:$0xff] %vm242, 0.0
      %426 = vst.msk [vmem:[#allocation2 + $0x5b8] sm:$0xff] %vm242, 0.0
      %427 = vst.msk [vmem:[#allocation2 + $0x5c0] sm:$0xff] %vm242, 0.0
      %428 = vst.msk [vmem:[#allocation2 + $0x5c8] sm:$0xff] %vm242, 0.0
      %429 = vst.msk [vmem:[#allocation2 + $0x5d0] sm:$0xff] %vm242, 0.0
      %430 = vst.msk [vmem:[#allocation2 + $0x5d8] sm:$0xff] %vm242, 0.0
      %431 = vst.msk [vmem:[#allocation2 + $0x5e0] sm:$0xff] %vm242, 0.0
      %432 = vst.msk [vmem:[#allocation2 + $0x5e8] sm:$0xff] %vm242, 0.0
      %433 = vst.msk [vmem:[#allocation2 + $0x5f0] sm:$0xff] %vm242, 0.0
      %434 = vst.msk [vmem:[#allocation2 + $0x5f8] sm:$0xff] %vm242, 0.0
      %435 = vst.msk [vmem:[#allocation2 + $0x600] sm:$0xff] %vm242, 0.0
      %436 = vst.msk [vmem:[#allocation2 + $0x608] sm:$0xff] %vm242, 0.0
      %437 = vst.msk [vmem:[#allocation2 + $0x610] sm:$0xff] %vm242, 0.0
      %438 = vst.msk [vmem:[#allocation2 + $0x618] sm:$0xff] %vm242, 0.0
      %439 = vst.msk [vmem:[#allocation2 + $0x620] sm:$0xff] %vm242, 0.0
      %440 = vst.msk [vmem:[#allocation2 + $0x628] sm:$0xff] %vm242, 0.0
      %441 = vst.msk [vmem:[#allocation2 + $0x630] sm:$0xff] %vm242, 0.0
      %442 = vst.msk [vmem:[#allocation2 + $0x638] sm:$0xff] %vm242, 0.0
      %443 = vst.msk [vmem:[#allocation2 + $0x640] sm:$0xff] %vm242, 0.0
      %444 = vst.msk [vmem:[#allocation2 + $0x648] sm:$0xff] %vm242, 0.0
      %445 = vst.msk [vmem:[#allocation2 + $0x650] sm:$0xff] %vm242, 0.0
      %446 = vst.msk [vmem:[#allocation2 + $0x658] sm:$0xff] %vm242, 0.0
      %447 = vst.msk [vmem:[#allocation2 + $0x660] sm:$0xff] %vm242, 0.0
      %448 = vst.msk [vmem:[#allocation2 + $0x668] sm:$0xff] %vm242, 0.0
      %449 = vst.msk [vmem:[#allocation2 + $0x670] sm:$0xff] %vm242, 0.0
      %450 = vst.msk [vmem:[#allocation2 + $0x678] sm:$0xff] %vm242, 0.0
      %451 = vst.msk [vmem:[#allocation2 + $0x680] sm:$0xff] %vm242, 0.0
      %452 = vst.msk [vmem:[#allocation2 + $0x688] sm:$0xff] %vm242, 0.0
      %453 = vst.msk [vmem:[#allocation2 + $0x690] sm:$0xff] %vm242, 0.0
      %454 = vst.msk [vmem:[#allocation2 + $0x698] sm:$0xff] %vm242, 0.0
      %455 = vst.msk [vmem:[#allocation2 + $0x6a0] sm:$0xff] %vm242, 0.0
      %456 = vst.msk [vmem:[#allocation2 + $0x6a8] sm:$0xff] %vm242, 0.0
      %457 = vst.msk [vmem:[#allocation2 + $0x6b0] sm:$0xff] %vm242, 0.0
      %458 = vst.msk [vmem:[#allocation2 + $0x6b8] sm:$0xff] %vm242, 0.0
      %459 = vst.msk [vmem:[#allocation2 + $0x6c0] sm:$0xff] %vm242, 0.0
      %460 = vst.msk [vmem:[#allocation2 + $0x6c8] sm:$0xff] %vm242, 0.0
      %461 = vst.msk [vmem:[#allocation2 + $0x6d0] sm:$0xff] %vm242, 0.0
      %462 = vst.msk [vmem:[#allocation2 + $0x6d8] sm:$0xff] %vm242, 0.0
      %463 = vst.msk [vmem:[#allocation2 + $0x6e0] sm:$0xff] %vm242, 0.0
      %464 = vst.msk [vmem:[#allocation2 + $0x6e8] sm:$0xff] %vm242, 0.0
      %465 = vst.msk [vmem:[#allocation2 + $0x6f0] sm:$0xff] %vm242, 0.0
      %466 = vst.msk [vmem:[#allocation2 + $0x6f8] sm:$0xff] %vm242, 0.0
      %467 = vst.msk [vmem:[#allocation2 + $0x700] sm:$0xff] %vm242, 0.0
      %468 = vst.msk [vmem:[#allocation2 + $0x708] sm:$0xff] %vm242, 0.0
      %469 = vst.msk [vmem:[#allocation2 + $0x710] sm:$0xff] %vm242, 0.0
      %470 = vst.msk [vmem:[#allocation2 + $0x718] sm:$0xff] %vm242, 0.0
      %471 = vst.msk [vmem:[#allocation2 + $0x720] sm:$0xff] %vm242, 0.0
      %472 = vst.msk [vmem:[#allocation2 + $0x728] sm:$0xff] %vm242, 0.0
      %473 = vst.msk [vmem:[#allocation2 + $0x730] sm:$0xff] %vm242, 0.0
      %474 = vst.msk [vmem:[#allocation2 + $0x738] sm:$0xff] %vm242, 0.0
      %475 = vst.msk [vmem:[#allocation2 + $0x740] sm:$0xff] %vm242, 0.0
      %476 = vst.msk [vmem:[#allocation2 + $0x748] sm:$0xff] %vm242, 0.0
      %477 = vst.msk [vmem:[#allocation2 + $0x750] sm:$0xff] %vm242, 0.0
      %478 = vst.msk [vmem:[#allocation2 + $0x758] sm:$0xff] %vm242, 0.0
      %479 = vst.msk [vmem:[#allocation2 + $0x760] sm:$0xff] %vm242, 0.0
      %480 = vst.msk [vmem:[#allocation2 + $0x768] sm:$0xff] %vm242, 0.0
      %481 = vst.msk [vmem:[#allocation2 + $0x770] sm:$0xff] %vm242, 0.0
      %482 = vst.msk [vmem:[#allocation2 + $0x778] sm:$0xff] %vm242, 0.0
      %483 = vst.msk [vmem:[#allocation2 + $0x780] sm:$0xff] %vm242, 0.0
      %484 = vst.msk [vmem:[#allocation2 + $0x788] sm:$0xff] %vm242, 0.0
      %485 = vst.msk [vmem:[#allocation2 + $0x790] sm:$0xff] %vm242, 0.0
      %486 = vst.msk [vmem:[#allocation2 + $0x798] sm:$0xff] %vm242, 0.0
      %487 = vst.msk [vmem:[#allocation2 + $0x7a0] sm:$0xff] %vm242, 0.0
      %488 = vst.msk [vmem:[#allocation2 + $0x7a8] sm:$0xff] %vm242, 0.0
      %489 = vst.msk [vmem:[#allocation2 + $0x7b0] sm:$0xff] %vm242, 0.0
      %490 = vst.msk [vmem:[#allocation2 + $0x7b8] sm:$0xff] %vm242, 0.0
      %491 = vst.msk [vmem:[#allocation2 + $0x7c0] sm:$0xff] %vm242, 0.0
      %492 = vst.msk [vmem:[#allocation2 + $0x7c8] sm:$0xff] %vm242, 0.0
      %493 = vst.msk [vmem:[#allocation2 + $0x7d0] sm:$0xff] %vm242, 0.0
      %494 = vst.msk [vmem:[#allocation2 + $0x7d8] sm:$0xff] %vm242, 0.0
      %495 = vst.msk [vmem:[#allocation2 + $0x7e0] sm:$0xff] %vm242, 0.0
      %496 = vst.msk [vmem:[#allocation2 + $0x7e8] sm:$0xff] %vm242, 0.0
      %497 = vst.msk [vmem:[#allocation2 + $0x7f0] sm:$0xff] %vm242, 0.0
      %498 = vst.msk [vmem:[#allocation2 + $0x7f8] sm:$0xff] %vm242, 0.0
      %499 = vst.msk [vmem:[#allocation2 + $0x800] sm:$0xff] %vm242, 0.0
      %500 = vst.msk [vmem:[#allocation2 + $0x808] sm:$0xff] %vm242, 0.0
      %501 = vst.msk [vmem:[#allocation2 + $0x810] sm:$0xff] %vm242, 0.0
      %502 = vst.msk [vmem:[#allocation2 + $0x818] sm:$0xff] %vm242, 0.0
      %503 = vst.msk [vmem:[#allocation2 + $0x820] sm:$0xff] %vm242, 0.0
      %504 = vst.msk [vmem:[#allocation2 + $0x828] sm:$0xff] %vm242, 0.0
      %505 = vst.msk [vmem:[#allocation2 + $0x830] sm:$0xff] %vm242, 0.0
      %506 = vst.msk [vmem:[#allocation2 + $0x838] sm:$0xff] %vm242, 0.0
      %507 = vst.msk [vmem:[#allocation2 + $0x840] sm:$0xff] %vm242, 0.0
      %508 = vst.msk [vmem:[#allocation2 + $0x848] sm:$0xff] %vm242, 0.0
      %509 = vst.msk [vmem:[#allocation2 + $0x850] sm:$0xff] %vm242, 0.0
      %510 = vst.msk [vmem:[#allocation2 + $0x858] sm:$0xff] %vm242, 0.0
      %511 = vst.msk [vmem:[#allocation2 + $0x860] sm:$0xff] %vm242, 0.0
      %512 = vst.msk [vmem:[#allocation2 + $0x868] sm:$0xff] %vm242, 0.0
      %513 = vst.msk [vmem:[#allocation2 + $0x870] sm:$0xff] %vm242, 0.0
      %514 = vst.msk [vmem:[#allocation2 + $0x878] sm:$0xff] %vm242, 0.0
      %515 = vst.msk [vmem:[#allocation2 + $0x880] sm:$0xff] %vm242, 0.0
      %516 = vst.msk [vmem:[#allocation2 + $0x888] sm:$0xff] %vm242, 0.0
      %517 = vst.msk [vmem:[#allocation2 + $0x890] sm:$0xff] %vm242, 0.0
      %518 = vst.msk [vmem:[#allocation2 + $0x898] sm:$0xff] %vm242, 0.0
      %519 = vst.msk [vmem:[#allocation2 + $0x8a0] sm:$0xff] %vm242, 0.0
      %520 = vst.msk [vmem:[#allocation2 + $0x8a8] sm:$0xff] %vm242, 0.0
      %521 = vst.msk [vmem:[#allocation2 + $0x8b0] sm:$0xff] %vm242, 0.0
      %522 = vst.msk [vmem:[#allocation2 + $0x8b8] sm:$0xff] %vm242, 0.0
      %523 = vst.msk [vmem:[#allocation2 + $0x8c0] sm:$0xff] %vm242, 0.0
      %524 = vst.msk [vmem:[#allocation2 + $0x8c8] sm:$0xff] %vm242, 0.0
      %525 = vst.msk [vmem:[#allocation2 + $0x8d0] sm:$0xff] %vm242, 0.0
      %526 = vst.msk [vmem:[#allocation2 + $0x8d8] sm:$0xff] %vm242, 0.0
      %527 = vst.msk [vmem:[#allocation2 + $0x8e0] sm:$0xff] %vm242, 0.0
      %528 = vst.msk [vmem:[#allocation2 + $0x8e8] sm:$0xff] %vm242, 0.0
      %529 = vst.msk [vmem:[#allocation2 + $0x8f0] sm:$0xff] %vm242, 0.0
      %530 = vst.msk [vmem:[#allocation2 + $0x8f8] sm:$0xff] %vm242, 0.0
      %531 = vst.msk [vmem:[#allocation2 + $0x900] sm:$0xff] %vm242, 0.0
      %532 = vst.msk [vmem:[#allocation2 + $0x908] sm:$0xff] %vm242, 0.0
      %533 = vst.msk [vmem:[#allocation2 + $0x910] sm:$0xff] %vm242, 0.0
      %534 = vst.msk [vmem:[#allocation2 + $0x918] sm:$0xff] %vm242, 0.0
      %535 = vst.msk [vmem:[#allocation2 + $0x920] sm:$0xff] %vm242, 0.0
      %536 = vst.msk [vmem:[#allocation2 + $0x928] sm:$0xff] %vm242, 0.0
      %537 = vst.msk [vmem:[#allocation2 + $0x930] sm:$0xff] %vm242, 0.0
      %538 = vst.msk [vmem:[#allocation2 + $0x938] sm:$0xff] %vm242, 0.0
      %539 = vst.msk [vmem:[#allocation2 + $0x940] sm:$0xff] %vm242, 0.0
      %540 = vst.msk [vmem:[#allocation2 + $0x948] sm:$0xff] %vm242, 0.0
      %541 = vst.msk [vmem:[#allocation2 + $0x950] sm:$0xff] %vm242, 0.0
      %542 = vst.msk [vmem:[#allocation2 + $0x958] sm:$0xff] %vm242, 0.0
      %543 = vst.msk [vmem:[#allocation2 + $0x960] sm:$0xff] %vm242, 0.0
      %544 = vst.msk [vmem:[#allocation2 + $0x968] sm:$0xff] %vm242, 0.0
      %545 = vst.msk [vmem:[#allocation2 + $0x970] sm:$0xff] %vm242, 0.0
      %546 = vst.msk [vmem:[#allocation2 + $0x978] sm:$0xff] %vm242, 0.0
      %547 = vst.msk [vmem:[#allocation2 + $0x980] sm:$0xff] %vm242, 0.0
      %548 = vst.msk [vmem:[#allocation2 + $0x988] sm:$0xff] %vm242, 0.0
      %549 = vst.msk [vmem:[#allocation2 + $0x990] sm:$0xff] %vm242, 0.0
      %550 = vst.msk [vmem:[#allocation2 + $0x998] sm:$0xff] %vm242, 0.0
      %551 = vst.msk [vmem:[#allocation2 + $0x9a0] sm:$0xff] %vm242, 0.0
      %552 = vst.msk [vmem:[#allocation2 + $0x9a8] sm:$0xff] %vm242, 0.0
      %553 = vst.msk [vmem:[#allocation2 + $0x9b0] sm:$0xff] %vm242, 0.0
      %554 = vst.msk [vmem:[#allocation2 + $0x9b8] sm:$0xff] %vm242, 0.0
      %555 = vst.msk [vmem:[#allocation2 + $0x9c0] sm:$0xff] %vm242, 0.0
      %556 = vst.msk [vmem:[#allocation2 + $0x9c8] sm:$0xff] %vm242, 0.0
      %557 = vst.msk [vmem:[#allocation2 + $0x9d0] sm:$0xff] %vm242, 0.0
      %558 = vst.msk [vmem:[#allocation2 + $0x9d8] sm:$0xff] %vm242, 0.0
      %559 = vst.msk [vmem:[#allocation2 + $0x9e0] sm:$0xff] %vm242, 0.0
      %560 = vst.msk [vmem:[#allocation2 + $0x9e8] sm:$0xff] %vm242, 0.0
      %561 = vst.msk [vmem:[#allocation2 + $0x9f0] sm:$0xff] %vm242, 0.0
      %562 = vst.msk [vmem:[#allocation2 + $0x9f8] sm:$0xff] %vm242, 0.0
      %563 = vst.msk [vmem:[#allocation2 + $0xa00] sm:$0xff] %vm242, 0.0
      %564 = vst.msk [vmem:[#allocation2 + $0xa08] sm:$0xff] %vm242, 0.0
      %565 = vst.msk [vmem:[#allocation2 + $0xa10] sm:$0xff] %vm242, 0.0
      %566 = vst.msk [vmem:[#allocation2 + $0xa18] sm:$0xff] %vm242, 0.0
      %567 = vst.msk [vmem:[#allocation2 + $0xa20] sm:$0xff] %vm242, 0.0
      %568 = vst.msk [vmem:[#allocation2 + $0xa28] sm:$0xff] %vm242, 0.0
      %569 = vst.msk [vmem:[#allocation2 + $0xa30] sm:$0xff] %vm242, 0.0
      %570 = vst.msk [vmem:[#allocation2 + $0xa38] sm:$0xff] %vm242, 0.0
      %571 = vst.msk [vmem:[#allocation2 + $0xa40] sm:$0xff] %vm242, 0.0
      %572 = vst.msk [vmem:[#allocation2 + $0xa48] sm:$0xff] %vm242, 0.0
      %573 = vst.msk [vmem:[#allocation2 + $0xa50] sm:$0xff] %vm242, 0.0
      %574 = vst.msk [vmem:[#allocation2 + $0xa58] sm:$0xff] %vm242, 0.0
      %575 = vst.msk [vmem:[#allocation2 + $0xa60] sm:$0xff] %vm242, 0.0
      %576 = vst.msk [vmem:[#allocation2 + $0xa68] sm:$0xff] %vm242, 0.0
      %577 = vst.msk [vmem:[#allocation2 + $0xa70] sm:$0xff] %vm242, 0.0
      %578 = vst.msk [vmem:[#allocation2 + $0xa78] sm:$0xff] %vm242, 0.0
      %579 = vst.msk [vmem:[#allocation2 + $0xa80] sm:$0xff] %vm242, 0.0
      %580 = vst.msk [vmem:[#allocation2 + $0xa88] sm:$0xff] %vm242, 0.0
      %581 = vst.msk [vmem:[#allocation2 + $0xa90] sm:$0xff] %vm242, 0.0
      %582 = vst.msk [vmem:[#allocation2 + $0xa98] sm:$0xff] %vm242, 0.0
      %583 = vst.msk [vmem:[#allocation2 + $0xaa0] sm:$0xff] %vm242, 0.0
      %584 = vst.msk [vmem:[#allocation2 + $0xaa8] sm:$0xff] %vm242, 0.0
      %585 = vst.msk [vmem:[#allocation2 + $0xab0] sm:$0xff] %vm242, 0.0
      %586 = vst.msk [vmem:[#allocation2 + $0xab8] sm:$0xff] %vm242, 0.0
      %587 = vst.msk [vmem:[#allocation2 + $0xac0] sm:$0xff] %vm242, 0.0
      %588 = vst.msk [vmem:[#allocation2 + $0xac8] sm:$0xff] %vm242, 0.0
      %589 = vst.msk [vmem:[#allocation2 + $0xad0] sm:$0xff] %vm242, 0.0
      %590 = vst.msk [vmem:[#allocation2 + $0xad8] sm:$0xff] %vm242, 0.0
      %591 = vst.msk [vmem:[#allocation2 + $0xae0] sm:$0xff] %vm242, 0.0
      %592 = vst.msk [vmem:[#allocation2 + $0xae8] sm:$0xff] %vm242, 0.0
      %593 = vst.msk [vmem:[#allocation2 + $0xaf0] sm:$0xff] %vm242, 0.0
      %594 = vst.msk [vmem:[#allocation2 + $0xaf8] sm:$0xff] %vm242, 0.0
      %595 = vst.msk [vmem:[#allocation2 + $0xb00] sm:$0xff] %vm242, 0.0
      %596 = vst.msk [vmem:[#allocation2 + $0xb08] sm:$0xff] %vm242, 0.0
      %597 = vst.msk [vmem:[#allocation2 + $0xb10] sm:$0xff] %vm242, 0.0
      %598 = vst.msk [vmem:[#allocation2 + $0xb18] sm:$0xff] %vm242, 0.0
      %599 = vst.msk [vmem:[#allocation2 + $0xb20] sm:$0xff] %vm242, 0.0
      %600 = vst.msk [vmem:[#allocation2 + $0xb28] sm:$0xff] %vm242, 0.0
      %601 = vst.msk [vmem:[#allocation2 + $0xb30] sm:$0xff] %vm242, 0.0
      %602 = vst.msk [vmem:[#allocation2 + $0xb38] sm:$0xff] %vm242, 0.0
      %603 = vst.msk [vmem:[#allocation2 + $0xb40] sm:$0xff] %vm242, 0.0
      %604 = vst.msk [vmem:[#allocation2 + $0xb48] sm:$0xff] %vm242, 0.0
      %605 = vst.msk [vmem:[#allocation2 + $0xb50] sm:$0xff] %vm242, 0.0
      %606 = vst.msk [vmem:[#allocation2 + $0xb58] sm:$0xff] %vm242, 0.0
      %607 = vst.msk [vmem:[#allocation2 + $0xb60] sm:$0xff] %vm242, 0.0
      %608 = vst.msk [vmem:[#allocation2 + $0xb68] sm:$0xff] %vm242, 0.0
      %609 = vst.msk [vmem:[#allocation2 + $0xb70] sm:$0xff] %vm242, 0.0
      %610 = vst.msk [vmem:[#allocation2 + $0xb78] sm:$0xff] %vm242, 0.0
      %611 = vst.msk [vmem:[#allocation2 + $0xb80] sm:$0xff] %vm242, 0.0
      %612 = vst.msk [vmem:[#allocation2 + $0xb88] sm:$0xff] %vm242, 0.0
      %613 = vst.msk [vmem:[#allocation2 + $0xb90] sm:$0xff] %vm242, 0.0
      %614 = vst.msk [vmem:[#allocation2 + $0xb98] sm:$0xff] %vm242, 0.0
      %615 = vst.msk [vmem:[#allocation2 + $0xba0] sm:$0xff] %vm242, 0.0
      %616 = vst.msk [vmem:[#allocation2 + $0xba8] sm:$0xff] %vm242, 0.0
      %617 = vst.msk [vmem:[#allocation2 + $0xbb0] sm:$0xff] %vm242, 0.0
      %618 = vst.msk [vmem:[#allocation2 + $0xbb8] sm:$0xff] %vm242, 0.0
      %619 = vst.msk [vmem:[#allocation2 + $0xbc0] sm:$0xff] %vm242, 0.0
      %620 = vst.msk [vmem:[#allocation2 + $0xbc8] sm:$0xff] %vm242, 0.0
      %621 = vst.msk [vmem:[#allocation2 + $0xbd0] sm:$0xff] %vm242, 0.0
      %622 = vst.msk [vmem:[#allocation2 + $0xbd8] sm:$0xff] %vm242, 0.0
      %623 = vst.msk [vmem:[#allocation2 + $0xbe0] sm:$0xff] %vm242, 0.0
      %624 = vst.msk [vmem:[#allocation2 + $0xbe8] sm:$0xff] %vm242, 0.0
      %625 = vst.msk [vmem:[#allocation2 + $0xbf0] sm:$0xff] %vm242, 0.0
      %626 = vst.msk [vmem:[#allocation2 + $0xbf8] sm:$0xff] %vm242, 0.0
      %627 = vst.msk [vmem:[#allocation2 + $0xc00] sm:$0xff] %vm242, 0.0
      %628 = vst.msk [vmem:[#allocation2 + $0xc08] sm:$0xff] %vm242, 0.0
      %629 = vst.msk [vmem:[#allocation2 + $0xc10] sm:$0xff] %vm242, 0.0
      %630 = vst.msk [vmem:[#allocation2 + $0xc18] sm:$0xff] %vm242, 0.0
      %631 = vst.msk [vmem:[#allocation2 + $0xc20] sm:$0xff] %vm242, 0.0
      %632 = vst.msk [vmem:[#allocation2 + $0xc28] sm:$0xff] %vm242, 0.0
      %633 = vst.msk [vmem:[#allocation2 + $0xc30] sm:$0xff] %vm242, 0.0
      %634 = vst.msk [vmem:[#allocation2 + $0xc38] sm:$0xff] %vm242, 0.0
      %635 = vst.msk [vmem:[#allocation2 + $0xc40] sm:$0xff] %vm242, 0.0
      %636 = vst.msk [vmem:[#allocation2 + $0xc48] sm:$0xff] %vm242, 0.0
      %637 = vst.msk [vmem:[#allocation2 + $0xc50] sm:$0xff] %vm242, 0.0
      %638 = vst.msk [vmem:[#allocation2 + $0xc58] sm:$0xff] %vm242, 0.0
      %639 = vst.msk [vmem:[#allocation2 + $0xc60] sm:$0xff] %vm242, 0.0
      %640 = vst.msk [vmem:[#allocation2 + $0xc68] sm:$0xff] %vm242, 0.0
      %641 = vst.msk [vmem:[#allocation2 + $0xc70] sm:$0xff] %vm242, 0.0
      %642 = vst.msk [vmem:[#allocation2 + $0xc78] sm:$0xff] %vm242, 0.0
      %643 = vst.msk [vmem:[#allocation2 + $0xc80] sm:$0xff] %vm242, 0.0
      %644 = vst.msk [vmem:[#allocation2 + $0xc88] sm:$0xff] %vm242, 0.0
      %645 = vst.msk [vmem:[#allocation2 + $0xc90] sm:$0xff] %vm242, 0.0
      %646 = vst.msk [vmem:[#allocation2 + $0xc98] sm:$0xff] %vm242, 0.0
      %647 = vst.msk [vmem:[#allocation2 + $0xca0] sm:$0xff] %vm242, 0.0
      %648 = vst.msk [vmem:[#allocation2 + $0xca8] sm:$0xff] %vm242, 0.0
      %649 = vst.msk [vmem:[#allocation2 + $0xcb0] sm:$0xff] %vm242, 0.0
      %650 = vst.msk [vmem:[#allocation2 + $0xcb8] sm:$0xff] %vm242, 0.0
      %651 = vst.msk [vmem:[#allocation2 + $0xcc0] sm:$0xff] %vm242, 0.0
      %652 = vst.msk [vmem:[#allocation2 + $0xcc8] sm:$0xff] %vm242, 0.0
      %653 = vst.msk [vmem:[#allocation2 + $0xcd0] sm:$0xff] %vm242, 0.0
      %654 = vst.msk [vmem:[#allocation2 + $0xcd8] sm:$0xff] %vm242, 0.0
      %655 = vst.msk [vmem:[#allocation2 + $0xce0] sm:$0xff] %vm242, 0.0
      %656 = vst.msk [vmem:[#allocation2 + $0xce8] sm:$0xff] %vm242, 0.0
      %657 = vst.msk [vmem:[#allocation2 + $0xcf0] sm:$0xff] %vm242, 0.0
      %658 = vst.msk [vmem:[#allocation2 + $0xcf8] sm:$0xff] %vm242, 0.0
      %659 = vst.msk [vmem:[#allocation2 + $0xd00] sm:$0xff] %vm242, 0.0
      %660 = vst.msk [vmem:[#allocation2 + $0xd08] sm:$0xff] %vm242, 0.0
      %661 = vst.msk [vmem:[#allocation2 + $0xd10] sm:$0xff] %vm242, 0.0
      %662 = vst.msk [vmem:[#allocation2 + $0xd18] sm:$0xff] %vm242, 0.0
      %663 = vst.msk [vmem:[#allocation2 + $0xd20] sm:$0xff] %vm242, 0.0
      %664 = vst.msk [vmem:[#allocation2 + $0xd28] sm:$0xff] %vm242, 0.0
      %665 = vst.msk [vmem:[#allocation2 + $0xd30] sm:$0xff] %vm242, 0.0
      %666 = vst.msk [vmem:[#allocation2 + $0xd38] sm:$0xff] %vm242, 0.0
      %667 = vst.msk [vmem:[#allocation2 + $0xd40] sm:$0xff] %vm242, 0.0
      %668 = vst.msk [vmem:[#allocation2 + $0xd48] sm:$0xff] %vm242, 0.0
      %669 = vst.msk [vmem:[#allocation2 + $0xd50] sm:$0xff] %vm242, 0.0
      %670 = vst.msk [vmem:[#allocation2 + $0xd58] sm:$0xff] %vm242, 0.0
      %671 = vst.msk [vmem:[#allocation2 + $0xd60] sm:$0xff] %vm242, 0.0
      %672 = vst.msk [vmem:[#allocation2 + $0xd68] sm:$0xff] %vm242, 0.0
      %673 = vst.msk [vmem:[#allocation2 + $0xd70] sm:$0xff] %vm242, 0.0
      %674 = vst.msk [vmem:[#allocation2 + $0xd78] sm:$0xff] %vm242, 0.0
      %675 = vst.msk [vmem:[#allocation2 + $0xd80] sm:$0xff] %vm242, 0.0
      %676 = vst.msk [vmem:[#allocation2 + $0xd88] sm:$0xff] %vm242, 0.0
      %677 = vst.msk [vmem:[#allocation2 + $0xd90] sm:$0xff] %vm242, 0.0
      %678 = vst.msk [vmem:[#allocation2 + $0xd98] sm:$0xff] %vm242, 0.0
      %679 = vst.msk [vmem:[#allocation2 + $0xda0] sm:$0xff] %vm242, 0.0
      %680 = vst.msk [vmem:[#allocation2 + $0xda8] sm:$0xff] %vm242, 0.0
      %681 = vst.msk [vmem:[#allocation2 + $0xdb0] sm:$0xff] %vm242, 0.0
      %682 = vst.msk [vmem:[#allocation2 + $0xdb8] sm:$0xff] %vm242, 0.0
      %683 = vst.msk [vmem:[#allocation2 + $0xdc0] sm:$0xff] %vm242, 0.0
      %684 = vst.msk [vmem:[#allocation2 + $0xdc8] sm:$0xff] %vm242, 0.0
      %685 = vst.msk [vmem:[#allocation2 + $0xdd0] sm:$0xff] %vm242, 0.0
      %686 = vst.msk [vmem:[#allocation2 + $0xdd8] sm:$0xff] %vm242, 0.0
      %687 = vst.msk [vmem:[#allocation2 + $0xde0] sm:$0xff] %vm242, 0.0
      %688 = vst.msk [vmem:[#allocation2 + $0xde8] sm:$0xff] %vm242, 0.0
      %689 = vst.msk [vmem:[#allocation2 + $0xdf0] sm:$0xff] %vm242, 0.0
      %690 = vst.msk [vmem:[#allocation2 + $0xdf8] sm:$0xff] %vm242, 0.0
      %691 = vst.msk [vmem:[#allocation2 + $0xe00] sm:$0xff] %vm242, 0.0
      %692 = vst.msk [vmem:[#allocation2 + $0xe08] sm:$0xff] %vm242, 0.0
      %693 = vst.msk [vmem:[#allocation2 + $0xe10] sm:$0xff] %vm242, 0.0
      %694 = vst.msk [vmem:[#allocation2 + $0xe18] sm:$0xff] %vm242, 0.0
      %695 = vst.msk [vmem:[#allocation2 + $0xe20] sm:$0xff] %vm242, 0.0
      %696 = vst.msk [vmem:[#allocation2 + $0xe28] sm:$0xff] %vm242, 0.0
      %697 = vst.msk [vmem:[#allocation2 + $0xe30] sm:$0xff] %vm242, 0.0
      %698 = vst.msk [vmem:[#allocation2 + $0xe38] sm:$0xff] %vm242, 0.0
      %699 = vst.msk [vmem:[#allocation2 + $0xe40] sm:$0xff] %vm242, 0.0
      %700 = vst.msk [vmem:[#allocation2 + $0xe48] sm:$0xff] %vm242, 0.0
      %701 = vst.msk [vmem:[#allocation2 + $0xe50] sm:$0xff] %vm242, 0.0
      %702 = vst.msk [vmem:[#allocation2 + $0xe58] sm:$0xff] %vm242, 0.0
      %703 = vst.msk [vmem:[#allocation2 + $0xe60] sm:$0xff] %vm242, 0.0
      %704 = vst.msk [vmem:[#allocation2 + $0xe68] sm:$0xff] %vm242, 0.0
      %705 = vst.msk [vmem:[#allocation2 + $0xe70] sm:$0xff] %vm242, 0.0
      %706 = vst.msk [vmem:[#allocation2 + $0xe78] sm:$0xff] %vm242, 0.0
      %707 = vst.msk [vmem:[#allocation2 + $0xe80] sm:$0xff] %vm242, 0.0
      %708 = vst.msk [vmem:[#allocation2 + $0xe88] sm:$0xff] %vm242, 0.0
      %709 = vst.msk [vmem:[#allocation2 + $0xe90] sm:$0xff] %vm242, 0.0
      %710 = vst.msk [vmem:[#allocation2 + $0xe98] sm:$0xff] %vm242, 0.0
      %711 = vst.msk [vmem:[#allocation2 + $0xea0] sm:$0xff] %vm242, 0.0
      %712 = vst.msk [vmem:[#allocation2 + $0xea8] sm:$0xff] %vm242, 0.0
      %713 = vst.msk [vmem:[#allocation2 + $0xeb0] sm:$0xff] %vm242, 0.0
      %714 = vst.msk [vmem:[#allocation2 + $0xeb8] sm:$0xff] %vm242, 0.0
      %715 = vst.msk [vmem:[#allocation2 + $0xec0] sm:$0xff] %vm242, 0.0
      %716 = vst.msk [vmem:[#allocation2 + $0xec8] sm:$0xff] %vm242, 0.0
      %717 = vst.msk [vmem:[#allocation2 + $0xed0] sm:$0xff] %vm242, 0.0
      %718 = vst.msk [vmem:[#allocation2 + $0xed8] sm:$0xff] %vm242, 0.0
      %719 = vst.msk [vmem:[#allocation2 + $0xee0] sm:$0xff] %vm242, 0.0
      %720 = vst.msk [vmem:[#allocation2 + $0xee8] sm:$0xff] %vm242, 0.0
      %721 = vst.msk [vmem:[#allocation2 + $0xef0] sm:$0xff] %vm242, 0.0
      %722 = vst.msk [vmem:[#allocation2 + $0xef8] sm:$0xff] %vm242, 0.0
      %723 = vst.msk [vmem:[#allocation2 + $0xf00] sm:$0xff] %vm242, 0.0
      %724 = vst.msk [vmem:[#allocation2 + $0xf08] sm:$0xff] %vm242, 0.0
      %725 = vst.msk [vmem:[#allocation2 + $0xf10] sm:$0xff] %vm242, 0.0
      %726 = vst.msk [vmem:[#allocation2 + $0xf18] sm:$0xff] %vm242, 0.0
      %727 = vst.msk [vmem:[#allocation2 + $0xf20] sm:$0xff] %vm242, 0.0
      %728 = vst.msk [vmem:[#allocation2 + $0xf28] sm:$0xff] %vm242, 0.0
      %729 = vst.msk [vmem:[#allocation2 + $0xf30] sm:$0xff] %vm242, 0.0
      %730 = vst.msk [vmem:[#allocation2 + $0xf38] sm:$0xff] %vm242, 0.0
      %731 = vst.msk [vmem:[#allocation2 + $0xf40] sm:$0xff] %vm242, 0.0
      %732 = vst.msk [vmem:[#allocation2 + $0xf48] sm:$0xff] %vm242, 0.0
      %733 = vst.msk [vmem:[#allocation2 + $0xf50] sm:$0xff] %vm242, 0.0
      %734 = vst.msk [vmem:[#allocation2 + $0xf58] sm:$0xff] %vm242, 0.0
      %735 = vst.msk [vmem:[#allocation2 + $0xf60] sm:$0xff] %vm242, 0.0
      %736 = vst.msk [vmem:[#allocation2 + $0xf68] sm:$0xff] %vm242, 0.0
      %737 = vst.msk [vmem:[#allocation2 + $0xf70] sm:$0xff] %vm242, 0.0
      %738 = vst.msk [vmem:[#allocation2 + $0xf78] sm:$0xff] %vm242, 0.0
      %739 = vst.msk [vmem:[#allocation2 + $0xf80] sm:$0xff] %vm242, 0.0
      %740 = vst.msk [vmem:[#allocation2 + $0xf88] sm:$0xff] %vm242, 0.0
      %741 = vst.msk [vmem:[#allocation2 + $0xf90] sm:$0xff] %vm242, 0.0
      %742 = vst.msk [vmem:[#allocation2 + $0xf98] sm:$0xff] %vm242, 0.0
      %743 = vst.msk [vmem:[#allocation2 + $0xfa0] sm:$0xff] %vm242, 0.0
      %744 = vst.msk [vmem:[#allocation2 + $0xfa8] sm:$0xff] %vm242, 0.0
      %745 = vst.msk [vmem:[#allocation2 + $0xfb0] sm:$0xff] %vm242, 0.0
      %746 = vst.msk [vmem:[#allocation2 + $0xfb8] sm:$0xff] %vm242, 0.0
      %747 = vst.msk [vmem:[#allocation2 + $0xfc0] sm:$0xff] %vm242, 0.0
      %748 = vst.msk [vmem:[#allocation2 + $0xfc8] sm:$0xff] %vm242, 0.0
      %749 = vst.msk [vmem:[#allocation2 + $0xfd0] sm:$0xff] %vm242, 0.0
      %750 = vst.msk [vmem:[#allocation2 + $0xfd8] sm:$0xff] %vm242, 0.0
      %751 = vst.msk [vmem:[#allocation2 + $0xfe0] sm:$0xff] %vm242, 0.0
      %752 = vst.msk [vmem:[#allocation2 + $0xfe8] sm:$0xff] %vm242, 0.0
      %753 = vst.msk [vmem:[#allocation2 + $0xff0] sm:$0xff] %vm242, 0.0
      %754 = vst.msk [vmem:[#allocation2 + $0xff8] sm:$0xff] %vm242, 0.0
      %v755 = vld [vmem:[%s230] sm:$0xff]
      %v756 = vld [vmem:[%s230 + $0x8] sm:$0xff]
      %v757 = vld [vmem:[%s230 + $0x10] sm:$0xff]
      %v758 = vld [vmem:[%s230 + $0x18] sm:$0xff]
      %v759 = vld [vmem:[%s230 + $0x20] sm:$0xff]
      %v760 = vld [vmem:[%s230 + $0x28] sm:$0xff]
      %v761 = vld [vmem:[%s230 + $0x30] sm:$0xff]
      %v762 = vld [vmem:[%s230 + $0x38] sm:$0xff]
      %v763 = vld [vmem:[%s230 + $0x40] sm:$0xff]
      %v764 = vld [vmem:[%s230 + $0x48] sm:$0xff]
      %v765 = vld [vmem:[%s230 + $0x50] sm:$0xff]
      %v766 = vld [vmem:[%s230 + $0x58] sm:$0xff]
      %v767 = vld [vmem:[%s230 + $0x60] sm:$0xff]
      %v768 = vld [vmem:[%s230 + $0x68] sm:$0xff]
      %v769 = vld [vmem:[%s230 + $0x70] sm:$0xff]
      %v770 = vld [vmem:[%s230 + $0x78] sm:$0xff]
      %v771 = vld [vmem:[%s230 + $0x80] sm:$0xff]
      %v772 = vld [vmem:[%s230 + $0x88] sm:$0xff]
      %v773 = vld [vmem:[%s230 + $0x90] sm:$0xff]
      %v774 = vld [vmem:[%s230 + $0x98] sm:$0xff]
      %v775 = vld [vmem:[%s230 + $0xa0] sm:$0xff]
      %v776 = vld [vmem:[%s230 + $0xa8] sm:$0xff]
      %v777 = vld [vmem:[%s230 + $0xb0] sm:$0xff]
      %v778 = vld [vmem:[%s230 + $0xb8] sm:$0xff]
      %v779 = vld [vmem:[%s230 + $0xc0] sm:$0xff]
      %v780 = vld [vmem:[%s230 + $0xc8] sm:$0xff]
      %v781 = vld [vmem:[%s230 + $0xd0] sm:$0xff]
      %v782 = vld [vmem:[%s230 + $0xd8] sm:$0xff]
      %v783 = vld [vmem:[%s230 + $0xe0] sm:$0xff]
      %v784 = vld [vmem:[%s230 + $0xe8] sm:$0xff]
      %v785 = vld [vmem:[%s230 + $0xf0] sm:$0xff]
      %v786 = vld [vmem:[%s230 + $0xf8] sm:$0xff]
      %s787 = scalar_lea.vmem [#allocation2], 1536
      %788 = vst.msk [vmem:[%s787 + $0x18] sm:$0xff] %vm242, %v755
      %789 = vst.msk [vmem:[%s787 + $0x20] sm:$0xff] %vm242, %v756
      %790 = vst.msk [vmem:[%s787 + $0x58] sm:$0xff] %vm242, %v757
      %791 = vst.msk [vmem:[%s787 + $0x60] sm:$0xff] %vm242, %v758
      %792 = vst.msk [vmem:[%s787 + $0x98] sm:$0xff] %vm242, %v759
      %793 = vst.msk [vmem:[%s787 + $0xa0] sm:$0xff] %vm242, %v760
      %794 = vst.msk [vmem:[%s787 + $0xd8] sm:$0xff] %vm242, %v761
      %795 = vst.msk [vmem:[%s787 + $0xe0] sm:$0xff] %vm242, %v762
      %796 = vst.msk [vmem:[%s787 + $0x118] sm:$0xff] %vm242, %v763
      %797 = vst.msk [vmem:[%s787 + $0x120] sm:$0xff] %vm242, %v764
      %798 = vst.msk [vmem:[%s787 + $0x158] sm:$0xff] %vm242, %v765
      %799 = vst.msk [vmem:[%s787 + $0x160] sm:$0xff] %vm242, %v766
      %800 = vst.msk [vmem:[%s787 + $0x198] sm:$0xff] %vm242, %v767
      %801 = vst.msk [vmem:[%s787 + $0x1a0] sm:$0xff] %vm242, %v768
      %802 = vst.msk [vmem:[%s787 + $0x1d8] sm:$0xff] %vm242, %v769
      %803 = vst.msk [vmem:[%s787 + $0x1e0] sm:$0xff] %vm242, %v770
      %804 = vst.msk [vmem:[%s787 + $0x218] sm:$0xff] %vm242, %v771
      %805 = vst.msk [vmem:[%s787 + $0x220] sm:$0xff] %vm242, %v772
      %806 = vst.msk [vmem:[%s787 + $0x258] sm:$0xff] %vm242, %v773
      %807 = vst.msk [vmem:[%s787 + $0x260] sm:$0xff] %vm242, %v774
      %808 = vst.msk [vmem:[%s787 + $0x298] sm:$0xff] %vm242, %v775
      %809 = vst.msk [vmem:[%s787 + $0x2a0] sm:$0xff] %vm242, %v776
      %810 = vst.msk [vmem:[%s787 + $0x2d8] sm:$0xff] %vm242, %v777
      %811 = vst.msk [vmem:[%s787 + $0x2e0] sm:$0xff] %vm242, %v778
      %812 = vst.msk [vmem:[%s787 + $0x318] sm:$0xff] %vm242, %v779
      %813 = vst.msk [vmem:[%s787 + $0x320] sm:$0xff] %vm242, %v780
      %814 = vst.msk [vmem:[%s787 + $0x358] sm:$0xff] %vm242, %v781
      %815 = vst.msk [vmem:[%s787 + $0x360] sm:$0xff] %vm242, %v782
      %816 = vst.msk [vmem:[%s787 + $0x398] sm:$0xff] %vm242, %v783
      %817 = vst.msk [vmem:[%s787 + $0x3a0] sm:$0xff] %vm242, %v784
      %818 = vst.msk [vmem:[%s787 + $0x3d8] sm:$0xff] %vm242, %v785
      %819 = vst.msk [vmem:[%s787 + $0x3e0] sm:$0xff] %vm242, %v786
      %v820 = vld [vmem:[#allocation2 + $0x180] sm:$0xff]
      %v821 = vld [vmem:[#allocation2 + $0x188] sm:$0xff]
      %v822 = vld [vmem:[#allocation2 + $0x190] sm:$0xff]
      %v823 = vld [vmem:[#allocation2 + $0x198] sm:$0xff]
      %v824 = vld [vmem:[#allocation2 + $0x1a0] sm:$0xff]
      %v825 = vld [vmem:[#allocation2 + $0x1a8] sm:$0xff]
      %v826 = vld [vmem:[#allocation2 + $0x1b0] sm:$0xff]
      %v827 = vld [vmem:[#allocation2 + $0x1b8] sm:$0xff]
      %v828 = vld [vmem:[#allocation2 + $0x1c0] sm:$0xff]
      %v829 = vld [vmem:[#allocation2 + $0x1c8] sm:$0xff]
      %v830 = vld [vmem:[#allocation2 + $0x1d0] sm:$0xff]
      %v831 = vld [vmem:[#allocation2 + $0x1d8] sm:$0xff]
      %v832 = vld [vmem:[#allocation2 + $0x1e0] sm:$0xff]
      %v833 = vld [vmem:[#allocation2 + $0x1e8] sm:$0xff]
      %v834 = vld [vmem:[#allocation2 + $0x1f0] sm:$0xff]
      %v835 = vld [vmem:[#allocation2 + $0x1f8] sm:$0xff]
      %v836 = vld [vmem:[#allocation2 + $0x200] sm:$0xff]
      %v837 = vld [vmem:[#allocation2 + $0x208] sm:$0xff]
      %v838 = vld [vmem:[#allocation2 + $0x210] sm:$0xff]
      %v839 = vld [vmem:[#allocation2 + $0x218] sm:$0xff]
      %v840 = vld [vmem:[#allocation2 + $0x220] sm:$0xff]
      %v841 = vld [vmem:[#allocation2 + $0x228] sm:$0xff]
      %v842 = vld [vmem:[#allocation2 + $0x230] sm:$0xff]
      %v843 = vld [vmem:[#allocation2 + $0x238] sm:$0xff]
      %v844 = vld [vmem:[#allocation2 + $0x240] sm:$0xff]
      %v845 = vld [vmem:[#allocation2 + $0x248] sm:$0xff]
      %v846 = vld [vmem:[#allocation2 + $0x250] sm:$0xff]
      %v847 = vld [vmem:[#allocation2 + $0x258] sm:$0xff]
      %v848 = vld [vmem:[#allocation2 + $0x260] sm:$0xff]
      %v849 = vld [vmem:[#allocation2 + $0x268] sm:$0xff]
      %v850 = vld [vmem:[#allocation2 + $0x270] sm:$0xff]
      %v851 = vld [vmem:[#allocation2 + $0x278] sm:$0xff]
      %v852 = vld [vmem:[#allocation2 + $0x280] sm:$0xff]
      %v853 = vld [vmem:[#allocation2 + $0x288] sm:$0xff]
      %v854 = vld [vmem:[#allocation2 + $0x290] sm:$0xff]
      %v855 = vld [vmem:[#allocation2 + $0x298] sm:$0xff]
      %v856 = vld [vmem:[#allocation2 + $0x2a0] sm:$0xff]
      %v857 = vld [vmem:[#allocation2 + $0x2a8] sm:$0xff]
      %v858 = vld [vmem:[#allocation2 + $0x2b0] sm:$0xff]
      %v859 = vld [vmem:[#allocation2 + $0x2b8] sm:$0xff]
      %v860 = vld [vmem:[#allocation2 + $0x2c0] sm:$0xff]
      %v861 = vld [vmem:[#allocation2 + $0x2c8] sm:$0xff]
      %v862 = vld [vmem:[#allocation2 + $0x2d0] sm:$0xff]
      %v863 = vld [vmem:[#allocation2 + $0x2d8] sm:$0xff]
      %v864 = vld [vmem:[#allocation2 + $0x2e0] sm:$0xff]
      %v865 = vld [vmem:[#allocation2 + $0x2e8] sm:$0xff]
      %v866 = vld [vmem:[#allocation2 + $0x2f0] sm:$0xff]
      %v867 = vld [vmem:[#allocation2 + $0x2f8] sm:$0xff]
      %v868 = vld [vmem:[#allocation2 + $0x300] sm:$0xff]
      %v869 = vld [vmem:[#allocation2 + $0x308] sm:$0xff]
      %v870 = vld [vmem:[#allocation2 + $0x310] sm:$0xff]
      %v871 = vld [vmem:[#allocation2 + $0x318] sm:$0xff]
      %v872 = vld [vmem:[#allocation2 + $0x320] sm:$0xff]
      %v873 = vld [vmem:[#allocation2 + $0x328] sm:$0xff]
      %v874 = vld [vmem:[#allocation2 + $0x330] sm:$0xff]
      %v875 = vld [vmem:[#allocation2 + $0x338] sm:$0xff]
      %v876 = vld [vmem:[#allocation2 + $0x340] sm:$0xff]
      %v877 = vld [vmem:[#allocation2 + $0x348] sm:$0xff]
      %v878 = vld [vmem:[#allocation2 + $0x350] sm:$0xff]
      %v879 = vld [vmem:[#allocation2 + $0x358] sm:$0xff]
      %v880 = vld [vmem:[#allocation2 + $0x360] sm:$0xff]
      %v881 = vld [vmem:[#allocation2 + $0x368] sm:$0xff]
      %v882 = vld [vmem:[#allocation2 + $0x370] sm:$0xff]
      %v883 = vld [vmem:[#allocation2 + $0x378] sm:$0xff]
      %v884 = vld [vmem:[#allocation2 + $0x380] sm:$0xff]
      %v885 = vld [vmem:[#allocation2 + $0x388] sm:$0xff]
      %v886 = vld [vmem:[#allocation2 + $0x390] sm:$0xff]
      %v887 = vld [vmem:[#allocation2 + $0x398] sm:$0xff]
      %v888 = vld [vmem:[#allocation2 + $0x3a0] sm:$0xff]
      %v889 = vld [vmem:[#allocation2 + $0x3a8] sm:$0xff]
      %v890 = vld [vmem:[#allocation2 + $0x3b0] sm:$0xff]
      %v891 = vld [vmem:[#allocation2 + $0x3b8] sm:$0xff]
      %v892 = vld [vmem:[#allocation2 + $0x3c0] sm:$0xff]
      %v893 = vld [vmem:[#allocation2 + $0x3c8] sm:$0xff]
      %v894 = vld [vmem:[#allocation2 + $0x3d0] sm:$0xff]
      %v895 = vld [vmem:[#allocation2 + $0x3d8] sm:$0xff]
      %v896 = vld [vmem:[#allocation2 + $0x3e0] sm:$0xff]
      %v897 = vld [vmem:[#allocation2 + $0x3e8] sm:$0xff]
      %v898 = vld [vmem:[#allocation2 + $0x3f0] sm:$0xff]
      %v899 = vld [vmem:[#allocation2 + $0x3f8] sm:$0xff]
      %v900 = vld [vmem:[#allocation2 + $0x400] sm:$0xff]
      %v901 = vld [vmem:[#allocation2 + $0x408] sm:$0xff]
      %v902 = vld [vmem:[#allocation2 + $0x410] sm:$0xff]
      %v903 = vld [vmem:[#allocation2 + $0x418] sm:$0xff]
      %v904 = vld [vmem:[#allocation2 + $0x420] sm:$0xff]
      %v905 = vld [vmem:[#allocation2 + $0x428] sm:$0xff]
      %v906 = vld [vmem:[#allocation2 + $0x430] sm:$0xff]
      %v907 = vld [vmem:[#allocation2 + $0x438] sm:$0xff]
      %v908 = vld [vmem:[#allocation2 + $0x440] sm:$0xff]
      %v909 = vld [vmem:[#allocation2 + $0x448] sm:$0xff]
      %v910 = vld [vmem:[#allocation2 + $0x450] sm:$0xff]
      %v911 = vld [vmem:[#allocation2 + $0x458] sm:$0xff]
      %v912 = vld [vmem:[#allocation2 + $0x460] sm:$0xff]
      %v913 = vld [vmem:[#allocation2 + $0x468] sm:$0xff]
      %v914 = vld [vmem:[#allocation2 + $0x470] sm:$0xff]
      %v915 = vld [vmem:[#allocation2 + $0x478] sm:$0xff]
      %v916 = vld [vmem:[#allocation2 + $0x480] sm:$0xff]
      %v917 = vld [vmem:[#allocation2 + $0x488] sm:$0xff]
      %v918 = vld [vmem:[#allocation2 + $0x490] sm:$0xff]
      %v919 = vld [vmem:[#allocation2 + $0x498] sm:$0xff]
      %v920 = vld [vmem:[#allocation2 + $0x4a0] sm:$0xff]
      %v921 = vld [vmem:[#allocation2 + $0x4a8] sm:$0xff]
      %v922 = vld [vmem:[#allocation2 + $0x4b0] sm:$0xff]
      %v923 = vld [vmem:[#allocation2 + $0x4b8] sm:$0xff]
      %v924 = vld [vmem:[#allocation2 + $0x4c0] sm:$0xff]
      %v925 = vld [vmem:[#allocation2 + $0x4c8] sm:$0xff]
      %v926 = vld [vmem:[#allocation2 + $0x4d0] sm:$0xff]
      %v927 = vld [vmem:[#allocation2 + $0x4d8] sm:$0xff]
      %v928 = vld [vmem:[#allocation2 + $0x4e0] sm:$0xff]
      %v929 = vld [vmem:[#allocation2 + $0x4e8] sm:$0xff]
      %v930 = vld [vmem:[#allocation2 + $0x4f0] sm:$0xff]
      %v931 = vld [vmem:[#allocation2 + $0x4f8] sm:$0xff]
      %v932 = vld [vmem:[#allocation2 + $0x500] sm:$0xff]
      %v933 = vld [vmem:[#allocation2 + $0x508] sm:$0xff]
      %v934 = vld [vmem:[#allocation2 + $0x510] sm:$0xff]
      %v935 = vld [vmem:[#allocation2 + $0x518] sm:$0xff]
      %v936 = vld [vmem:[#allocation2 + $0x520] sm:$0xff]
      %v937 = vld [vmem:[#allocation2 + $0x528] sm:$0xff]
      %v938 = vld [vmem:[#allocation2 + $0x530] sm:$0xff]
      %v939 = vld [vmem:[#allocation2 + $0x538] sm:$0xff]
      %v940 = vld [vmem:[#allocation2 + $0x540] sm:$0xff]
      %v941 = vld [vmem:[#allocation2 + $0x548] sm:$0xff]
      %v942 = vld [vmem:[#allocation2 + $0x550] sm:$0xff]
      %v943 = vld [vmem:[#allocation2 + $0x558] sm:$0xff]
      %v944 = vld [vmem:[#allocation2 + $0x560] sm:$0xff]
      %v945 = vld [vmem:[#allocation2 + $0x568] sm:$0xff]
      %v946 = vld [vmem:[#allocation2 + $0x570] sm:$0xff]
      %v947 = vld [vmem:[#allocation2 + $0x578] sm:$0xff]
      %v948 = vld [vmem:[#allocation2 + $0x588] sm:$0xff]
      %v949 = vld [vmem:[#allocation2 + $0x590] sm:$0xff]
      %v950 = vld [vmem:[#allocation2 + $0x598] sm:$0xff]
      %v951 = vld [vmem:[#allocation2 + $0x5a0] sm:$0xff]
      %v952 = vld [vmem:[#allocation2 + $0x5a8] sm:$0xff]
      %v953 = vld [vmem:[#allocation2 + $0x5b0] sm:$0xff]
      %v954 = vld [vmem:[#allocation2 + $0x5c8] sm:$0xff]
      %v955 = vld [vmem:[#allocation2 + $0x5d0] sm:$0xff]
      %v956 = vld [vmem:[#allocation2 + $0x5d8] sm:$0xff]
      %v957 = vld [vmem:[#allocation2 + $0x5e0] sm:$0xff]
      %v958 = vld [vmem:[#allocation2 + $0x5e8] sm:$0xff]
      %v959 = vld [vmem:[#allocation2 + $0x5f0] sm:$0xff]
      %v960 = vld [vmem:[#allocation2 + $0x600] sm:$0xff]
      %v961 = vld [vmem:[#allocation2 + $0x608] sm:$0xff]
      %v962 = vld [vmem:[#allocation2 + $0x610] sm:$0xff]
      %v963 = vld [vmem:[#allocation2 + $0x618] sm:$0xff]
      %v964 = vld [vmem:[#allocation2 + $0x620] sm:$0xff]
      %v965 = vld [vmem:[#allocation2 + $0x628] sm:$0xff]
      %v966 = vld [vmem:[#allocation2 + $0x630] sm:$0xff]
      %v967 = vld [vmem:[#allocation2 + $0x638] sm:$0xff]
      %v968 = vld [vmem:[#allocation2 + $0x640] sm:$0xff]
      %v969 = vld [vmem:[#allocation2 + $0x648] sm:$0xff]
      %v970 = vld [vmem:[#allocation2 + $0x650] sm:$0xff]
      %v971 = vld [vmem:[#allocation2 + $0x658] sm:$0xff]
      %v972 = vld [vmem:[#allocation2 + $0x660] sm:$0xff]
      %v973 = vld [vmem:[#allocation2 + $0x668] sm:$0xff]
      %v974 = vld [vmem:[#allocation2 + $0x670] sm:$0xff]
      %v975 = vld [vmem:[#allocation2 + $0x678] sm:$0xff]
      %v976 = vld [vmem:[#allocation2 + $0x680] sm:$0xff]
      %v977 = vld [vmem:[#allocation2 + $0x688] sm:$0xff]
      %v978 = vld [vmem:[#allocation2 + $0x690] sm:$0xff]
      %v979 = vld [vmem:[#allocation2 + $0x698] sm:$0xff]
      %v980 = vld [vmem:[#allocation2 + $0x6a0] sm:$0xff]
      %v981 = vld [vmem:[#allocation2 + $0x6a8] sm:$0xff]
      %v982 = vld [vmem:[#allocation2 + $0x6b0] sm:$0xff]
      %v983 = vld [vmem:[#allocation2 + $0x6b8] sm:$0xff]
      %v984 = vld [vmem:[#allocation2 + $0x6c0] sm:$0xff]
      %v985 = vld [vmem:[#allocation2 + $0x6c8] sm:$0xff]
      %v986 = vld [vmem:[#allocation2 + $0x6d0] sm:$0xff]
      %v987 = vld [vmem:[#allocation2 + $0x6d8] sm:$0xff]
      %v988 = vld [vmem:[#allocation2 + $0x6e0] sm:$0xff]
      %v989 = vld [vmem:[#allocation2 + $0x6e8] sm:$0xff]
      %v990 = vld [vmem:[#allocation2 + $0x6f0] sm:$0xff]
      %v991 = vld [vmem:[#allocation2 + $0x6f8] sm:$0xff]
      %v992 = vld [vmem:[#allocation2 + $0x700] sm:$0xff]
      %v993 = vld [vmem:[#allocation2 + $0x708] sm:$0xff]
      %v994 = vld [vmem:[#allocation2 + $0x710] sm:$0xff]
      %v995 = vld [vmem:[#allocation2 + $0x718] sm:$0xff]
      %v996 = vld [vmem:[#allocation2 + $0x720] sm:$0xff]
      %v997 = vld [vmem:[#allocation2 + $0x728] sm:$0xff]
      %v998 = vld [vmem:[#allocation2 + $0x730] sm:$0xff]
      %v999 = vld [vmem:[#allocation2 + $0x738] sm:$0xff]
      %v1000 = vld [vmem:[#allocation2 + $0x740] sm:$0xff]
      %v1001 = vld [vmem:[#allocation2 + $0x748] sm:$0xff]
      %v1002 = vld [vmem:[#allocation2 + $0x750] sm:$0xff]
      %v1003 = vld [vmem:[#allocation2 + $0x758] sm:$0xff]
      %v1004 = vld [vmem:[#allocation2 + $0x760] sm:$0xff]
      %v1005 = vld [vmem:[#allocation2 + $0x768] sm:$0xff]
      %v1006 = vld [vmem:[#allocation2 + $0x770] sm:$0xff]
      %v1007 = vld [vmem:[#allocation2 + $0x778] sm:$0xff]
      %v1008 = vld [vmem:[#allocation2 + $0x780] sm:$0xff]
      %v1009 = vld [vmem:[#allocation2 + $0x788] sm:$0xff]
      %v1010 = vld [vmem:[#allocation2 + $0x790] sm:$0xff]
      %v1011 = vld [vmem:[#allocation2 + $0x798] sm:$0xff]
      %v1012 = vld [vmem:[#allocation2 + $0x7a0] sm:$0xff]
      %v1013 = vld [vmem:[#allocation2 + $0x7a8] sm:$0xff]
      %v1014 = vld [vmem:[#allocation2 + $0x7b0] sm:$0xff]
      %v1015 = vld [vmem:[#allocation2 + $0x7b8] sm:$0xff]
      %v1016 = vld [vmem:[#allocation2 + $0x7c0] sm:$0xff]
      %v1017 = vld [vmem:[#allocation2 + $0x7c8] sm:$0xff]
      %v1018 = vld [vmem:[#allocation2 + $0x7d0] sm:$0xff]
      %v1019 = vld [vmem:[#allocation2 + $0x7d8] sm:$0xff]
      %v1020 = vld [vmem:[#allocation2 + $0x7e0] sm:$0xff]
      %v1021 = vld [vmem:[#allocation2 + $0x7e8] sm:$0xff]
      %v1022 = vld [vmem:[#allocation2 + $0x7f0] sm:$0xff]
      %v1023 = vld [vmem:[#allocation2 + $0x7f8] sm:$0xff]
      %v1024 = vld [vmem:[#allocation2 + $0x800] sm:$0xff]
      %v1025 = vld [vmem:[#allocation2 + $0x808] sm:$0xff]
      %v1026 = vld [vmem:[#allocation2 + $0x810] sm:$0xff]
      %v1027 = vld [vmem:[#allocation2 + $0x818] sm:$0xff]
      %v1028 = vld [vmem:[#allocation2 + $0x820] sm:$0xff]
      %v1029 = vld [vmem:[#allocation2 + $0x828] sm:$0xff]
      %v1030 = vld [vmem:[#allocation2 + $0x830] sm:$0xff]
      %v1031 = vld [vmem:[#allocation2 + $0x838] sm:$0xff]
      %v1032 = vld [vmem:[#allocation2 + $0x840] sm:$0xff]
      %v1033 = vld [vmem:[#allocation2 + $0x848] sm:$0xff]
      %v1034 = vld [vmem:[#allocation2 + $0x850] sm:$0xff]
      %v1035 = vld [vmem:[#allocation2 + $0x858] sm:$0xff]
      %v1036 = vld [vmem:[#allocation2 + $0x860] sm:$0xff]
      %v1037 = vld [vmem:[#allocation2 + $0x868] sm:$0xff]
      %v1038 = vld [vmem:[#allocation2 + $0x870] sm:$0xff]
      %v1039 = vld [vmem:[#allocation2 + $0x878] sm:$0xff]
      %v1040 = vld [vmem:[#allocation2 + $0x880] sm:$0xff]
      %v1041 = vld [vmem:[#allocation2 + $0x888] sm:$0xff]
      %v1042 = vld [vmem:[#allocation2 + $0x890] sm:$0xff]
      %v1043 = vld [vmem:[#allocation2 + $0x898] sm:$0xff]
      %v1044 = vld [vmem:[#allocation2 + $0x8a0] sm:$0xff]
      %v1045 = vld [vmem:[#allocation2 + $0x8a8] sm:$0xff]
      %v1046 = vld [vmem:[#allocation2 + $0x8b0] sm:$0xff]
      %v1047 = vld [vmem:[#allocation2 + $0x8b8] sm:$0xff]
      %v1048 = vld [vmem:[#allocation2 + $0x8c0] sm:$0xff]
      %v1049 = vld [vmem:[#allocation2 + $0x8c8] sm:$0xff]
      %v1050 = vld [vmem:[#allocation2 + $0x8d0] sm:$0xff]
      %v1051 = vld [vmem:[#allocation2 + $0x8d8] sm:$0xff]
      %v1052 = vld [vmem:[#allocation2 + $0x8e0] sm:$0xff]
      %v1053 = vld [vmem:[#allocation2 + $0x8e8] sm:$0xff]
      %v1054 = vld [vmem:[#allocation2 + $0x8f0] sm:$0xff]
      %v1055 = vld [vmem:[#allocation2 + $0x8f8] sm:$0xff]
      %v1056 = vld [vmem:[#allocation2 + $0x900] sm:$0xff]
      %v1057 = vld [vmem:[#allocation2 + $0x908] sm:$0xff]
      %v1058 = vld [vmem:[#allocation2 + $0x910] sm:$0xff]
      %v1059 = vld [vmem:[#allocation2 + $0x918] sm:$0xff]
      %v1060 = vld [vmem:[#allocation2 + $0x920] sm:$0xff]
      %v1061 = vld [vmem:[#allocation2 + $0x928] sm:$0xff]
      %v1062 = vld [vmem:[#allocation2 + $0x930] sm:$0xff]
      %v1063 = vld [vmem:[#allocation2 + $0x938] sm:$0xff]
      %v1064 = vld [vmem:[#allocation2 + $0x940] sm:$0xff]
      %v1065 = vld [vmem:[#allocation2 + $0x948] sm:$0xff]
      %v1066 = vld [vmem:[#allocation2 + $0x950] sm:$0xff]
      %v1067 = vld [vmem:[#allocation2 + $0x958] sm:$0xff]
      %v1068 = vld [vmem:[#allocation2 + $0x960] sm:$0xff]
      %v1069 = vld [vmem:[#allocation2 + $0x968] sm:$0xff]
      %v1070 = vld [vmem:[#allocation2 + $0x970] sm:$0xff]
      %v1071 = vld [vmem:[#allocation2 + $0x978] sm:$0xff]
      %v1072 = vld [vmem:[#allocation2 + $0x980] sm:$0xff]
      %v1073 = vld [vmem:[#allocation2 + $0x988] sm:$0xff]
      %v1074 = vld [vmem:[#allocation2 + $0x990] sm:$0xff]
      %v1075 = vld [vmem:[#allocation2 + $0x998] sm:$0xff]
      %v1076 = vld [vmem:[#allocation2 + $0x9a0] sm:$0xff]
      %v1077 = vld [vmem:[#allocation2 + $0x9a8] sm:$0xff]
      %v1078 = vld [vmem:[#allocation2 + $0x9b0] sm:$0xff]
      %v1079 = vld [vmem:[#allocation2 + $0x9b8] sm:$0xff]
      %v1080 = vld [vmem:[#allocation2 + $0x9c0] sm:$0xff]
      %v1081 = vld [vmem:[#allocation2 + $0x9c8] sm:$0xff]
      %v1082 = vld [vmem:[#allocation2 + $0x9d0] sm:$0xff]
      %v1083 = vld [vmem:[#allocation2 + $0x9d8] sm:$0xff]
      %v1084 = vld [vmem:[#allocation2 + $0x9e0] sm:$0xff]
      %v1085 = vld [vmem:[#allocation2 + $0x9e8] sm:$0xff]
      %v1086 = vld [vmem:[#allocation2 + $0x9f0] sm:$0xff]
      %v1087 = vld [vmem:[#allocation2 + $0x9f8] sm:$0xff]
      %v1088 = vld [vmem:[#allocation2 + $0xa08] sm:$0xff]
      %v1089 = vld [vmem:[#allocation2 + $0xa10] sm:$0xff]
      %v1090 = vld [vmem:[#allocation2 + $0xa18] sm:$0xff]
      %v1091 = vld [vmem:[#allocation2 + $0xa20] sm:$0xff]
      %v1092 = vld [vmem:[#allocation2 + $0xa28] sm:$0xff]
      %v1093 = vld [vmem:[#allocation2 + $0xa30] sm:$0xff]
      %v1094 = vld [vmem:[#allocation2 + $0xa48] sm:$0xff]
      %v1095 = vld [vmem:[#allocation2 + $0xa50] sm:$0xff]
      %v1096 = vld [vmem:[#allocation2 + $0xa58] sm:$0xff]
      %v1097 = vld [vmem:[#allocation2 + $0xa60] sm:$0xff]
      %v1098 = vld [vmem:[#allocation2 + $0xa68] sm:$0xff]
      %v1099 = vld [vmem:[#allocation2 + $0xa70] sm:$0xff]
      %v1100 = vld [vmem:[#allocation2 + $0xa80] sm:$0xff]
      %v1101 = vld [vmem:[#allocation2 + $0xa88] sm:$0xff]
      %v1102 = vld [vmem:[#allocation2 + $0xa90] sm:$0xff]
      %v1103 = vld [vmem:[#allocation2 + $0xa98] sm:$0xff]
      %v1104 = vld [vmem:[#allocation2 + $0xaa0] sm:$0xff]
      %v1105 = vld [vmem:[#allocation2 + $0xaa8] sm:$0xff]
      %v1106 = vld [vmem:[#allocation2 + $0xab0] sm:$0xff]
      %v1107 = vld [vmem:[#allocation2 + $0xab8] sm:$0xff]
      %v1108 = vld [vmem:[#allocation2 + $0xac0] sm:$0xff]
      %v1109 = vld [vmem:[#allocation2 + $0xac8] sm:$0xff]
      %v1110 = vld [vmem:[#allocation2 + $0xad0] sm:$0xff]
      %v1111 = vld [vmem:[#allocation2 + $0xad8] sm:$0xff]
      %v1112 = vld [vmem:[#allocation2 + $0xae0] sm:$0xff]
      %v1113 = vld [vmem:[#allocation2 + $0xae8] sm:$0xff]
      %v1114 = vld [vmem:[#allocation2 + $0xaf0] sm:$0xff]
      %v1115 = vld [vmem:[#allocation2 + $0xaf8] sm:$0xff]
      %v1116 = vld [vmem:[#allocation2 + $0xb00] sm:$0xff]
      %v1117 = vld [vmem:[#allocation2 + $0xb08] sm:$0xff]
      %v1118 = vld [vmem:[#allocation2 + $0xb10] sm:$0xff]
      %v1119 = vld [vmem:[#allocation2 + $0xb18] sm:$0xff]
      %v1120 = vld [vmem:[#allocation2 + $0xb20] sm:$0xff]
      %v1121 = vld [vmem:[#allocation2 + $0xb28] sm:$0xff]
      %v1122 = vld [vmem:[#allocation2 + $0xb30] sm:$0xff]
      %v1123 = vld [vmem:[#allocation2 + $0xb38] sm:$0xff]
      %v1124 = vld [vmem:[#allocation2 + $0xb40] sm:$0xff]
      %v1125 = vld [vmem:[#allocation2 + $0xb48] sm:$0xff]
      %v1126 = vld [vmem:[#allocation2 + $0xb50] sm:$0xff]
      %v1127 = vld [vmem:[#allocation2 + $0xb58] sm:$0xff]
      %v1128 = vld [vmem:[#allocation2 + $0xb60] sm:$0xff]
      %v1129 = vld [vmem:[#allocation2 + $0xb68] sm:$0xff]
      %v1130 = vld [vmem:[#allocation2 + $0xb70] sm:$0xff]
      %v1131 = vld [vmem:[#allocation2 + $0xb78] sm:$0xff]
      %v1132 = vld [vmem:[#allocation2 + $0xb80] sm:$0xff]
      %v1133 = vld [vmem:[#allocation2 + $0xb88] sm:$0xff]
      %v1134 = vld [vmem:[#allocation2 + $0xb90] sm:$0xff]
      %v1135 = vld [vmem:[#allocation2 + $0xb98] sm:$0xff]
      %v1136 = vld [vmem:[#allocation2 + $0xba0] sm:$0xff]
      %v1137 = vld [vmem:[#allocation2 + $0xba8] sm:$0xff]
      %v1138 = vld [vmem:[#allocation2 + $0xbb0] sm:$0xff]
      %v1139 = vld [vmem:[#allocation2 + $0xbb8] sm:$0xff]
      %v1140 = vld [vmem:[#allocation2 + $0xbc0] sm:$0xff]
      %v1141 = vld [vmem:[#allocation2 + $0xbc8] sm:$0xff]
      %v1142 = vld [vmem:[#allocation2 + $0xbd0] sm:$0xff]
      %v1143 = vld [vmem:[#allocation2 + $0xbd8] sm:$0xff]
      %v1144 = vld [vmem:[#allocation2 + $0xbe0] sm:$0xff]
      %v1145 = vld [vmem:[#allocation2 + $0xbe8] sm:$0xff]
      %v1146 = vld [vmem:[#allocation2 + $0xbf0] sm:$0xff]
      %v1147 = vld [vmem:[#allocation2 + $0xbf8] sm:$0xff]
      %v1148 = vld [vmem:[#allocation2 + $0xc00] sm:$0xff]
      %v1149 = vld [vmem:[#allocation2 + $0xc08] sm:$0xff]
      %v1150 = vld [vmem:[#allocation2 + $0xc10] sm:$0xff]
      %v1151 = vld [vmem:[#allocation2 + $0xc18] sm:$0xff]
      %v1152 = vld [vmem:[#allocation2 + $0xc20] sm:$0xff]
      %v1153 = vld [vmem:[#allocation2 + $0xc28] sm:$0xff]
      %v1154 = vld [vmem:[#allocation2 + $0xc30] sm:$0xff]
      %v1155 = vld [vmem:[#allocation2 + $0xc38] sm:$0xff]
      %v1156 = vld [vmem:[#allocation2 + $0xc40] sm:$0xff]
      %v1157 = vld [vmem:[#allocation2 + $0xc48] sm:$0xff]
      %v1158 = vld [vmem:[#allocation2 + $0xc50] sm:$0xff]
      %v1159 = vld [vmem:[#allocation2 + $0xc58] sm:$0xff]
      %v1160 = vld [vmem:[#allocation2 + $0xc60] sm:$0xff]
      %v1161 = vld [vmem:[#allocation2 + $0xc68] sm:$0xff]
      %v1162 = vld [vmem:[#allocation2 + $0xc70] sm:$0xff]
      %v1163 = vld [vmem:[#allocation2 + $0xc78] sm:$0xff]
      %v1164 = vld [vmem:[#allocation2 + $0xc80] sm:$0xff]
      %v1165 = vld [vmem:[#allocation2 + $0xc88] sm:$0xff]
      %v1166 = vld [vmem:[#allocation2 + $0xc90] sm:$0xff]
      %v1167 = vld [vmem:[#allocation2 + $0xc98] sm:$0xff]
      %v1168 = vld [vmem:[#allocation2 + $0xca0] sm:$0xff]
      %v1169 = vld [vmem:[#allocation2 + $0xca8] sm:$0xff]
      %v1170 = vld [vmem:[#allocation2 + $0xcb0] sm:$0xff]
      %v1171 = vld [vmem:[#allocation2 + $0xcb8] sm:$0xff]
      %v1172 = vld [vmem:[#allocation2 + $0xcc0] sm:$0xff]
      %v1173 = vld [vmem:[#allocation2 + $0xcc8] sm:$0xff]
      %v1174 = vld [vmem:[#allocation2 + $0xcd0] sm:$0xff]
      %v1175 = vld [vmem:[#allocation2 + $0xcd8] sm:$0xff]
      %v1176 = vld [vmem:[#allocation2 + $0xce0] sm:$0xff]
      %v1177 = vld [vmem:[#allocation2 + $0xce8] sm:$0xff]
      %v1178 = vld [vmem:[#allocation2 + $0xcf0] sm:$0xff]
      %v1179 = vld [vmem:[#allocation2 + $0xcf8] sm:$0xff]
      %v1180 = vld [vmem:[#allocation2 + $0xd00] sm:$0xff]
      %v1181 = vld [vmem:[#allocation2 + $0xd08] sm:$0xff]
      %v1182 = vld [vmem:[#allocation2 + $0xd10] sm:$0xff]
      %v1183 = vld [vmem:[#allocation2 + $0xd18] sm:$0xff]
      %v1184 = vld [vmem:[#allocation2 + $0xd20] sm:$0xff]
      %v1185 = vld [vmem:[#allocation2 + $0xd28] sm:$0xff]
      %v1186 = vld [vmem:[#allocation2 + $0xd30] sm:$0xff]
      %v1187 = vld [vmem:[#allocation2 + $0xd38] sm:$0xff]
      %v1188 = vld [vmem:[#allocation2 + $0xd40] sm:$0xff]
      %v1189 = vld [vmem:[#allocation2 + $0xd48] sm:$0xff]
      %v1190 = vld [vmem:[#allocation2 + $0xd50] sm:$0xff]
      %v1191 = vld [vmem:[#allocation2 + $0xd58] sm:$0xff]
      %v1192 = vld [vmem:[#allocation2 + $0xd60] sm:$0xff]
      %v1193 = vld [vmem:[#allocation2 + $0xd68] sm:$0xff]
      %v1194 = vld [vmem:[#allocation2 + $0xd70] sm:$0xff]
      %v1195 = vld [vmem:[#allocation2 + $0xd78] sm:$0xff]
      %v1196 = vld [vmem:[#allocation2 + $0xd80] sm:$0xff]
      %v1197 = vld [vmem:[#allocation2 + $0xd88] sm:$0xff]
      %v1198 = vld [vmem:[#allocation2 + $0xd90] sm:$0xff]
      %v1199 = vld [vmem:[#allocation2 + $0xd98] sm:$0xff]
      %v1200 = vld [vmem:[#allocation2 + $0xda0] sm:$0xff]
      %v1201 = vld [vmem:[#allocation2 + $0xda8] sm:$0xff]
      %v1202 = vld [vmem:[#allocation2 + $0xdb0] sm:$0xff]
      %v1203 = vld [vmem:[#allocation2 + $0xdb8] sm:$0xff]
      %v1204 = vld [vmem:[#allocation2 + $0xdc0] sm:$0xff]
      %v1205 = vld [vmem:[#allocation2 + $0xdc8] sm:$0xff]
      %v1206 = vld [vmem:[#allocation2 + $0xdd0] sm:$0xff]
      %v1207 = vld [vmem:[#allocation2 + $0xdd8] sm:$0xff]
      %v1208 = vld [vmem:[#allocation2 + $0xde0] sm:$0xff]
      %v1209 = vld [vmem:[#allocation2 + $0xde8] sm:$0xff]
      %v1210 = vld [vmem:[#allocation2 + $0xdf0] sm:$0xff]
      %v1211 = vld [vmem:[#allocation2 + $0xdf8] sm:$0xff]
      %v1212 = vld [vmem:[#allocation2 + $0xe00] sm:$0xff]
      %v1213 = vld [vmem:[#allocation2 + $0xe08] sm:$0xff]
      %v1214 = vld [vmem:[#allocation2 + $0xe10] sm:$0xff]
      %v1215 = vld [vmem:[#allocation2 + $0xe18] sm:$0xff]
      %v1216 = vld [vmem:[#allocation2 + $0xe20] sm:$0xff]
      %v1217 = vld [vmem:[#allocation2 + $0xe28] sm:$0xff]
      %v1218 = vld [vmem:[#allocation2 + $0xe30] sm:$0xff]
      %v1219 = vld [vmem:[#allocation2 + $0xe38] sm:$0xff]
      %v1220 = vld [vmem:[#allocation2 + $0xe40] sm:$0xff]
      %v1221 = vld [vmem:[#allocation2 + $0xe48] sm:$0xff]
      %v1222 = vld [vmem:[#allocation2 + $0xe50] sm:$0xff]
      %v1223 = vld [vmem:[#allocation2 + $0xe58] sm:$0xff]
      %v1224 = vld [vmem:[#allocation2 + $0xe60] sm:$0xff]
      %v1225 = vld [vmem:[#allocation2 + $0xe68] sm:$0xff]
      %v1226 = vld [vmem:[#allocation2 + $0xe70] sm:$0xff]
      %v1227 = vld [vmem:[#allocation2 + $0xe78] sm:$0xff]
      %v1228 = vsel %vm242, %v755, 0.0
      %v1229 = vsel %vm242, %v756, 0.0
      %v1230 = vadd.f32 %v1228, %v1229
      %v1231 = vsel %vm242, %v757, 0.0
      %v1232 = vadd.f32 %v1230, %v1231
      %v1233 = vsel %vm242, %v758, 0.0
      %v1234 = vadd.f32 %v1232, %v1233
      %v1235 = vsel %vm242, %v759, 0.0
      %v1236 = vadd.f32 %v1234, %v1235
      %v1237 = vsel %vm242, %v760, 0.0
      %v1238 = vadd.f32 %v1236, %v1237
      %v1239 = vsel %vm242, %v761, 0.0
      %v1240 = vadd.f32 %v1238, %v1239
      %v1241 = vsel %vm242, %v762, 0.0
      %v1242 = vadd.f32 %v1240, %v1241
      %v1243 = vsel %vm242, %v763, 0.0
      %v1244 = vadd.f32 %v1242, %v1243
      %v1245 = vsel %vm242, %v764, 0.0
      %v1246 = vadd.f32 %v1244, %v1245
      %v1247 = vsel %vm242, %v765, 0.0
      %v1248 = vadd.f32 %v1246, %v1247
      %v1249 = vsel %vm242, %v766, 0.0
      %v1250 = vadd.f32 %v1248, %v1249
      %v1251 = vsel %vm242, %v767, 0.0
      %v1252 = vadd.f32 %v1250, %v1251
      %v1253 = vsel %vm242, %v768, 0.0
      %v1254 = vadd.f32 %v1252, %v1253
      %v1255 = vsel %vm242, %v769, 0.0
      %v1256 = vadd.f32 %v1254, %v1255
      %v1257 = vsel %vm242, %v770, 0.0
      %v1258 = vadd.f32 %v1256, %v1257
      %v1259 = vsel %vm242, %v771, 0.0
      %v1260 = vadd.f32 %v1258, %v1259
      %v1261 = vsel %vm242, %v772, 0.0
      %v1262 = vadd.f32 %v1260, %v1261
      %v1263 = vsel %vm242, %v773, 0.0
      %v1264 = vadd.f32 %v1262, %v1263
      %v1265 = vsel %vm242, %v774, 0.0
      %v1266 = vadd.f32 %v1264, %v1265
      %v1267 = vsel %vm242, %v775, 0.0
      %v1268 = vadd.f32 %v1266, %v1267
      %v1269 = vsel %vm242, %v776, 0.0
      %v1270 = vadd.f32 %v1268, %v1269
      %v1271 = vsel %vm242, %v777, 0.0
      %v1272 = vadd.f32 %v1270, %v1271
      %v1273 = vsel %vm242, %v778, 0.0
      %v1274 = vadd.f32 %v1272, %v1273
      %v1275 = vsel %vm242, %v779, 0.0
      %v1276 = vadd.f32 %v1274, %v1275
      %v1277 = vsel %vm242, %v780, 0.0
      %v1278 = vadd.f32 %v1276, %v1277
      %v1279 = vsel %vm242, %v781, 0.0
      %v1280 = vadd.f32 %v1278, %v1279
      %v1281 = vsel %vm242, %v782, 0.0
      %v1282 = vadd.f32 %v1280, %v1281
      %v1283 = vsel %vm242, %v783, 0.0
      %v1284 = vadd.f32 %v1282, %v1283
      %v1285 = vsel %vm242, %v784, 0.0
      %v1286 = vadd.f32 %v1284, %v1285
      %v1287 = vsel %vm242, %v785, 0.0
      %v1288 = vadd.f32 %v1286, %v1287
      %v1289 = vsel %vm242, %v786, 0.0
      %v1290 = vadd.f32 %v1288, %v1289
      %v1291 = vrot.slane %v1290, 4
      %v1292 = vadd.f32 %v1290, %v1291
      %v1293 = vrot.slane %v1292, 2
      %v1294 = vadd.f32 %v1292, %v1293
      %v1295 = vrot.slane %v1294, 1
      %v1296 = vadd.f32 %v1294, %v1295
      %v1297 = vmul.f32 %v1296, 0.00390625
      %v1298 = vld [vmem:[%s2] sm:$0xff]
      %v1300 = vsel %vm242, %v1297, 0
      %1302 = vmatprep.subr.mxu0 0.0
      %1303 = vmatpush1.msra.mxu0 %v1298
      %1304 = vmatprep.subr.mxu0 0.0
      %1305 = vmatpush1.msra.mxu0 0.0
      %1306 = vmatprep.subr.mxu0 0.0
      %1307 = vmatpush1.msra.mxu0 0.0
      %1308 = vmatprep.subr.mxu0 0.0
      %1309 = vmatpush1.msra.mxu0 0.0
      %1310 = vmatprep.subr.mxu0 0.0
      %1311 = vmatpush1.msra.mxu0 0.0
      %1312 = vmatprep.subr.mxu0 0.0
      %1313 = vmatpush1.msra.mxu0 0.0
      %1314 = vmatprep.subr.mxu0 0.0
      %1315 = vmatpush1.msra.mxu0 0.0
      %1316 = vmatprep.subr.mxu0 0.0
      %1317 = vmatpush1.msra.mxu0 0.0
      %1318 = vmatprep.subr.mxu0 0.0
      %1319 = vmatpush1.msra.mxu0 0.0
      %1320 = vmatprep.subr.mxu0 0.0
      %1321 = vmatpush1.msra.mxu0 0.0
      %1322 = vmatprep.subr.mxu0 0.0
      %1323 = vmatpush1.msra.mxu0 0.0
      %1324 = vmatprep.subr.mxu0 0.0
      %1325 = vmatpush1.msra.mxu0 0.0
      %1326 = vmatprep.subr.mxu0 0.0
      %1327 = vmatpush1.msra.mxu0 0.0
      %1328 = vmatprep.subr.mxu0 0.0
      %1329 = vmatpush1.msra.mxu0 0.0
      %1330 = vmatprep.subr.mxu0 0.0
      %1331 = vmatpush1.msra.mxu0 0.0
      %1332 = vmatprep.subr.mxu0 0.0
      %1333 = vmatpush1.msra.mxu0 0.0
      %1334 = vmatprep.subr.mxu0 0.0
      %1335 = vmatpush1.msra.mxu0 0.0
      %1336 = vmatprep.subr.mxu0 0.0
      %1337 = vmatpush1.msra.mxu0 0.0
      %1338 = vmatprep.subr.mxu0 0.0
      %1339 = vmatpush1.msra.mxu0 0.0
      %1340 = vmatprep.subr.mxu0 0.0
      %1341 = vmatpush1.msra.mxu0 0.0
      %1342 = vmatprep.subr.mxu0 0.0
      %1343 = vmatpush1.msra.mxu0 0.0
      %1344 = vmatprep.subr.mxu0 0.0
      %1345 = vmatpush1.msra.mxu0 0.0
      %1346 = vmatprep.subr.mxu0 0.0
      %1347 = vmatpush1.msra.mxu0 0.0
      %1348 = vmatprep.subr.mxu0 0.0
      %1349 = vmatpush1.msra.mxu0 0.0
      %1350 = vmatprep.subr.mxu0 0.0
      %1351 = vmatpush1.msra.mxu0 0.0
      %1352 = vmatprep.subr.mxu0 0.0
      %1353 = vmatpush1.msra.mxu0 0.0
      %1354 = vmatprep.subr.mxu0 0.0
      %1355 = vmatpush1.msra.mxu0 0.0
      %1356 = vmatprep.subr.mxu0 0.0
      %1357 = vmatpush1.msra.mxu0 0.0
      %1358 = vmatprep.subr.mxu0 0.0
      %1359 = vmatpush1.msra.mxu0 0.0
      %1360 = vmatprep.subr.mxu0 0.0
      %1361 = vmatpush1.msra.mxu0 0.0
      %1362 = vmatprep.subr.mxu0 0.0
      %1363 = vmatpush1.msra.mxu0 0.0
      %1364 = vmatprep.subr.mxu0 0.0
      %1365 = vmatpush1.msra.mxu0 0.0
      %1366 = vmatprep.mubr.f32.mxu0 0.0
      %1367 = vmatmul.mubr.f32.gmra.mrb[0].mxu0 %v1300
      %v1368 = vpop.f32.mrb[0].mxu0
      %v1369 = vadd.f32 0.0, %v1368
      %v1370 = vpop.f32.mrb[0].mxu0
      %1371 = vdwg.mxu0
      %vm1404 = vcmask 1041408
      %v1405 = vrot.slane %v919, 6
      %v1406 = vrot.slane %v920, 6
      %v1407 = vsel %vm1404, %v1405, %v1406
      %v1408 = vrot.slane %v927, 6
      %v1409 = vrot.slane %v928, 6
      %v1410 = vsel %vm1404, %v1408, %v1409
      %v1411 = vrot.slane %v935, 6
      %v1412 = vrot.slane %v936, 6
      %v1413 = vsel %vm1404, %v1411, %v1412
      %v1414 = vrot.slane %v943, 6
      %v1415 = vrot.slane %v944, 6
      %v1416 = vsel %vm1404, %v1414, %v1415
      %v1417 = vrot.slane %v950, 6
      %v1418 = vrot.slane %v951, 6
      %v1419 = vsel %vm1404, %v1417, %v1418
      %v1420 = vrot.slane %v956, 6
      %v1421 = vrot.slane %v957, 6
      %v1422 = vsel %vm1404, %v1420, %v1421
      %v1423 = vrot.slane %v963, 6
      %v1424 = vrot.slane %v964, 6
      %v1425 = vsel %vm1404, %v1423, %v1424
      %v1426 = vrot.slane %v971, 6
      %v1427 = vrot.slane %v972, 6
      %v1428 = vsel %vm1404, %v1426, %v1427
      %v1429 = vrot.slane %v979, 6
      %v1430 = vrot.slane %v980, 6
      %v1431 = vsel %vm1404, %v1429, %v1430
      %v1432 = vrot.slane %v987, 6
      %v1433 = vrot.slane %v988, 6
      %v1434 = vsel %vm1404, %v1432, %v1433
      %v1435 = vrot.slane %v995, 6
      %v1436 = vrot.slane %v996, 6
      %v1437 = vsel %vm1404, %v1435, %v1436
      %v1438 = vrot.slane %v1003, 6
      %v1439 = vrot.slane %v1004, 6
      %v1440 = vsel %vm1404, %v1438, %v1439
      %v1441 = vrot.slane %v1011, 6
      %v1442 = vrot.slane %v1012, 6
      %v1443 = vsel %vm1404, %v1441, %v1442
      %v1444 = vrot.slane %v1019, 6
      %v1445 = vrot.slane %v1020, 6
      %v1446 = vsel %vm1404, %v1444, %v1445
      %v1447 = vrot.slane %v1027, 6
      %v1448 = vrot.slane %v1028, 6
      %v1449 = vsel %vm1404, %v1447, %v1448
      %v1450 = vrot.slane %v1035, 6
      %v1451 = vrot.slane %v1036, 6
      %v1452 = vsel %vm1404, %v1450, %v1451
      %1453 = vrot.lane.b32.xlu0 %v1405, 8
      %v1454 = vpop.permute.xlu0 %1453
      %1455 = vrot.lane.b32.xlu0 %v1407, 8
      %v1456 = vpop.permute.xlu0 %1455
      %1457 = vrot.lane.b32.xlu0 %v1406, 8
      %v1458 = vpop.permute.xlu0 %1457
      %1459 = vrot.lane.b32.xlu0 %v1408, 8
      %v1460 = vpop.permute.xlu0 %1459
      %1461 = vrot.lane.b32.xlu0 %v1410, 8
      %v1462 = vpop.permute.xlu0 %1461
      %1463 = vrot.lane.b32.xlu0 %v1409, 8
      %v1464 = vpop.permute.xlu0 %1463
      %1465 = vrot.lane.b32.xlu0 %v1411, 8
      %v1466 = vpop.permute.xlu0 %1465
      %1467 = vrot.lane.b32.xlu0 %v1413, 8
      %v1468 = vpop.permute.xlu0 %1467
      %1469 = vrot.lane.b32.xlu0 %v1412, 8
      %v1470 = vpop.permute.xlu0 %1469
      %1471 = vrot.lane.b32.xlu0 %v1414, 8
      %v1472 = vpop.permute.xlu0 %1471
      %1473 = vrot.lane.b32.xlu0 %v1416, 8
      %v1474 = vpop.permute.xlu0 %1473
      %1475 = vrot.lane.b32.xlu0 %v1415, 8
      %v1476 = vpop.permute.xlu0 %1475
      %1477 = vrot.lane.b32.xlu0 %v1417, 8
      %v1478 = vpop.permute.xlu0 %1477
      %1479 = vrot.lane.b32.xlu0 %v1419, 8
      %v1480 = vpop.permute.xlu0 %1479
      %1481 = vrot.lane.b32.xlu0 %v1418, 8
      %v1482 = vpop.permute.xlu0 %1481
      %1483 = vrot.lane.b32.xlu0 %v1420, 8
      %v1484 = vpop.permute.xlu0 %1483
      %1485 = vrot.lane.b32.xlu0 %v1422, 8
      %v1486 = vpop.permute.xlu0 %1485
      %1487 = vrot.lane.b32.xlu0 %v1421, 8
      %v1488 = vpop.permute.xlu0 %1487
      %1489 = vrot.lane.b32.xlu0 %v1423, 8
      %v1490 = vpop.permute.xlu0 %1489
      %1491 = vrot.lane.b32.xlu0 %v1425, 8
      %v1492 = vpop.permute.xlu0 %1491
      %1493 = vrot.lane.b32.xlu0 %v1424, 8
      %v1494 = vpop.permute.xlu0 %1493
      %1495 = vrot.lane.b32.xlu0 %v1426, 8
      %v1496 = vpop.permute.xlu0 %1495
      %1497 = vrot.lane.b32.xlu0 %v1428, 8
      %v1498 = vpop.permute.xlu0 %1497
      %1499 = vrot.lane.b32.xlu0 %v1427, 8
      %v1500 = vpop.permute.xlu0 %1499
      %1501 = vrot.lane.b32.xlu0 %v1429, 8
      %v1502 = vpop.permute.xlu0 %1501
      %1503 = vrot.lane.b32.xlu0 %v1431, 8
      %v1504 = vpop.permute.xlu0 %1503
      %1505 = vrot.lane.b32.xlu0 %v1430, 8
      %v1506 = vpop.permute.xlu0 %1505
      %1507 = vrot.lane.b32.xlu0 %v1432, 8
      %v1508 = vpop.permute.xlu0 %1507
      %1509 = vrot.lane.b32.xlu0 %v1434, 8
      %v1510 = vpop.permute.xlu0 %1509
      %1511 = vrot.lane.b32.xlu0 %v1433, 8
      %v1512 = vpop.permute.xlu0 %1511
      %1513 = vrot.lane.b32.xlu0 %v1435, 8
      %v1514 = vpop.permute.xlu0 %1513
      %1515 = vrot.lane.b32.xlu0 %v1437, 8
      %v1516 = vpop.permute.xlu0 %1515
      %1517 = vrot.lane.b32.xlu0 %v1436, 8
      %v1518 = vpop.permute.xlu0 %1517
      %1519 = vrot.lane.b32.xlu0 %v1438, 8
      %v1520 = vpop.permute.xlu0 %1519
      %1521 = vrot.lane.b32.xlu0 %v1440, 8
      %v1522 = vpop.permute.xlu0 %1521
      %1523 = vrot.lane.b32.xlu0 %v1439, 8
      %v1524 = vpop.permute.xlu0 %1523
      %1525 = vrot.lane.b32.xlu0 %v1441, 8
      %v1526 = vpop.permute.xlu0 %1525
      %1527 = vrot.lane.b32.xlu0 %v1443, 8
      %v1528 = vpop.permute.xlu0 %1527
      %1529 = vrot.lane.b32.xlu0 %v1442, 8
      %v1530 = vpop.permute.xlu0 %1529
      %1531 = vrot.lane.b32.xlu0 %v1444, 8
      %v1532 = vpop.permute.xlu0 %1531
      %1533 = vrot.lane.b32.xlu0 %v1446, 8
      %v1534 = vpop.permute.xlu0 %1533
      %1535 = vrot.lane.b32.xlu0 %v1445, 8
      %v1536 = vpop.permute.xlu0 %1535
      %1537 = vrot.lane.b32.xlu0 %v1447, 8
      %v1538 = vpop.permute.xlu0 %1537
      %1539 = vrot.lane.b32.xlu0 %v1449, 8
      %v1540 = vpop.permute.xlu0 %1539
      %1541 = vrot.lane.b32.xlu0 %v1448, 8
      %v1542 = vpop.permute.xlu0 %1541
      %1543 = vrot.lane.b32.xlu0 %v1450, 8
      %v1544 = vpop.permute.xlu0 %1543
      %1545 = vrot.lane.b32.xlu0 %v1452, 8
      %v1546 = vpop.permute.xlu0 %1545
      %1547 = vrot.lane.b32.xlu0 %v1451, 8
      %v1548 = vpop.permute.xlu0 %1547
      %vm1613 = vcmask 1043456
      %v1614 = vrot.slane %v919, 4
      %v1615 = vrot.slane %v920, 4
      %v1616 = vsel %vm1613, %v1614, %v1615
      %v1617 = vrot.slane %v921, 4
      %v1618 = vsel %vm1613, %v1615, %v1617
      %v1619 = vrot.slane %v927, 4
      %v1620 = vrot.slane %v928, 4
      %v1621 = vsel %vm1613, %v1619, %v1620
      %v1622 = vrot.slane %v929, 4
      %v1623 = vsel %vm1613, %v1620, %v1622
      %v1624 = vrot.slane %v935, 4
      %v1625 = vrot.slane %v936, 4
      %v1626 = vsel %vm1613, %v1624, %v1625
      %v1627 = vrot.slane %v937, 4
      %v1628 = vsel %vm1613, %v1625, %v1627
      %v1629 = vrot.slane %v943, 4
      %v1630 = vrot.slane %v944, 4
      %v1631 = vsel %vm1613, %v1629, %v1630
      %v1632 = vrot.slane %v945, 4
      %v1633 = vsel %vm1613, %v1630, %v1632
      %v1634 = vrot.slane %v950, 4
      %v1635 = vrot.slane %v951, 4
      %v1636 = vsel %vm1613, %v1634, %v1635
      %v1637 = vrot.slane %v952, 4
      %v1638 = vsel %vm1613, %v1635, %v1637
      %v1639 = vrot.slane %v956, 4
      %v1640 = vrot.slane %v957, 4
      %v1641 = vsel %vm1613, %v1639, %v1640
      %v1642 = vrot.slane %v958, 4
      %v1643 = vsel %vm1613, %v1640, %v1642
      %v1644 = vrot.slane %v963, 4
      %v1645 = vrot.slane %v964, 4
      %v1646 = vsel %vm1613, %v1644, %v1645
      %v1647 = vrot.slane %v965, 4
      %v1648 = vsel %vm1613, %v1645, %v1647
      %v1649 = vrot.slane %v971, 4
      %v1650 = vrot.slane %v972, 4
      %v1651 = vsel %vm1613, %v1649, %v1650
      %v1652 = vrot.slane %v973, 4
      %v1653 = vsel %vm1613, %v1650, %v1652
      %v1654 = vrot.slane %v979, 4
      %v1655 = vrot.slane %v980, 4
      %v1656 = vsel %vm1613, %v1654, %v1655
      %v1657 = vrot.slane %v981, 4
      %v1658 = vsel %vm1613, %v1655, %v1657
      %v1659 = vrot.slane %v987, 4
      %v1660 = vrot.slane %v988, 4
      %v1661 = vsel %vm1613, %v1659, %v1660
      %v1662 = vrot.slane %v989, 4
      %v1663 = vsel %vm1613, %v1660, %v1662
      %v1664 = vrot.slane %v995, 4
      %v1665 = vrot.slane %v996, 4
      %v1666 = vsel %vm1613, %v1664, %v1665
      %v1667 = vrot.slane %v997, 4
      %v1668 = vsel %vm1613, %v1665, %v1667
      %v1669 = vrot.slane %v1003, 4
      %v1670 = vrot.slane %v1004, 4
      %v1671 = vsel %vm1613, %v1669, %v1670
      %v1672 = vrot.slane %v1005, 4
      %v1673 = vsel %vm1613, %v1670, %v1672
      %v1674 = vrot.slane %v1011, 4
      %v1675 = vrot.slane %v1012, 4
      %v1676 = vsel %vm1613, %v1674, %v1675
      %v1677 = vrot.slane %v1013, 4
      %v1678 = vsel %vm1613, %v1675, %v1677
      %v1679 = vrot.slane %v1019, 4
      %v1680 = vrot.slane %v1020, 4
      %v1681 = vsel %vm1613, %v1679, %v1680
      %v1682 = vrot.slane %v1021, 4
      %v1683 = vsel %vm1613, %v1680, %v1682
      %v1684 = vrot.slane %v1027, 4
      %v1685 = vrot.slane %v1028, 4
      %v1686 = vsel %vm1613, %v1684, %v1685
      %v1687 = vrot.slane %v1029, 4
      %v1688 = vsel %vm1613, %v1685, %v1687
      %v1689 = vrot.slane %v1035, 4
      %v1690 = vrot.slane %v1036, 4
      %v1691 = vsel %vm1613, %v1689, %v1690
      %v1692 = vrot.slane %v1037, 4
      %v1693 = vsel %vm1613, %v1690, %v1692
      %1694 = vrot.lane.b32.xlu0 %v1616, 16
      %v1695 = vpop.permute.xlu0 %1694
      %1696 = vrot.lane.b32.xlu0 %v1618, 16
      %v1697 = vpop.permute.xlu0 %1696
      %1698 = vrot.lane.b32.xlu0 %v1617, 16
      %v1699 = vpop.permute.xlu0 %1698
      %1700 = vrot.lane.b32.xlu0 %v1621, 16
      %v1701 = vpop.permute.xlu0 %1700
      %1702 = vrot.lane.b32.xlu0 %v1623, 16
      %v1703 = vpop.permute.xlu0 %1702
      %1704 = vrot.lane.b32.xlu0 %v1622, 16
      %v1705 = vpop.permute.xlu0 %1704
      %1706 = vrot.lane.b32.xlu0 %v1626, 16
      %v1707 = vpop.permute.xlu0 %1706
      %1708 = vrot.lane.b32.xlu0 %v1628, 16
      %v1709 = vpop.permute.xlu0 %1708
      %1710 = vrot.lane.b32.xlu0 %v1627, 16
      %v1711 = vpop.permute.xlu0 %1710
      %1712 = vrot.lane.b32.xlu0 %v1631, 16
      %v1713 = vpop.permute.xlu0 %1712
      %1714 = vrot.lane.b32.xlu0 %v1633, 16
      %v1715 = vpop.permute.xlu0 %1714
      %1716 = vrot.lane.b32.xlu0 %v1632, 16
      %v1717 = vpop.permute.xlu0 %1716
      %1718 = vrot.lane.b32.xlu0 %v1636, 16
      %v1719 = vpop.permute.xlu0 %1718
      %1720 = vrot.lane.b32.xlu0 %v1638, 16
      %v1721 = vpop.permute.xlu0 %1720
      %1722 = vrot.lane.b32.xlu0 %v1637, 16
      %v1723 = vpop.permute.xlu0 %1722
      %1724 = vrot.lane.b32.xlu0 %v1641, 16
      %v1725 = vpop.permute.xlu0 %1724
      %1726 = vrot.lane.b32.xlu0 %v1643, 16
      %v1727 = vpop.permute.xlu0 %1726
      %1728 = vrot.lane.b32.xlu0 %v1642, 16
      %v1729 = vpop.permute.xlu0 %1728
      %1730 = vrot.lane.b32.xlu0 %v1646, 16
      %v1731 = vpop.permute.xlu0 %1730
      %1732 = vrot.lane.b32.xlu0 %v1648, 16
      %v1733 = vpop.permute.xlu0 %1732
      %1734 = vrot.lane.b32.xlu0 %v1647, 16
      %v1735 = vpop.permute.xlu0 %1734
      %1736 = vrot.lane.b32.xlu0 %v1651, 16
      %v1737 = vpop.permute.xlu0 %1736
      %1738 = vrot.lane.b32.xlu0 %v1653, 16
      %v1739 = vpop.permute.xlu0 %1738
      %1740 = vrot.lane.b32.xlu0 %v1652, 16
      %v1741 = vpop.permute.xlu0 %1740
      %1742 = vrot.lane.b32.xlu0 %v1656, 16
      %v1743 = vpop.permute.xlu0 %1742
      %1744 = vrot.lane.b32.xlu0 %v1658, 16
      %v1745 = vpop.permute.xlu0 %1744
      %1746 = vrot.lane.b32.xlu0 %v1657, 16
      %v1747 = vpop.permute.xlu0 %1746
      %1748 = vrot.lane.b32.xlu0 %v1661, 16
      %v1749 = vpop.permute.xlu0 %1748
      %1750 = vrot.lane.b32.xlu0 %v1663, 16
      %v1751 = vpop.permute.xlu0 %1750
      %1752 = vrot.lane.b32.xlu0 %v1662, 16
      %v1753 = vpop.permute.xlu0 %1752
      %1754 = vrot.lane.b32.xlu0 %v1666, 16
      %v1755 = vpop.permute.xlu0 %1754
      %1756 = vrot.lane.b32.xlu0 %v1668, 16
      %v1757 = vpop.permute.xlu0 %1756
      %1758 = vrot.lane.b32.xlu0 %v1667, 16
      %v1759 = vpop.permute.xlu0 %1758
      %1760 = vrot.lane.b32.xlu0 %v1671, 16
      %v1761 = vpop.permute.xlu0 %1760
      %1762 = vrot.lane.b32.xlu0 %v1673, 16
      %v1763 = vpop.permute.xlu0 %1762
      %1764 = vrot.lane.b32.xlu0 %v1672, 16
      %v1765 = vpop.permute.xlu0 %1764
      %1766 = vrot.lane.b32.xlu0 %v1676, 16
      %v1767 = vpop.permute.xlu0 %1766
      %1768 = vrot.lane.b32.xlu0 %v1678, 16
      %v1769 = vpop.permute.xlu0 %1768
      %1770 = vrot.lane.b32.xlu0 %v1677, 16
      %v1771 = vpop.permute.xlu0 %1770
      %1772 = vrot.lane.b32.xlu0 %v1681, 16
      %v1773 = vpop.permute.xlu0 %1772
      %1774 = vrot.lane.b32.xlu0 %v1683, 16
      %v1775 = vpop.permute.xlu0 %1774
      %1776 = vrot.lane.b32.xlu0 %v1682, 16
      %v1777 = vpop.permute.xlu0 %1776
      %1778 = vrot.lane.b32.xlu0 %v1686, 16
      %v1779 = vpop.permute.xlu0 %1778
      %1780 = vrot.lane.b32.xlu0 %v1688, 16
      %v1781 = vpop.permute.xlu0 %1780
      %1782 = vrot.lane.b32.xlu0 %v1687, 16
      %v1783 = vpop.permute.xlu0 %1782
      %1784 = vrot.lane.b32.xlu0 %v1691, 16
      %v1785 = vpop.permute.xlu0 %1784
      %1786 = vrot.lane.b32.xlu0 %v1693, 16
      %v1787 = vpop.permute.xlu0 %1786
      %1788 = vrot.lane.b32.xlu0 %v1692, 16
      %v1789 = vpop.permute.xlu0 %1788
      %1866 = vrot.lane.b32.xlu0 %v962, 24
      %v1867 = vpop.permute.xlu0 %1866
      %1868 = vrot.lane.b32.xlu0 %v963, 24
      %v1869 = vpop.permute.xlu0 %1868
      %1870 = vrot.lane.b32.xlu0 %v964, 24
      %v1871 = vpop.permute.xlu0 %1870
      %1872 = vrot.lane.b32.xlu0 %v970, 24
      %v1873 = vpop.permute.xlu0 %1872
      %1874 = vrot.lane.b32.xlu0 %v971, 24
      %v1875 = vpop.permute.xlu0 %1874
      %1876 = vrot.lane.b32.xlu0 %v972, 24
      %v1877 = vpop.permute.xlu0 %1876
      %1878 = vrot.lane.b32.xlu0 %v978, 24
      %v1879 = vpop.permute.xlu0 %1878
      %1880 = vrot.lane.b32.xlu0 %v979, 24
      %v1881 = vpop.permute.xlu0 %1880
      %1882 = vrot.lane.b32.xlu0 %v980, 24
      %v1883 = vpop.permute.xlu0 %1882
      %1884 = vrot.lane.b32.xlu0 %v986, 24
      %v1885 = vpop.permute.xlu0 %1884
      %1886 = vrot.lane.b32.xlu0 %v987, 24
      %v1887 = vpop.permute.xlu0 %1886
      %1888 = vrot.lane.b32.xlu0 %v988, 24
      %v1889 = vpop.permute.xlu0 %1888
      %1890 = vrot.lane.b32.xlu0 %v994, 24
      %v1891 = vpop.permute.xlu0 %1890
      %1892 = vrot.lane.b32.xlu0 %v995, 24
      %v1893 = vpop.permute.xlu0 %1892
      %1894 = vrot.lane.b32.xlu0 %v996, 24
      %v1895 = vpop.permute.xlu0 %1894
      %1896 = vrot.lane.b32.xlu0 %v1002, 24
      %v1897 = vpop.permute.xlu0 %1896
      %1898 = vrot.lane.b32.xlu0 %v1003, 24
      %v1899 = vpop.permute.xlu0 %1898
      %1900 = vrot.lane.b32.xlu0 %v1004, 24
      %v1901 = vpop.permute.xlu0 %1900
      %1902 = vrot.lane.b32.xlu0 %v1010, 24
      %v1903 = vpop.permute.xlu0 %1902
      %1904 = vrot.lane.b32.xlu0 %v1011, 24
      %v1905 = vpop.permute.xlu0 %1904
      %1906 = vrot.lane.b32.xlu0 %v1012, 24
      %v1907 = vpop.permute.xlu0 %1906
      %1908 = vrot.lane.b32.xlu0 %v1018, 24
      %v1909 = vpop.permute.xlu0 %1908
      %1910 = vrot.lane.b32.xlu0 %v1019, 24
      %v1911 = vpop.permute.xlu0 %1910
      %1912 = vrot.lane.b32.xlu0 %v1020, 24
      %v1913 = vpop.permute.xlu0 %1912
      %1914 = vrot.lane.b32.xlu0 %v1026, 24
      %v1915 = vpop.permute.xlu0 %1914
      %1916 = vrot.lane.b32.xlu0 %v1027, 24
      %v1917 = vpop.permute.xlu0 %1916
      %1918 = vrot.lane.b32.xlu0 %v1028, 24
      %v1919 = vpop.permute.xlu0 %1918
      %1920 = vrot.lane.b32.xlu0 %v1034, 24
      %v1921 = vpop.permute.xlu0 %1920
      %1922 = vrot.lane.b32.xlu0 %v1035, 24
      %v1923 = vpop.permute.xlu0 %1922
      %1924 = vrot.lane.b32.xlu0 %v1036, 24
      %v1925 = vpop.permute.xlu0 %1924
      %1926 = vrot.lane.b32.xlu0 %v1042, 24
      %v1927 = vpop.permute.xlu0 %1926
      %1928 = vrot.lane.b32.xlu0 %v1043, 24
      %v1929 = vpop.permute.xlu0 %1928
      %1930 = vrot.lane.b32.xlu0 %v1044, 24
      %v1931 = vpop.permute.xlu0 %1930
      %1932 = vrot.lane.b32.xlu0 %v1050, 24
      %v1933 = vpop.permute.xlu0 %1932
      %1934 = vrot.lane.b32.xlu0 %v1051, 24
      %v1935 = vpop.permute.xlu0 %1934
      %1936 = vrot.lane.b32.xlu0 %v1052, 24
      %v1937 = vpop.permute.xlu0 %1936
      %1938 = vrot.lane.b32.xlu0 %v1058, 24
      %v1939 = vpop.permute.xlu0 %1938
      %1940 = vrot.lane.b32.xlu0 %v1059, 24
      %v1941 = vpop.permute.xlu0 %1940
      %1942 = vrot.lane.b32.xlu0 %v1060, 24
      %v1943 = vpop.permute.xlu0 %1942
      %1944 = vrot.lane.b32.xlu0 %v1066, 24
      %v1945 = vpop.permute.xlu0 %1944
      %1946 = vrot.lane.b32.xlu0 %v1067, 24
      %v1947 = vpop.permute.xlu0 %1946
      %1948 = vrot.lane.b32.xlu0 %v1068, 24
      %v1949 = vpop.permute.xlu0 %1948
      %1950 = vrot.lane.b32.xlu0 %v1074, 24
      %v1951 = vpop.permute.xlu0 %1950
      %1952 = vrot.lane.b32.xlu0 %v1075, 24
      %v1953 = vpop.permute.xlu0 %1952
      %1954 = vrot.lane.b32.xlu0 %v1076, 24
      %v1955 = vpop.permute.xlu0 %1954
      %1956 = vrot.lane.b32.xlu0 %v1082, 24
      %v1957 = vpop.permute.xlu0 %1956
      %1958 = vrot.lane.b32.xlu0 %v1083, 24
      %v1959 = vpop.permute.xlu0 %1958
      %1960 = vrot.lane.b32.xlu0 %v1084, 24
      %v1961 = vpop.permute.xlu0 %1960
      %v2010 = vrot.slane %v1043, 6
      %v2011 = vrot.slane %v1044, 6
      %v2012 = vsel %vm1404, %v2010, %v2011
      %v2013 = vrot.slane %v1051, 6
      %v2014 = vrot.slane %v1052, 6
      %v2015 = vsel %vm1404, %v2013, %v2014
      %v2016 = vrot.slane %v1059, 6
      %v2017 = vrot.slane %v1060, 6
      %v2018 = vsel %vm1404, %v2016, %v2017
      %v2019 = vrot.slane %v1067, 6
      %v2020 = vrot.slane %v1068, 6
      %v2021 = vsel %vm1404, %v2019, %v2020
      %v2022 = vrot.slane %v1075, 6
      %v2023 = vrot.slane %v1076, 6
      %v2024 = vsel %vm1404, %v2022, %v2023
      %v2025 = vrot.slane %v1083, 6
      %v2026 = vrot.slane %v1084, 6
      %v2027 = vsel %vm1404, %v2025, %v2026
      %2028 = vrot.lane.b32.xlu0 %v1423, 32
      %v2029 = vpop.permute.xlu0 %2028
      %2030 = vrot.lane.b32.xlu0 %v1425, 32
      %v2031 = vpop.permute.xlu0 %2030
      %2032 = vrot.lane.b32.xlu0 %v1424, 32
      %v2033 = vpop.permute.xlu0 %2032
      %2034 = vrot.lane.b32.xlu0 %v1426, 32
      %v2035 = vpop.permute.xlu0 %2034
      %2036 = vrot.lane.b32.xlu0 %v1428, 32
      %v2037 = vpop.permute.xlu0 %2036
      %2038 = vrot.lane.b32.xlu0 %v1427, 32
      %v2039 = vpop.permute.xlu0 %2038
      %2040 = vrot.lane.b32.xlu0 %v1429, 32
      %v2041 = vpop.permute.xlu0 %2040
      %2042 = vrot.lane.b32.xlu0 %v1431, 32
      %v2043 = vpop.permute.xlu0 %2042
      %2044 = vrot.lane.b32.xlu0 %v1430, 32
      %v2045 = vpop.permute.xlu0 %2044
      %2046 = vrot.lane.b32.xlu0 %v1432, 32
      %v2047 = vpop.permute.xlu0 %2046
      %2048 = vrot.lane.b32.xlu0 %v1434, 32
      %v2049 = vpop.permute.xlu0 %2048
      %2050 = vrot.lane.b32.xlu0 %v1433, 32
      %v2051 = vpop.permute.xlu0 %2050
      %2052 = vrot.lane.b32.xlu0 %v1435, 32
      %v2053 = vpop.permute.xlu0 %2052
      %2054 = vrot.lane.b32.xlu0 %v1437, 32
      %v2055 = vpop.permute.xlu0 %2054
      %2056 = vrot.lane.b32.xlu0 %v1436, 32
      %v2057 = vpop.permute.xlu0 %2056
      %2058 = vrot.lane.b32.xlu0 %v1438, 32
      %v2059 = vpop.permute.xlu0 %2058
      %2060 = vrot.lane.b32.xlu0 %v1440, 32
      %v2061 = vpop.permute.xlu0 %2060
      %2062 = vrot.lane.b32.xlu0 %v1439, 32
      %v2063 = vpop.permute.xlu0 %2062
      %2064 = vrot.lane.b32.xlu0 %v1441, 32
      %v2065 = vpop.permute.xlu0 %2064
      %2066 = vrot.lane.b32.xlu0 %v1443, 32
      %v2067 = vpop.permute.xlu0 %2066
      %2068 = vrot.lane.b32.xlu0 %v1442, 32
      %v2069 = vpop.permute.xlu0 %2068
      %2070 = vrot.lane.b32.xlu0 %v1444, 32
      %v2071 = vpop.permute.xlu0 %2070
      %2072 = vrot.lane.b32.xlu0 %v1446, 32
      %v2073 = vpop.permute.xlu0 %2072
      %2074 = vrot.lane.b32.xlu0 %v1445, 32
      %v2075 = vpop.permute.xlu0 %2074
      %2076 = vrot.lane.b32.xlu0 %v1447, 32
      %v2077 = vpop.permute.xlu0 %2076
      %2078 = vrot.lane.b32.xlu0 %v1449, 32
      %v2079 = vpop.permute.xlu0 %2078
      %2080 = vrot.lane.b32.xlu0 %v1448, 32
      %v2081 = vpop.permute.xlu0 %2080
      %2082 = vrot.lane.b32.xlu0 %v1450, 32
      %v2083 = vpop.permute.xlu0 %2082
      %2084 = vrot.lane.b32.xlu0 %v1452, 32
      %v2085 = vpop.permute.xlu0 %2084
      %2086 = vrot.lane.b32.xlu0 %v1451, 32
      %v2087 = vpop.permute.xlu0 %2086
      %2088 = vrot.lane.b32.xlu0 %v2010, 32
      %v2089 = vpop.permute.xlu0 %2088
      %2090 = vrot.lane.b32.xlu0 %v2012, 32
      %v2091 = vpop.permute.xlu0 %2090
      %2092 = vrot.lane.b32.xlu0 %v2011, 32
      %v2093 = vpop.permute.xlu0 %2092
      %2094 = vrot.lane.b32.xlu0 %v2013, 32
      %v2095 = vpop.permute.xlu0 %2094
      %2096 = vrot.lane.b32.xlu0 %v2015, 32
      %v2097 = vpop.permute.xlu0 %2096
      %2098 = vrot.lane.b32.xlu0 %v2014, 32
      %v2099 = vpop.permute.xlu0 %2098
      %2100 = vrot.lane.b32.xlu0 %v2016, 32
      %v2101 = vpop.permute.xlu0 %2100
      %2102 = vrot.lane.b32.xlu0 %v2018, 32
      %v2103 = vpop.permute.xlu0 %2102
      %2104 = vrot.lane.b32.xlu0 %v2017, 32
      %v2105 = vpop.permute.xlu0 %2104
      %2106 = vrot.lane.b32.xlu0 %v2019, 32
      %v2107 = vpop.permute.xlu0 %2106
      %2108 = vrot.lane.b32.xlu0 %v2021, 32
      %v2109 = vpop.permute.xlu0 %2108
      %2110 = vrot.lane.b32.xlu0 %v2020, 32
      %v2111 = vpop.permute.xlu0 %2110
      %2112 = vrot.lane.b32.xlu0 %v2022, 32
      %v2113 = vpop.permute.xlu0 %2112
      %2114 = vrot.lane.b32.xlu0 %v2024, 32
      %v2115 = vpop.permute.xlu0 %2114
      %2116 = vrot.lane.b32.xlu0 %v2023, 32
      %v2117 = vpop.permute.xlu0 %2116
      %2118 = vrot.lane.b32.xlu0 %v2025, 32
      %v2119 = vpop.permute.xlu0 %2118
      %2120 = vrot.lane.b32.xlu0 %v2027, 32
      %v2121 = vpop.permute.xlu0 %2120
      %2122 = vrot.lane.b32.xlu0 %v2026, 32
      %v2123 = vpop.permute.xlu0 %2122
      %v2178 = vrot.slane %v1043, 4
      %v2179 = vrot.slane %v1044, 4
      %v2180 = vsel %vm1613, %v2178, %v2179
      %v2181 = vrot.slane %v1045, 4
      %v2182 = vsel %vm1613, %v2179, %v2181
      %v2183 = vrot.slane %v1051, 4
      %v2184 = vrot.slane %v1052, 4
      %v2185 = vsel %vm1613, %v2183, %v2184
      %v2186 = vrot.slane %v1053, 4
      %v2187 = vsel %vm1613, %v2184, %v2186
      %v2188 = vrot.slane %v1059, 4
      %v2189 = vrot.slane %v1060, 4
      %v2190 = vsel %vm1613, %v2188, %v2189
      %v2191 = vrot.slane %v1061, 4
      %v2192 = vsel %vm1613, %v2189, %v2191
      %v2193 = vrot.slane %v1067, 4
      %v2194 = vrot.slane %v1068, 4
      %v2195 = vsel %vm1613, %v2193, %v2194
      %v2196 = vrot.slane %v1069, 4
      %v2197 = vsel %vm1613, %v2194, %v2196
      %v2198 = vrot.slane %v1075, 4
      %v2199 = vrot.slane %v1076, 4
      %v2200 = vsel %vm1613, %v2198, %v2199
      %v2201 = vrot.slane %v1077, 4
      %v2202 = vsel %vm1613, %v2199, %v2201
      %v2203 = vrot.slane %v1083, 4
      %v2204 = vrot.slane %v1084, 4
      %v2205 = vsel %vm1613, %v2203, %v2204
      %v2206 = vrot.slane %v1085, 4
      %v2207 = vsel %vm1613, %v2204, %v2206
      %2208 = vrot.lane.b32.xlu0 %v1646, 40
      %v2209 = vpop.permute.xlu0 %2208
      %2210 = vrot.lane.b32.xlu0 %v1648, 40
      %v2211 = vpop.permute.xlu0 %2210
      %2212 = vrot.lane.b32.xlu0 %v1647, 40
      %v2213 = vpop.permute.xlu0 %2212
      %2214 = vrot.lane.b32.xlu0 %v1651, 40
      %v2215 = vpop.permute.xlu0 %2214
      %2216 = vrot.lane.b32.xlu0 %v1653, 40
      %v2217 = vpop.permute.xlu0 %2216
      %2218 = vrot.lane.b32.xlu0 %v1652, 40
      %v2219 = vpop.permute.xlu0 %2218
      %2220 = vrot.lane.b32.xlu0 %v1656, 40
      %v2221 = vpop.permute.xlu0 %2220
      %2222 = vrot.lane.b32.xlu0 %v1658, 40
      %v2223 = vpop.permute.xlu0 %2222
      %2224 = vrot.lane.b32.xlu0 %v1657, 40
      %v2225 = vpop.permute.xlu0 %2224
      %2226 = vrot.lane.b32.xlu0 %v1661, 40
      %v2227 = vpop.permute.xlu0 %2226
      %2228 = vrot.lane.b32.xlu0 %v1663, 40
      %v2229 = vpop.permute.xlu0 %2228
      %2230 = vrot.lane.b32.xlu0 %v1662, 40
      %v2231 = vpop.permute.xlu0 %2230
      %2232 = vrot.lane.b32.xlu0 %v1666, 40
      %v2233 = vpop.permute.xlu0 %2232
      %2234 = vrot.lane.b32.xlu0 %v1668, 40
      %v2235 = vpop.permute.xlu0 %2234
      %2236 = vrot.lane.b32.xlu0 %v1667, 40
      %v2237 = vpop.permute.xlu0 %2236
      %2238 = vrot.lane.b32.xlu0 %v1671, 40
      %v2239 = vpop.permute.xlu0 %2238
      %2240 = vrot.lane.b32.xlu0 %v1673, 40
      %v2241 = vpop.permute.xlu0 %2240
      %2242 = vrot.lane.b32.xlu0 %v1672, 40
      %v2243 = vpop.permute.xlu0 %2242
      %2244 = vrot.lane.b32.xlu0 %v1676, 40
      %v2245 = vpop.permute.xlu0 %2244
      %2246 = vrot.lane.b32.xlu0 %v1678, 40
      %v2247 = vpop.permute.xlu0 %2246
      %2248 = vrot.lane.b32.xlu0 %v1677, 40
      %v2249 = vpop.permute.xlu0 %2248
      %2250 = vrot.lane.b32.xlu0 %v1681, 40
      %v2251 = vpop.permute.xlu0 %2250
      %2252 = vrot.lane.b32.xlu0 %v1683, 40
      %v2253 = vpop.permute.xlu0 %2252
      %2254 = vrot.lane.b32.xlu0 %v1682, 40
      %v2255 = vpop.permute.xlu0 %2254
      %2256 = vrot.lane.b32.xlu0 %v1686, 40
      %v2257 = vpop.permute.xlu0 %2256
      %2258 = vrot.lane.b32.xlu0 %v1688, 40
      %v2259 = vpop.permute.xlu0 %2258
      %2260 = vrot.lane.b32.xlu0 %v1687, 40
      %v2261 = vpop.permute.xlu0 %2260
      %2262 = vrot.lane.b32.xlu0 %v1691, 40
      %v2263 = vpop.permute.xlu0 %2262
      %2264 = vrot.lane.b32.xlu0 %v1693, 40
      %v2265 = vpop.permute.xlu0 %2264
      %2266 = vrot.lane.b32.xlu0 %v1692, 40
      %v2267 = vpop.permute.xlu0 %2266
      %2268 = vrot.lane.b32.xlu0 %v2180, 40
      %v2269 = vpop.permute.xlu0 %2268
      %2270 = vrot.lane.b32.xlu0 %v2182, 40
      %v2271 = vpop.permute.xlu0 %2270
      %2272 = vrot.lane.b32.xlu0 %v2181, 40
      %v2273 = vpop.permute.xlu0 %2272
      %2274 = vrot.lane.b32.xlu0 %v2185, 40
      %v2275 = vpop.permute.xlu0 %2274
      %2276 = vrot.lane.b32.xlu0 %v2187, 40
      %v2277 = vpop.permute.xlu0 %2276
      %2278 = vrot.lane.b32.xlu0 %v2186, 40
      %v2279 = vpop.permute.xlu0 %2278
      %2280 = vrot.lane.b32.xlu0 %v2190, 40
      %v2281 = vpop.permute.xlu0 %2280
      %2282 = vrot.lane.b32.xlu0 %v2192, 40
      %v2283 = vpop.permute.xlu0 %2282
      %2284 = vrot.lane.b32.xlu0 %v2191, 40
      %v2285 = vpop.permute.xlu0 %2284
      %2286 = vrot.lane.b32.xlu0 %v2195, 40
      %v2287 = vpop.permute.xlu0 %2286
      %2288 = vrot.lane.b32.xlu0 %v2197, 40
      %v2289 = vpop.permute.xlu0 %2288
      %2290 = vrot.lane.b32.xlu0 %v2196, 40
      %v2291 = vpop.permute.xlu0 %2290
      %2292 = vrot.lane.b32.xlu0 %v2200, 40
      %v2293 = vpop.permute.xlu0 %2292
      %2294 = vrot.lane.b32.xlu0 %v2202, 40
      %v2295 = vpop.permute.xlu0 %2294
      %2296 = vrot.lane.b32.xlu0 %v2201, 40
      %v2297 = vpop.permute.xlu0 %2296
      %2298 = vrot.lane.b32.xlu0 %v2205, 40
      %v2299 = vpop.permute.xlu0 %2298
      %2300 = vrot.lane.b32.xlu0 %v2207, 40
      %v2301 = vpop.permute.xlu0 %2300
      %2302 = vrot.lane.b32.xlu0 %v2206, 40
      %v2303 = vpop.permute.xlu0 %2302
      %2370 = vrot.lane.b32.xlu0 %v1010, 48
      %v2371 = vpop.permute.xlu0 %2370
      %2372 = vrot.lane.b32.xlu0 %v1011, 48
      %v2373 = vpop.permute.xlu0 %2372
      %2374 = vrot.lane.b32.xlu0 %v1012, 48
      %v2375 = vpop.permute.xlu0 %2374
      %2376 = vrot.lane.b32.xlu0 %v1018, 48
      %v2377 = vpop.permute.xlu0 %2376
      %2378 = vrot.lane.b32.xlu0 %v1019, 48
      %v2379 = vpop.permute.xlu0 %2378
      %2380 = vrot.lane.b32.xlu0 %v1020, 48
      %v2381 = vpop.permute.xlu0 %2380
      %2382 = vrot.lane.b32.xlu0 %v1026, 48
      %v2383 = vpop.permute.xlu0 %2382
      %2384 = vrot.lane.b32.xlu0 %v1027, 48
      %v2385 = vpop.permute.xlu0 %2384
      %2386 = vrot.lane.b32.xlu0 %v1028, 48
      %v2387 = vpop.permute.xlu0 %2386
      %2388 = vrot.lane.b32.xlu0 %v1034, 48
      %v2389 = vpop.permute.xlu0 %2388
      %2390 = vrot.lane.b32.xlu0 %v1035, 48
      %v2391 = vpop.permute.xlu0 %2390
      %2392 = vrot.lane.b32.xlu0 %v1036, 48
      %v2393 = vpop.permute.xlu0 %2392
      %2394 = vrot.lane.b32.xlu0 %v1042, 48
      %v2395 = vpop.permute.xlu0 %2394
      %2396 = vrot.lane.b32.xlu0 %v1043, 48
      %v2397 = vpop.permute.xlu0 %2396
      %2398 = vrot.lane.b32.xlu0 %v1044, 48
      %v2399 = vpop.permute.xlu0 %2398
      %2400 = vrot.lane.b32.xlu0 %v1050, 48
      %v2401 = vpop.permute.xlu0 %2400
      %2402 = vrot.lane.b32.xlu0 %v1051, 48
      %v2403 = vpop.permute.xlu0 %2402
      %2404 = vrot.lane.b32.xlu0 %v1052, 48
      %v2405 = vpop.permute.xlu0 %2404
      %2406 = vrot.lane.b32.xlu0 %v1058, 48
      %v2407 = vpop.permute.xlu0 %2406
      %2408 = vrot.lane.b32.xlu0 %v1059, 48
      %v2409 = vpop.permute.xlu0 %2408
      %2410 = vrot.lane.b32.xlu0 %v1060, 48
      %v2411 = vpop.permute.xlu0 %2410
      %2412 = vrot.lane.b32.xlu0 %v1066, 48
      %v2413 = vpop.permute.xlu0 %2412
      %2414 = vrot.lane.b32.xlu0 %v1067, 48
      %v2415 = vpop.permute.xlu0 %2414
      %2416 = vrot.lane.b32.xlu0 %v1068, 48
      %v2417 = vpop.permute.xlu0 %2416
      %2418 = vrot.lane.b32.xlu0 %v1074, 48
      %v2419 = vpop.permute.xlu0 %2418
      %2420 = vrot.lane.b32.xlu0 %v1075, 48
      %v2421 = vpop.permute.xlu0 %2420
      %2422 = vrot.lane.b32.xlu0 %v1076, 48
      %v2423 = vpop.permute.xlu0 %2422
      %2424 = vrot.lane.b32.xlu0 %v1082, 48
      %v2425 = vpop.permute.xlu0 %2424
      %2426 = vrot.lane.b32.xlu0 %v1083, 48
      %v2427 = vpop.permute.xlu0 %2426
      %2428 = vrot.lane.b32.xlu0 %v1084, 48
      %v2429 = vpop.permute.xlu0 %2428
      %2430 = vrot.lane.b32.xlu0 %v1089, 48
      %v2431 = vpop.permute.xlu0 %2430
      %2432 = vrot.lane.b32.xlu0 %v1090, 48
      %v2433 = vpop.permute.xlu0 %2432
      %2434 = vrot.lane.b32.xlu0 %v1091, 48
      %v2435 = vpop.permute.xlu0 %2434
      %2436 = vrot.lane.b32.xlu0 %v1095, 48
      %v2437 = vpop.permute.xlu0 %2436
      %2438 = vrot.lane.b32.xlu0 %v1096, 48
      %v2439 = vpop.permute.xlu0 %2438
      %2440 = vrot.lane.b32.xlu0 %v1097, 48
      %v2441 = vpop.permute.xlu0 %2440
      %2442 = vrot.lane.b32.xlu0 %v1102, 48
      %v2443 = vpop.permute.xlu0 %2442
      %2444 = vrot.lane.b32.xlu0 %v1103, 48
      %v2445 = vpop.permute.xlu0 %2444
      %2446 = vrot.lane.b32.xlu0 %v1104, 48
      %v2447 = vpop.permute.xlu0 %2446
      %2448 = vrot.lane.b32.xlu0 %v1110, 48
      %v2449 = vpop.permute.xlu0 %2448
      %2450 = vrot.lane.b32.xlu0 %v1111, 48
      %v2451 = vpop.permute.xlu0 %2450
      %2452 = vrot.lane.b32.xlu0 %v1112, 48
      %v2453 = vpop.permute.xlu0 %2452
      %2454 = vrot.lane.b32.xlu0 %v1118, 48
      %v2455 = vpop.permute.xlu0 %2454
      %2456 = vrot.lane.b32.xlu0 %v1119, 48
      %v2457 = vpop.permute.xlu0 %2456
      %2458 = vrot.lane.b32.xlu0 %v1120, 48
      %v2459 = vpop.permute.xlu0 %2458
      %2460 = vrot.lane.b32.xlu0 %v1126, 48
      %v2461 = vpop.permute.xlu0 %2460
      %2462 = vrot.lane.b32.xlu0 %v1127, 48
      %v2463 = vpop.permute.xlu0 %2462
      %2464 = vrot.lane.b32.xlu0 %v1128, 48
      %v2465 = vpop.permute.xlu0 %2464
      %v2514 = vrot.slane %v1090, 6
      %v2515 = vrot.slane %v1091, 6
      %v2516 = vsel %vm1404, %v2514, %v2515
      %v2517 = vrot.slane %v1096, 6
      %v2518 = vrot.slane %v1097, 6
      %v2519 = vsel %vm1404, %v2517, %v2518
      %v2520 = vrot.slane %v1103, 6
      %v2521 = vrot.slane %v1104, 6
      %v2522 = vsel %vm1404, %v2520, %v2521
      %v2523 = vrot.slane %v1111, 6
      %v2524 = vrot.slane %v1112, 6
      %v2525 = vsel %vm1404, %v2523, %v2524
      %v2526 = vrot.slane %v1119, 6
      %v2527 = vrot.slane %v1120, 6
      %v2528 = vsel %vm1404, %v2526, %v2527
      %v2529 = vrot.slane %v1127, 6
      %v2530 = vrot.slane %v1128, 6
      %v2531 = vsel %vm1404, %v2529, %v2530
      %2532 = vrot.lane.b32.xlu0 %v1441, 56
      %v2533 = vpop.permute.xlu0 %2532
      %2534 = vrot.lane.b32.xlu0 %v1443, 56
      %v2535 = vpop.permute.xlu0 %2534
      %2536 = vrot.lane.b32.xlu0 %v1442, 56
      %v2537 = vpop.permute.xlu0 %2536
      %2538 = vrot.lane.b32.xlu0 %v1444, 56
      %v2539 = vpop.permute.xlu0 %2538
      %2540 = vrot.lane.b32.xlu0 %v1446, 56
      %v2541 = vpop.permute.xlu0 %2540
      %2542 = vrot.lane.b32.xlu0 %v1445, 56
      %v2543 = vpop.permute.xlu0 %2542
      %2544 = vrot.lane.b32.xlu0 %v1447, 56
      %v2545 = vpop.permute.xlu0 %2544
      %2546 = vrot.lane.b32.xlu0 %v1449, 56
      %v2547 = vpop.permute.xlu0 %2546
      %2548 = vrot.lane.b32.xlu0 %v1448, 56
      %v2549 = vpop.permute.xlu0 %2548
      %2550 = vrot.lane.b32.xlu0 %v1450, 56
      %v2551 = vpop.permute.xlu0 %2550
      %2552 = vrot.lane.b32.xlu0 %v1452, 56
      %v2553 = vpop.permute.xlu0 %2552
      %2554 = vrot.lane.b32.xlu0 %v1451, 56
      %v2555 = vpop.permute.xlu0 %2554
      %2556 = vrot.lane.b32.xlu0 %v2010, 56
      %v2557 = vpop.permute.xlu0 %2556
      %2558 = vrot.lane.b32.xlu0 %v2012, 56
      %v2559 = vpop.permute.xlu0 %2558
      %2560 = vrot.lane.b32.xlu0 %v2011, 56
      %v2561 = vpop.permute.xlu0 %2560
      %2562 = vrot.lane.b32.xlu0 %v2013, 56
      %v2563 = vpop.permute.xlu0 %2562
      %2564 = vrot.lane.b32.xlu0 %v2015, 56
      %v2565 = vpop.permute.xlu0 %2564
      %2566 = vrot.lane.b32.xlu0 %v2014, 56
      %v2567 = vpop.permute.xlu0 %2566
      %2568 = vrot.lane.b32.xlu0 %v2016, 56
      %v2569 = vpop.permute.xlu0 %2568
      %2570 = vrot.lane.b32.xlu0 %v2018, 56
      %v2571 = vpop.permute.xlu0 %2570
      %2572 = vrot.lane.b32.xlu0 %v2017, 56
      %v2573 = vpop.permute.xlu0 %2572
      %2574 = vrot.lane.b32.xlu0 %v2019, 56
      %v2575 = vpop.permute.xlu0 %2574
      %2576 = vrot.lane.b32.xlu0 %v2021, 56
      %v2577 = vpop.permute.xlu0 %2576
      %2578 = vrot.lane.b32.xlu0 %v2020, 56
      %v2579 = vpop.permute.xlu0 %2578
      %2580 = vrot.lane.b32.xlu0 %v2022, 56
      %v2581 = vpop.permute.xlu0 %2580
      %2582 = vrot.lane.b32.xlu0 %v2024, 56
      %v2583 = vpop.permute.xlu0 %2582
      %2584 = vrot.lane.b32.xlu0 %v2023, 56
      %v2585 = vpop.permute.xlu0 %2584
      %2586 = vrot.lane.b32.xlu0 %v2025, 56
      %v2587 = vpop.permute.xlu0 %2586
      %2588 = vrot.lane.b32.xlu0 %v2027, 56
      %v2589 = vpop.permute.xlu0 %2588
      %2590 = vrot.lane.b32.xlu0 %v2026, 56
      %v2591 = vpop.permute.xlu0 %2590
      %2592 = vrot.lane.b32.xlu0 %v2514, 56
      %v2593 = vpop.permute.xlu0 %2592
      %2594 = vrot.lane.b32.xlu0 %v2516, 56
      %v2595 = vpop.permute.xlu0 %2594
      %2596 = vrot.lane.b32.xlu0 %v2515, 56
      %v2597 = vpop.permute.xlu0 %2596
      %2598 = vrot.lane.b32.xlu0 %v2517, 56
      %v2599 = vpop.permute.xlu0 %2598
      %2600 = vrot.lane.b32.xlu0 %v2519, 56
      %v2601 = vpop.permute.xlu0 %2600
      %2602 = vrot.lane.b32.xlu0 %v2518, 56
      %v2603 = vpop.permute.xlu0 %2602
      %2604 = vrot.lane.b32.xlu0 %v2520, 56
      %v2605 = vpop.permute.xlu0 %2604
      %2606 = vrot.lane.b32.xlu0 %v2522, 56
      %v2607 = vpop.permute.xlu0 %2606
      %2608 = vrot.lane.b32.xlu0 %v2521, 56
      %v2609 = vpop.permute.xlu0 %2608
      %2610 = vrot.lane.b32.xlu0 %v2523, 56
      %v2611 = vpop.permute.xlu0 %2610
      %2612 = vrot.lane.b32.xlu0 %v2525, 56
      %v2613 = vpop.permute.xlu0 %2612
      %2614 = vrot.lane.b32.xlu0 %v2524, 56
      %v2615 = vpop.permute.xlu0 %2614
      %2616 = vrot.lane.b32.xlu0 %v2526, 56
      %v2617 = vpop.permute.xlu0 %2616
      %2618 = vrot.lane.b32.xlu0 %v2528, 56
      %v2619 = vpop.permute.xlu0 %2618
      %2620 = vrot.lane.b32.xlu0 %v2527, 56
      %v2621 = vpop.permute.xlu0 %2620
      %2622 = vrot.lane.b32.xlu0 %v2529, 56
      %v2623 = vpop.permute.xlu0 %2622
      %2624 = vrot.lane.b32.xlu0 %v2531, 56
      %v2625 = vpop.permute.xlu0 %2624
      %2626 = vrot.lane.b32.xlu0 %v2530, 56
      %v2627 = vpop.permute.xlu0 %2626
      %v2682 = vrot.slane %v1090, 4
      %v2683 = vrot.slane %v1091, 4
      %v2684 = vsel %vm1613, %v2682, %v2683
      %v2685 = vrot.slane %v1092, 4
      %v2686 = vsel %vm1613, %v2683, %v2685
      %v2687 = vrot.slane %v1096, 4
      %v2688 = vrot.slane %v1097, 4
      %v2689 = vsel %vm1613, %v2687, %v2688
      %v2690 = vrot.slane %v1098, 4
      %v2691 = vsel %vm1613, %v2688, %v2690
      %v2692 = vrot.slane %v1103, 4
      %v2693 = vrot.slane %v1104, 4
      %v2694 = vsel %vm1613, %v2692, %v2693
      %v2695 = vrot.slane %v1105, 4
      %v2696 = vsel %vm1613, %v2693, %v2695
      %v2697 = vrot.slane %v1111, 4
      %v2698 = vrot.slane %v1112, 4
      %v2699 = vsel %vm1613, %v2697, %v2698
      %v2700 = vrot.slane %v1113, 4
      %v2701 = vsel %vm1613, %v2698, %v2700
      %v2702 = vrot.slane %v1119, 4
      %v2703 = vrot.slane %v1120, 4
      %v2704 = vsel %vm1613, %v2702, %v2703
      %v2705 = vrot.slane %v1121, 4
      %v2706 = vsel %vm1613, %v2703, %v2705
      %v2707 = vrot.slane %v1127, 4
      %v2708 = vrot.slane %v1128, 4
      %v2709 = vsel %vm1613, %v2707, %v2708
      %v2710 = vrot.slane %v1129, 4
      %v2711 = vsel %vm1613, %v2708, %v2710
      %2712 = vrot.lane.b32.xlu0 %v1676, 64
      %v2713 = vpop.permute.xlu0 %2712
      %2714 = vrot.lane.b32.xlu0 %v1678, 64
      %v2715 = vpop.permute.xlu0 %2714
      %2716 = vrot.lane.b32.xlu0 %v1677, 64
      %v2717 = vpop.permute.xlu0 %2716
      %2718 = vrot.lane.b32.xlu0 %v1681, 64
      %v2719 = vpop.permute.xlu0 %2718
      %2720 = vrot.lane.b32.xlu0 %v1683, 64
      %v2721 = vpop.permute.xlu0 %2720
      %2722 = vrot.lane.b32.xlu0 %v1682, 64
      %v2723 = vpop.permute.xlu0 %2722
      %2724 = vrot.lane.b32.xlu0 %v1686, 64
      %v2725 = vpop.permute.xlu0 %2724
      %2726 = vrot.lane.b32.xlu0 %v1688, 64
      %v2727 = vpop.permute.xlu0 %2726
      %2728 = vrot.lane.b32.xlu0 %v1687, 64
      %v2729 = vpop.permute.xlu0 %2728
      %2730 = vrot.lane.b32.xlu0 %v1691, 64
      %v2731 = vpop.permute.xlu0 %2730
      %2732 = vrot.lane.b32.xlu0 %v1693, 64
      %v2733 = vpop.permute.xlu0 %2732
      %2734 = vrot.lane.b32.xlu0 %v1692, 64
      %v2735 = vpop.permute.xlu0 %2734
      %2736 = vrot.lane.b32.xlu0 %v2180, 64
      %v2737 = vpop.permute.xlu0 %2736
      %2738 = vrot.lane.b32.xlu0 %v2182, 64
      %v2739 = vpop.permute.xlu0 %2738
      %2740 = vrot.lane.b32.xlu0 %v2181, 64
      %v2741 = vpop.permute.xlu0 %2740
      %2742 = vrot.lane.b32.xlu0 %v2185, 64
      %v2743 = vpop.permute.xlu0 %2742
      %2744 = vrot.lane.b32.xlu0 %v2187, 64
      %v2745 = vpop.permute.xlu0 %2744
      %2746 = vrot.lane.b32.xlu0 %v2186, 64
      %v2747 = vpop.permute.xlu0 %2746
      %2748 = vrot.lane.b32.xlu0 %v2190, 64
      %v2749 = vpop.permute.xlu0 %2748
      %2750 = vrot.lane.b32.xlu0 %v2192, 64
      %v2751 = vpop.permute.xlu0 %2750
      %2752 = vrot.lane.b32.xlu0 %v2191, 64
      %v2753 = vpop.permute.xlu0 %2752
      %2754 = vrot.lane.b32.xlu0 %v2195, 64
      %v2755 = vpop.permute.xlu0 %2754
      %2756 = vrot.lane.b32.xlu0 %v2197, 64
      %v2757 = vpop.permute.xlu0 %2756
      %2758 = vrot.lane.b32.xlu0 %v2196, 64
      %v2759 = vpop.permute.xlu0 %2758
      %2760 = vrot.lane.b32.xlu0 %v2200, 64
      %v2761 = vpop.permute.xlu0 %2760
      %2762 = vrot.lane.b32.xlu0 %v2202, 64
      %v2763 = vpop.permute.xlu0 %2762
      %2764 = vrot.lane.b32.xlu0 %v2201, 64
      %v2765 = vpop.permute.xlu0 %2764
      %2766 = vrot.lane.b32.xlu0 %v2205, 64
      %v2767 = vpop.permute.xlu0 %2766
      %2768 = vrot.lane.b32.xlu0 %v2207, 64
      %v2769 = vpop.permute.xlu0 %2768
      %2770 = vrot.lane.b32.xlu0 %v2206, 64
      %v2771 = vpop.permute.xlu0 %2770
      %2772 = vrot.lane.b32.xlu0 %v2684, 64
      %v2773 = vpop.permute.xlu0 %2772
      %2774 = vrot.lane.b32.xlu0 %v2686, 64
      %v2775 = vpop.permute.xlu0 %2774
      %2776 = vrot.lane.b32.xlu0 %v2685, 64
      %v2777 = vpop.permute.xlu0 %2776
      %2778 = vrot.lane.b32.xlu0 %v2689, 64
      %v2779 = vpop.permute.xlu0 %2778
      %2780 = vrot.lane.b32.xlu0 %v2691, 64
      %v2781 = vpop.permute.xlu0 %2780
      %2782 = vrot.lane.b32.xlu0 %v2690, 64
      %v2783 = vpop.permute.xlu0 %2782
      %2784 = vrot.lane.b32.xlu0 %v2694, 64
      %v2785 = vpop.permute.xlu0 %2784
      %2786 = vrot.lane.b32.xlu0 %v2696, 64
      %v2787 = vpop.permute.xlu0 %2786
      %2788 = vrot.lane.b32.xlu0 %v2695, 64
      %v2789 = vpop.permute.xlu0 %2788
      %2790 = vrot.lane.b32.xlu0 %v2699, 64
      %v2791 = vpop.permute.xlu0 %2790
      %2792 = vrot.lane.b32.xlu0 %v2701, 64
      %v2793 = vpop.permute.xlu0 %2792
      %2794 = vrot.lane.b32.xlu0 %v2700, 64
      %v2795 = vpop.permute.xlu0 %2794
      %2796 = vrot.lane.b32.xlu0 %v2704, 64
      %v2797 = vpop.permute.xlu0 %2796
      %2798 = vrot.lane.b32.xlu0 %v2706, 64
      %v2799 = vpop.permute.xlu0 %2798
      %2800 = vrot.lane.b32.xlu0 %v2705, 64
      %v2801 = vpop.permute.xlu0 %2800
      %2802 = vrot.lane.b32.xlu0 %v2709, 64
      %v2803 = vpop.permute.xlu0 %2802
      %2804 = vrot.lane.b32.xlu0 %v2711, 64
      %v2805 = vpop.permute.xlu0 %2804
      %2806 = vrot.lane.b32.xlu0 %v2710, 64
      %v2807 = vpop.permute.xlu0 %2806
      %vm2890 = vcmask 1045504
      %v2891 = vrot.slane %v869, 2
      %v2892 = vrot.slane %v870, 2
      %v2893 = vsel %vm2890, %v2891, %v2892
      %v2894 = vrot.slane %v871, 2
      %v2895 = vsel %vm2890, %v2892, %v2894
      %v2896 = vrot.slane %v877, 2
      %v2897 = vrot.slane %v878, 2
      %v2898 = vsel %vm2890, %v2896, %v2897
      %v2899 = vrot.slane %v879, 2
      %v2900 = vsel %vm2890, %v2897, %v2899
      %v2901 = vrot.slane %v885, 2
      %v2902 = vrot.slane %v886, 2
      %v2903 = vsel %vm2890, %v2901, %v2902
      %v2904 = vrot.slane %v887, 2
      %v2905 = vsel %vm2890, %v2902, %v2904
      %v2906 = vrot.slane %v893, 2
      %v2907 = vrot.slane %v894, 2
      %v2908 = vsel %vm2890, %v2906, %v2907
      %v2909 = vrot.slane %v895, 2
      %v2910 = vsel %vm2890, %v2907, %v2909
      %v2911 = vrot.slane %v901, 2
      %v2912 = vrot.slane %v902, 2
      %v2913 = vsel %vm2890, %v2911, %v2912
      %v2914 = vrot.slane %v903, 2
      %v2915 = vsel %vm2890, %v2912, %v2914
      %v2916 = vrot.slane %v909, 2
      %v2917 = vrot.slane %v910, 2
      %v2918 = vsel %vm2890, %v2916, %v2917
      %v2919 = vrot.slane %v911, 2
      %v2920 = vsel %vm2890, %v2917, %v2919
      %v2921 = vrot.slane %v917, 2
      %v2922 = vrot.slane %v918, 2
      %v2923 = vsel %vm2890, %v2921, %v2922
      %v2924 = vrot.slane %v919, 2
      %v2925 = vsel %vm2890, %v2922, %v2924
      %v2926 = vrot.slane %v925, 2
      %v2927 = vrot.slane %v926, 2
      %v2928 = vsel %vm2890, %v2926, %v2927
      %v2929 = vrot.slane %v927, 2
      %v2930 = vsel %vm2890, %v2927, %v2929
      %v2931 = vrot.slane %v933, 2
      %v2932 = vrot.slane %v934, 2
      %v2933 = vsel %vm2890, %v2931, %v2932
      %v2934 = vrot.slane %v935, 2
      %v2935 = vsel %vm2890, %v2932, %v2934
      %v2936 = vrot.slane %v941, 2
      %v2937 = vrot.slane %v942, 2
      %v2938 = vsel %vm2890, %v2936, %v2937
      %v2939 = vrot.slane %v943, 2
      %v2940 = vsel %vm2890, %v2937, %v2939
      %v2941 = vrot.slane %v948, 2
      %v2942 = vrot.slane %v949, 2
      %v2943 = vsel %vm2890, %v2941, %v2942
      %v2944 = vrot.slane %v950, 2
      %v2945 = vsel %vm2890, %v2942, %v2944
      %v2946 = vrot.slane %v954, 2
      %v2947 = vrot.slane %v955, 2
      %v2948 = vsel %vm2890, %v2946, %v2947
      %v2949 = vrot.slane %v956, 2
      %v2950 = vsel %vm2890, %v2947, %v2949
      %v2951 = vrot.slane %v961, 2
      %v2952 = vrot.slane %v962, 2
      %v2953 = vsel %vm2890, %v2951, %v2952
      %v2954 = vrot.slane %v963, 2
      %v2955 = vsel %vm2890, %v2952, %v2954
      %v2956 = vrot.slane %v969, 2
      %v2957 = vrot.slane %v970, 2
      %v2958 = vsel %vm2890, %v2956, %v2957
      %v2959 = vrot.slane %v971, 2
      %v2960 = vsel %vm2890, %v2957, %v2959
      %v2961 = vrot.slane %v977, 2
      %v2962 = vrot.slane %v978, 2
      %v2963 = vsel %vm2890, %v2961, %v2962
      %v2964 = vrot.slane %v979, 2
      %v2965 = vsel %vm2890, %v2962, %v2964
      %v2966 = vrot.slane %v985, 2
      %v2967 = vrot.slane %v986, 2
      %v2968 = vsel %vm2890, %v2966, %v2967
      %v2969 = vrot.slane %v987, 2
      %v2970 = vsel %vm2890, %v2967, %v2969
      %2971 = vrot.lane.b32.xlu0 %v2893, 72
      %v2972 = vpop.permute.xlu0 %2971
      %2973 = vrot.lane.b32.xlu0 %v2895, 72
      %v2974 = vpop.permute.xlu0 %2973
      %2975 = vrot.lane.b32.xlu0 %v2894, 72
      %v2976 = vpop.permute.xlu0 %2975
      %2977 = vrot.lane.b32.xlu0 %v2898, 72
      %v2978 = vpop.permute.xlu0 %2977
      %2979 = vrot.lane.b32.xlu0 %v2900, 72
      %v2980 = vpop.permute.xlu0 %2979
      %2981 = vrot.lane.b32.xlu0 %v2899, 72
      %v2982 = vpop.permute.xlu0 %2981
      %2983 = vrot.lane.b32.xlu0 %v2903, 72
      %v2984 = vpop.permute.xlu0 %2983
      %2985 = vrot.lane.b32.xlu0 %v2905, 72
      %v2986 = vpop.permute.xlu0 %2985
      %2987 = vrot.lane.b32.xlu0 %v2904, 72
      %v2988 = vpop.permute.xlu0 %2987
      %2989 = vrot.lane.b32.xlu0 %v2908, 72
      %v2990 = vpop.permute.xlu0 %2989
      %2991 = vrot.lane.b32.xlu0 %v2910, 72
      %v2992 = vpop.permute.xlu0 %2991
      %2993 = vrot.lane.b32.xlu0 %v2909, 72
      %v2994 = vpop.permute.xlu0 %2993
      %2995 = vrot.lane.b32.xlu0 %v2913, 72
      %v2996 = vpop.permute.xlu0 %2995
      %2997 = vrot.lane.b32.xlu0 %v2915, 72
      %v2998 = vpop.permute.xlu0 %2997
      %2999 = vrot.lane.b32.xlu0 %v2914, 72
      %v3000 = vpop.permute.xlu0 %2999
      %3001 = vrot.lane.b32.xlu0 %v2918, 72
      %v3002 = vpop.permute.xlu0 %3001
      %3003 = vrot.lane.b32.xlu0 %v2920, 72
      %v3004 = vpop.permute.xlu0 %3003
      %3005 = vrot.lane.b32.xlu0 %v2919, 72
      %v3006 = vpop.permute.xlu0 %3005
      %3007 = vrot.lane.b32.xlu0 %v2923, 72
      %v3008 = vpop.permute.xlu0 %3007
      %3009 = vrot.lane.b32.xlu0 %v2925, 72
      %v3010 = vpop.permute.xlu0 %3009
      %3011 = vrot.lane.b32.xlu0 %v2924, 72
      %v3012 = vpop.permute.xlu0 %3011
      %3013 = vrot.lane.b32.xlu0 %v2928, 72
      %v3014 = vpop.permute.xlu0 %3013
      %3015 = vrot.lane.b32.xlu0 %v2930, 72
      %v3016 = vpop.permute.xlu0 %3015
      %3017 = vrot.lane.b32.xlu0 %v2929, 72
      %v3018 = vpop.permute.xlu0 %3017
      %3019 = vrot.lane.b32.xlu0 %v2933, 72
      %v3020 = vpop.permute.xlu0 %3019
      %3021 = vrot.lane.b32.xlu0 %v2935, 72
      %v3022 = vpop.permute.xlu0 %3021
      %3023 = vrot.lane.b32.xlu0 %v2934, 72
      %v3024 = vpop.permute.xlu0 %3023
      %3025 = vrot.lane.b32.xlu0 %v2938, 72
      %v3026 = vpop.permute.xlu0 %3025
      %3027 = vrot.lane.b32.xlu0 %v2940, 72
      %v3028 = vpop.permute.xlu0 %3027
      %3029 = vrot.lane.b32.xlu0 %v2939, 72
      %v3030 = vpop.permute.xlu0 %3029
      %3031 = vrot.lane.b32.xlu0 %v2943, 72
      %v3032 = vpop.permute.xlu0 %3031
      %3033 = vrot.lane.b32.xlu0 %v2945, 72
      %v3034 = vpop.permute.xlu0 %3033
      %3035 = vrot.lane.b32.xlu0 %v2944, 72
      %v3036 = vpop.permute.xlu0 %3035
      %3037 = vrot.lane.b32.xlu0 %v2948, 72
      %v3038 = vpop.permute.xlu0 %3037
      %3039 = vrot.lane.b32.xlu0 %v2950, 72
      %v3040 = vpop.permute.xlu0 %3039
      %3041 = vrot.lane.b32.xlu0 %v2949, 72
      %v3042 = vpop.permute.xlu0 %3041
      %3043 = vrot.lane.b32.xlu0 %v2953, 72
      %v3044 = vpop.permute.xlu0 %3043
      %3045 = vrot.lane.b32.xlu0 %v2955, 72
      %v3046 = vpop.permute.xlu0 %3045
      %3047 = vrot.lane.b32.xlu0 %v2954, 72
      %v3048 = vpop.permute.xlu0 %3047
      %3049 = vrot.lane.b32.xlu0 %v2958, 72
      %v3050 = vpop.permute.xlu0 %3049
      %3051 = vrot.lane.b32.xlu0 %v2960, 72
      %v3052 = vpop.permute.xlu0 %3051
      %3053 = vrot.lane.b32.xlu0 %v2959, 72
      %v3054 = vpop.permute.xlu0 %3053
      %3055 = vrot.lane.b32.xlu0 %v2963, 72
      %v3056 = vpop.permute.xlu0 %3055
      %3057 = vrot.lane.b32.xlu0 %v2965, 72
      %v3058 = vpop.permute.xlu0 %3057
      %3059 = vrot.lane.b32.xlu0 %v2964, 72
      %v3060 = vpop.permute.xlu0 %3059
      %3061 = vrot.lane.b32.xlu0 %v2968, 72
      %v3062 = vpop.permute.xlu0 %3061
      %3063 = vrot.lane.b32.xlu0 %v2970, 72
      %v3064 = vpop.permute.xlu0 %3063
      %3065 = vrot.lane.b32.xlu0 %v2969, 72
      %v3066 = vpop.permute.xlu0 %3065
      %v3121 = vrot.slane %v871, 6
      %v3122 = vrot.slane %v872, 6
      %v3123 = vsel %vm1404, %v3121, %v3122
      %v3124 = vrot.slane %v879, 6
      %v3125 = vrot.slane %v880, 6
      %v3126 = vsel %vm1404, %v3124, %v3125
      %v3127 = vrot.slane %v887, 6
      %v3128 = vrot.slane %v888, 6
      %v3129 = vsel %vm1404, %v3127, %v3128
      %v3130 = vrot.slane %v895, 6
      %v3131 = vrot.slane %v896, 6
      %v3132 = vsel %vm1404, %v3130, %v3131
      %v3133 = vrot.slane %v903, 6
      %v3134 = vrot.slane %v904, 6
      %v3135 = vsel %vm1404, %v3133, %v3134
      %v3136 = vrot.slane %v911, 6
      %v3137 = vrot.slane %v912, 6
      %v3138 = vsel %vm1404, %v3136, %v3137
      %3139 = vrot.lane.b32.xlu0 %v3121, 80
      %v3140 = vpop.permute.xlu0 %3139
      %3141 = vrot.lane.b32.xlu0 %v3123, 80
      %v3142 = vpop.permute.xlu0 %3141
      %3143 = vrot.lane.b32.xlu0 %v3122, 80
      %v3144 = vpop.permute.xlu0 %3143
      %3145 = vrot.lane.b32.xlu0 %v3124, 80
      %v3146 = vpop.permute.xlu0 %3145
      %3147 = vrot.lane.b32.xlu0 %v3126, 80
      %v3148 = vpop.permute.xlu0 %3147
      %3149 = vrot.lane.b32.xlu0 %v3125, 80
      %v3150 = vpop.permute.xlu0 %3149
      %3151 = vrot.lane.b32.xlu0 %v3127, 80
      %v3152 = vpop.permute.xlu0 %3151
      %3153 = vrot.lane.b32.xlu0 %v3129, 80
      %v3154 = vpop.permute.xlu0 %3153
      %3155 = vrot.lane.b32.xlu0 %v3128, 80
      %v3156 = vpop.permute.xlu0 %3155
      %3157 = vrot.lane.b32.xlu0 %v3130, 80
      %v3158 = vpop.permute.xlu0 %3157
      %3159 = vrot.lane.b32.xlu0 %v3132, 80
      %v3160 = vpop.permute.xlu0 %3159
      %3161 = vrot.lane.b32.xlu0 %v3131, 80
      %v3162 = vpop.permute.xlu0 %3161
      %3163 = vrot.lane.b32.xlu0 %v3133, 80
      %v3164 = vpop.permute.xlu0 %3163
      %3165 = vrot.lane.b32.xlu0 %v3135, 80
      %v3166 = vpop.permute.xlu0 %3165
      %3167 = vrot.lane.b32.xlu0 %v3134, 80
      %v3168 = vpop.permute.xlu0 %3167
      %3169 = vrot.lane.b32.xlu0 %v3136, 80
      %v3170 = vpop.permute.xlu0 %3169
      %3171 = vrot.lane.b32.xlu0 %v3138, 80
      %v3172 = vpop.permute.xlu0 %3171
      %3173 = vrot.lane.b32.xlu0 %v3137, 80
      %v3174 = vpop.permute.xlu0 %3173
      %3175 = vrot.lane.b32.xlu0 %v1405, 80
      %v3176 = vpop.permute.xlu0 %3175
      %3177 = vrot.lane.b32.xlu0 %v1407, 80
      %v3178 = vpop.permute.xlu0 %3177
      %3179 = vrot.lane.b32.xlu0 %v1406, 80
      %v3180 = vpop.permute.xlu0 %3179
      %3181 = vrot.lane.b32.xlu0 %v1408, 80
      %v3182 = vpop.permute.xlu0 %3181
      %3183 = vrot.lane.b32.xlu0 %v1410, 80
      %v3184 = vpop.permute.xlu0 %3183
      %3185 = vrot.lane.b32.xlu0 %v1409, 80
      %v3186 = vpop.permute.xlu0 %3185
      %3187 = vrot.lane.b32.xlu0 %v1411, 80
      %v3188 = vpop.permute.xlu0 %3187
      %3189 = vrot.lane.b32.xlu0 %v1413, 80
      %v3190 = vpop.permute.xlu0 %3189
      %3191 = vrot.lane.b32.xlu0 %v1412, 80
      %v3192 = vpop.permute.xlu0 %3191
      %3193 = vrot.lane.b32.xlu0 %v1414, 80
      %v3194 = vpop.permute.xlu0 %3193
      %3195 = vrot.lane.b32.xlu0 %v1416, 80
      %v3196 = vpop.permute.xlu0 %3195
      %3197 = vrot.lane.b32.xlu0 %v1415, 80
      %v3198 = vpop.permute.xlu0 %3197
      %3199 = vrot.lane.b32.xlu0 %v1417, 80
      %v3200 = vpop.permute.xlu0 %3199
      %3201 = vrot.lane.b32.xlu0 %v1419, 80
      %v3202 = vpop.permute.xlu0 %3201
      %3203 = vrot.lane.b32.xlu0 %v1418, 80
      %v3204 = vpop.permute.xlu0 %3203
      %3205 = vrot.lane.b32.xlu0 %v1420, 80
      %v3206 = vpop.permute.xlu0 %3205
      %3207 = vrot.lane.b32.xlu0 %v1422, 80
      %v3208 = vpop.permute.xlu0 %3207
      %3209 = vrot.lane.b32.xlu0 %v1421, 80
      %v3210 = vpop.permute.xlu0 %3209
      %3211 = vrot.lane.b32.xlu0 %v1423, 80
      %v3212 = vpop.permute.xlu0 %3211
      %3213 = vrot.lane.b32.xlu0 %v1425, 80
      %v3214 = vpop.permute.xlu0 %3213
      %3215 = vrot.lane.b32.xlu0 %v1424, 80
      %v3216 = vpop.permute.xlu0 %3215
      %3217 = vrot.lane.b32.xlu0 %v1426, 80
      %v3218 = vpop.permute.xlu0 %3217
      %3219 = vrot.lane.b32.xlu0 %v1428, 80
      %v3220 = vpop.permute.xlu0 %3219
      %3221 = vrot.lane.b32.xlu0 %v1427, 80
      %v3222 = vpop.permute.xlu0 %3221
      %3223 = vrot.lane.b32.xlu0 %v1429, 80
      %v3224 = vpop.permute.xlu0 %3223
      %3225 = vrot.lane.b32.xlu0 %v1431, 80
      %v3226 = vpop.permute.xlu0 %3225
      %3227 = vrot.lane.b32.xlu0 %v1430, 80
      %v3228 = vpop.permute.xlu0 %3227
      %3229 = vrot.lane.b32.xlu0 %v1432, 80
      %v3230 = vpop.permute.xlu0 %3229
      %3231 = vrot.lane.b32.xlu0 %v1434, 80
      %v3232 = vpop.permute.xlu0 %3231
      %3233 = vrot.lane.b32.xlu0 %v1433, 80
      %v3234 = vpop.permute.xlu0 %3233
      %v3305 = vrot.slane %v872, 2
      %v3306 = vrot.slane %v873, 2
      %v3307 = vsel %vm2890, %v3305, %v3306
      %v3308 = vrot.slane %v874, 2
      %v3309 = vsel %vm2890, %v3306, %v3308
      %v3310 = vrot.slane %v880, 2
      %v3311 = vrot.slane %v881, 2
      %v3312 = vsel %vm2890, %v3310, %v3311
      %v3313 = vrot.slane %v882, 2
      %v3314 = vsel %vm2890, %v3311, %v3313
      %v3315 = vrot.slane %v888, 2
      %v3316 = vrot.slane %v889, 2
      %v3317 = vsel %vm2890, %v3315, %v3316
      %v3318 = vrot.slane %v890, 2
      %v3319 = vsel %vm2890, %v3316, %v3318
      %v3320 = vrot.slane %v896, 2
      %v3321 = vrot.slane %v897, 2
      %v3322 = vsel %vm2890, %v3320, %v3321
      %v3323 = vrot.slane %v898, 2
      %v3324 = vsel %vm2890, %v3321, %v3323
      %v3325 = vrot.slane %v904, 2
      %v3326 = vrot.slane %v905, 2
      %v3327 = vsel %vm2890, %v3325, %v3326
      %v3328 = vrot.slane %v906, 2
      %v3329 = vsel %vm2890, %v3326, %v3328
      %v3330 = vrot.slane %v912, 2
      %v3331 = vrot.slane %v913, 2
      %v3332 = vsel %vm2890, %v3330, %v3331
      %v3333 = vrot.slane %v914, 2
      %v3334 = vsel %vm2890, %v3331, %v3333
      %v3335 = vrot.slane %v920, 2
      %v3336 = vrot.slane %v921, 2
      %v3337 = vsel %vm2890, %v3335, %v3336
      %v3338 = vrot.slane %v922, 2
      %v3339 = vsel %vm2890, %v3336, %v3338
      %v3340 = vrot.slane %v928, 2
      %v3341 = vrot.slane %v929, 2
      %v3342 = vsel %vm2890, %v3340, %v3341
      %v3343 = vrot.slane %v930, 2
      %v3344 = vsel %vm2890, %v3341, %v3343
      %v3345 = vrot.slane %v936, 2
      %v3346 = vrot.slane %v937, 2
      %v3347 = vsel %vm2890, %v3345, %v3346
      %v3348 = vrot.slane %v938, 2
      %v3349 = vsel %vm2890, %v3346, %v3348
      %v3350 = vrot.slane %v944, 2
      %v3351 = vrot.slane %v945, 2
      %v3352 = vsel %vm2890, %v3350, %v3351
      %v3353 = vrot.slane %v946, 2
      %v3354 = vsel %vm2890, %v3351, %v3353
      %v3355 = vrot.slane %v951, 2
      %v3356 = vrot.slane %v952, 2
      %v3357 = vsel %vm2890, %v3355, %v3356
      %v3358 = vrot.slane %v953, 2
      %v3359 = vsel %vm2890, %v3356, %v3358
      %v3360 = vrot.slane %v957, 2
      %v3361 = vrot.slane %v958, 2
      %v3362 = vsel %vm2890, %v3360, %v3361
      %v3363 = vrot.slane %v959, 2
      %v3364 = vsel %vm2890, %v3361, %v3363
      %v3365 = vrot.slane %v964, 2
      %v3366 = vrot.slane %v965, 2
      %v3367 = vsel %vm2890, %v3365, %v3366
      %v3368 = vrot.slane %v966, 2
      %v3369 = vsel %vm2890, %v3366, %v3368
      %v3370 = vrot.slane %v972, 2
      %v3371 = vrot.slane %v973, 2
      %v3372 = vsel %vm2890, %v3370, %v3371
      %v3373 = vrot.slane %v974, 2
      %v3374 = vsel %vm2890, %v3371, %v3373
      %v3375 = vrot.slane %v980, 2
      %v3376 = vrot.slane %v981, 2
      %v3377 = vsel %vm2890, %v3375, %v3376
      %v3378 = vrot.slane %v982, 2
      %v3379 = vsel %vm2890, %v3376, %v3378
      %v3380 = vrot.slane %v988, 2
      %v3381 = vrot.slane %v989, 2
      %v3382 = vsel %vm2890, %v3380, %v3381
      %v3383 = vrot.slane %v990, 2
      %v3384 = vsel %vm2890, %v3381, %v3383
      %3385 = vrot.lane.b32.xlu0 %v3307, 88
      %v3386 = vpop.permute.xlu0 %3385
      %3387 = vrot.lane.b32.xlu0 %v3309, 88
      %v3388 = vpop.permute.xlu0 %3387
      %3389 = vrot.lane.b32.xlu0 %v3308, 88
      %v3390 = vpop.permute.xlu0 %3389
      %3391 = vrot.lane.b32.xlu0 %v3312, 88
      %v3392 = vpop.permute.xlu0 %3391
      %3393 = vrot.lane.b32.xlu0 %v3314, 88
      %v3394 = vpop.permute.xlu0 %3393
      %3395 = vrot.lane.b32.xlu0 %v3313, 88
      %v3396 = vpop.permute.xlu0 %3395
      %3397 = vrot.lane.b32.xlu0 %v3317, 88
      %v3398 = vpop.permute.xlu0 %3397
      %3399 = vrot.lane.b32.xlu0 %v3319, 88
      %v3400 = vpop.permute.xlu0 %3399
      %3401 = vrot.lane.b32.xlu0 %v3318, 88
      %v3402 = vpop.permute.xlu0 %3401
      %3403 = vrot.lane.b32.xlu0 %v3322, 88
      %v3404 = vpop.permute.xlu0 %3403
      %3405 = vrot.lane.b32.xlu0 %v3324, 88
      %v3406 = vpop.permute.xlu0 %3405
      %3407 = vrot.lane.b32.xlu0 %v3323, 88
      %v3408 = vpop.permute.xlu0 %3407
      %3409 = vrot.lane.b32.xlu0 %v3327, 88
      %v3410 = vpop.permute.xlu0 %3409
      %3411 = vrot.lane.b32.xlu0 %v3329, 88
      %v3412 = vpop.permute.xlu0 %3411
      %3413 = vrot.lane.b32.xlu0 %v3328, 88
      %v3414 = vpop.permute.xlu0 %3413
      %3415 = vrot.lane.b32.xlu0 %v3332, 88
      %v3416 = vpop.permute.xlu0 %3415
      %3417 = vrot.lane.b32.xlu0 %v3334, 88
      %v3418 = vpop.permute.xlu0 %3417
      %3419 = vrot.lane.b32.xlu0 %v3333, 88
      %v3420 = vpop.permute.xlu0 %3419
      %3421 = vrot.lane.b32.xlu0 %v3337, 88
      %v3422 = vpop.permute.xlu0 %3421
      %3423 = vrot.lane.b32.xlu0 %v3339, 88
      %v3424 = vpop.permute.xlu0 %3423
      %3425 = vrot.lane.b32.xlu0 %v3338, 88
      %v3426 = vpop.permute.xlu0 %3425
      %3427 = vrot.lane.b32.xlu0 %v3342, 88
      %v3428 = vpop.permute.xlu0 %3427
      %3429 = vrot.lane.b32.xlu0 %v3344, 88
      %v3430 = vpop.permute.xlu0 %3429
      %3431 = vrot.lane.b32.xlu0 %v3343, 88
      %v3432 = vpop.permute.xlu0 %3431
      %3433 = vrot.lane.b32.xlu0 %v3347, 88
      %v3434 = vpop.permute.xlu0 %3433
      %3435 = vrot.lane.b32.xlu0 %v3349, 88
      %v3436 = vpop.permute.xlu0 %3435
      %3437 = vrot.lane.b32.xlu0 %v3348, 88
      %v3438 = vpop.permute.xlu0 %3437
      %3439 = vrot.lane.b32.xlu0 %v3352, 88
      %v3440 = vpop.permute.xlu0 %3439
      %3441 = vrot.lane.b32.xlu0 %v3354, 88
      %v3442 = vpop.permute.xlu0 %3441
      %3443 = vrot.lane.b32.xlu0 %v3353, 88
      %v3444 = vpop.permute.xlu0 %3443
      %3445 = vrot.lane.b32.xlu0 %v3357, 88
      %v3446 = vpop.permute.xlu0 %3445
      %3447 = vrot.lane.b32.xlu0 %v3359, 88
      %v3448 = vpop.permute.xlu0 %3447
      %3449 = vrot.lane.b32.xlu0 %v3358, 88
      %v3450 = vpop.permute.xlu0 %3449
      %3451 = vrot.lane.b32.xlu0 %v3362, 88
      %v3452 = vpop.permute.xlu0 %3451
      %3453 = vrot.lane.b32.xlu0 %v3364, 88
      %v3454 = vpop.permute.xlu0 %3453
      %3455 = vrot.lane.b32.xlu0 %v3363, 88
      %v3456 = vpop.permute.xlu0 %3455
      %3457 = vrot.lane.b32.xlu0 %v3367, 88
      %v3458 = vpop.permute.xlu0 %3457
      %3459 = vrot.lane.b32.xlu0 %v3369, 88
      %v3460 = vpop.permute.xlu0 %3459
      %3461 = vrot.lane.b32.xlu0 %v3368, 88
      %v3462 = vpop.permute.xlu0 %3461
      %3463 = vrot.lane.b32.xlu0 %v3372, 88
      %v3464 = vpop.permute.xlu0 %3463
      %3465 = vrot.lane.b32.xlu0 %v3374, 88
      %v3466 = vpop.permute.xlu0 %3465
      %3467 = vrot.lane.b32.xlu0 %v3373, 88
      %v3468 = vpop.permute.xlu0 %3467
      %3469 = vrot.lane.b32.xlu0 %v3377, 88
      %v3470 = vpop.permute.xlu0 %3469
      %3471 = vrot.lane.b32.xlu0 %v3379, 88
      %v3472 = vpop.permute.xlu0 %3471
      %3473 = vrot.lane.b32.xlu0 %v3378, 88
      %v3474 = vpop.permute.xlu0 %3473
      %3475 = vrot.lane.b32.xlu0 %v3382, 88
      %v3476 = vpop.permute.xlu0 %3475
      %3477 = vrot.lane.b32.xlu0 %v3384, 88
      %v3478 = vpop.permute.xlu0 %3477
      %3479 = vrot.lane.b32.xlu0 %v3383, 88
      %v3480 = vpop.permute.xlu0 %3479
      %v3541 = vrot.slane %v993, 2
      %v3542 = vrot.slane %v994, 2
      %v3543 = vsel %vm2890, %v3541, %v3542
      %v3544 = vrot.slane %v995, 2
      %v3545 = vsel %vm2890, %v3542, %v3544
      %v3546 = vrot.slane %v1001, 2
      %v3547 = vrot.slane %v1002, 2
      %v3548 = vsel %vm2890, %v3546, %v3547
      %v3549 = vrot.slane %v1003, 2
      %v3550 = vsel %vm2890, %v3547, %v3549
      %v3551 = vrot.slane %v1009, 2
      %v3552 = vrot.slane %v1010, 2
      %v3553 = vsel %vm2890, %v3551, %v3552
      %v3554 = vrot.slane %v1011, 2
      %v3555 = vsel %vm2890, %v3552, %v3554
      %v3556 = vrot.slane %v1017, 2
      %v3557 = vrot.slane %v1018, 2
      %v3558 = vsel %vm2890, %v3556, %v3557
      %v3559 = vrot.slane %v1019, 2
      %v3560 = vsel %vm2890, %v3557, %v3559
      %v3561 = vrot.slane %v1025, 2
      %v3562 = vrot.slane %v1026, 2
      %v3563 = vsel %vm2890, %v3561, %v3562
      %v3564 = vrot.slane %v1027, 2
      %v3565 = vsel %vm2890, %v3562, %v3564
      %v3566 = vrot.slane %v1033, 2
      %v3567 = vrot.slane %v1034, 2
      %v3568 = vsel %vm2890, %v3566, %v3567
      %v3569 = vrot.slane %v1035, 2
      %v3570 = vsel %vm2890, %v3567, %v3569
      %v3571 = vrot.slane %v1041, 2
      %v3572 = vrot.slane %v1042, 2
      %v3573 = vsel %vm2890, %v3571, %v3572
      %v3574 = vrot.slane %v1043, 2
      %v3575 = vsel %vm2890, %v3572, %v3574
      %v3576 = vrot.slane %v1049, 2
      %v3577 = vrot.slane %v1050, 2
      %v3578 = vsel %vm2890, %v3576, %v3577
      %v3579 = vrot.slane %v1051, 2
      %v3580 = vsel %vm2890, %v3577, %v3579
      %v3581 = vrot.slane %v1057, 2
      %v3582 = vrot.slane %v1058, 2
      %v3583 = vsel %vm2890, %v3581, %v3582
      %v3584 = vrot.slane %v1059, 2
      %v3585 = vsel %vm2890, %v3582, %v3584
      %v3586 = vrot.slane %v1065, 2
      %v3587 = vrot.slane %v1066, 2
      %v3588 = vsel %vm2890, %v3586, %v3587
      %v3589 = vrot.slane %v1067, 2
      %v3590 = vsel %vm2890, %v3587, %v3589
      %v3591 = vrot.slane %v1073, 2
      %v3592 = vrot.slane %v1074, 2
      %v3593 = vsel %vm2890, %v3591, %v3592
      %v3594 = vrot.slane %v1075, 2
      %v3595 = vsel %vm2890, %v3592, %v3594
      %v3596 = vrot.slane %v1081, 2
      %v3597 = vrot.slane %v1082, 2
      %v3598 = vsel %vm2890, %v3596, %v3597
      %v3599 = vrot.slane %v1083, 2
      %v3600 = vsel %vm2890, %v3597, %v3599
      %3601 = vrot.lane.b32.xlu0 %v2953, 96
      %v3602 = vpop.permute.xlu0 %3601
      %3603 = vrot.lane.b32.xlu0 %v2955, 96
      %v3604 = vpop.permute.xlu0 %3603
      %3605 = vrot.lane.b32.xlu0 %v2954, 96
      %v3606 = vpop.permute.xlu0 %3605
      %3607 = vrot.lane.b32.xlu0 %v2958, 96
      %v3608 = vpop.permute.xlu0 %3607
      %3609 = vrot.lane.b32.xlu0 %v2960, 96
      %v3610 = vpop.permute.xlu0 %3609
      %3611 = vrot.lane.b32.xlu0 %v2959, 96
      %v3612 = vpop.permute.xlu0 %3611
      %3613 = vrot.lane.b32.xlu0 %v2963, 96
      %v3614 = vpop.permute.xlu0 %3613
      %3615 = vrot.lane.b32.xlu0 %v2965, 96
      %v3616 = vpop.permute.xlu0 %3615
      %3617 = vrot.lane.b32.xlu0 %v2964, 96
      %v3618 = vpop.permute.xlu0 %3617
      %3619 = vrot.lane.b32.xlu0 %v2968, 96
      %v3620 = vpop.permute.xlu0 %3619
      %3621 = vrot.lane.b32.xlu0 %v2970, 96
      %v3622 = vpop.permute.xlu0 %3621
      %3623 = vrot.lane.b32.xlu0 %v2969, 96
      %v3624 = vpop.permute.xlu0 %3623
      %3625 = vrot.lane.b32.xlu0 %v3543, 96
      %v3626 = vpop.permute.xlu0 %3625
      %3627 = vrot.lane.b32.xlu0 %v3545, 96
      %v3628 = vpop.permute.xlu0 %3627
      %3629 = vrot.lane.b32.xlu0 %v3544, 96
      %v3630 = vpop.permute.xlu0 %3629
      %3631 = vrot.lane.b32.xlu0 %v3548, 96
      %v3632 = vpop.permute.xlu0 %3631
      %3633 = vrot.lane.b32.xlu0 %v3550, 96
      %v3634 = vpop.permute.xlu0 %3633
      %3635 = vrot.lane.b32.xlu0 %v3549, 96
      %v3636 = vpop.permute.xlu0 %3635
      %3637 = vrot.lane.b32.xlu0 %v3553, 96
      %v3638 = vpop.permute.xlu0 %3637
      %3639 = vrot.lane.b32.xlu0 %v3555, 96
      %v3640 = vpop.permute.xlu0 %3639
      %3641 = vrot.lane.b32.xlu0 %v3554, 96
      %v3642 = vpop.permute.xlu0 %3641
      %3643 = vrot.lane.b32.xlu0 %v3558, 96
      %v3644 = vpop.permute.xlu0 %3643
      %3645 = vrot.lane.b32.xlu0 %v3560, 96
      %v3646 = vpop.permute.xlu0 %3645
      %3647 = vrot.lane.b32.xlu0 %v3559, 96
      %v3648 = vpop.permute.xlu0 %3647
      %3649 = vrot.lane.b32.xlu0 %v3563, 96
      %v3650 = vpop.permute.xlu0 %3649
      %3651 = vrot.lane.b32.xlu0 %v3565, 96
      %v3652 = vpop.permute.xlu0 %3651
      %3653 = vrot.lane.b32.xlu0 %v3564, 96
      %v3654 = vpop.permute.xlu0 %3653
      %3655 = vrot.lane.b32.xlu0 %v3568, 96
      %v3656 = vpop.permute.xlu0 %3655
      %3657 = vrot.lane.b32.xlu0 %v3570, 96
      %v3658 = vpop.permute.xlu0 %3657
      %3659 = vrot.lane.b32.xlu0 %v3569, 96
      %v3660 = vpop.permute.xlu0 %3659
      %3661 = vrot.lane.b32.xlu0 %v3573, 96
      %v3662 = vpop.permute.xlu0 %3661
      %3663 = vrot.lane.b32.xlu0 %v3575, 96
      %v3664 = vpop.permute.xlu0 %3663
      %3665 = vrot.lane.b32.xlu0 %v3574, 96
      %v3666 = vpop.permute.xlu0 %3665
      %3667 = vrot.lane.b32.xlu0 %v3578, 96
      %v3668 = vpop.permute.xlu0 %3667
      %3669 = vrot.lane.b32.xlu0 %v3580, 96
      %v3670 = vpop.permute.xlu0 %3669
      %3671 = vrot.lane.b32.xlu0 %v3579, 96
      %v3672 = vpop.permute.xlu0 %3671
      %3673 = vrot.lane.b32.xlu0 %v3583, 96
      %v3674 = vpop.permute.xlu0 %3673
      %3675 = vrot.lane.b32.xlu0 %v3585, 96
      %v3676 = vpop.permute.xlu0 %3675
      %3677 = vrot.lane.b32.xlu0 %v3584, 96
      %v3678 = vpop.permute.xlu0 %3677
      %3679 = vrot.lane.b32.xlu0 %v3588, 96
      %v3680 = vpop.permute.xlu0 %3679
      %3681 = vrot.lane.b32.xlu0 %v3590, 96
      %v3682 = vpop.permute.xlu0 %3681
      %3683 = vrot.lane.b32.xlu0 %v3589, 96
      %v3684 = vpop.permute.xlu0 %3683
      %3685 = vrot.lane.b32.xlu0 %v3593, 96
      %v3686 = vpop.permute.xlu0 %3685
      %3687 = vrot.lane.b32.xlu0 %v3595, 96
      %v3688 = vpop.permute.xlu0 %3687
      %3689 = vrot.lane.b32.xlu0 %v3594, 96
      %v3690 = vpop.permute.xlu0 %3689
      %3691 = vrot.lane.b32.xlu0 %v3598, 96
      %v3692 = vpop.permute.xlu0 %3691
      %3693 = vrot.lane.b32.xlu0 %v3600, 96
      %v3694 = vpop.permute.xlu0 %3693
      %3695 = vrot.lane.b32.xlu0 %v3599, 96
      %v3696 = vpop.permute.xlu0 %3695
      %3745 = vrot.lane.b32.xlu0 %v1423, 104
      %v3746 = vpop.permute.xlu0 %3745
      %3747 = vrot.lane.b32.xlu0 %v1425, 104
      %v3748 = vpop.permute.xlu0 %3747
      %3749 = vrot.lane.b32.xlu0 %v1424, 104
      %v3750 = vpop.permute.xlu0 %3749
      %3751 = vrot.lane.b32.xlu0 %v1426, 104
      %v3752 = vpop.permute.xlu0 %3751
      %3753 = vrot.lane.b32.xlu0 %v1428, 104
      %v3754 = vpop.permute.xlu0 %3753
      %3755 = vrot.lane.b32.xlu0 %v1427, 104
      %v3756 = vpop.permute.xlu0 %3755
      %3757 = vrot.lane.b32.xlu0 %v1429, 104
      %v3758 = vpop.permute.xlu0 %3757
      %3759 = vrot.lane.b32.xlu0 %v1431, 104
      %v3760 = vpop.permute.xlu0 %3759
      %3761 = vrot.lane.b32.xlu0 %v1430, 104
      %v3762 = vpop.permute.xlu0 %3761
      %3763 = vrot.lane.b32.xlu0 %v1432, 104
      %v3764 = vpop.permute.xlu0 %3763
      %3765 = vrot.lane.b32.xlu0 %v1434, 104
      %v3766 = vpop.permute.xlu0 %3765
      %3767 = vrot.lane.b32.xlu0 %v1433, 104
      %v3768 = vpop.permute.xlu0 %3767
      %3769 = vrot.lane.b32.xlu0 %v1435, 104
      %v3770 = vpop.permute.xlu0 %3769
      %3771 = vrot.lane.b32.xlu0 %v1437, 104
      %v3772 = vpop.permute.xlu0 %3771
      %3773 = vrot.lane.b32.xlu0 %v1436, 104
      %v3774 = vpop.permute.xlu0 %3773
      %3775 = vrot.lane.b32.xlu0 %v1438, 104
      %v3776 = vpop.permute.xlu0 %3775
      %3777 = vrot.lane.b32.xlu0 %v1440, 104
      %v3778 = vpop.permute.xlu0 %3777
      %3779 = vrot.lane.b32.xlu0 %v1439, 104
      %v3780 = vpop.permute.xlu0 %3779
      %3781 = vrot.lane.b32.xlu0 %v1441, 104
      %v3782 = vpop.permute.xlu0 %3781
      %3783 = vrot.lane.b32.xlu0 %v1443, 104
      %v3784 = vpop.permute.xlu0 %3783
      %3785 = vrot.lane.b32.xlu0 %v1442, 104
      %v3786 = vpop.permute.xlu0 %3785
      %3787 = vrot.lane.b32.xlu0 %v1444, 104
      %v3788 = vpop.permute.xlu0 %3787
      %3789 = vrot.lane.b32.xlu0 %v1446, 104
      %v3790 = vpop.permute.xlu0 %3789
      %3791 = vrot.lane.b32.xlu0 %v1445, 104
      %v3792 = vpop.permute.xlu0 %3791
      %3793 = vrot.lane.b32.xlu0 %v1447, 104
      %v3794 = vpop.permute.xlu0 %3793
      %3795 = vrot.lane.b32.xlu0 %v1449, 104
      %v3796 = vpop.permute.xlu0 %3795
      %3797 = vrot.lane.b32.xlu0 %v1448, 104
      %v3798 = vpop.permute.xlu0 %3797
      %3799 = vrot.lane.b32.xlu0 %v1450, 104
      %v3800 = vpop.permute.xlu0 %3799
      %3801 = vrot.lane.b32.xlu0 %v1452, 104
      %v3802 = vpop.permute.xlu0 %3801
      %3803 = vrot.lane.b32.xlu0 %v1451, 104
      %v3804 = vpop.permute.xlu0 %3803
      %3805 = vrot.lane.b32.xlu0 %v2010, 104
      %v3806 = vpop.permute.xlu0 %3805
      %3807 = vrot.lane.b32.xlu0 %v2012, 104
      %v3808 = vpop.permute.xlu0 %3807
      %3809 = vrot.lane.b32.xlu0 %v2011, 104
      %v3810 = vpop.permute.xlu0 %3809
      %3811 = vrot.lane.b32.xlu0 %v2013, 104
      %v3812 = vpop.permute.xlu0 %3811
      %3813 = vrot.lane.b32.xlu0 %v2015, 104
      %v3814 = vpop.permute.xlu0 %3813
      %3815 = vrot.lane.b32.xlu0 %v2014, 104
      %v3816 = vpop.permute.xlu0 %3815
      %3817 = vrot.lane.b32.xlu0 %v2016, 104
      %v3818 = vpop.permute.xlu0 %3817
      %3819 = vrot.lane.b32.xlu0 %v2018, 104
      %v3820 = vpop.permute.xlu0 %3819
      %3821 = vrot.lane.b32.xlu0 %v2017, 104
      %v3822 = vpop.permute.xlu0 %3821
      %3823 = vrot.lane.b32.xlu0 %v2019, 104
      %v3824 = vpop.permute.xlu0 %3823
      %3825 = vrot.lane.b32.xlu0 %v2021, 104
      %v3826 = vpop.permute.xlu0 %3825
      %3827 = vrot.lane.b32.xlu0 %v2020, 104
      %v3828 = vpop.permute.xlu0 %3827
      %3829 = vrot.lane.b32.xlu0 %v2022, 104
      %v3830 = vpop.permute.xlu0 %3829
      %3831 = vrot.lane.b32.xlu0 %v2024, 104
      %v3832 = vpop.permute.xlu0 %3831
      %3833 = vrot.lane.b32.xlu0 %v2023, 104
      %v3834 = vpop.permute.xlu0 %3833
      %3835 = vrot.lane.b32.xlu0 %v2025, 104
      %v3836 = vpop.permute.xlu0 %3835
      %3837 = vrot.lane.b32.xlu0 %v2027, 104
      %v3838 = vpop.permute.xlu0 %3837
      %3839 = vrot.lane.b32.xlu0 %v2026, 104
      %v3840 = vpop.permute.xlu0 %3839
      %v3901 = vrot.slane %v996, 2
      %v3902 = vrot.slane %v997, 2
      %v3903 = vsel %vm2890, %v3901, %v3902
      %v3904 = vrot.slane %v998, 2
      %v3905 = vsel %vm2890, %v3902, %v3904
      %v3906 = vrot.slane %v1004, 2
      %v3907 = vrot.slane %v1005, 2
      %v3908 = vsel %vm2890, %v3906, %v3907
      %v3909 = vrot.slane %v1006, 2
      %v3910 = vsel %vm2890, %v3907, %v3909
      %v3911 = vrot.slane %v1012, 2
      %v3912 = vrot.slane %v1013, 2
      %v3913 = vsel %vm2890, %v3911, %v3912
      %v3914 = vrot.slane %v1014, 2
      %v3915 = vsel %vm2890, %v3912, %v3914
      %v3916 = vrot.slane %v1020, 2
      %v3917 = vrot.slane %v1021, 2
      %v3918 = vsel %vm2890, %v3916, %v3917
      %v3919 = vrot.slane %v1022, 2
      %v3920 = vsel %vm2890, %v3917, %v3919
      %v3921 = vrot.slane %v1028, 2
      %v3922 = vrot.slane %v1029, 2
      %v3923 = vsel %vm2890, %v3921, %v3922
      %v3924 = vrot.slane %v1030, 2
      %v3925 = vsel %vm2890, %v3922, %v3924
      %v3926 = vrot.slane %v1036, 2
      %v3927 = vrot.slane %v1037, 2
      %v3928 = vsel %vm2890, %v3926, %v3927
      %v3929 = vrot.slane %v1038, 2
      %v3930 = vsel %vm2890, %v3927, %v3929
      %v3931 = vrot.slane %v1044, 2
      %v3932 = vrot.slane %v1045, 2
      %v3933 = vsel %vm2890, %v3931, %v3932
      %v3934 = vrot.slane %v1046, 2
      %v3935 = vsel %vm2890, %v3932, %v3934
      %v3936 = vrot.slane %v1052, 2
      %v3937 = vrot.slane %v1053, 2
      %v3938 = vsel %vm2890, %v3936, %v3937
      %v3939 = vrot.slane %v1054, 2
      %v3940 = vsel %vm2890, %v3937, %v3939
      %v3941 = vrot.slane %v1060, 2
      %v3942 = vrot.slane %v1061, 2
      %v3943 = vsel %vm2890, %v3941, %v3942
      %v3944 = vrot.slane %v1062, 2
      %v3945 = vsel %vm2890, %v3942, %v3944
      %v3946 = vrot.slane %v1068, 2
      %v3947 = vrot.slane %v1069, 2
      %v3948 = vsel %vm2890, %v3946, %v3947
      %v3949 = vrot.slane %v1070, 2
      %v3950 = vsel %vm2890, %v3947, %v3949
      %v3951 = vrot.slane %v1076, 2
      %v3952 = vrot.slane %v1077, 2
      %v3953 = vsel %vm2890, %v3951, %v3952
      %v3954 = vrot.slane %v1078, 2
      %v3955 = vsel %vm2890, %v3952, %v3954
      %v3956 = vrot.slane %v1084, 2
      %v3957 = vrot.slane %v1085, 2
      %v3958 = vsel %vm2890, %v3956, %v3957
      %v3959 = vrot.slane %v1086, 2
      %v3960 = vsel %vm2890, %v3957, %v3959
      %3961 = vrot.lane.b32.xlu0 %v3367, 112
      %v3962 = vpop.permute.xlu0 %3961
      %3963 = vrot.lane.b32.xlu0 %v3369, 112
      %v3964 = vpop.permute.xlu0 %3963
      %3965 = vrot.lane.b32.xlu0 %v3368, 112
      %v3966 = vpop.permute.xlu0 %3965
      %3967 = vrot.lane.b32.xlu0 %v3372, 112
      %v3968 = vpop.permute.xlu0 %3967
      %3969 = vrot.lane.b32.xlu0 %v3374, 112
      %v3970 = vpop.permute.xlu0 %3969
      %3971 = vrot.lane.b32.xlu0 %v3373, 112
      %v3972 = vpop.permute.xlu0 %3971
      %3973 = vrot.lane.b32.xlu0 %v3377, 112
      %v3974 = vpop.permute.xlu0 %3973
      %3975 = vrot.lane.b32.xlu0 %v3379, 112
      %v3976 = vpop.permute.xlu0 %3975
      %3977 = vrot.lane.b32.xlu0 %v3378, 112
      %v3978 = vpop.permute.xlu0 %3977
      %3979 = vrot.lane.b32.xlu0 %v3382, 112
      %v3980 = vpop.permute.xlu0 %3979
      %3981 = vrot.lane.b32.xlu0 %v3384, 112
      %v3982 = vpop.permute.xlu0 %3981
      %3983 = vrot.lane.b32.xlu0 %v3383, 112
      %v3984 = vpop.permute.xlu0 %3983
      %3985 = vrot.lane.b32.xlu0 %v3903, 112
      %v3986 = vpop.permute.xlu0 %3985
      %3987 = vrot.lane.b32.xlu0 %v3905, 112
      %v3988 = vpop.permute.xlu0 %3987
      %3989 = vrot.lane.b32.xlu0 %v3904, 112
      %v3990 = vpop.permute.xlu0 %3989
      %3991 = vrot.lane.b32.xlu0 %v3908, 112
      %v3992 = vpop.permute.xlu0 %3991
      %3993 = vrot.lane.b32.xlu0 %v3910, 112
      %v3994 = vpop.permute.xlu0 %3993
      %3995 = vrot.lane.b32.xlu0 %v3909, 112
      %v3996 = vpop.permute.xlu0 %3995
      %3997 = vrot.lane.b32.xlu0 %v3913, 112
      %v3998 = vpop.permute.xlu0 %3997
      %3999 = vrot.lane.b32.xlu0 %v3915, 112
      %v4000 = vpop.permute.xlu0 %3999
      %4001 = vrot.lane.b32.xlu0 %v3914, 112
      %v4002 = vpop.permute.xlu0 %4001
      %4003 = vrot.lane.b32.xlu0 %v3918, 112
      %v4004 = vpop.permute.xlu0 %4003
      %4005 = vrot.lane.b32.xlu0 %v3920, 112
      %v4006 = vpop.permute.xlu0 %4005
      %4007 = vrot.lane.b32.xlu0 %v3919, 112
      %v4008 = vpop.permute.xlu0 %4007
      %4009 = vrot.lane.b32.xlu0 %v3923, 112
      %v4010 = vpop.permute.xlu0 %4009
      %4011 = vrot.lane.b32.xlu0 %v3925, 112
      %v4012 = vpop.permute.xlu0 %4011
      %4013 = vrot.lane.b32.xlu0 %v3924, 112
      %v4014 = vpop.permute.xlu0 %4013
      %4015 = vrot.lane.b32.xlu0 %v3928, 112
      %v4016 = vpop.permute.xlu0 %4015
      %4017 = vrot.lane.b32.xlu0 %v3930, 112
      %v4018 = vpop.permute.xlu0 %4017
      %4019 = vrot.lane.b32.xlu0 %v3929, 112
      %v4020 = vpop.permute.xlu0 %4019
      %4021 = vrot.lane.b32.xlu0 %v3933, 112
      %v4022 = vpop.permute.xlu0 %4021
      %4023 = vrot.lane.b32.xlu0 %v3935, 112
      %v4024 = vpop.permute.xlu0 %4023
      %4025 = vrot.lane.b32.xlu0 %v3934, 112
      %v4026 = vpop.permute.xlu0 %4025
      %4027 = vrot.lane.b32.xlu0 %v3938, 112
      %v4028 = vpop.permute.xlu0 %4027
      %4029 = vrot.lane.b32.xlu0 %v3940, 112
      %v4030 = vpop.permute.xlu0 %4029
      %4031 = vrot.lane.b32.xlu0 %v3939, 112
      %v4032 = vpop.permute.xlu0 %4031
      %4033 = vrot.lane.b32.xlu0 %v3943, 112
      %v4034 = vpop.permute.xlu0 %4033
      %4035 = vrot.lane.b32.xlu0 %v3945, 112
      %v4036 = vpop.permute.xlu0 %4035
      %4037 = vrot.lane.b32.xlu0 %v3944, 112
      %v4038 = vpop.permute.xlu0 %4037
      %4039 = vrot.lane.b32.xlu0 %v3948, 112
      %v4040 = vpop.permute.xlu0 %4039
      %4041 = vrot.lane.b32.xlu0 %v3950, 112
      %v4042 = vpop.permute.xlu0 %4041
      %4043 = vrot.lane.b32.xlu0 %v3949, 112
      %v4044 = vpop.permute.xlu0 %4043
      %4045 = vrot.lane.b32.xlu0 %v3953, 112
      %v4046 = vpop.permute.xlu0 %4045
      %4047 = vrot.lane.b32.xlu0 %v3955, 112
      %v4048 = vpop.permute.xlu0 %4047
      %4049 = vrot.lane.b32.xlu0 %v3954, 112
      %v4050 = vpop.permute.xlu0 %4049
      %4051 = vrot.lane.b32.xlu0 %v3958, 112
      %v4052 = vpop.permute.xlu0 %4051
      %4053 = vrot.lane.b32.xlu0 %v3960, 112
      %v4054 = vpop.permute.xlu0 %4053
      %4055 = vrot.lane.b32.xlu0 %v3959, 112
      %v4056 = vpop.permute.xlu0 %4055
      %v4129 = vrot.slane %v1088, 2
      %v4130 = vrot.slane %v1089, 2
      %v4131 = vsel %vm2890, %v4129, %v4130
      %v4132 = vrot.slane %v1090, 2
      %v4133 = vsel %vm2890, %v4130, %v4132
      %v4134 = vrot.slane %v1094, 2
      %v4135 = vrot.slane %v1095, 2
      %v4136 = vsel %vm2890, %v4134, %v4135
      %v4137 = vrot.slane %v1096, 2
      %v4138 = vsel %vm2890, %v4135, %v4137
      %v4139 = vrot.slane %v1101, 2
      %v4140 = vrot.slane %v1102, 2
      %v4141 = vsel %vm2890, %v4139, %v4140
      %v4142 = vrot.slane %v1103, 2
      %v4143 = vsel %vm2890, %v4140, %v4142
      %v4144 = vrot.slane %v1109, 2
      %v4145 = vrot.slane %v1110, 2
      %v4146 = vsel %vm2890, %v4144, %v4145
      %v4147 = vrot.slane %v1111, 2
      %v4148 = vsel %vm2890, %v4145, %v4147
      %v4149 = vrot.slane %v1117, 2
      %v4150 = vrot.slane %v1118, 2
      %v4151 = vsel %vm2890, %v4149, %v4150
      %v4152 = vrot.slane %v1119, 2
      %v4153 = vsel %vm2890, %v4150, %v4152
      %v4154 = vrot.slane %v1125, 2
      %v4155 = vrot.slane %v1126, 2
      %v4156 = vsel %vm2890, %v4154, %v4155
      %v4157 = vrot.slane %v1127, 2
      %v4158 = vsel %vm2890, %v4155, %v4157
      %v4159 = vrot.slane %v1133, 2
      %v4160 = vrot.slane %v1134, 2
      %v4161 = vsel %vm2890, %v4159, %v4160
      %v4162 = vrot.slane %v1135, 2
      %v4163 = vsel %vm2890, %v4160, %v4162
      %v4164 = vrot.slane %v1141, 2
      %v4165 = vrot.slane %v1142, 2
      %v4166 = vsel %vm2890, %v4164, %v4165
      %v4167 = vrot.slane %v1143, 2
      %v4168 = vsel %vm2890, %v4165, %v4167
      %v4169 = vrot.slane %v1149, 2
      %v4170 = vrot.slane %v1150, 2
      %v4171 = vsel %vm2890, %v4169, %v4170
      %v4172 = vrot.slane %v1151, 2
      %v4173 = vsel %vm2890, %v4170, %v4172
      %v4174 = vrot.slane %v1157, 2
      %v4175 = vrot.slane %v1158, 2
      %v4176 = vsel %vm2890, %v4174, %v4175
      %v4177 = vrot.slane %v1159, 2
      %v4178 = vsel %vm2890, %v4175, %v4177
      %v4179 = vrot.slane %v1165, 2
      %v4180 = vrot.slane %v1166, 2
      %v4181 = vsel %vm2890, %v4179, %v4180
      %v4182 = vrot.slane %v1167, 2
      %v4183 = vsel %vm2890, %v4180, %v4182
      %v4184 = vrot.slane %v1173, 2
      %v4185 = vrot.slane %v1174, 2
      %v4186 = vsel %vm2890, %v4184, %v4185
      %v4187 = vrot.slane %v1175, 2
      %v4188 = vsel %vm2890, %v4185, %v4187
      %4189 = vrot.lane.b32.xlu0 %v3583, 120
      %v4190 = vpop.permute.xlu0 %4189
      %4191 = vrot.lane.b32.xlu0 %v3585, 120
      %v4192 = vpop.permute.xlu0 %4191
      %4193 = vrot.lane.b32.xlu0 %v3584, 120
      %v4194 = vpop.permute.xlu0 %4193
      %4195 = vrot.lane.b32.xlu0 %v3588, 120
      %v4196 = vpop.permute.xlu0 %4195
      %4197 = vrot.lane.b32.xlu0 %v3590, 120
      %v4198 = vpop.permute.xlu0 %4197
      %4199 = vrot.lane.b32.xlu0 %v3589, 120
      %v4200 = vpop.permute.xlu0 %4199
      %4201 = vrot.lane.b32.xlu0 %v3593, 120
      %v4202 = vpop.permute.xlu0 %4201
      %4203 = vrot.lane.b32.xlu0 %v3595, 120
      %v4204 = vpop.permute.xlu0 %4203
      %4205 = vrot.lane.b32.xlu0 %v3594, 120
      %v4206 = vpop.permute.xlu0 %4205
      %4207 = vrot.lane.b32.xlu0 %v3598, 120
      %v4208 = vpop.permute.xlu0 %4207
      %4209 = vrot.lane.b32.xlu0 %v3600, 120
      %v4210 = vpop.permute.xlu0 %4209
      %4211 = vrot.lane.b32.xlu0 %v3599, 120
      %v4212 = vpop.permute.xlu0 %4211
      %4213 = vrot.lane.b32.xlu0 %v4131, 120
      %v4214 = vpop.permute.xlu0 %4213
      %4215 = vrot.lane.b32.xlu0 %v4133, 120
      %v4216 = vpop.permute.xlu0 %4215
      %4217 = vrot.lane.b32.xlu0 %v4132, 120
      %v4218 = vpop.permute.xlu0 %4217
      %4219 = vrot.lane.b32.xlu0 %v4136, 120
      %v4220 = vpop.permute.xlu0 %4219
      %4221 = vrot.lane.b32.xlu0 %v4138, 120
      %v4222 = vpop.permute.xlu0 %4221
      %4223 = vrot.lane.b32.xlu0 %v4137, 120
      %v4224 = vpop.permute.xlu0 %4223
      %4225 = vrot.lane.b32.xlu0 %v4141, 120
      %v4226 = vpop.permute.xlu0 %4225
      %4227 = vrot.lane.b32.xlu0 %v4143, 120
      %v4228 = vpop.permute.xlu0 %4227
      %4229 = vrot.lane.b32.xlu0 %v4142, 120
      %v4230 = vpop.permute.xlu0 %4229
      %4231 = vrot.lane.b32.xlu0 %v4146, 120
      %v4232 = vpop.permute.xlu0 %4231
      %4233 = vrot.lane.b32.xlu0 %v4148, 120
      %v4234 = vpop.permute.xlu0 %4233
      %4235 = vrot.lane.b32.xlu0 %v4147, 120
      %v4236 = vpop.permute.xlu0 %4235
      %4237 = vrot.lane.b32.xlu0 %v4151, 120
      %v4238 = vpop.permute.xlu0 %4237
      %4239 = vrot.lane.b32.xlu0 %v4153, 120
      %v4240 = vpop.permute.xlu0 %4239
      %4241 = vrot.lane.b32.xlu0 %v4152, 120
      %v4242 = vpop.permute.xlu0 %4241
      %4243 = vrot.lane.b32.xlu0 %v4156, 120
      %v4244 = vpop.permute.xlu0 %4243
      %4245 = vrot.lane.b32.xlu0 %v4158, 120
      %v4246 = vpop.permute.xlu0 %4245
      %4247 = vrot.lane.b32.xlu0 %v4157, 120
      %v4248 = vpop.permute.xlu0 %4247
      %4249 = vrot.lane.b32.xlu0 %v4161, 120
      %v4250 = vpop.permute.xlu0 %4249
      %4251 = vrot.lane.b32.xlu0 %v4163, 120
      %v4252 = vpop.permute.xlu0 %4251
      %4253 = vrot.lane.b32.xlu0 %v4162, 120
      %v4254 = vpop.permute.xlu0 %4253
      %4255 = vrot.lane.b32.xlu0 %v4166, 120
      %v4256 = vpop.permute.xlu0 %4255
      %4257 = vrot.lane.b32.xlu0 %v4168, 120
      %v4258 = vpop.permute.xlu0 %4257
      %4259 = vrot.lane.b32.xlu0 %v4167, 120
      %v4260 = vpop.permute.xlu0 %4259
      %4261 = vrot.lane.b32.xlu0 %v4171, 120
      %v4262 = vpop.permute.xlu0 %4261
      %4263 = vrot.lane.b32.xlu0 %v4173, 120
      %v4264 = vpop.permute.xlu0 %4263
      %4265 = vrot.lane.b32.xlu0 %v4172, 120
      %v4266 = vpop.permute.xlu0 %4265
      %4267 = vrot.lane.b32.xlu0 %v4176, 120
      %v4268 = vpop.permute.xlu0 %4267
      %4269 = vrot.lane.b32.xlu0 %v4178, 120
      %v4270 = vpop.permute.xlu0 %4269
      %4271 = vrot.lane.b32.xlu0 %v4177, 120
      %v4272 = vpop.permute.xlu0 %4271
      %4273 = vrot.lane.b32.xlu0 %v4181, 120
      %v4274 = vpop.permute.xlu0 %4273
      %4275 = vrot.lane.b32.xlu0 %v4183, 120
      %v4276 = vpop.permute.xlu0 %4275
      %4277 = vrot.lane.b32.xlu0 %v4182, 120
      %v4278 = vpop.permute.xlu0 %4277
      %4279 = vrot.lane.b32.xlu0 %v4186, 120
      %v4280 = vpop.permute.xlu0 %4279
      %4281 = vrot.lane.b32.xlu0 %v4188, 120
      %v4282 = vpop.permute.xlu0 %4281
      %4283 = vrot.lane.b32.xlu0 %v4187, 120
      %v4284 = vpop.permute.xlu0 %4283
      %v4333 = vsel %vm242, %v918, %v1454
      %v4334 = vsel %vm242, %v919, %v1456
      %v4335 = vsel %vm242, %v920, %v1458
      %v4336 = vsel %vm242, %v926, %v1460
      %v4337 = vsel %vm242, %v927, %v1462
      %v4338 = vsel %vm242, %v928, %v1464
      %v4339 = vsel %vm242, %v934, %v1466
      %v4340 = vsel %vm242, %v935, %v1468
      %v4341 = vsel %vm242, %v936, %v1470
      %v4342 = vsel %vm242, %v942, %v1472
      %v4343 = vsel %vm242, %v943, %v1474
      %v4344 = vsel %vm242, %v944, %v1476
      %v4345 = vsel %vm242, %v949, %v1478
      %v4346 = vsel %vm242, %v950, %v1480
      %v4347 = vsel %vm242, %v951, %v1482
      %v4348 = vsel %vm242, %v955, %v1484
      %v4349 = vsel %vm242, %v956, %v1486
      %v4350 = vsel %vm242, %v957, %v1488
      %v4351 = vsel %vm242, %v962, %v1490
      %v4352 = vsel %vm242, %v963, %v1492
      %v4353 = vsel %vm242, %v964, %v1494
      %v4354 = vsel %vm242, %v970, %v1496
      %v4355 = vsel %vm242, %v971, %v1498
      %v4356 = vsel %vm242, %v972, %v1500
      %v4357 = vsel %vm242, %v978, %v1502
      %v4358 = vsel %vm242, %v979, %v1504
      %v4359 = vsel %vm242, %v980, %v1506
      %v4360 = vsel %vm242, %v986, %v1508
      %v4361 = vsel %vm242, %v987, %v1510
      %v4362 = vsel %vm242, %v988, %v1512
      %v4363 = vsel %vm242, %v994, %v1514
      %v4364 = vsel %vm242, %v995, %v1516
      %v4365 = vsel %vm242, %v996, %v1518
      %v4366 = vsel %vm242, %v1002, %v1520
      %v4367 = vsel %vm242, %v1003, %v1522
      %v4368 = vsel %vm242, %v1004, %v1524
      %v4369 = vsel %vm242, %v1010, %v1526
      %v4370 = vsel %vm242, %v1011, %v1528
      %v4371 = vsel %vm242, %v1012, %v1530
      %v4372 = vsel %vm242, %v1018, %v1532
      %v4373 = vsel %vm242, %v1019, %v1534
      %v4374 = vsel %vm242, %v1020, %v1536
      %v4375 = vsel %vm242, %v1026, %v1538
      %v4376 = vsel %vm242, %v1027, %v1540
      %v4377 = vsel %vm242, %v1028, %v1542
      %v4378 = vsel %vm242, %v1034, %v1544
      %v4379 = vsel %vm242, %v1035, %v1546
      %v4380 = vsel %vm242, %v1036, %v1548
      %vm4381 = vcmask 130048
      %v4382 = vsel %vm4381, %v4333, %v1695
      %v4383 = vsel %vm4381, %v4334, %v1697
      %v4384 = vsel %vm4381, %v4335, %v1699
      %v4385 = vsel %vm4381, %v4336, %v1701
      %v4386 = vsel %vm4381, %v4337, %v1703
      %v4387 = vsel %vm4381, %v4338, %v1705
      %v4388 = vsel %vm4381, %v4339, %v1707
      %v4389 = vsel %vm4381, %v4340, %v1709
      %v4390 = vsel %vm4381, %v4341, %v1711
      %v4391 = vsel %vm4381, %v4342, %v1713
      %v4392 = vsel %vm4381, %v4343, %v1715
      %v4393 = vsel %vm4381, %v4344, %v1717
      %v4394 = vsel %vm4381, %v4345, %v1719
      %v4395 = vsel %vm4381, %v4346, %v1721
      %v4396 = vsel %vm4381, %v4347, %v1723
      %v4397 = vsel %vm4381, %v4348, %v1725
      %v4398 = vsel %vm4381, %v4349, %v1727
      %v4399 = vsel %vm4381, %v4350, %v1729
      %v4400 = vsel %vm4381, %v4351, %v1731
      %v4401 = vsel %vm4381, %v4352, %v1733
      %v4402 = vsel %vm4381, %v4353, %v1735
      %v4403 = vsel %vm4381, %v4354, %v1737
      %v4404 = vsel %vm4381, %v4355, %v1739
      %v4405 = vsel %vm4381, %v4356, %v1741
      %v4406 = vsel %vm4381, %v4357, %v1743
      %v4407 = vsel %vm4381, %v4358, %v1745
      %v4408 = vsel %vm4381, %v4359, %v1747
      %v4409 = vsel %vm4381, %v4360, %v1749
      %v4410 = vsel %vm4381, %v4361, %v1751
      %v4411 = vsel %vm4381, %v4362, %v1753
      %v4412 = vsel %vm4381, %v4363, %v1755
      %v4413 = vsel %vm4381, %v4364, %v1757
      %v4414 = vsel %vm4381, %v4365, %v1759
      %v4415 = vsel %vm4381, %v4366, %v1761
      %v4416 = vsel %vm4381, %v4367, %v1763
      %v4417 = vsel %vm4381, %v4368, %v1765
      %v4418 = vsel %vm4381, %v4369, %v1767
      %v4419 = vsel %vm4381, %v4370, %v1769
      %v4420 = vsel %vm4381, %v4371, %v1771
      %v4421 = vsel %vm4381, %v4372, %v1773
      %v4422 = vsel %vm4381, %v4373, %v1775
      %v4423 = vsel %vm4381, %v4374, %v1777
      %v4424 = vsel %vm4381, %v4375, %v1779
      %v4425 = vsel %vm4381, %v4376, %v1781
      %v4426 = vsel %vm4381, %v4377, %v1783
      %v4427 = vsel %vm4381, %v4378, %v1785
      %v4428 = vsel %vm4381, %v4379, %v1787
      %v4429 = vsel %vm4381, %v4380, %v1789
      %vm4430 = vcmask 195584
      %v4431 = vsel %vm4430, %v4382, %v1867
      %v4432 = vsel %vm4430, %v4383, %v1869
      %v4433 = vsel %vm4430, %v4384, %v1871
      %v4434 = vsel %vm4430, %v4385, %v1873
      %v4435 = vsel %vm4430, %v4386, %v1875
      %v4436 = vsel %vm4430, %v4387, %v1877
      %v4437 = vsel %vm4430, %v4388, %v1879
      %v4438 = vsel %vm4430, %v4389, %v1881
      %v4439 = vsel %vm4430, %v4390, %v1883
      %v4440 = vsel %vm4430, %v4391, %v1885
      %v4441 = vsel %vm4430, %v4392, %v1887
      %v4442 = vsel %vm4430, %v4393, %v1889
      %v4443 = vsel %vm4430, %v4394, %v1891
      %v4444 = vsel %vm4430, %v4395, %v1893
      %v4445 = vsel %vm4430, %v4396, %v1895
      %v4446 = vsel %vm4430, %v4397, %v1897
      %v4447 = vsel %vm4430, %v4398, %v1899
      %v4448 = vsel %vm4430, %v4399, %v1901
      %v4449 = vsel %vm4430, %v4400, %v1903
      %v4450 = vsel %vm4430, %v4401, %v1905
      %v4451 = vsel %vm4430, %v4402, %v1907
      %v4452 = vsel %vm4430, %v4403, %v1909
      %v4453 = vsel %vm4430, %v4404, %v1911
      %v4454 = vsel %vm4430, %v4405, %v1913
      %v4455 = vsel %vm4430, %v4406, %v1915
      %v4456 = vsel %vm4430, %v4407, %v1917
      %v4457 = vsel %vm4430, %v4408, %v1919
      %v4458 = vsel %vm4430, %v4409, %v1921
      %v4459 = vsel %vm4430, %v4410, %v1923
      %v4460 = vsel %vm4430, %v4411, %v1925
      %v4461 = vsel %vm4430, %v4412, %v1927
      %v4462 = vsel %vm4430, %v4413, %v1929
      %v4463 = vsel %vm4430, %v4414, %v1931
      %v4464 = vsel %vm4430, %v4415, %v1933
      %v4465 = vsel %vm4430, %v4416, %v1935
      %v4466 = vsel %vm4430, %v4417, %v1937
      %v4467 = vsel %vm4430, %v4418, %v1939
      %v4468 = vsel %vm4430, %v4419, %v1941
      %v4469 = vsel %vm4430, %v4420, %v1943
      %v4470 = vsel %vm4430, %v4421, %v1945
      %v4471 = vsel %vm4430, %v4422, %v1947
      %v4472 = vsel %vm4430, %v4423, %v1949
      %v4473 = vsel %vm4430, %v4424, %v1951
      %v4474 = vsel %vm4430, %v4425, %v1953
      %v4475 = vsel %vm4430, %v4426, %v1955
      %v4476 = vsel %vm4430, %v4427, %v1957
      %v4477 = vsel %vm4430, %v4428, %v1959
      %v4478 = vsel %vm4430, %v4429, %v1961
      %vm4479 = vcmask 261120
      %v4480 = vsel %vm4479, %v4431, %v2029
      %v4481 = vsel %vm4479, %v4432, %v2031
      %v4482 = vsel %vm4479, %v4433, %v2033
      %v4483 = vsel %vm4479, %v4434, %v2035
      %v4484 = vsel %vm4479, %v4435, %v2037
      %v4485 = vsel %vm4479, %v4436, %v2039
      %v4486 = vsel %vm4479, %v4437, %v2041
      %v4487 = vsel %vm4479, %v4438, %v2043
      %v4488 = vsel %vm4479, %v4439, %v2045
      %v4489 = vsel %vm4479, %v4440, %v2047
      %v4490 = vsel %vm4479, %v4441, %v2049
      %v4491 = vsel %vm4479, %v4442, %v2051
      %v4492 = vsel %vm4479, %v4443, %v2053
      %v4493 = vsel %vm4479, %v4444, %v2055
      %v4494 = vsel %vm4479, %v4445, %v2057
      %v4495 = vsel %vm4479, %v4446, %v2059
      %v4496 = vsel %vm4479, %v4447, %v2061
      %v4497 = vsel %vm4479, %v4448, %v2063
      %v4498 = vsel %vm4479, %v4449, %v2065
      %v4499 = vsel %vm4479, %v4450, %v2067
      %v4500 = vsel %vm4479, %v4451, %v2069
      %v4501 = vsel %vm4479, %v4452, %v2071
      %v4502 = vsel %vm4479, %v4453, %v2073
      %v4503 = vsel %vm4479, %v4454, %v2075
      %v4504 = vsel %vm4479, %v4455, %v2077
      %v4505 = vsel %vm4479, %v4456, %v2079
      %v4506 = vsel %vm4479, %v4457, %v2081
      %v4507 = vsel %vm4479, %v4458, %v2083
      %v4508 = vsel %vm4479, %v4459, %v2085
      %v4509 = vsel %vm4479, %v4460, %v2087
      %v4510 = vsel %vm4479, %v4461, %v2089
      %v4511 = vsel %vm4479, %v4462, %v2091
      %v4512 = vsel %vm4479, %v4463, %v2093
      %v4513 = vsel %vm4479, %v4464, %v2095
      %v4514 = vsel %vm4479, %v4465, %v2097
      %v4515 = vsel %vm4479, %v4466, %v2099
      %v4516 = vsel %vm4479, %v4467, %v2101
      %v4517 = vsel %vm4479, %v4468, %v2103
      %v4518 = vsel %vm4479, %v4469, %v2105
      %v4519 = vsel %vm4479, %v4470, %v2107
      %v4520 = vsel %vm4479, %v4471, %v2109
      %v4521 = vsel %vm4479, %v4472, %v2111
      %v4522 = vsel %vm4479, %v4473, %v2113
      %v4523 = vsel %vm4479, %v4474, %v2115
      %v4524 = vsel %vm4479, %v4475, %v2117
      %v4525 = vsel %vm4479, %v4476, %v2119
      %v4526 = vsel %vm4479, %v4477, %v2121
      %v4527 = vsel %vm4479, %v4478, %v2123
      %vm4528 = vcmask 326656
      %v4529 = vsel %vm4528, %v4480, %v2209
      %v4530 = vsel %vm4528, %v4481, %v2211
      %v4531 = vsel %vm4528, %v4482, %v2213
      %v4532 = vsel %vm4528, %v4483, %v2215
      %v4533 = vsel %vm4528, %v4484, %v2217
      %v4534 = vsel %vm4528, %v4485, %v2219
      %v4535 = vsel %vm4528, %v4486, %v2221
      %v4536 = vsel %vm4528, %v4487, %v2223
      %v4537 = vsel %vm4528, %v4488, %v2225
      %v4538 = vsel %vm4528, %v4489, %v2227
      %v4539 = vsel %vm4528, %v4490, %v2229
      %v4540 = vsel %vm4528, %v4491, %v2231
      %v4541 = vsel %vm4528, %v4492, %v2233
      %v4542 = vsel %vm4528, %v4493, %v2235
      %v4543 = vsel %vm4528, %v4494, %v2237
      %v4544 = vsel %vm4528, %v4495, %v2239
      %v4545 = vsel %vm4528, %v4496, %v2241
      %v4546 = vsel %vm4528, %v4497, %v2243
      %v4547 = vsel %vm4528, %v4498, %v2245
      %v4548 = vsel %vm4528, %v4499, %v2247
      %v4549 = vsel %vm4528, %v4500, %v2249
      %v4550 = vsel %vm4528, %v4501, %v2251
      %v4551 = vsel %vm4528, %v4502, %v2253
      %v4552 = vsel %vm4528, %v4503, %v2255
      %v4553 = vsel %vm4528, %v4504, %v2257
      %v4554 = vsel %vm4528, %v4505, %v2259
      %v4555 = vsel %vm4528, %v4506, %v2261
      %v4556 = vsel %vm4528, %v4507, %v2263
      %v4557 = vsel %vm4528, %v4508, %v2265
      %v4558 = vsel %vm4528, %v4509, %v2267
      %v4559 = vsel %vm4528, %v4510, %v2269
      %v4560 = vsel %vm4528, %v4511, %v2271
      %v4561 = vsel %vm4528, %v4512, %v2273
      %v4562 = vsel %vm4528, %v4513, %v2275
      %v4563 = vsel %vm4528, %v4514, %v2277
      %v4564 = vsel %vm4528, %v4515, %v2279
      %v4565 = vsel %vm4528, %v4516, %v2281
      %v4566 = vsel %vm4528, %v4517, %v2283
      %v4567 = vsel %vm4528, %v4518, %v2285
      %v4568 = vsel %vm4528, %v4519, %v2287
      %v4569 = vsel %vm4528, %v4520, %v2289
      %v4570 = vsel %vm4528, %v4521, %v2291
      %v4571 = vsel %vm4528, %v4522, %v2293
      %v4572 = vsel %vm4528, %v4523, %v2295
      %v4573 = vsel %vm4528, %v4524, %v2297
      %v4574 = vsel %vm4528, %v4525, %v2299
      %v4575 = vsel %vm4528, %v4526, %v2301
      %v4576 = vsel %vm4528, %v4527, %v2303
      %vm4577 = vcmask 392192
      %v4578 = vsel %vm4577, %v4529, %v2371
      %v4579 = vsel %vm4577, %v4530, %v2373
      %v4580 = vsel %vm4577, %v4531, %v2375
      %v4581 = vsel %vm4577, %v4532, %v2377
      %v4582 = vsel %vm4577, %v4533, %v2379
      %v4583 = vsel %vm4577, %v4534, %v2381
      %v4584 = vsel %vm4577, %v4535, %v2383
      %v4585 = vsel %vm4577, %v4536, %v2385
      %v4586 = vsel %vm4577, %v4537, %v2387
      %v4587 = vsel %vm4577, %v4538, %v2389
      %v4588 = vsel %vm4577, %v4539, %v2391
      %v4589 = vsel %vm4577, %v4540, %v2393
      %v4590 = vsel %vm4577, %v4541, %v2395
      %v4591 = vsel %vm4577, %v4542, %v2397
      %v4592 = vsel %vm4577, %v4543, %v2399
      %v4593 = vsel %vm4577, %v4544, %v2401
      %v4594 = vsel %vm4577, %v4545, %v2403
      %v4595 = vsel %vm4577, %v4546, %v2405
      %v4596 = vsel %vm4577, %v4547, %v2407
      %v4597 = vsel %vm4577, %v4548, %v2409
      %v4598 = vsel %vm4577, %v4549, %v2411
      %v4599 = vsel %vm4577, %v4550, %v2413
      %v4600 = vsel %vm4577, %v4551, %v2415
      %v4601 = vsel %vm4577, %v4552, %v2417
      %v4602 = vsel %vm4577, %v4553, %v2419
      %v4603 = vsel %vm4577, %v4554, %v2421
      %v4604 = vsel %vm4577, %v4555, %v2423
      %v4605 = vsel %vm4577, %v4556, %v2425
      %v4606 = vsel %vm4577, %v4557, %v2427
      %v4607 = vsel %vm4577, %v4558, %v2429
      %v4608 = vsel %vm4577, %v4559, %v2431
      %v4609 = vsel %vm4577, %v4560, %v2433
      %v4610 = vsel %vm4577, %v4561, %v2435
      %v4611 = vsel %vm4577, %v4562, %v2437
      %v4612 = vsel %vm4577, %v4563, %v2439
      %v4613 = vsel %vm4577, %v4564, %v2441
      %v4614 = vsel %vm4577, %v4565, %v2443
      %v4615 = vsel %vm4577, %v4566, %v2445
      %v4616 = vsel %vm4577, %v4567, %v2447
      %v4617 = vsel %vm4577, %v4568, %v2449
      %v4618 = vsel %vm4577, %v4569, %v2451
      %v4619 = vsel %vm4577, %v4570, %v2453
      %v4620 = vsel %vm4577, %v4571, %v2455
      %v4621 = vsel %vm4577, %v4572, %v2457
      %v4622 = vsel %vm4577, %v4573, %v2459
      %v4623 = vsel %vm4577, %v4574, %v2461
      %v4624 = vsel %vm4577, %v4575, %v2463
      %v4625 = vsel %vm4577, %v4576, %v2465
      %vm4626 = vcmask 457728
      %v4627 = vsel %vm4626, %v4578, %v2533
      %v4628 = vsel %vm4626, %v4579, %v2535
      %v4629 = vsel %vm4626, %v4580, %v2537
      %v4630 = vsel %vm4626, %v4581, %v2539
      %v4631 = vsel %vm4626, %v4582, %v2541
      %v4632 = vsel %vm4626, %v4583, %v2543
      %v4633 = vsel %vm4626, %v4584, %v2545
      %v4634 = vsel %vm4626, %v4585, %v2547
      %v4635 = vsel %vm4626, %v4586, %v2549
      %v4636 = vsel %vm4626, %v4587, %v2551
      %v4637 = vsel %vm4626, %v4588, %v2553
      %v4638 = vsel %vm4626, %v4589, %v2555
      %v4639 = vsel %vm4626, %v4590, %v2557
      %v4640 = vsel %vm4626, %v4591, %v2559
      %v4641 = vsel %vm4626, %v4592, %v2561
      %v4642 = vsel %vm4626, %v4593, %v2563
      %v4643 = vsel %vm4626, %v4594, %v2565
      %v4644 = vsel %vm4626, %v4595, %v2567
      %v4645 = vsel %vm4626, %v4596, %v2569
      %v4646 = vsel %vm4626, %v4597, %v2571
      %v4647 = vsel %vm4626, %v4598, %v2573
      %v4648 = vsel %vm4626, %v4599, %v2575
      %v4649 = vsel %vm4626, %v4600, %v2577
      %v4650 = vsel %vm4626, %v4601, %v2579
      %v4651 = vsel %vm4626, %v4602, %v2581
      %v4652 = vsel %vm4626, %v4603, %v2583
      %v4653 = vsel %vm4626, %v4604, %v2585
      %v4654 = vsel %vm4626, %v4605, %v2587
      %v4655 = vsel %vm4626, %v4606, %v2589
      %v4656 = vsel %vm4626, %v4607, %v2591
      %v4657 = vsel %vm4626, %v4608, %v2593
      %v4658 = vsel %vm4626, %v4609, %v2595
      %v4659 = vsel %vm4626, %v4610, %v2597
      %v4660 = vsel %vm4626, %v4611, %v2599
      %v4661 = vsel %vm4626, %v4612, %v2601
      %v4662 = vsel %vm4626, %v4613, %v2603
      %v4663 = vsel %vm4626, %v4614, %v2605
      %v4664 = vsel %vm4626, %v4615, %v2607
      %v4665 = vsel %vm4626, %v4616, %v2609
      %v4666 = vsel %vm4626, %v4617, %v2611
      %v4667 = vsel %vm4626, %v4618, %v2613
      %v4668 = vsel %vm4626, %v4619, %v2615
      %v4669 = vsel %vm4626, %v4620, %v2617
      %v4670 = vsel %vm4626, %v4621, %v2619
      %v4671 = vsel %vm4626, %v4622, %v2621
      %v4672 = vsel %vm4626, %v4623, %v2623
      %v4673 = vsel %vm4626, %v4624, %v2625
      %v4674 = vsel %vm4626, %v4625, %v2627
      %vm4675 = vcmask 523264
      %v4676 = vsel %vm4675, %v4627, %v2713
      %v4677 = vsel %vm4675, %v4628, %v2715
      %v4678 = vsel %vm4675, %v4629, %v2717
      %v4679 = vsel %vm4675, %v4630, %v2719
      %v4680 = vsel %vm4675, %v4631, %v2721
      %v4681 = vsel %vm4675, %v4632, %v2723
      %v4682 = vsel %vm4675, %v4633, %v2725
      %v4683 = vsel %vm4675, %v4634, %v2727
      %v4684 = vsel %vm4675, %v4635, %v2729
      %v4685 = vsel %vm4675, %v4636, %v2731
      %v4686 = vsel %vm4675, %v4637, %v2733
      %v4687 = vsel %vm4675, %v4638, %v2735
      %v4688 = vsel %vm4675, %v4639, %v2737
      %v4689 = vsel %vm4675, %v4640, %v2739
      %v4690 = vsel %vm4675, %v4641, %v2741
      %v4691 = vsel %vm4675, %v4642, %v2743
      %v4692 = vsel %vm4675, %v4643, %v2745
      %v4693 = vsel %vm4675, %v4644, %v2747
      %v4694 = vsel %vm4675, %v4645, %v2749
      %v4695 = vsel %vm4675, %v4646, %v2751
      %v4696 = vsel %vm4675, %v4647, %v2753
      %v4697 = vsel %vm4675, %v4648, %v2755
      %v4698 = vsel %vm4675, %v4649, %v2757
      %v4699 = vsel %vm4675, %v4650, %v2759
      %v4700 = vsel %vm4675, %v4651, %v2761
      %v4701 = vsel %vm4675, %v4652, %v2763
      %v4702 = vsel %vm4675, %v4653, %v2765
      %v4703 = vsel %vm4675, %v4654, %v2767
      %v4704 = vsel %vm4675, %v4655, %v2769
      %v4705 = vsel %vm4675, %v4656, %v2771
      %v4706 = vsel %vm4675, %v4657, %v2773
      %v4707 = vsel %vm4675, %v4658, %v2775
      %v4708 = vsel %vm4675, %v4659, %v2777
      %v4709 = vsel %vm4675, %v4660, %v2779
      %v4710 = vsel %vm4675, %v4661, %v2781
      %v4711 = vsel %vm4675, %v4662, %v2783
      %v4712 = vsel %vm4675, %v4663, %v2785
      %v4713 = vsel %vm4675, %v4664, %v2787
      %v4714 = vsel %vm4675, %v4665, %v2789
      %v4715 = vsel %vm4675, %v4666, %v2791
      %v4716 = vsel %vm4675, %v4667, %v2793
      %v4717 = vsel %vm4675, %v4668, %v2795
      %v4718 = vsel %vm4675, %v4669, %v2797
      %v4719 = vsel %vm4675, %v4670, %v2799
      %v4720 = vsel %vm4675, %v4671, %v2801
      %v4721 = vsel %vm4675, %v4672, %v2803
      %v4722 = vsel %vm4675, %v4673, %v2805
      %v4723 = vsel %vm4675, %v4674, %v2807
      %vm4724 = vcmask 588800
      %v4725 = vsel %vm4724, %v4676, %v2972
      %v4726 = vsel %vm4724, %v4677, %v2974
      %v4727 = vsel %vm4724, %v4678, %v2976
      %v4728 = vsel %vm4724, %v4679, %v2978
      %v4729 = vsel %vm4724, %v4680, %v2980
      %v4730 = vsel %vm4724, %v4681, %v2982
      %v4731 = vsel %vm4724, %v4682, %v2984
      %v4732 = vsel %vm4724, %v4683, %v2986
      %v4733 = vsel %vm4724, %v4684, %v2988
      %v4734 = vsel %vm4724, %v4685, %v2990
      %v4735 = vsel %vm4724, %v4686, %v2992
      %v4736 = vsel %vm4724, %v4687, %v2994
      %v4737 = vsel %vm4724, %v4688, %v2996
      %v4738 = vsel %vm4724, %v4689, %v2998
      %v4739 = vsel %vm4724, %v4690, %v3000
      %v4740 = vsel %vm4724, %v4691, %v3002
      %v4741 = vsel %vm4724, %v4692, %v3004
      %v4742 = vsel %vm4724, %v4693, %v3006
      %v4743 = vsel %vm4724, %v4694, %v3008
      %v4744 = vsel %vm4724, %v4695, %v3010
      %v4745 = vsel %vm4724, %v4696, %v3012
      %v4746 = vsel %vm4724, %v4697, %v3014
      %v4747 = vsel %vm4724, %v4698, %v3016
      %v4748 = vsel %vm4724, %v4699, %v3018
      %v4749 = vsel %vm4724, %v4700, %v3020
      %v4750 = vsel %vm4724, %v4701, %v3022
      %v4751 = vsel %vm4724, %v4702, %v3024
      %v4752 = vsel %vm4724, %v4703, %v3026
      %v4753 = vsel %vm4724, %v4704, %v3028
      %v4754 = vsel %vm4724, %v4705, %v3030
      %v4755 = vsel %vm4724, %v4706, %v3032
      %v4756 = vsel %vm4724, %v4707, %v3034
      %v4757 = vsel %vm4724, %v4708, %v3036
      %v4758 = vsel %vm4724, %v4709, %v3038
      %v4759 = vsel %vm4724, %v4710, %v3040
      %v4760 = vsel %vm4724, %v4711, %v3042
      %v4761 = vsel %vm4724, %v4712, %v3044
      %v4762 = vsel %vm4724, %v4713, %v3046
      %v4763 = vsel %vm4724, %v4714, %v3048
      %v4764 = vsel %vm4724, %v4715, %v3050
      %v4765 = vsel %vm4724, %v4716, %v3052
      %v4766 = vsel %vm4724, %v4717, %v3054
      %v4767 = vsel %vm4724, %v4718, %v3056
      %v4768 = vsel %vm4724, %v4719, %v3058
      %v4769 = vsel %vm4724, %v4720, %v3060
      %v4770 = vsel %vm4724, %v4721, %v3062
      %v4771 = vsel %vm4724, %v4722, %v3064
      %v4772 = vsel %vm4724, %v4723, %v3066
      %vm4773 = vcmask 654336
      %v4774 = vsel %vm4773, %v4725, %v3140
      %v4775 = vsel %vm4773, %v4726, %v3142
      %v4776 = vsel %vm4773, %v4727, %v3144
      %v4777 = vsel %vm4773, %v4728, %v3146
      %v4778 = vsel %vm4773, %v4729, %v3148
      %v4779 = vsel %vm4773, %v4730, %v3150
      %v4780 = vsel %vm4773, %v4731, %v3152
      %v4781 = vsel %vm4773, %v4732, %v3154
      %v4782 = vsel %vm4773, %v4733, %v3156
      %v4783 = vsel %vm4773, %v4734, %v3158
      %v4784 = vsel %vm4773, %v4735, %v3160
      %v4785 = vsel %vm4773, %v4736, %v3162
      %v4786 = vsel %vm4773, %v4737, %v3164
      %v4787 = vsel %vm4773, %v4738, %v3166
      %v4788 = vsel %vm4773, %v4739, %v3168
      %v4789 = vsel %vm4773, %v4740, %v3170
      %v4790 = vsel %vm4773, %v4741, %v3172
      %v4791 = vsel %vm4773, %v4742, %v3174
      %v4792 = vsel %vm4773, %v4743, %v3176
      %v4793 = vsel %vm4773, %v4744, %v3178
      %v4794 = vsel %vm4773, %v4745, %v3180
      %v4795 = vsel %vm4773, %v4746, %v3182
      %v4796 = vsel %vm4773, %v4747, %v3184
      %v4797 = vsel %vm4773, %v4748, %v3186
      %v4798 = vsel %vm4773, %v4749, %v3188
      %v4799 = vsel %vm4773, %v4750, %v3190
      %v4800 = vsel %vm4773, %v4751, %v3192
      %v4801 = vsel %vm4773, %v4752, %v3194
      %v4802 = vsel %vm4773, %v4753, %v3196
      %v4803 = vsel %vm4773, %v4754, %v3198
      %v4804 = vsel %vm4773, %v4755, %v3200
      %v4805 = vsel %vm4773, %v4756, %v3202
      %v4806 = vsel %vm4773, %v4757, %v3204
      %v4807 = vsel %vm4773, %v4758, %v3206
      %v4808 = vsel %vm4773, %v4759, %v3208
      %v4809 = vsel %vm4773, %v4760, %v3210
      %v4810 = vsel %vm4773, %v4761, %v3212
      %v4811 = vsel %vm4773, %v4762, %v3214
      %v4812 = vsel %vm4773, %v4763, %v3216
      %v4813 = vsel %vm4773, %v4764, %v3218
      %v4814 = vsel %vm4773, %v4765, %v3220
      %v4815 = vsel %vm4773, %v4766, %v3222
      %v4816 = vsel %vm4773, %v4767, %v3224
      %v4817 = vsel %vm4773, %v4768, %v3226
      %v4818 = vsel %vm4773, %v4769, %v3228
      %v4819 = vsel %vm4773, %v4770, %v3230
      %v4820 = vsel %vm4773, %v4771, %v3232
      %v4821 = vsel %vm4773, %v4772, %v3234
      %vm4822 = vcmask 719872
      %v4823 = vsel %vm4822, %v4774, %v3386
      %v4824 = vsel %vm4822, %v4775, %v3388
      %v4825 = vsel %vm4822, %v4776, %v3390
      %v4826 = vsel %vm4822, %v4777, %v3392
      %v4827 = vsel %vm4822, %v4778, %v3394
      %v4828 = vsel %vm4822, %v4779, %v3396
      %v4829 = vsel %vm4822, %v4780, %v3398
      %v4830 = vsel %vm4822, %v4781, %v3400
      %v4831 = vsel %vm4822, %v4782, %v3402
      %v4832 = vsel %vm4822, %v4783, %v3404
      %v4833 = vsel %vm4822, %v4784, %v3406
      %v4834 = vsel %vm4822, %v4785, %v3408
      %v4835 = vsel %vm4822, %v4786, %v3410
      %v4836 = vsel %vm4822, %v4787, %v3412
      %v4837 = vsel %vm4822, %v4788, %v3414
      %v4838 = vsel %vm4822, %v4789, %v3416
      %v4839 = vsel %vm4822, %v4790, %v3418
      %v4840 = vsel %vm4822, %v4791, %v3420
      %v4841 = vsel %vm4822, %v4792, %v3422
      %v4842 = vsel %vm4822, %v4793, %v3424
      %v4843 = vsel %vm4822, %v4794, %v3426
      %v4844 = vsel %vm4822, %v4795, %v3428
      %v4845 = vsel %vm4822, %v4796, %v3430
      %v4846 = vsel %vm4822, %v4797, %v3432
      %v4847 = vsel %vm4822, %v4798, %v3434
      %v4848 = vsel %vm4822, %v4799, %v3436
      %v4849 = vsel %vm4822, %v4800, %v3438
      %v4850 = vsel %vm4822, %v4801, %v3440
      %v4851 = vsel %vm4822, %v4802, %v3442
      %v4852 = vsel %vm4822, %v4803, %v3444
      %v4853 = vsel %vm4822, %v4804, %v3446
      %v4854 = vsel %vm4822, %v4805, %v3448
      %v4855 = vsel %vm4822, %v4806, %v3450
      %v4856 = vsel %vm4822, %v4807, %v3452
      %v4857 = vsel %vm4822, %v4808, %v3454
      %v4858 = vsel %vm4822, %v4809, %v3456
      %v4859 = vsel %vm4822, %v4810, %v3458
      %v4860 = vsel %vm4822, %v4811, %v3460
      %v4861 = vsel %vm4822, %v4812, %v3462
      %v4862 = vsel %vm4822, %v4813, %v3464
      %v4863 = vsel %vm4822, %v4814, %v3466
      %v4864 = vsel %vm4822, %v4815, %v3468
      %v4865 = vsel %vm4822, %v4816, %v3470
      %v4866 = vsel %vm4822, %v4817, %v3472
      %v4867 = vsel %vm4822, %v4818, %v3474
      %v4868 = vsel %vm4822, %v4819, %v3476
      %v4869 = vsel %vm4822, %v4820, %v3478
      %v4870 = vsel %vm4822, %v4821, %v3480
      %vm4871 = vcmask 785408
      %v4872 = vsel %vm4871, %v4823, %v3602
      %v4873 = vsel %vm4871, %v4824, %v3604
      %v4874 = vsel %vm4871, %v4825, %v3606
      %v4875 = vsel %vm4871, %v4826, %v3608
      %v4876 = vsel %vm4871, %v4827, %v3610
      %v4877 = vsel %vm4871, %v4828, %v3612
      %v4878 = vsel %vm4871, %v4829, %v3614
      %v4879 = vsel %vm4871, %v4830, %v3616
      %v4880 = vsel %vm4871, %v4831, %v3618
      %v4881 = vsel %vm4871, %v4832, %v3620
      %v4882 = vsel %vm4871, %v4833, %v3622
      %v4883 = vsel %vm4871, %v4834, %v3624
      %v4884 = vsel %vm4871, %v4835, %v3626
      %v4885 = vsel %vm4871, %v4836, %v3628
      %v4886 = vsel %vm4871, %v4837, %v3630
      %v4887 = vsel %vm4871, %v4838, %v3632
      %v4888 = vsel %vm4871, %v4839, %v3634
      %v4889 = vsel %vm4871, %v4840, %v3636
      %v4890 = vsel %vm4871, %v4841, %v3638
      %v4891 = vsel %vm4871, %v4842, %v3640
      %v4892 = vsel %vm4871, %v4843, %v3642
      %v4893 = vsel %vm4871, %v4844, %v3644
      %v4894 = vsel %vm4871, %v4845, %v3646
      %v4895 = vsel %vm4871, %v4846, %v3648
      %v4896 = vsel %vm4871, %v4847, %v3650
      %v4897 = vsel %vm4871, %v4848, %v3652
      %v4898 = vsel %vm4871, %v4849, %v3654
      %v4899 = vsel %vm4871, %v4850, %v3656
      %v4900 = vsel %vm4871, %v4851, %v3658
      %v4901 = vsel %vm4871, %v4852, %v3660
      %v4902 = vsel %vm4871, %v4853, %v3662
      %v4903 = vsel %vm4871, %v4854, %v3664
      %v4904 = vsel %vm4871, %v4855, %v3666
      %v4905 = vsel %vm4871, %v4856, %v3668
      %v4906 = vsel %vm4871, %v4857, %v3670
      %v4907 = vsel %vm4871, %v4858, %v3672
      %v4908 = vsel %vm4871, %v4859, %v3674
      %v4909 = vsel %vm4871, %v4860, %v3676
      %v4910 = vsel %vm4871, %v4861, %v3678
      %v4911 = vsel %vm4871, %v4862, %v3680
      %v4912 = vsel %vm4871, %v4863, %v3682
      %v4913 = vsel %vm4871, %v4864, %v3684
      %v4914 = vsel %vm4871, %v4865, %v3686
      %v4915 = vsel %vm4871, %v4866, %v3688
      %v4916 = vsel %vm4871, %v4867, %v3690
      %v4917 = vsel %vm4871, %v4868, %v3692
      %v4918 = vsel %vm4871, %v4869, %v3694
      %v4919 = vsel %vm4871, %v4870, %v3696
      %vm4920 = vcmask 850944
      %v4921 = vsel %vm4920, %v4872, %v3746
      %v4922 = vsel %vm4920, %v4873, %v3748
      %v4923 = vsel %vm4920, %v4874, %v3750
      %v4924 = vsel %vm4920, %v4875, %v3752
      %v4925 = vsel %vm4920, %v4876, %v3754
      %v4926 = vsel %vm4920, %v4877, %v3756
      %v4927 = vsel %vm4920, %v4878, %v3758
      %v4928 = vsel %vm4920, %v4879, %v3760
      %v4929 = vsel %vm4920, %v4880, %v3762
      %v4930 = vsel %vm4920, %v4881, %v3764
      %v4931 = vsel %vm4920, %v4882, %v3766
      %v4932 = vsel %vm4920, %v4883, %v3768
      %v4933 = vsel %vm4920, %v4884, %v3770
      %v4934 = vsel %vm4920, %v4885, %v3772
      %v4935 = vsel %vm4920, %v4886, %v3774
      %v4936 = vsel %vm4920, %v4887, %v3776
      %v4937 = vsel %vm4920, %v4888, %v3778
      %v4938 = vsel %vm4920, %v4889, %v3780
      %v4939 = vsel %vm4920, %v4890, %v3782
      %v4940 = vsel %vm4920, %v4891, %v3784
      %v4941 = vsel %vm4920, %v4892, %v3786
      %v4942 = vsel %vm4920, %v4893, %v3788
      %v4943 = vsel %vm4920, %v4894, %v3790
      %v4944 = vsel %vm4920, %v4895, %v3792
      %v4945 = vsel %vm4920, %v4896, %v3794
      %v4946 = vsel %vm4920, %v4897, %v3796
      %v4947 = vsel %vm4920, %v4898, %v3798
      %v4948 = vsel %vm4920, %v4899, %v3800
      %v4949 = vsel %vm4920, %v4900, %v3802
      %v4950 = vsel %vm4920, %v4901, %v3804
      %v4951 = vsel %vm4920, %v4902, %v3806
      %v4952 = vsel %vm4920, %v4903, %v3808
      %v4953 = vsel %vm4920, %v4904, %v3810
      %v4954 = vsel %vm4920, %v4905, %v3812
      %v4955 = vsel %vm4920, %v4906, %v3814
      %v4956 = vsel %vm4920, %v4907, %v3816
      %v4957 = vsel %vm4920, %v4908, %v3818
      %v4958 = vsel %vm4920, %v4909, %v3820
      %v4959 = vsel %vm4920, %v4910, %v3822
      %v4960 = vsel %vm4920, %v4911, %v3824
      %v4961 = vsel %vm4920, %v4912, %v3826
      %v4962 = vsel %vm4920, %v4913, %v3828
      %v4963 = vsel %vm4920, %v4914, %v3830
      %v4964 = vsel %vm4920, %v4915, %v3832
      %v4965 = vsel %vm4920, %v4916, %v3834
      %v4966 = vsel %vm4920, %v4917, %v3836
      %v4967 = vsel %vm4920, %v4918, %v3838
      %v4968 = vsel %vm4920, %v4919, %v3840
      %vm4969 = vcmask 916480
      %v4970 = vsel %vm4969, %v4921, %v3962
      %v4971 = vsel %vm4969, %v4922, %v3964
      %v4972 = vsel %vm4969, %v4923, %v3966
      %v4973 = vsel %vm4969, %v4924, %v3968
      %v4974 = vsel %vm4969, %v4925, %v3970
      %v4975 = vsel %vm4969, %v4926, %v3972
      %v4976 = vsel %vm4969, %v4927, %v3974
      %v4977 = vsel %vm4969, %v4928, %v3976
      %v4978 = vsel %vm4969, %v4929, %v3978
      %v4979 = vsel %vm4969, %v4930, %v3980
      %v4980 = vsel %vm4969, %v4931, %v3982
      %v4981 = vsel %vm4969, %v4932, %v3984
      %v4982 = vsel %vm4969, %v4933, %v3986
      %v4983 = vsel %vm4969, %v4934, %v3988
      %v4984 = vsel %vm4969, %v4935, %v3990
      %v4985 = vsel %vm4969, %v4936, %v3992
      %v4986 = vsel %vm4969, %v4937, %v3994
      %v4987 = vsel %vm4969, %v4938, %v3996
      %v4988 = vsel %vm4969, %v4939, %v3998
      %v4989 = vsel %vm4969, %v4940, %v4000
      %v4990 = vsel %vm4969, %v4941, %v4002
      %v4991 = vsel %vm4969, %v4942, %v4004
      %v4992 = vsel %vm4969, %v4943, %v4006
      %v4993 = vsel %vm4969, %v4944, %v4008
      %v4994 = vsel %vm4969, %v4945, %v4010
      %v4995 = vsel %vm4969, %v4946, %v4012
      %v4996 = vsel %vm4969, %v4947, %v4014
      %v4997 = vsel %vm4969, %v4948, %v4016
      %v4998 = vsel %vm4969, %v4949, %v4018
      %v4999 = vsel %vm4969, %v4950, %v4020
      %v5000 = vsel %vm4969, %v4951, %v4022
      %v5001 = vsel %vm4969, %v4952, %v4024
      %v5002 = vsel %vm4969, %v4953, %v4026
      %v5003 = vsel %vm4969, %v4954, %v4028
      %v5004 = vsel %vm4969, %v4955, %v4030
      %v5005 = vsel %vm4969, %v4956, %v4032
      %v5006 = vsel %vm4969, %v4957, %v4034
      %v5007 = vsel %vm4969, %v4958, %v4036
      %v5008 = vsel %vm4969, %v4959, %v4038
      %v5009 = vsel %vm4969, %v4960, %v4040
      %v5010 = vsel %vm4969, %v4961, %v4042
      %v5011 = vsel %vm4969, %v4962, %v4044
      %v5012 = vsel %vm4969, %v4963, %v4046
      %v5013 = vsel %vm4969, %v4964, %v4048
      %v5014 = vsel %vm4969, %v4965, %v4050
      %v5015 = vsel %vm4969, %v4966, %v4052
      %v5016 = vsel %vm4969, %v4967, %v4054
      %v5017 = vsel %vm4969, %v4968, %v4056
      %vm5018 = vcmask 982016
      %v5019 = vsel %vm5018, %v4970, %v4190
      %v5020 = vsel %vm5018, %v4971, %v4192
      %v5021 = vsel %vm5018, %v4972, %v4194
      %v5022 = vsel %vm5018, %v4973, %v4196
      %v5023 = vsel %vm5018, %v4974, %v4198
      %v5024 = vsel %vm5018, %v4975, %v4200
      %v5025 = vsel %vm5018, %v4976, %v4202
      %v5026 = vsel %vm5018, %v4977, %v4204
      %v5027 = vsel %vm5018, %v4978, %v4206
      %v5028 = vsel %vm5018, %v4979, %v4208
      %v5029 = vsel %vm5018, %v4980, %v4210
      %v5030 = vsel %vm5018, %v4981, %v4212
      %v5031 = vsel %vm5018, %v4982, %v4214
      %v5032 = vsel %vm5018, %v4983, %v4216
      %v5033 = vsel %vm5018, %v4984, %v4218
      %v5034 = vsel %vm5018, %v4985, %v4220
      %v5035 = vsel %vm5018, %v4986, %v4222
      %v5036 = vsel %vm5018, %v4987, %v4224
      %v5037 = vsel %vm5018, %v4988, %v4226
      %v5038 = vsel %vm5018, %v4989, %v4228
      %v5039 = vsel %vm5018, %v4990, %v4230
      %v5040 = vsel %vm5018, %v4991, %v4232
      %v5041 = vsel %vm5018, %v4992, %v4234
      %v5042 = vsel %vm5018, %v4993, %v4236
      %v5043 = vsel %vm5018, %v4994, %v4238
      %v5044 = vsel %vm5018, %v4995, %v4240
      %v5045 = vsel %vm5018, %v4996, %v4242
      %v5046 = vsel %vm5018, %v4997, %v4244
      %v5047 = vsel %vm5018, %v4998, %v4246
      %v5048 = vsel %vm5018, %v4999, %v4248
      %v5049 = vsel %vm5018, %v5000, %v4250
      %v5050 = vsel %vm5018, %v5001, %v4252
      %v5051 = vsel %vm5018, %v5002, %v4254
      %v5052 = vsel %vm5018, %v5003, %v4256
      %v5053 = vsel %vm5018, %v5004, %v4258
      %v5054 = vsel %vm5018, %v5005, %v4260
      %v5055 = vsel %vm5018, %v5006, %v4262
      %v5056 = vsel %vm5018, %v5007, %v4264
      %v5057 = vsel %vm5018, %v5008, %v4266
      %v5058 = vsel %vm5018, %v5009, %v4268
      %v5059 = vsel %vm5018, %v5010, %v4270
      %v5060 = vsel %vm5018, %v5011, %v4272
      %v5061 = vsel %vm5018, %v5012, %v4274
      %v5062 = vsel %vm5018, %v5013, %v4276
      %v5063 = vsel %vm5018, %v5014, %v4278
      %v5064 = vsel %vm5018, %v5015, %v4280
      %v5065 = vsel %vm5018, %v5016, %v4282
      %v5066 = vsel %vm5018, %v5017, %v4284
      %v5091 = vrot.slane %v1062, 4
      %v5092 = vsel %vm1613, %v2191, %v5091
      %v5093 = vrot.slane %v1070, 4
      %v5094 = vsel %vm1613, %v2196, %v5093
      %v5095 = vrot.slane %v1078, 4
      %v5096 = vsel %vm1613, %v2201, %v5095
      %v5097 = vrot.slane %v1086, 4
      %v5098 = vsel %vm1613, %v2206, %v5097
      %v5099 = vrot.slane %v1093, 4
      %v5100 = vsel %vm1613, %v2685, %v5099
      %v5101 = vrot.slane %v1099, 4
      %v5102 = vsel %vm1613, %v2690, %v5101
      %v5103 = vrot.slane %v1106, 4
      %v5104 = vsel %vm1613, %v2695, %v5103
      %v5105 = vrot.slane %v1114, 4
      %v5106 = vsel %vm1613, %v2700, %v5105
      %v5107 = vrot.slane %v1122, 4
      %v5108 = vsel %vm1613, %v2705, %v5107
      %v5109 = vrot.slane %v1130, 4
      %v5110 = vsel %vm1613, %v2710, %v5109
      %v5111 = vrot.slane %v1136, 4
      %v5112 = vrot.slane %v1137, 4
      %v5113 = vsel %vm1613, %v5111, %v5112
      %v5114 = vrot.slane %v1138, 4
      %v5115 = vsel %vm1613, %v5112, %v5114
      %v5116 = vrot.slane %v1144, 4
      %v5117 = vrot.slane %v1145, 4
      %v5118 = vsel %vm1613, %v5116, %v5117
      %v5119 = vrot.slane %v1146, 4
      %v5120 = vsel %vm1613, %v5117, %v5119
      %v5121 = vrot.slane %v1152, 4
      %v5122 = vrot.slane %v1153, 4
      %v5123 = vsel %vm1613, %v5121, %v5122
      %v5124 = vrot.slane %v1154, 4
      %v5125 = vsel %vm1613, %v5122, %v5124
      %v5126 = vrot.slane %v1160, 4
      %v5127 = vrot.slane %v1161, 4
      %v5128 = vsel %vm1613, %v5126, %v5127
      %v5129 = vrot.slane %v1162, 4
      %v5130 = vsel %vm1613, %v5127, %v5129
      %v5131 = vrot.slane %v1168, 4
      %v5132 = vrot.slane %v1169, 4
      %v5133 = vsel %vm1613, %v5131, %v5132
      %v5134 = vrot.slane %v1170, 4
      %v5135 = vsel %vm1613, %v5132, %v5134
      %v5136 = vrot.slane %v1176, 4
      %v5137 = vrot.slane %v1177, 4
      %v5138 = vsel %vm1613, %v5136, %v5137
      %v5139 = vrot.slane %v1178, 4
      %v5140 = vsel %vm1613, %v5137, %v5139
      %5141 = vrot.lane.b32.xlu0 %v2192, 8
      %v5142 = vpop.permute.xlu0 %5141
      %5143 = vrot.lane.b32.xlu0 %v5092, 8
      %v5144 = vpop.permute.xlu0 %5143
      %5145 = vrot.lane.b32.xlu0 %v2197, 8
      %v5146 = vpop.permute.xlu0 %5145
      %5147 = vrot.lane.b32.xlu0 %v5094, 8
      %v5148 = vpop.permute.xlu0 %5147
      %5149 = vrot.lane.b32.xlu0 %v2202, 8
      %v5150 = vpop.permute.xlu0 %5149
      %5151 = vrot.lane.b32.xlu0 %v5096, 8
      %v5152 = vpop.permute.xlu0 %5151
      %5153 = vrot.lane.b32.xlu0 %v2207, 8
      %v5154 = vpop.permute.xlu0 %5153
      %5155 = vrot.lane.b32.xlu0 %v5098, 8
      %v5156 = vpop.permute.xlu0 %5155
      %5157 = vrot.lane.b32.xlu0 %v2686, 8
      %v5158 = vpop.permute.xlu0 %5157
      %5159 = vrot.lane.b32.xlu0 %v5100, 8
      %v5160 = vpop.permute.xlu0 %5159
      %5161 = vrot.lane.b32.xlu0 %v2691, 8
      %v5162 = vpop.permute.xlu0 %5161
      %5163 = vrot.lane.b32.xlu0 %v5102, 8
      %v5164 = vpop.permute.xlu0 %5163
      %5165 = vrot.lane.b32.xlu0 %v2696, 8
      %v5166 = vpop.permute.xlu0 %5165
      %5167 = vrot.lane.b32.xlu0 %v5104, 8
      %v5168 = vpop.permute.xlu0 %5167
      %5169 = vrot.lane.b32.xlu0 %v2701, 8
      %v5170 = vpop.permute.xlu0 %5169
      %5171 = vrot.lane.b32.xlu0 %v5106, 8
      %v5172 = vpop.permute.xlu0 %5171
      %5173 = vrot.lane.b32.xlu0 %v2706, 8
      %v5174 = vpop.permute.xlu0 %5173
      %5175 = vrot.lane.b32.xlu0 %v5108, 8
      %v5176 = vpop.permute.xlu0 %5175
      %5177 = vrot.lane.b32.xlu0 %v2711, 8
      %v5178 = vpop.permute.xlu0 %5177
      %5179 = vrot.lane.b32.xlu0 %v5110, 8
      %v5180 = vpop.permute.xlu0 %5179
      %5181 = vrot.lane.b32.xlu0 %v5113, 8
      %v5182 = vpop.permute.xlu0 %5181
      %5183 = vrot.lane.b32.xlu0 %v5115, 8
      %v5184 = vpop.permute.xlu0 %5183
      %5185 = vrot.lane.b32.xlu0 %v5118, 8
      %v5186 = vpop.permute.xlu0 %5185
      %5187 = vrot.lane.b32.xlu0 %v5120, 8
      %v5188 = vpop.permute.xlu0 %5187
      %5189 = vrot.lane.b32.xlu0 %v5123, 8
      %v5190 = vpop.permute.xlu0 %5189
      %5191 = vrot.lane.b32.xlu0 %v5125, 8
      %v5192 = vpop.permute.xlu0 %5191
      %5193 = vrot.lane.b32.xlu0 %v5128, 8
      %v5194 = vpop.permute.xlu0 %5193
      %5195 = vrot.lane.b32.xlu0 %v5130, 8
      %v5196 = vpop.permute.xlu0 %5195
      %5197 = vrot.lane.b32.xlu0 %v5133, 8
      %v5198 = vpop.permute.xlu0 %5197
      %5199 = vrot.lane.b32.xlu0 %v5135, 8
      %v5200 = vpop.permute.xlu0 %5199
      %5201 = vrot.lane.b32.xlu0 %v5138, 8
      %v5202 = vpop.permute.xlu0 %5201
      %5203 = vrot.lane.b32.xlu0 %v5140, 8
      %v5204 = vpop.permute.xlu0 %5203
      %v5265 = vrot.slane %v820, 6
      %v5266 = vrot.slane %v821, 6
      %v5267 = vsel %vm1404, %v5265, %v5266
      %v5268 = vrot.slane %v822, 6
      %v5269 = vsel %vm1404, %v5266, %v5268
      %v5270 = vrot.slane %v828, 6
      %v5271 = vrot.slane %v829, 6
      %v5272 = vsel %vm1404, %v5270, %v5271
      %v5273 = vrot.slane %v830, 6
      %v5274 = vsel %vm1404, %v5271, %v5273
      %v5275 = vrot.slane %v836, 6
      %v5276 = vrot.slane %v837, 6
      %v5277 = vsel %vm1404, %v5275, %v5276
      %v5278 = vrot.slane %v838, 6
      %v5279 = vsel %vm1404, %v5276, %v5278
      %v5280 = vrot.slane %v844, 6
      %v5281 = vrot.slane %v845, 6
      %v5282 = vsel %vm1404, %v5280, %v5281
      %v5283 = vrot.slane %v846, 6
      %v5284 = vsel %vm1404, %v5281, %v5283
      %v5285 = vrot.slane %v852, 6
      %v5286 = vrot.slane %v853, 6
      %v5287 = vsel %vm1404, %v5285, %v5286
      %v5288 = vrot.slane %v854, 6
      %v5289 = vsel %vm1404, %v5286, %v5288
      %v5290 = vrot.slane %v860, 6
      %v5291 = vrot.slane %v861, 6
      %v5292 = vsel %vm1404, %v5290, %v5291
      %v5293 = vrot.slane %v862, 6
      %v5294 = vsel %vm1404, %v5291, %v5293
      %v5295 = vrot.slane %v868, 6
      %v5296 = vrot.slane %v869, 6
      %v5297 = vsel %vm1404, %v5295, %v5296
      %v5298 = vrot.slane %v870, 6
      %v5299 = vsel %vm1404, %v5296, %v5298
      %v5300 = vrot.slane %v876, 6
      %v5301 = vrot.slane %v877, 6
      %v5302 = vsel %vm1404, %v5300, %v5301
      %v5303 = vrot.slane %v878, 6
      %v5304 = vsel %vm1404, %v5301, %v5303
      %v5305 = vrot.slane %v884, 6
      %v5306 = vrot.slane %v885, 6
      %v5307 = vsel %vm1404, %v5305, %v5306
      %v5308 = vrot.slane %v886, 6
      %v5309 = vsel %vm1404, %v5306, %v5308
      %v5310 = vrot.slane %v892, 6
      %v5311 = vrot.slane %v893, 6
      %v5312 = vsel %vm1404, %v5310, %v5311
      %v5313 = vrot.slane %v894, 6
      %v5314 = vsel %vm1404, %v5311, %v5313
      %v5315 = vrot.slane %v900, 6
      %v5316 = vrot.slane %v901, 6
      %v5317 = vsel %vm1404, %v5315, %v5316
      %v5318 = vrot.slane %v902, 6
      %v5319 = vsel %vm1404, %v5316, %v5318
      %v5320 = vrot.slane %v908, 6
      %v5321 = vrot.slane %v909, 6
      %v5322 = vsel %vm1404, %v5320, %v5321
      %v5323 = vrot.slane %v910, 6
      %v5324 = vsel %vm1404, %v5321, %v5323
      %v5325 = vrot.slane %v916, 6
      %v5326 = vrot.slane %v917, 6
      %v5327 = vsel %vm1404, %v5325, %v5326
      %v5328 = vrot.slane %v918, 6
      %v5329 = vsel %vm1404, %v5326, %v5328
      %v5330 = vrot.slane %v924, 6
      %v5331 = vrot.slane %v925, 6
      %v5332 = vsel %vm1404, %v5330, %v5331
      %v5333 = vrot.slane %v926, 6
      %v5334 = vsel %vm1404, %v5331, %v5333
      %v5335 = vrot.slane %v932, 6
      %v5336 = vrot.slane %v933, 6
      %v5337 = vsel %vm1404, %v5335, %v5336
      %v5338 = vrot.slane %v934, 6
      %v5339 = vsel %vm1404, %v5336, %v5338
      %v5340 = vrot.slane %v940, 6
      %v5341 = vrot.slane %v941, 6
      %v5342 = vsel %vm1404, %v5340, %v5341
      %v5343 = vrot.slane %v942, 6
      %v5344 = vsel %vm1404, %v5341, %v5343
      %5345 = vrot.lane.b32.xlu0 %v5267, 16
      %v5346 = vpop.permute.xlu0 %5345
      %5347 = vrot.lane.b32.xlu0 %v5269, 16
      %v5348 = vpop.permute.xlu0 %5347
      %5349 = vrot.lane.b32.xlu0 %v5272, 16
      %v5350 = vpop.permute.xlu0 %5349
      %5351 = vrot.lane.b32.xlu0 %v5274, 16
      %v5352 = vpop.permute.xlu0 %5351
      %5353 = vrot.lane.b32.xlu0 %v5277, 16
      %v5354 = vpop.permute.xlu0 %5353
      %5355 = vrot.lane.b32.xlu0 %v5279, 16
      %v5356 = vpop.permute.xlu0 %5355
      %5357 = vrot.lane.b32.xlu0 %v5282, 16
      %v5358 = vpop.permute.xlu0 %5357
      %5359 = vrot.lane.b32.xlu0 %v5284, 16
      %v5360 = vpop.permute.xlu0 %5359
      %5361 = vrot.lane.b32.xlu0 %v5287, 16
      %v5362 = vpop.permute.xlu0 %5361
      %5363 = vrot.lane.b32.xlu0 %v5289, 16
      %v5364 = vpop.permute.xlu0 %5363
      %5365 = vrot.lane.b32.xlu0 %v5292, 16
      %v5366 = vpop.permute.xlu0 %5365
      %5367 = vrot.lane.b32.xlu0 %v5294, 16
      %v5368 = vpop.permute.xlu0 %5367
      %5369 = vrot.lane.b32.xlu0 %v5297, 16
      %v5370 = vpop.permute.xlu0 %5369
      %5371 = vrot.lane.b32.xlu0 %v5299, 16
      %v5372 = vpop.permute.xlu0 %5371
      %5373 = vrot.lane.b32.xlu0 %v5302, 16
      %v5374 = vpop.permute.xlu0 %5373
      %5375 = vrot.lane.b32.xlu0 %v5304, 16
      %v5376 = vpop.permute.xlu0 %5375
      %5377 = vrot.lane.b32.xlu0 %v5307, 16
      %v5378 = vpop.permute.xlu0 %5377
      %5379 = vrot.lane.b32.xlu0 %v5309, 16
      %v5380 = vpop.permute.xlu0 %5379
      %5381 = vrot.lane.b32.xlu0 %v5312, 16
      %v5382 = vpop.permute.xlu0 %5381
      %5383 = vrot.lane.b32.xlu0 %v5314, 16
      %v5384 = vpop.permute.xlu0 %5383
      %5385 = vrot.lane.b32.xlu0 %v5317, 16
      %v5386 = vpop.permute.xlu0 %5385
      %5387 = vrot.lane.b32.xlu0 %v5319, 16
      %v5388 = vpop.permute.xlu0 %5387
      %5389 = vrot.lane.b32.xlu0 %v5322, 16
      %v5390 = vpop.permute.xlu0 %5389
      %5391 = vrot.lane.b32.xlu0 %v5324, 16
      %v5392 = vpop.permute.xlu0 %5391
      %5393 = vrot.lane.b32.xlu0 %v5327, 16
      %v5394 = vpop.permute.xlu0 %5393
      %5395 = vrot.lane.b32.xlu0 %v5329, 16
      %v5396 = vpop.permute.xlu0 %5395
      %5397 = vrot.lane.b32.xlu0 %v5332, 16
      %v5398 = vpop.permute.xlu0 %5397
      %5399 = vrot.lane.b32.xlu0 %v5334, 16
      %v5400 = vpop.permute.xlu0 %5399
      %5401 = vrot.lane.b32.xlu0 %v5337, 16
      %v5402 = vpop.permute.xlu0 %5401
      %5403 = vrot.lane.b32.xlu0 %v5339, 16
      %v5404 = vpop.permute.xlu0 %5403
      %5405 = vrot.lane.b32.xlu0 %v5342, 16
      %v5406 = vpop.permute.xlu0 %5405
      %5407 = vrot.lane.b32.xlu0 %v5344, 16
      %v5408 = vpop.permute.xlu0 %5407
      %5453 = vrot.lane.b32.xlu0 %v823, 24
      %v5454 = vpop.permute.xlu0 %5453
      %5455 = vrot.lane.b32.xlu0 %v824, 24
      %v5456 = vpop.permute.xlu0 %5455
      %5457 = vrot.lane.b32.xlu0 %v831, 24
      %v5458 = vpop.permute.xlu0 %5457
      %5459 = vrot.lane.b32.xlu0 %v832, 24
      %v5460 = vpop.permute.xlu0 %5459
      %5461 = vrot.lane.b32.xlu0 %v839, 24
      %v5462 = vpop.permute.xlu0 %5461
      %5463 = vrot.lane.b32.xlu0 %v840, 24
      %v5464 = vpop.permute.xlu0 %5463
      %5465 = vrot.lane.b32.xlu0 %v847, 24
      %v5466 = vpop.permute.xlu0 %5465
      %5467 = vrot.lane.b32.xlu0 %v848, 24
      %v5468 = vpop.permute.xlu0 %5467
      %5469 = vrot.lane.b32.xlu0 %v855, 24
      %v5470 = vpop.permute.xlu0 %5469
      %5471 = vrot.lane.b32.xlu0 %v856, 24
      %v5472 = vpop.permute.xlu0 %5471
      %5473 = vrot.lane.b32.xlu0 %v863, 24
      %v5474 = vpop.permute.xlu0 %5473
      %5475 = vrot.lane.b32.xlu0 %v864, 24
      %v5476 = vpop.permute.xlu0 %5475
      %5477 = vrot.lane.b32.xlu0 %v871, 24
      %v5478 = vpop.permute.xlu0 %5477
      %5479 = vrot.lane.b32.xlu0 %v872, 24
      %v5480 = vpop.permute.xlu0 %5479
      %5481 = vrot.lane.b32.xlu0 %v879, 24
      %v5482 = vpop.permute.xlu0 %5481
      %5483 = vrot.lane.b32.xlu0 %v880, 24
      %v5484 = vpop.permute.xlu0 %5483
      %5485 = vrot.lane.b32.xlu0 %v887, 24
      %v5486 = vpop.permute.xlu0 %5485
      %5487 = vrot.lane.b32.xlu0 %v888, 24
      %v5488 = vpop.permute.xlu0 %5487
      %5489 = vrot.lane.b32.xlu0 %v895, 24
      %v5490 = vpop.permute.xlu0 %5489
      %5491 = vrot.lane.b32.xlu0 %v896, 24
      %v5492 = vpop.permute.xlu0 %5491
      %5493 = vrot.lane.b32.xlu0 %v903, 24
      %v5494 = vpop.permute.xlu0 %5493
      %5495 = vrot.lane.b32.xlu0 %v904, 24
      %v5496 = vpop.permute.xlu0 %5495
      %5497 = vrot.lane.b32.xlu0 %v911, 24
      %v5498 = vpop.permute.xlu0 %5497
      %5499 = vrot.lane.b32.xlu0 %v912, 24
      %v5500 = vpop.permute.xlu0 %5499
      %5501 = vrot.lane.b32.xlu0 %v919, 24
      %v5502 = vpop.permute.xlu0 %5501
      %5503 = vrot.lane.b32.xlu0 %v920, 24
      %v5504 = vpop.permute.xlu0 %5503
      %5505 = vrot.lane.b32.xlu0 %v927, 24
      %v5506 = vpop.permute.xlu0 %5505
      %5507 = vrot.lane.b32.xlu0 %v928, 24
      %v5508 = vpop.permute.xlu0 %5507
      %5509 = vrot.lane.b32.xlu0 %v935, 24
      %v5510 = vpop.permute.xlu0 %5509
      %5511 = vrot.lane.b32.xlu0 %v936, 24
      %v5512 = vpop.permute.xlu0 %5511
      %5513 = vrot.lane.b32.xlu0 %v943, 24
      %v5514 = vpop.permute.xlu0 %5513
      %5515 = vrot.lane.b32.xlu0 %v944, 24
      %v5516 = vpop.permute.xlu0 %5515
      %v5577 = vrot.slane %v825, 2
      %v5578 = vrot.slane %v826, 2
      %v5579 = vsel %vm2890, %v5577, %v5578
      %v5580 = vrot.slane %v827, 2
      %v5581 = vsel %vm2890, %v5578, %v5580
      %v5582 = vrot.slane %v833, 2
      %v5583 = vrot.slane %v834, 2
      %v5584 = vsel %vm2890, %v5582, %v5583
      %v5585 = vrot.slane %v835, 2
      %v5586 = vsel %vm2890, %v5583, %v5585
      %v5587 = vrot.slane %v841, 2
      %v5588 = vrot.slane %v842, 2
      %v5589 = vsel %vm2890, %v5587, %v5588
      %v5590 = vrot.slane %v843, 2
      %v5591 = vsel %vm2890, %v5588, %v5590
      %v5592 = vrot.slane %v849, 2
      %v5593 = vrot.slane %v850, 2
      %v5594 = vsel %vm2890, %v5592, %v5593
      %v5595 = vrot.slane %v851, 2
      %v5596 = vsel %vm2890, %v5593, %v5595
      %v5597 = vrot.slane %v857, 2
      %v5598 = vrot.slane %v858, 2
      %v5599 = vsel %vm2890, %v5597, %v5598
      %v5600 = vrot.slane %v859, 2
      %v5601 = vsel %vm2890, %v5598, %v5600
      %v5602 = vrot.slane %v865, 2
      %v5603 = vrot.slane %v866, 2
      %v5604 = vsel %vm2890, %v5602, %v5603
      %v5605 = vrot.slane %v867, 2
      %v5606 = vsel %vm2890, %v5603, %v5605
      %v5607 = vrot.slane %v875, 2
      %v5608 = vsel %vm2890, %v3308, %v5607
      %v5609 = vrot.slane %v883, 2
      %v5610 = vsel %vm2890, %v3313, %v5609
      %v5611 = vrot.slane %v891, 2
      %v5612 = vsel %vm2890, %v3318, %v5611
      %v5613 = vrot.slane %v899, 2
      %v5614 = vsel %vm2890, %v3323, %v5613
      %v5615 = vrot.slane %v907, 2
      %v5616 = vsel %vm2890, %v3328, %v5615
      %v5617 = vrot.slane %v915, 2
      %v5618 = vsel %vm2890, %v3333, %v5617
      %v5619 = vrot.slane %v923, 2
      %v5620 = vsel %vm2890, %v3338, %v5619
      %v5621 = vrot.slane %v931, 2
      %v5622 = vsel %vm2890, %v3343, %v5621
      %v5623 = vrot.slane %v939, 2
      %v5624 = vsel %vm2890, %v3348, %v5623
      %v5625 = vrot.slane %v947, 2
      %v5626 = vsel %vm2890, %v3353, %v5625
      %5627 = vrot.lane.b32.xlu0 %v5579, 32
      %v5628 = vpop.permute.xlu0 %5627
      %5629 = vrot.lane.b32.xlu0 %v5581, 32
      %v5630 = vpop.permute.xlu0 %5629
      %5631 = vrot.lane.b32.xlu0 %v5584, 32
      %v5632 = vpop.permute.xlu0 %5631
      %5633 = vrot.lane.b32.xlu0 %v5586, 32
      %v5634 = vpop.permute.xlu0 %5633
      %5635 = vrot.lane.b32.xlu0 %v5589, 32
      %v5636 = vpop.permute.xlu0 %5635
      %5637 = vrot.lane.b32.xlu0 %v5591, 32
      %v5638 = vpop.permute.xlu0 %5637
      %5639 = vrot.lane.b32.xlu0 %v5594, 32
      %v5640 = vpop.permute.xlu0 %5639
      %5641 = vrot.lane.b32.xlu0 %v5596, 32
      %v5642 = vpop.permute.xlu0 %5641
      %5643 = vrot.lane.b32.xlu0 %v5599, 32
      %v5644 = vpop.permute.xlu0 %5643
      %5645 = vrot.lane.b32.xlu0 %v5601, 32
      %v5646 = vpop.permute.xlu0 %5645
      %5647 = vrot.lane.b32.xlu0 %v5604, 32
      %v5648 = vpop.permute.xlu0 %5647
      %5649 = vrot.lane.b32.xlu0 %v5606, 32
      %v5650 = vpop.permute.xlu0 %5649
      %5651 = vrot.lane.b32.xlu0 %v3309, 32
      %v5652 = vpop.permute.xlu0 %5651
      %5653 = vrot.lane.b32.xlu0 %v5608, 32
      %v5654 = vpop.permute.xlu0 %5653
      %5655 = vrot.lane.b32.xlu0 %v3314, 32
      %v5656 = vpop.permute.xlu0 %5655
      %5657 = vrot.lane.b32.xlu0 %v5610, 32
      %v5658 = vpop.permute.xlu0 %5657
      %5659 = vrot.lane.b32.xlu0 %v3319, 32
      %v5660 = vpop.permute.xlu0 %5659
      %5661 = vrot.lane.b32.xlu0 %v5612, 32
      %v5662 = vpop.permute.xlu0 %5661
      %5663 = vrot.lane.b32.xlu0 %v3324, 32
      %v5664 = vpop.permute.xlu0 %5663
      %5665 = vrot.lane.b32.xlu0 %v5614, 32
      %v5666 = vpop.permute.xlu0 %5665
      %5667 = vrot.lane.b32.xlu0 %v3329, 32
      %v5668 = vpop.permute.xlu0 %5667
      %5669 = vrot.lane.b32.xlu0 %v5616, 32
      %v5670 = vpop.permute.xlu0 %5669
      %5671 = vrot.lane.b32.xlu0 %v3334, 32
      %v5672 = vpop.permute.xlu0 %5671
      %5673 = vrot.lane.b32.xlu0 %v5618, 32
      %v5674 = vpop.permute.xlu0 %5673
      %5675 = vrot.lane.b32.xlu0 %v3339, 32
      %v5676 = vpop.permute.xlu0 %5675
      %5677 = vrot.lane.b32.xlu0 %v5620, 32
      %v5678 = vpop.permute.xlu0 %5677
      %5679 = vrot.lane.b32.xlu0 %v3344, 32
      %v5680 = vpop.permute.xlu0 %5679
      %5681 = vrot.lane.b32.xlu0 %v5622, 32
      %v5682 = vpop.permute.xlu0 %5681
      %5683 = vrot.lane.b32.xlu0 %v3349, 32
      %v5684 = vpop.permute.xlu0 %5683
      %5685 = vrot.lane.b32.xlu0 %v5624, 32
      %v5686 = vpop.permute.xlu0 %5685
      %5687 = vrot.lane.b32.xlu0 %v3354, 32
      %v5688 = vpop.permute.xlu0 %5687
      %5689 = vrot.lane.b32.xlu0 %v5626, 32
      %v5690 = vpop.permute.xlu0 %5689
      %v5739 = vrot.slane %v960, 6
      %v5740 = vrot.slane %v961, 6
      %v5741 = vsel %vm1404, %v5739, %v5740
      %v5742 = vrot.slane %v962, 6
      %v5743 = vsel %vm1404, %v5740, %v5742
      %v5744 = vrot.slane %v968, 6
      %v5745 = vrot.slane %v969, 6
      %v5746 = vsel %vm1404, %v5744, %v5745
      %v5747 = vrot.slane %v970, 6
      %v5748 = vsel %vm1404, %v5745, %v5747
      %v5749 = vrot.slane %v976, 6
      %v5750 = vrot.slane %v977, 6
      %v5751 = vsel %vm1404, %v5749, %v5750
      %v5752 = vrot.slane %v978, 6
      %v5753 = vsel %vm1404, %v5750, %v5752
      %v5754 = vrot.slane %v984, 6
      %v5755 = vrot.slane %v985, 6
      %v5756 = vsel %vm1404, %v5754, %v5755
      %v5757 = vrot.slane %v986, 6
      %v5758 = vsel %vm1404, %v5755, %v5757
      %v5759 = vrot.slane %v992, 6
      %v5760 = vrot.slane %v993, 6
      %v5761 = vsel %vm1404, %v5759, %v5760
      %v5762 = vrot.slane %v994, 6
      %v5763 = vsel %vm1404, %v5760, %v5762
      %v5764 = vrot.slane %v1000, 6
      %v5765 = vrot.slane %v1001, 6
      %v5766 = vsel %vm1404, %v5764, %v5765
      %v5767 = vrot.slane %v1002, 6
      %v5768 = vsel %vm1404, %v5765, %v5767
      %v5769 = vrot.slane %v1008, 6
      %v5770 = vrot.slane %v1009, 6
      %v5771 = vsel %vm1404, %v5769, %v5770
      %v5772 = vrot.slane %v1010, 6
      %v5773 = vsel %vm1404, %v5770, %v5772
      %v5774 = vrot.slane %v1016, 6
      %v5775 = vrot.slane %v1017, 6
      %v5776 = vsel %vm1404, %v5774, %v5775
      %v5777 = vrot.slane %v1018, 6
      %v5778 = vsel %vm1404, %v5775, %v5777
      %v5779 = vrot.slane %v1024, 6
      %v5780 = vrot.slane %v1025, 6
      %v5781 = vsel %vm1404, %v5779, %v5780
      %v5782 = vrot.slane %v1026, 6
      %v5783 = vsel %vm1404, %v5780, %v5782
      %v5784 = vrot.slane %v1032, 6
      %v5785 = vrot.slane %v1033, 6
      %v5786 = vsel %vm1404, %v5784, %v5785
      %v5787 = vrot.slane %v1034, 6
      %v5788 = vsel %vm1404, %v5785, %v5787
      %v5789 = vrot.slane %v1040, 6
      %v5790 = vrot.slane %v1041, 6
      %v5791 = vsel %vm1404, %v5789, %v5790
      %v5792 = vrot.slane %v1042, 6
      %v5793 = vsel %vm1404, %v5790, %v5792
      %v5794 = vrot.slane %v1048, 6
      %v5795 = vrot.slane %v1049, 6
      %v5796 = vsel %vm1404, %v5794, %v5795
      %v5797 = vrot.slane %v1050, 6
      %v5798 = vsel %vm1404, %v5795, %v5797
      %v5799 = vrot.slane %v1056, 6
      %v5800 = vrot.slane %v1057, 6
      %v5801 = vsel %vm1404, %v5799, %v5800
      %v5802 = vrot.slane %v1058, 6
      %v5803 = vsel %vm1404, %v5800, %v5802
      %v5804 = vrot.slane %v1064, 6
      %v5805 = vrot.slane %v1065, 6
      %v5806 = vsel %vm1404, %v5804, %v5805
      %v5807 = vrot.slane %v1066, 6
      %v5808 = vsel %vm1404, %v5805, %v5807
      %v5809 = vrot.slane %v1072, 6
      %v5810 = vrot.slane %v1073, 6
      %v5811 = vsel %vm1404, %v5809, %v5810
      %v5812 = vrot.slane %v1074, 6
      %v5813 = vsel %vm1404, %v5810, %v5812
      %v5814 = vrot.slane %v1080, 6
      %v5815 = vrot.slane %v1081, 6
      %v5816 = vsel %vm1404, %v5814, %v5815
      %v5817 = vrot.slane %v1082, 6
      %v5818 = vsel %vm1404, %v5815, %v5817
      %5819 = vrot.lane.b32.xlu0 %v5741, 40
      %v5820 = vpop.permute.xlu0 %5819
      %5821 = vrot.lane.b32.xlu0 %v5743, 40
      %v5822 = vpop.permute.xlu0 %5821
      %5823 = vrot.lane.b32.xlu0 %v5746, 40
      %v5824 = vpop.permute.xlu0 %5823
      %5825 = vrot.lane.b32.xlu0 %v5748, 40
      %v5826 = vpop.permute.xlu0 %5825
      %5827 = vrot.lane.b32.xlu0 %v5751, 40
      %v5828 = vpop.permute.xlu0 %5827
      %5829 = vrot.lane.b32.xlu0 %v5753, 40
      %v5830 = vpop.permute.xlu0 %5829
      %5831 = vrot.lane.b32.xlu0 %v5756, 40
      %v5832 = vpop.permute.xlu0 %5831
      %5833 = vrot.lane.b32.xlu0 %v5758, 40
      %v5834 = vpop.permute.xlu0 %5833
      %5835 = vrot.lane.b32.xlu0 %v5761, 40
      %v5836 = vpop.permute.xlu0 %5835
      %5837 = vrot.lane.b32.xlu0 %v5763, 40
      %v5838 = vpop.permute.xlu0 %5837
      %5839 = vrot.lane.b32.xlu0 %v5766, 40
      %v5840 = vpop.permute.xlu0 %5839
      %5841 = vrot.lane.b32.xlu0 %v5768, 40
      %v5842 = vpop.permute.xlu0 %5841
      %5843 = vrot.lane.b32.xlu0 %v5771, 40
      %v5844 = vpop.permute.xlu0 %5843
      %5845 = vrot.lane.b32.xlu0 %v5773, 40
      %v5846 = vpop.permute.xlu0 %5845
      %5847 = vrot.lane.b32.xlu0 %v5776, 40
      %v5848 = vpop.permute.xlu0 %5847
      %5849 = vrot.lane.b32.xlu0 %v5778, 40
      %v5850 = vpop.permute.xlu0 %5849
      %5851 = vrot.lane.b32.xlu0 %v5781, 40
      %v5852 = vpop.permute.xlu0 %5851
      %5853 = vrot.lane.b32.xlu0 %v5783, 40
      %v5854 = vpop.permute.xlu0 %5853
      %5855 = vrot.lane.b32.xlu0 %v5786, 40
      %v5856 = vpop.permute.xlu0 %5855
      %5857 = vrot.lane.b32.xlu0 %v5788, 40
      %v5858 = vpop.permute.xlu0 %5857
      %5859 = vrot.lane.b32.xlu0 %v5791, 40
      %v5860 = vpop.permute.xlu0 %5859
      %5861 = vrot.lane.b32.xlu0 %v5793, 40
      %v5862 = vpop.permute.xlu0 %5861
      %5863 = vrot.lane.b32.xlu0 %v5796, 40
      %v5864 = vpop.permute.xlu0 %5863
      %5865 = vrot.lane.b32.xlu0 %v5798, 40
      %v5866 = vpop.permute.xlu0 %5865
      %5867 = vrot.lane.b32.xlu0 %v5801, 40
      %v5868 = vpop.permute.xlu0 %5867
      %5869 = vrot.lane.b32.xlu0 %v5803, 40
      %v5870 = vpop.permute.xlu0 %5869
      %5871 = vrot.lane.b32.xlu0 %v5806, 40
      %v5872 = vpop.permute.xlu0 %5871
      %5873 = vrot.lane.b32.xlu0 %v5808, 40
      %v5874 = vpop.permute.xlu0 %5873
      %5875 = vrot.lane.b32.xlu0 %v5811, 40
      %v5876 = vpop.permute.xlu0 %5875
      %5877 = vrot.lane.b32.xlu0 %v5813, 40
      %v5878 = vpop.permute.xlu0 %5877
      %5879 = vrot.lane.b32.xlu0 %v5816, 40
      %v5880 = vpop.permute.xlu0 %5879
      %5881 = vrot.lane.b32.xlu0 %v5818, 40
      %v5882 = vpop.permute.xlu0 %5881
      %5915 = vrot.lane.b32.xlu0 %v963, 48
      %v5916 = vpop.permute.xlu0 %5915
      %5917 = vrot.lane.b32.xlu0 %v964, 48
      %v5918 = vpop.permute.xlu0 %5917
      %5919 = vrot.lane.b32.xlu0 %v971, 48
      %v5920 = vpop.permute.xlu0 %5919
      %5921 = vrot.lane.b32.xlu0 %v972, 48
      %v5922 = vpop.permute.xlu0 %5921
      %5923 = vrot.lane.b32.xlu0 %v979, 48
      %v5924 = vpop.permute.xlu0 %5923
      %5925 = vrot.lane.b32.xlu0 %v980, 48
      %v5926 = vpop.permute.xlu0 %5925
      %5927 = vrot.lane.b32.xlu0 %v987, 48
      %v5928 = vpop.permute.xlu0 %5927
      %5929 = vrot.lane.b32.xlu0 %v988, 48
      %v5930 = vpop.permute.xlu0 %5929
      %5931 = vrot.lane.b32.xlu0 %v995, 48
      %v5932 = vpop.permute.xlu0 %5931
      %5933 = vrot.lane.b32.xlu0 %v996, 48
      %v5934 = vpop.permute.xlu0 %5933
      %5935 = vrot.lane.b32.xlu0 %v1003, 48
      %v5936 = vpop.permute.xlu0 %5935
      %5937 = vrot.lane.b32.xlu0 %v1004, 48
      %v5938 = vpop.permute.xlu0 %5937
      %v5967 = vrot.slane %v967, 2
      %v5968 = vsel %vm2890, %v3368, %v5967
      %v5969 = vrot.slane %v975, 2
      %v5970 = vsel %vm2890, %v3373, %v5969
      %v5971 = vrot.slane %v983, 2
      %v5972 = vsel %vm2890, %v3378, %v5971
      %v5973 = vrot.slane %v991, 2
      %v5974 = vsel %vm2890, %v3383, %v5973
      %v5975 = vrot.slane %v999, 2
      %v5976 = vsel %vm2890, %v3904, %v5975
      %v5977 = vrot.slane %v1007, 2
      %v5978 = vsel %vm2890, %v3909, %v5977
      %v5979 = vrot.slane %v1015, 2
      %v5980 = vsel %vm2890, %v3914, %v5979
      %v5981 = vrot.slane %v1023, 2
      %v5982 = vsel %vm2890, %v3919, %v5981
      %v5983 = vrot.slane %v1031, 2
      %v5984 = vsel %vm2890, %v3924, %v5983
      %v5985 = vrot.slane %v1039, 2
      %v5986 = vsel %vm2890, %v3929, %v5985
      %v5987 = vrot.slane %v1047, 2
      %v5988 = vsel %vm2890, %v3934, %v5987
      %v5989 = vrot.slane %v1055, 2
      %v5990 = vsel %vm2890, %v3939, %v5989
      %v5991 = vrot.slane %v1063, 2
      %v5992 = vsel %vm2890, %v3944, %v5991
      %v5993 = vrot.slane %v1071, 2
      %v5994 = vsel %vm2890, %v3949, %v5993
      %v5995 = vrot.slane %v1079, 2
      %v5996 = vsel %vm2890, %v3954, %v5995
      %v5997 = vrot.slane %v1087, 2
      %v5998 = vsel %vm2890, %v3959, %v5997
      %5999 = vrot.lane.b32.xlu0 %v3369, 56
      %v6000 = vpop.permute.xlu0 %5999
      %6001 = vrot.lane.b32.xlu0 %v5968, 56
      %v6002 = vpop.permute.xlu0 %6001
      %6003 = vrot.lane.b32.xlu0 %v3374, 56
      %v6004 = vpop.permute.xlu0 %6003
      %6005 = vrot.lane.b32.xlu0 %v5970, 56
      %v6006 = vpop.permute.xlu0 %6005
      %6007 = vrot.lane.b32.xlu0 %v3379, 56
      %v6008 = vpop.permute.xlu0 %6007
      %6009 = vrot.lane.b32.xlu0 %v5972, 56
      %v6010 = vpop.permute.xlu0 %6009
      %6011 = vrot.lane.b32.xlu0 %v3384, 56
      %v6012 = vpop.permute.xlu0 %6011
      %6013 = vrot.lane.b32.xlu0 %v5974, 56
      %v6014 = vpop.permute.xlu0 %6013
      %6015 = vrot.lane.b32.xlu0 %v3905, 56
      %v6016 = vpop.permute.xlu0 %6015
      %6017 = vrot.lane.b32.xlu0 %v5976, 56
      %v6018 = vpop.permute.xlu0 %6017
      %6019 = vrot.lane.b32.xlu0 %v3910, 56
      %v6020 = vpop.permute.xlu0 %6019
      %6021 = vrot.lane.b32.xlu0 %v5978, 56
      %v6022 = vpop.permute.xlu0 %6021
      %6023 = vrot.lane.b32.xlu0 %v3915, 56
      %v6024 = vpop.permute.xlu0 %6023
      %6025 = vrot.lane.b32.xlu0 %v5980, 56
      %v6026 = vpop.permute.xlu0 %6025
      %6027 = vrot.lane.b32.xlu0 %v3920, 56
      %v6028 = vpop.permute.xlu0 %6027
      %6029 = vrot.lane.b32.xlu0 %v5982, 56
      %v6030 = vpop.permute.xlu0 %6029
      %6031 = vrot.lane.b32.xlu0 %v3925, 56
      %v6032 = vpop.permute.xlu0 %6031
      %6033 = vrot.lane.b32.xlu0 %v5984, 56
      %v6034 = vpop.permute.xlu0 %6033
      %6035 = vrot.lane.b32.xlu0 %v3930, 56
      %v6036 = vpop.permute.xlu0 %6035
      %6037 = vrot.lane.b32.xlu0 %v5986, 56
      %v6038 = vpop.permute.xlu0 %6037
      %6039 = vrot.lane.b32.xlu0 %v3935, 56
      %v6040 = vpop.permute.xlu0 %6039
      %6041 = vrot.lane.b32.xlu0 %v5988, 56
      %v6042 = vpop.permute.xlu0 %6041
      %6043 = vrot.lane.b32.xlu0 %v3940, 56
      %v6044 = vpop.permute.xlu0 %6043
      %6045 = vrot.lane.b32.xlu0 %v5990, 56
      %v6046 = vpop.permute.xlu0 %6045
      %6047 = vrot.lane.b32.xlu0 %v3945, 56
      %v6048 = vpop.permute.xlu0 %6047
      %6049 = vrot.lane.b32.xlu0 %v5992, 56
      %v6050 = vpop.permute.xlu0 %6049
      %6051 = vrot.lane.b32.xlu0 %v3950, 56
      %v6052 = vpop.permute.xlu0 %6051
      %6053 = vrot.lane.b32.xlu0 %v5994, 56
      %v6054 = vpop.permute.xlu0 %6053
      %6055 = vrot.lane.b32.xlu0 %v3955, 56
      %v6056 = vpop.permute.xlu0 %6055
      %6057 = vrot.lane.b32.xlu0 %v5996, 56
      %v6058 = vpop.permute.xlu0 %6057
      %6059 = vrot.lane.b32.xlu0 %v3960, 56
      %v6060 = vpop.permute.xlu0 %6059
      %6061 = vrot.lane.b32.xlu0 %v5998, 56
      %v6062 = vpop.permute.xlu0 %6061
      %v6123 = vrot.slane %v1100, 6
      %v6124 = vrot.slane %v1101, 6
      %v6125 = vsel %vm1404, %v6123, %v6124
      %v6126 = vrot.slane %v1102, 6
      %v6127 = vsel %vm1404, %v6124, %v6126
      %v6128 = vrot.slane %v1108, 6
      %v6129 = vrot.slane %v1109, 6
      %v6130 = vsel %vm1404, %v6128, %v6129
      %v6131 = vrot.slane %v1110, 6
      %v6132 = vsel %vm1404, %v6129, %v6131
      %v6133 = vrot.slane %v1116, 6
      %v6134 = vrot.slane %v1117, 6
      %v6135 = vsel %vm1404, %v6133, %v6134
      %v6136 = vrot.slane %v1118, 6
      %v6137 = vsel %vm1404, %v6134, %v6136
      %v6138 = vrot.slane %v1124, 6
      %v6139 = vrot.slane %v1125, 6
      %v6140 = vsel %vm1404, %v6138, %v6139
      %v6141 = vrot.slane %v1126, 6
      %v6142 = vsel %vm1404, %v6139, %v6141
      %v6143 = vrot.slane %v1132, 6
      %v6144 = vrot.slane %v1133, 6
      %v6145 = vsel %vm1404, %v6143, %v6144
      %v6146 = vrot.slane %v1134, 6
      %v6147 = vsel %vm1404, %v6144, %v6146
      %v6148 = vrot.slane %v1140, 6
      %v6149 = vrot.slane %v1141, 6
      %v6150 = vsel %vm1404, %v6148, %v6149
      %v6151 = vrot.slane %v1142, 6
      %v6152 = vsel %vm1404, %v6149, %v6151
      %v6153 = vrot.slane %v1148, 6
      %v6154 = vrot.slane %v1149, 6
      %v6155 = vsel %vm1404, %v6153, %v6154
      %v6156 = vrot.slane %v1150, 6
      %v6157 = vsel %vm1404, %v6154, %v6156
      %v6158 = vrot.slane %v1156, 6
      %v6159 = vrot.slane %v1157, 6
      %v6160 = vsel %vm1404, %v6158, %v6159
      %v6161 = vrot.slane %v1158, 6
      %v6162 = vsel %vm1404, %v6159, %v6161
      %v6163 = vrot.slane %v1164, 6
      %v6164 = vrot.slane %v1165, 6
      %v6165 = vsel %vm1404, %v6163, %v6164
      %v6166 = vrot.slane %v1166, 6
      %v6167 = vsel %vm1404, %v6164, %v6166
      %v6168 = vrot.slane %v1172, 6
      %v6169 = vrot.slane %v1173, 6
      %v6170 = vsel %vm1404, %v6168, %v6169
      %v6171 = vrot.slane %v1174, 6
      %v6172 = vsel %vm1404, %v6169, %v6171
      %v6173 = vrot.slane %v1180, 6
      %v6174 = vrot.slane %v1181, 6
      %v6175 = vsel %vm1404, %v6173, %v6174
      %v6176 = vrot.slane %v1182, 6
      %v6177 = vsel %vm1404, %v6174, %v6176
      %v6178 = vrot.slane %v1188, 6
      %v6179 = vrot.slane %v1189, 6
      %v6180 = vsel %vm1404, %v6178, %v6179
      %v6181 = vrot.slane %v1190, 6
      %v6182 = vsel %vm1404, %v6179, %v6181
      %v6183 = vrot.slane %v1196, 6
      %v6184 = vrot.slane %v1197, 6
      %v6185 = vsel %vm1404, %v6183, %v6184
      %v6186 = vrot.slane %v1198, 6
      %v6187 = vsel %vm1404, %v6184, %v6186
      %v6188 = vrot.slane %v1204, 6
      %v6189 = vrot.slane %v1205, 6
      %v6190 = vsel %vm1404, %v6188, %v6189
      %v6191 = vrot.slane %v1206, 6
      %v6192 = vsel %vm1404, %v6189, %v6191
      %v6193 = vrot.slane %v1212, 6
      %v6194 = vrot.slane %v1213, 6
      %v6195 = vsel %vm1404, %v6193, %v6194
      %v6196 = vrot.slane %v1214, 6
      %v6197 = vsel %vm1404, %v6194, %v6196
      %v6198 = vrot.slane %v1220, 6
      %v6199 = vrot.slane %v1221, 6
      %v6200 = vsel %vm1404, %v6198, %v6199
      %v6201 = vrot.slane %v1222, 6
      %v6202 = vsel %vm1404, %v6199, %v6201
      %6203 = vrot.lane.b32.xlu0 %v6125, 64
      %v6204 = vpop.permute.xlu0 %6203
      %6205 = vrot.lane.b32.xlu0 %v6127, 64
      %v6206 = vpop.permute.xlu0 %6205
      %6207 = vrot.lane.b32.xlu0 %v6130, 64
      %v6208 = vpop.permute.xlu0 %6207
      %6209 = vrot.lane.b32.xlu0 %v6132, 64
      %v6210 = vpop.permute.xlu0 %6209
      %6211 = vrot.lane.b32.xlu0 %v6135, 64
      %v6212 = vpop.permute.xlu0 %6211
      %6213 = vrot.lane.b32.xlu0 %v6137, 64
      %v6214 = vpop.permute.xlu0 %6213
      %6215 = vrot.lane.b32.xlu0 %v6140, 64
      %v6216 = vpop.permute.xlu0 %6215
      %6217 = vrot.lane.b32.xlu0 %v6142, 64
      %v6218 = vpop.permute.xlu0 %6217
      %6219 = vrot.lane.b32.xlu0 %v6145, 64
      %v6220 = vpop.permute.xlu0 %6219
      %6221 = vrot.lane.b32.xlu0 %v6147, 64
      %v6222 = vpop.permute.xlu0 %6221
      %6223 = vrot.lane.b32.xlu0 %v6150, 64
      %v6224 = vpop.permute.xlu0 %6223
      %6225 = vrot.lane.b32.xlu0 %v6152, 64
      %v6226 = vpop.permute.xlu0 %6225
      %6227 = vrot.lane.b32.xlu0 %v6155, 64
      %v6228 = vpop.permute.xlu0 %6227
      %6229 = vrot.lane.b32.xlu0 %v6157, 64
      %v6230 = vpop.permute.xlu0 %6229
      %6231 = vrot.lane.b32.xlu0 %v6160, 64
      %v6232 = vpop.permute.xlu0 %6231
      %6233 = vrot.lane.b32.xlu0 %v6162, 64
      %v6234 = vpop.permute.xlu0 %6233
      %6235 = vrot.lane.b32.xlu0 %v6165, 64
      %v6236 = vpop.permute.xlu0 %6235
      %6237 = vrot.lane.b32.xlu0 %v6167, 64
      %v6238 = vpop.permute.xlu0 %6237
      %6239 = vrot.lane.b32.xlu0 %v6170, 64
      %v6240 = vpop.permute.xlu0 %6239
      %6241 = vrot.lane.b32.xlu0 %v6172, 64
      %v6242 = vpop.permute.xlu0 %6241
      %6243 = vrot.lane.b32.xlu0 %v6175, 64
      %v6244 = vpop.permute.xlu0 %6243
      %6245 = vrot.lane.b32.xlu0 %v6177, 64
      %v6246 = vpop.permute.xlu0 %6245
      %6247 = vrot.lane.b32.xlu0 %v6180, 64
      %v6248 = vpop.permute.xlu0 %6247
      %6249 = vrot.lane.b32.xlu0 %v6182, 64
      %v6250 = vpop.permute.xlu0 %6249
      %6251 = vrot.lane.b32.xlu0 %v6185, 64
      %v6252 = vpop.permute.xlu0 %6251
      %6253 = vrot.lane.b32.xlu0 %v6187, 64
      %v6254 = vpop.permute.xlu0 %6253
      %6255 = vrot.lane.b32.xlu0 %v6190, 64
      %v6256 = vpop.permute.xlu0 %6255
      %6257 = vrot.lane.b32.xlu0 %v6192, 64
      %v6258 = vpop.permute.xlu0 %6257
      %6259 = vrot.lane.b32.xlu0 %v6195, 64
      %v6260 = vpop.permute.xlu0 %6259
      %6261 = vrot.lane.b32.xlu0 %v6197, 64
      %v6262 = vpop.permute.xlu0 %6261
      %6263 = vrot.lane.b32.xlu0 %v6200, 64
      %v6264 = vpop.permute.xlu0 %6263
      %6265 = vrot.lane.b32.xlu0 %v6202, 64
      %v6266 = vpop.permute.xlu0 %6265
      %6311 = vrot.lane.b32.xlu0 %v1103, 72
      %v6312 = vpop.permute.xlu0 %6311
      %6313 = vrot.lane.b32.xlu0 %v1104, 72
      %v6314 = vpop.permute.xlu0 %6313
      %6315 = vrot.lane.b32.xlu0 %v1111, 72
      %v6316 = vpop.permute.xlu0 %6315
      %6317 = vrot.lane.b32.xlu0 %v1112, 72
      %v6318 = vpop.permute.xlu0 %6317
      %6319 = vrot.lane.b32.xlu0 %v1119, 72
      %v6320 = vpop.permute.xlu0 %6319
      %6321 = vrot.lane.b32.xlu0 %v1120, 72
      %v6322 = vpop.permute.xlu0 %6321
      %6323 = vrot.lane.b32.xlu0 %v1127, 72
      %v6324 = vpop.permute.xlu0 %6323
      %6325 = vrot.lane.b32.xlu0 %v1128, 72
      %v6326 = vpop.permute.xlu0 %6325
      %6327 = vrot.lane.b32.xlu0 %v1135, 72
      %v6328 = vpop.permute.xlu0 %6327
      %6329 = vrot.lane.b32.xlu0 %v1136, 72
      %v6330 = vpop.permute.xlu0 %6329
      %6331 = vrot.lane.b32.xlu0 %v1143, 72
      %v6332 = vpop.permute.xlu0 %6331
      %6333 = vrot.lane.b32.xlu0 %v1144, 72
      %v6334 = vpop.permute.xlu0 %6333
      %6335 = vrot.lane.b32.xlu0 %v1151, 72
      %v6336 = vpop.permute.xlu0 %6335
      %6337 = vrot.lane.b32.xlu0 %v1152, 72
      %v6338 = vpop.permute.xlu0 %6337
      %6339 = vrot.lane.b32.xlu0 %v1159, 72
      %v6340 = vpop.permute.xlu0 %6339
      %6341 = vrot.lane.b32.xlu0 %v1160, 72
      %v6342 = vpop.permute.xlu0 %6341
      %6343 = vrot.lane.b32.xlu0 %v1167, 72
      %v6344 = vpop.permute.xlu0 %6343
      %6345 = vrot.lane.b32.xlu0 %v1168, 72
      %v6346 = vpop.permute.xlu0 %6345
      %6347 = vrot.lane.b32.xlu0 %v1175, 72
      %v6348 = vpop.permute.xlu0 %6347
      %6349 = vrot.lane.b32.xlu0 %v1176, 72
      %v6350 = vpop.permute.xlu0 %6349
      %6351 = vrot.lane.b32.xlu0 %v1183, 72
      %v6352 = vpop.permute.xlu0 %6351
      %6353 = vrot.lane.b32.xlu0 %v1184, 72
      %v6354 = vpop.permute.xlu0 %6353
      %6355 = vrot.lane.b32.xlu0 %v1191, 72
      %v6356 = vpop.permute.xlu0 %6355
      %6357 = vrot.lane.b32.xlu0 %v1192, 72
      %v6358 = vpop.permute.xlu0 %6357
      %6359 = vrot.lane.b32.xlu0 %v1199, 72
      %v6360 = vpop.permute.xlu0 %6359
      %6361 = vrot.lane.b32.xlu0 %v1200, 72
      %v6362 = vpop.permute.xlu0 %6361
      %6363 = vrot.lane.b32.xlu0 %v1207, 72
      %v6364 = vpop.permute.xlu0 %6363
      %6365 = vrot.lane.b32.xlu0 %v1208, 72
      %v6366 = vpop.permute.xlu0 %6365
      %6367 = vrot.lane.b32.xlu0 %v1215, 72
      %v6368 = vpop.permute.xlu0 %6367
      %6369 = vrot.lane.b32.xlu0 %v1216, 72
      %v6370 = vpop.permute.xlu0 %6369
      %6371 = vrot.lane.b32.xlu0 %v1223, 72
      %v6372 = vpop.permute.xlu0 %6371
      %6373 = vrot.lane.b32.xlu0 %v1224, 72
      %v6374 = vpop.permute.xlu0 %6373
      %v6435 = vrot.slane %v1105, 2
      %v6436 = vrot.slane %v1106, 2
      %v6437 = vsel %vm2890, %v6435, %v6436
      %v6438 = vrot.slane %v1107, 2
      %v6439 = vsel %vm2890, %v6436, %v6438
      %v6440 = vrot.slane %v1113, 2
      %v6441 = vrot.slane %v1114, 2
      %v6442 = vsel %vm2890, %v6440, %v6441
      %v6443 = vrot.slane %v1115, 2
      %v6444 = vsel %vm2890, %v6441, %v6443
      %v6445 = vrot.slane %v1121, 2
      %v6446 = vrot.slane %v1122, 2
      %v6447 = vsel %vm2890, %v6445, %v6446
      %v6448 = vrot.slane %v1123, 2
      %v6449 = vsel %vm2890, %v6446, %v6448
      %v6450 = vrot.slane %v1129, 2
      %v6451 = vrot.slane %v1130, 2
      %v6452 = vsel %vm2890, %v6450, %v6451
      %v6453 = vrot.slane %v1131, 2
      %v6454 = vsel %vm2890, %v6451, %v6453
      %v6455 = vrot.slane %v1137, 2
      %v6456 = vrot.slane %v1138, 2
      %v6457 = vsel %vm2890, %v6455, %v6456
      %v6458 = vrot.slane %v1139, 2
      %v6459 = vsel %vm2890, %v6456, %v6458
      %v6460 = vrot.slane %v1145, 2
      %v6461 = vrot.slane %v1146, 2
      %v6462 = vsel %vm2890, %v6460, %v6461
      %v6463 = vrot.slane %v1147, 2
      %v6464 = vsel %vm2890, %v6461, %v6463
      %v6465 = vrot.slane %v1153, 2
      %v6466 = vrot.slane %v1154, 2
      %v6467 = vsel %vm2890, %v6465, %v6466
      %v6468 = vrot.slane %v1155, 2
      %v6469 = vsel %vm2890, %v6466, %v6468
      %v6470 = vrot.slane %v1161, 2
      %v6471 = vrot.slane %v1162, 2
      %v6472 = vsel %vm2890, %v6470, %v6471
      %v6473 = vrot.slane %v1163, 2
      %v6474 = vsel %vm2890, %v6471, %v6473
      %v6475 = vrot.slane %v1169, 2
      %v6476 = vrot.slane %v1170, 2
      %v6477 = vsel %vm2890, %v6475, %v6476
      %v6478 = vrot.slane %v1171, 2
      %v6479 = vsel %vm2890, %v6476, %v6478
      %v6480 = vrot.slane %v1177, 2
      %v6481 = vrot.slane %v1178, 2
      %v6482 = vsel %vm2890, %v6480, %v6481
      %v6483 = vrot.slane %v1179, 2
      %v6484 = vsel %vm2890, %v6481, %v6483
      %v6485 = vrot.slane %v1185, 2
      %v6486 = vrot.slane %v1186, 2
      %v6487 = vsel %vm2890, %v6485, %v6486
      %v6488 = vrot.slane %v1187, 2
      %v6489 = vsel %vm2890, %v6486, %v6488
      %v6490 = vrot.slane %v1193, 2
      %v6491 = vrot.slane %v1194, 2
      %v6492 = vsel %vm2890, %v6490, %v6491
      %v6493 = vrot.slane %v1195, 2
      %v6494 = vsel %vm2890, %v6491, %v6493
      %v6495 = vrot.slane %v1201, 2
      %v6496 = vrot.slane %v1202, 2
      %v6497 = vsel %vm2890, %v6495, %v6496
      %v6498 = vrot.slane %v1203, 2
      %v6499 = vsel %vm2890, %v6496, %v6498
      %v6500 = vrot.slane %v1209, 2
      %v6501 = vrot.slane %v1210, 2
      %v6502 = vsel %vm2890, %v6500, %v6501
      %v6503 = vrot.slane %v1211, 2
      %v6504 = vsel %vm2890, %v6501, %v6503
      %v6505 = vrot.slane %v1217, 2
      %v6506 = vrot.slane %v1218, 2
      %v6507 = vsel %vm2890, %v6505, %v6506
      %v6508 = vrot.slane %v1219, 2
      %v6509 = vsel %vm2890, %v6506, %v6508
      %v6510 = vrot.slane %v1225, 2
      %v6511 = vrot.slane %v1226, 2
      %v6512 = vsel %vm2890, %v6510, %v6511
      %v6513 = vrot.slane %v1227, 2
      %v6514 = vsel %vm2890, %v6511, %v6513
      %6515 = vrot.lane.b32.xlu0 %v6437, 80
      %v6516 = vpop.permute.xlu0 %6515
      %6517 = vrot.lane.b32.xlu0 %v6439, 80
      %v6518 = vpop.permute.xlu0 %6517
      %6519 = vrot.lane.b32.xlu0 %v6442, 80
      %v6520 = vpop.permute.xlu0 %6519
      %6521 = vrot.lane.b32.xlu0 %v6444, 80
      %v6522 = vpop.permute.xlu0 %6521
      %6523 = vrot.lane.b32.xlu0 %v6447, 80
      %v6524 = vpop.permute.xlu0 %6523
      %6525 = vrot.lane.b32.xlu0 %v6449, 80
      %v6526 = vpop.permute.xlu0 %6525
      %6527 = vrot.lane.b32.xlu0 %v6452, 80
      %v6528 = vpop.permute.xlu0 %6527
      %6529 = vrot.lane.b32.xlu0 %v6454, 80
      %v6530 = vpop.permute.xlu0 %6529
      %6531 = vrot.lane.b32.xlu0 %v6457, 80
      %v6532 = vpop.permute.xlu0 %6531
      %6533 = vrot.lane.b32.xlu0 %v6459, 80
      %v6534 = vpop.permute.xlu0 %6533
      %6535 = vrot.lane.b32.xlu0 %v6462, 80
      %v6536 = vpop.permute.xlu0 %6535
      %6537 = vrot.lane.b32.xlu0 %v6464, 80
      %v6538 = vpop.permute.xlu0 %6537
      %6539 = vrot.lane.b32.xlu0 %v6467, 80
      %v6540 = vpop.permute.xlu0 %6539
      %6541 = vrot.lane.b32.xlu0 %v6469, 80
      %v6542 = vpop.permute.xlu0 %6541
      %6543 = vrot.lane.b32.xlu0 %v6472, 80
      %v6544 = vpop.permute.xlu0 %6543
      %6545 = vrot.lane.b32.xlu0 %v6474, 80
      %v6546 = vpop.permute.xlu0 %6545
      %6547 = vrot.lane.b32.xlu0 %v6477, 80
      %v6548 = vpop.permute.xlu0 %6547
      %6549 = vrot.lane.b32.xlu0 %v6479, 80
      %v6550 = vpop.permute.xlu0 %6549
      %6551 = vrot.lane.b32.xlu0 %v6482, 80
      %v6552 = vpop.permute.xlu0 %6551
      %6553 = vrot.lane.b32.xlu0 %v6484, 80
      %v6554 = vpop.permute.xlu0 %6553
      %6555 = vrot.lane.b32.xlu0 %v6487, 80
      %v6556 = vpop.permute.xlu0 %6555
      %6557 = vrot.lane.b32.xlu0 %v6489, 80
      %v6558 = vpop.permute.xlu0 %6557
      %6559 = vrot.lane.b32.xlu0 %v6492, 80
      %v6560 = vpop.permute.xlu0 %6559
      %6561 = vrot.lane.b32.xlu0 %v6494, 80
      %v6562 = vpop.permute.xlu0 %6561
      %6563 = vrot.lane.b32.xlu0 %v6497, 80
      %v6564 = vpop.permute.xlu0 %6563
      %6565 = vrot.lane.b32.xlu0 %v6499, 80
      %v6566 = vpop.permute.xlu0 %6565
      %6567 = vrot.lane.b32.xlu0 %v6502, 80
      %v6568 = vpop.permute.xlu0 %6567
      %6569 = vrot.lane.b32.xlu0 %v6504, 80
      %v6570 = vpop.permute.xlu0 %6569
      %6571 = vrot.lane.b32.xlu0 %v6507, 80
      %v6572 = vpop.permute.xlu0 %6571
      %6573 = vrot.lane.b32.xlu0 %v6509, 80
      %v6574 = vpop.permute.xlu0 %6573
      %6575 = vrot.lane.b32.xlu0 %v6512, 80
      %v6576 = vpop.permute.xlu0 %6575
      %6577 = vrot.lane.b32.xlu0 %v6514, 80
      %v6578 = vpop.permute.xlu0 %6577
      %v6611 = vsel %vm242, %v1059, %v5142
      %v6612 = vsel %vm242, %v1060, %v5144
      %v6613 = vsel %vm242, %v1067, %v5146
      %v6614 = vsel %vm242, %v1068, %v5148
      %v6615 = vsel %vm242, %v1075, %v5150
      %v6616 = vsel %vm242, %v1076, %v5152
      %v6617 = vsel %vm242, %v1083, %v5154
      %v6618 = vsel %vm242, %v1084, %v5156
      %v6619 = vsel %vm242, %v1090, %v5158
      %v6620 = vsel %vm242, %v1091, %v5160
      %v6621 = vsel %vm242, %v1096, %v5162
      %v6622 = vsel %vm242, %v1097, %v5164
      %v6623 = vsel %vm242, %v1103, %v5166
      %v6624 = vsel %vm242, %v1104, %v5168
      %v6625 = vsel %vm242, %v1111, %v5170
      %v6626 = vsel %vm242, %v1112, %v5172
      %v6627 = vsel %vm242, %v1119, %v5174
      %v6628 = vsel %vm242, %v1120, %v5176
      %v6629 = vsel %vm242, %v1127, %v5178
      %v6630 = vsel %vm242, %v1128, %v5180
      %v6631 = vsel %vm242, %v1135, %v5182
      %v6632 = vsel %vm242, %v1136, %v5184
      %v6633 = vsel %vm242, %v1143, %v5186
      %v6634 = vsel %vm242, %v1144, %v5188
      %v6635 = vsel %vm242, %v1151, %v5190
      %v6636 = vsel %vm242, %v1152, %v5192
      %v6637 = vsel %vm242, %v1159, %v5194
      %v6638 = vsel %vm242, %v1160, %v5196
      %v6639 = vsel %vm242, %v1167, %v5198
      %v6640 = vsel %vm242, %v1168, %v5200
      %v6641 = vsel %vm242, %v1175, %v5202
      %v6642 = vsel %vm242, %v1176, %v5204
      %v6643 = vsel %vm4381, %v6611, %v5346
      %v6644 = vsel %vm4381, %v6612, %v5348
      %v6645 = vsel %vm4381, %v6613, %v5350
      %v6646 = vsel %vm4381, %v6614, %v5352
      %v6647 = vsel %vm4381, %v6615, %v5354
      %v6648 = vsel %vm4381, %v6616, %v5356
      %v6649 = vsel %vm4381, %v6617, %v5358
      %v6650 = vsel %vm4381, %v6618, %v5360
      %v6651 = vsel %vm4381, %v6619, %v5362
      %v6652 = vsel %vm4381, %v6620, %v5364
      %v6653 = vsel %vm4381, %v6621, %v5366
      %v6654 = vsel %vm4381, %v6622, %v5368
      %v6655 = vsel %vm4381, %v6623, %v5370
      %v6656 = vsel %vm4381, %v6624, %v5372
      %v6657 = vsel %vm4381, %v6625, %v5374
      %v6658 = vsel %vm4381, %v6626, %v5376
      %v6659 = vsel %vm4381, %v6627, %v5378
      %v6660 = vsel %vm4381, %v6628, %v5380
      %v6661 = vsel %vm4381, %v6629, %v5382
      %v6662 = vsel %vm4381, %v6630, %v5384
      %v6663 = vsel %vm4381, %v6631, %v5386
      %v6664 = vsel %vm4381, %v6632, %v5388
      %v6665 = vsel %vm4381, %v6633, %v5390
      %v6666 = vsel %vm4381, %v6634, %v5392
      %v6667 = vsel %vm4381, %v6635, %v5394
      %v6668 = vsel %vm4381, %v6636, %v5396
      %v6669 = vsel %vm4381, %v6637, %v5398
      %v6670 = vsel %vm4381, %v6638, %v5400
      %v6671 = vsel %vm4381, %v6639, %v5402
      %v6672 = vsel %vm4381, %v6640, %v5404
      %v6673 = vsel %vm4381, %v6641, %v5406
      %v6674 = vsel %vm4381, %v6642, %v5408
      %v6675 = vsel %vm4430, %v6643, %v5454
      %v6676 = vsel %vm4430, %v6644, %v5456
      %v6677 = vsel %vm4430, %v6645, %v5458
      %v6678 = vsel %vm4430, %v6646, %v5460
      %v6679 = vsel %vm4430, %v6647, %v5462
      %v6680 = vsel %vm4430, %v6648, %v5464
      %v6681 = vsel %vm4430, %v6649, %v5466
      %v6682 = vsel %vm4430, %v6650, %v5468
      %v6683 = vsel %vm4430, %v6651, %v5470
      %v6684 = vsel %vm4430, %v6652, %v5472
      %v6685 = vsel %vm4430, %v6653, %v5474
      %v6686 = vsel %vm4430, %v6654, %v5476
      %v6687 = vsel %vm4430, %v6655, %v5478
      %v6688 = vsel %vm4430, %v6656, %v5480
      %v6689 = vsel %vm4430, %v6657, %v5482
      %v6690 = vsel %vm4430, %v6658, %v5484
      %v6691 = vsel %vm4430, %v6659, %v5486
      %v6692 = vsel %vm4430, %v6660, %v5488
      %v6693 = vsel %vm4430, %v6661, %v5490
      %v6694 = vsel %vm4430, %v6662, %v5492
      %v6695 = vsel %vm4430, %v6663, %v5494
      %v6696 = vsel %vm4430, %v6664, %v5496
      %v6697 = vsel %vm4430, %v6665, %v5498
      %v6698 = vsel %vm4430, %v6666, %v5500
      %v6699 = vsel %vm4430, %v6667, %v5502
      %v6700 = vsel %vm4430, %v6668, %v5504
      %v6701 = vsel %vm4430, %v6669, %v5506
      %v6702 = vsel %vm4430, %v6670, %v5508
      %v6703 = vsel %vm4430, %v6671, %v5510
      %v6704 = vsel %vm4430, %v6672, %v5512
      %v6705 = vsel %vm4430, %v6673, %v5514
      %v6706 = vsel %vm4430, %v6674, %v5516
      %v6707 = vsel %vm4479, %v6675, %v5628
      %v6708 = vsel %vm4479, %v6676, %v5630
      %v6709 = vsel %vm4479, %v6677, %v5632
      %v6710 = vsel %vm4479, %v6678, %v5634
      %v6711 = vsel %vm4479, %v6679, %v5636
      %v6712 = vsel %vm4479, %v6680, %v5638
      %v6713 = vsel %vm4479, %v6681, %v5640
      %v6714 = vsel %vm4479, %v6682, %v5642
      %v6715 = vsel %vm4479, %v6683, %v5644
      %v6716 = vsel %vm4479, %v6684, %v5646
      %v6717 = vsel %vm4479, %v6685, %v5648
      %v6718 = vsel %vm4479, %v6686, %v5650
      %v6719 = vsel %vm4479, %v6687, %v5652
      %v6720 = vsel %vm4479, %v6688, %v5654
      %v6721 = vsel %vm4479, %v6689, %v5656
      %v6722 = vsel %vm4479, %v6690, %v5658
      %v6723 = vsel %vm4479, %v6691, %v5660
      %v6724 = vsel %vm4479, %v6692, %v5662
      %v6725 = vsel %vm4479, %v6693, %v5664
      %v6726 = vsel %vm4479, %v6694, %v5666
      %v6727 = vsel %vm4479, %v6695, %v5668
      %v6728 = vsel %vm4479, %v6696, %v5670
      %v6729 = vsel %vm4479, %v6697, %v5672
      %v6730 = vsel %vm4479, %v6698, %v5674
      %v6731 = vsel %vm4479, %v6699, %v5676
      %v6732 = vsel %vm4479, %v6700, %v5678
      %v6733 = vsel %vm4479, %v6701, %v5680
      %v6734 = vsel %vm4479, %v6702, %v5682
      %v6735 = vsel %vm4479, %v6703, %v5684
      %v6736 = vsel %vm4479, %v6704, %v5686
      %v6737 = vsel %vm4479, %v6705, %v5688
      %v6738 = vsel %vm4479, %v6706, %v5690
      %v6739 = vsel %vm4528, %v6707, %v5820
      %v6740 = vsel %vm4528, %v6708, %v5822
      %v6741 = vsel %vm4528, %v6709, %v5824
      %v6742 = vsel %vm4528, %v6710, %v5826
      %v6743 = vsel %vm4528, %v6711, %v5828
      %v6744 = vsel %vm4528, %v6712, %v5830
      %v6745 = vsel %vm4528, %v6713, %v5832
      %v6746 = vsel %vm4528, %v6714, %v5834
      %v6747 = vsel %vm4528, %v6715, %v5836
      %v6748 = vsel %vm4528, %v6716, %v5838
      %v6749 = vsel %vm4528, %v6717, %v5840
      %v6750 = vsel %vm4528, %v6718, %v5842
      %v6751 = vsel %vm4528, %v6719, %v5844
      %v6752 = vsel %vm4528, %v6720, %v5846
      %v6753 = vsel %vm4528, %v6721, %v5848
      %v6754 = vsel %vm4528, %v6722, %v5850
      %v6755 = vsel %vm4528, %v6723, %v5852
      %v6756 = vsel %vm4528, %v6724, %v5854
      %v6757 = vsel %vm4528, %v6725, %v5856
      %v6758 = vsel %vm4528, %v6726, %v5858
      %v6759 = vsel %vm4528, %v6727, %v5860
      %v6760 = vsel %vm4528, %v6728, %v5862
      %v6761 = vsel %vm4528, %v6729, %v5864
      %v6762 = vsel %vm4528, %v6730, %v5866
      %v6763 = vsel %vm4528, %v6731, %v5868
      %v6764 = vsel %vm4528, %v6732, %v5870
      %v6765 = vsel %vm4528, %v6733, %v5872
      %v6766 = vsel %vm4528, %v6734, %v5874
      %v6767 = vsel %vm4528, %v6735, %v5876
      %v6768 = vsel %vm4528, %v6736, %v5878
      %v6769 = vsel %vm4528, %v6737, %v5880
      %v6770 = vsel %vm4528, %v6738, %v5882
      %v6771 = vsel %vm4577, %v6739, %v5916
      %v6772 = vsel %vm4577, %v6740, %v5918
      %v6773 = vsel %vm4577, %v6741, %v5920
      %v6774 = vsel %vm4577, %v6742, %v5922
      %v6775 = vsel %vm4577, %v6743, %v5924
      %v6776 = vsel %vm4577, %v6744, %v5926
      %v6777 = vsel %vm4577, %v6745, %v5928
      %v6778 = vsel %vm4577, %v6746, %v5930
      %v6779 = vsel %vm4577, %v6747, %v5932
      %v6780 = vsel %vm4577, %v6748, %v5934
      %v6781 = vsel %vm4577, %v6749, %v5936
      %v6782 = vsel %vm4577, %v6750, %v5938
      %v6783 = vsel %vm4577, %v6751, %v2373
      %v6784 = vsel %vm4577, %v6752, %v2375
      %v6785 = vsel %vm4577, %v6753, %v2379
      %v6786 = vsel %vm4577, %v6754, %v2381
      %v6787 = vsel %vm4577, %v6755, %v2385
      %v6788 = vsel %vm4577, %v6756, %v2387
      %v6789 = vsel %vm4577, %v6757, %v2391
      %v6790 = vsel %vm4577, %v6758, %v2393
      %v6791 = vsel %vm4577, %v6759, %v2397
      %v6792 = vsel %vm4577, %v6760, %v2399
      %v6793 = vsel %vm4577, %v6761, %v2403
      %v6794 = vsel %vm4577, %v6762, %v2405
      %v6795 = vsel %vm4577, %v6763, %v2409
      %v6796 = vsel %vm4577, %v6764, %v2411
      %v6797 = vsel %vm4577, %v6765, %v2415
      %v6798 = vsel %vm4577, %v6766, %v2417
      %v6799 = vsel %vm4577, %v6767, %v2421
      %v6800 = vsel %vm4577, %v6768, %v2423
      %v6801 = vsel %vm4577, %v6769, %v2427
      %v6802 = vsel %vm4577, %v6770, %v2429
      %v6803 = vsel %vm4626, %v6771, %v6000
      %v6804 = vsel %vm4626, %v6772, %v6002
      %v6805 = vsel %vm4626, %v6773, %v6004
      %v6806 = vsel %vm4626, %v6774, %v6006
      %v6807 = vsel %vm4626, %v6775, %v6008
      %v6808 = vsel %vm4626, %v6776, %v6010
      %v6809 = vsel %vm4626, %v6777, %v6012
      %v6810 = vsel %vm4626, %v6778, %v6014
      %v6811 = vsel %vm4626, %v6779, %v6016
      %v6812 = vsel %vm4626, %v6780, %v6018
      %v6813 = vsel %vm4626, %v6781, %v6020
      %v6814 = vsel %vm4626, %v6782, %v6022
      %v6815 = vsel %vm4626, %v6783, %v6024
      %v6816 = vsel %vm4626, %v6784, %v6026
      %v6817 = vsel %vm4626, %v6785, %v6028
      %v6818 = vsel %vm4626, %v6786, %v6030
      %v6819 = vsel %vm4626, %v6787, %v6032
      %v6820 = vsel %vm4626, %v6788, %v6034
      %v6821 = vsel %vm4626, %v6789, %v6036
      %v6822 = vsel %vm4626, %v6790, %v6038
      %v6823 = vsel %vm4626, %v6791, %v6040
      %v6824 = vsel %vm4626, %v6792, %v6042
      %v6825 = vsel %vm4626, %v6793, %v6044
      %v6826 = vsel %vm4626, %v6794, %v6046
      %v6827 = vsel %vm4626, %v6795, %v6048
      %v6828 = vsel %vm4626, %v6796, %v6050
      %v6829 = vsel %vm4626, %v6797, %v6052
      %v6830 = vsel %vm4626, %v6798, %v6054
      %v6831 = vsel %vm4626, %v6799, %v6056
      %v6832 = vsel %vm4626, %v6800, %v6058
      %v6833 = vsel %vm4626, %v6801, %v6060
      %v6834 = vsel %vm4626, %v6802, %v6062
      %v6835 = vsel %vm4675, %v6803, %v6204
      %v6836 = vsel %vm4675, %v6804, %v6206
      %v6837 = vsel %vm4675, %v6805, %v6208
      %v6838 = vsel %vm4675, %v6806, %v6210
      %v6839 = vsel %vm4675, %v6807, %v6212
      %v6840 = vsel %vm4675, %v6808, %v6214
      %v6841 = vsel %vm4675, %v6809, %v6216
      %v6842 = vsel %vm4675, %v6810, %v6218
      %v6843 = vsel %vm4675, %v6811, %v6220
      %v6844 = vsel %vm4675, %v6812, %v6222
      %v6845 = vsel %vm4675, %v6813, %v6224
      %v6846 = vsel %vm4675, %v6814, %v6226
      %v6847 = vsel %vm4675, %v6815, %v6228
      %v6848 = vsel %vm4675, %v6816, %v6230
      %v6849 = vsel %vm4675, %v6817, %v6232
      %v6850 = vsel %vm4675, %v6818, %v6234
      %v6851 = vsel %vm4675, %v6819, %v6236
      %v6852 = vsel %vm4675, %v6820, %v6238
      %v6853 = vsel %vm4675, %v6821, %v6240
      %v6854 = vsel %vm4675, %v6822, %v6242
      %v6855 = vsel %vm4675, %v6823, %v6244
      %v6856 = vsel %vm4675, %v6824, %v6246
      %v6857 = vsel %vm4675, %v6825, %v6248
      %v6858 = vsel %vm4675, %v6826, %v6250
      %v6859 = vsel %vm4675, %v6827, %v6252
      %v6860 = vsel %vm4675, %v6828, %v6254
      %v6861 = vsel %vm4675, %v6829, %v6256
      %v6862 = vsel %vm4675, %v6830, %v6258
      %v6863 = vsel %vm4675, %v6831, %v6260
      %v6864 = vsel %vm4675, %v6832, %v6262
      %v6865 = vsel %vm4675, %v6833, %v6264
      %v6866 = vsel %vm4675, %v6834, %v6266
      %v6867 = vsel %vm4724, %v6835, %v6312
      %v6868 = vsel %vm4724, %v6836, %v6314
      %v6869 = vsel %vm4724, %v6837, %v6316
      %v6870 = vsel %vm4724, %v6838, %v6318
      %v6871 = vsel %vm4724, %v6839, %v6320
      %v6872 = vsel %vm4724, %v6840, %v6322
      %v6873 = vsel %vm4724, %v6841, %v6324
      %v6874 = vsel %vm4724, %v6842, %v6326
      %v6875 = vsel %vm4724, %v6843, %v6328
      %v6876 = vsel %vm4724, %v6844, %v6330
      %v6877 = vsel %vm4724, %v6845, %v6332
      %v6878 = vsel %vm4724, %v6846, %v6334
      %v6879 = vsel %vm4724, %v6847, %v6336
      %v6880 = vsel %vm4724, %v6848, %v6338
      %v6881 = vsel %vm4724, %v6849, %v6340
      %v6882 = vsel %vm4724, %v6850, %v6342
      %v6883 = vsel %vm4724, %v6851, %v6344
      %v6884 = vsel %vm4724, %v6852, %v6346
      %v6885 = vsel %vm4724, %v6853, %v6348
      %v6886 = vsel %vm4724, %v6854, %v6350
      %v6887 = vsel %vm4724, %v6855, %v6352
      %v6888 = vsel %vm4724, %v6856, %v6354
      %v6889 = vsel %vm4724, %v6857, %v6356
      %v6890 = vsel %vm4724, %v6858, %v6358
      %v6891 = vsel %vm4724, %v6859, %v6360
      %v6892 = vsel %vm4724, %v6860, %v6362
      %v6893 = vsel %vm4724, %v6861, %v6364
      %v6894 = vsel %vm4724, %v6862, %v6366
      %v6895 = vsel %vm4724, %v6863, %v6368
      %v6896 = vsel %vm4724, %v6864, %v6370
      %v6897 = vsel %vm4724, %v6865, %v6372
      %v6898 = vsel %vm4724, %v6866, %v6374
      %v6899 = vsel %vm4773, %v6867, %v6516
      %v6900 = vsel %vm4773, %v6868, %v6518
      %v6901 = vsel %vm4773, %v6869, %v6520
      %v6902 = vsel %vm4773, %v6870, %v6522
      %v6903 = vsel %vm4773, %v6871, %v6524
      %v6904 = vsel %vm4773, %v6872, %v6526
      %v6905 = vsel %vm4773, %v6873, %v6528
      %v6906 = vsel %vm4773, %v6874, %v6530
      %v6907 = vsel %vm4773, %v6875, %v6532
      %v6908 = vsel %vm4773, %v6876, %v6534
      %v6909 = vsel %vm4773, %v6877, %v6536
      %v6910 = vsel %vm4773, %v6878, %v6538
      %v6911 = vsel %vm4773, %v6879, %v6540
      %v6912 = vsel %vm4773, %v6880, %v6542
      %v6913 = vsel %vm4773, %v6881, %v6544
      %v6914 = vsel %vm4773, %v6882, %v6546
      %v6915 = vsel %vm4773, %v6883, %v6548
      %v6916 = vsel %vm4773, %v6884, %v6550
      %v6917 = vsel %vm4773, %v6885, %v6552
      %v6918 = vsel %vm4773, %v6886, %v6554
      %v6919 = vsel %vm4773, %v6887, %v6556
      %v6920 = vsel %vm4773, %v6888, %v6558
      %v6921 = vsel %vm4773, %v6889, %v6560
      %v6922 = vsel %vm4773, %v6890, %v6562
      %v6923 = vsel %vm4773, %v6891, %v6564
      %v6924 = vsel %vm4773, %v6892, %v6566
      %v6925 = vsel %vm4773, %v6893, %v6568
      %v6926 = vsel %vm4773, %v6894, %v6570
      %v6927 = vsel %vm4773, %v6895, %v6572
      %v6928 = vsel %vm4773, %v6896, %v6574
      %v6929 = vsel %vm4773, %v6897, %v6576
      %v6930 = vsel %vm4773, %v6898, %v6578
      %v6963 = vrot.slane %v6899, 6
      %v6964 = vrot.slane %v6900, 6
      %v6965 = vsel %vm1404, %v6963, %v6964
      %v6966 = vrot.slane %v6901, 6
      %v6967 = vrot.slane %v6902, 6
      %v6968 = vsel %vm1404, %v6966, %v6967
      %v6969 = vrot.slane %v6903, 6
      %v6970 = vrot.slane %v6904, 6
      %v6971 = vsel %vm1404, %v6969, %v6970
      %v6972 = vrot.slane %v6905, 6
      %v6973 = vrot.slane %v6906, 6
      %v6974 = vsel %vm1404, %v6972, %v6973
      %v6975 = vrot.slane %v6907, 6
      %v6976 = vrot.slane %v6908, 6
      %v6977 = vsel %vm1404, %v6975, %v6976
      %v6978 = vrot.slane %v6909, 6
      %v6979 = vrot.slane %v6910, 6
      %v6980 = vsel %vm1404, %v6978, %v6979
      %v6981 = vrot.slane %v6911, 6
      %v6982 = vrot.slane %v6912, 6
      %v6983 = vsel %vm1404, %v6981, %v6982
      %v6984 = vrot.slane %v6913, 6
      %v6985 = vrot.slane %v6914, 6
      %v6986 = vsel %vm1404, %v6984, %v6985
      %v6987 = vrot.slane %v6915, 6
      %v6988 = vrot.slane %v6916, 6
      %v6989 = vsel %vm1404, %v6987, %v6988
      %v6990 = vrot.slane %v6917, 6
      %v6991 = vrot.slane %v6918, 6
      %v6992 = vsel %vm1404, %v6990, %v6991
      %v6993 = vrot.slane %v6919, 6
      %v6994 = vrot.slane %v6920, 6
      %v6995 = vsel %vm1404, %v6993, %v6994
      %v6996 = vrot.slane %v6921, 6
      %v6997 = vrot.slane %v6922, 6
      %v6998 = vsel %vm1404, %v6996, %v6997
      %v6999 = vrot.slane %v6923, 6
      %v7000 = vrot.slane %v6924, 6
      %v7001 = vsel %vm1404, %v6999, %v7000
      %v7002 = vrot.slane %v6925, 6
      %v7003 = vrot.slane %v6926, 6
      %v7004 = vsel %vm1404, %v7002, %v7003
      %v7005 = vrot.slane %v6927, 6
      %v7006 = vrot.slane %v6928, 6
      %v7007 = vsel %vm1404, %v7005, %v7006
      %v7008 = vrot.slane %v6929, 6
      %v7009 = vrot.slane %v6930, 6
      %v7010 = vsel %vm1404, %v7008, %v7009
      %v7059 = vrot.slane %v5019, 2
      %v7060 = vrot.slane %v5020, 2
      %v7061 = vsel %vm2890, %v7059, %v7060
      %v7062 = vrot.slane %v6963, 2
      %v7063 = vrot.slane %v6965, 2
      %v7064 = vsel %vm2890, %v7062, %v7063
      %v7065 = vrot.slane %v5021, 2
      %v7066 = vsel %vm2890, %v7060, %v7065
      %v7067 = vrot.slane %v6964, 2
      %v7068 = vsel %vm2890, %v7063, %v7067
      %v7069 = vrot.slane %v5022, 2
      %v7070 = vrot.slane %v5023, 2
      %v7071 = vsel %vm2890, %v7069, %v7070
      %v7072 = vrot.slane %v6966, 2
      %v7073 = vrot.slane %v6968, 2
      %v7074 = vsel %vm2890, %v7072, %v7073
      %v7075 = vrot.slane %v5024, 2
      %v7076 = vsel %vm2890, %v7070, %v7075
      %v7077 = vrot.slane %v6967, 2
      %v7078 = vsel %vm2890, %v7073, %v7077
      %v7079 = vrot.slane %v5025, 2
      %v7080 = vrot.slane %v5026, 2
      %v7081 = vsel %vm2890, %v7079, %v7080
      %v7082 = vrot.slane %v6969, 2
      %v7083 = vrot.slane %v6971, 2
      %v7084 = vsel %vm2890, %v7082, %v7083
      %v7085 = vrot.slane %v5027, 2
      %v7086 = vsel %vm2890, %v7080, %v7085
      %v7087 = vrot.slane %v6970, 2
      %v7088 = vsel %vm2890, %v7083, %v7087
      %v7089 = vrot.slane %v5028, 2
      %v7090 = vrot.slane %v5029, 2
      %v7091 = vsel %vm2890, %v7089, %v7090
      %v7092 = vrot.slane %v6972, 2
      %v7093 = vrot.slane %v6974, 2
      %v7094 = vsel %vm2890, %v7092, %v7093
      %v7095 = vrot.slane %v5030, 2
      %v7096 = vsel %vm2890, %v7090, %v7095
      %v7097 = vrot.slane %v6973, 2
      %v7098 = vsel %vm2890, %v7093, %v7097
      %v7099 = vrot.slane %v5031, 2
      %v7100 = vrot.slane %v5032, 2
      %v7101 = vsel %vm2890, %v7099, %v7100
      %v7102 = vrot.slane %v6975, 2
      %v7103 = vrot.slane %v6977, 2
      %v7104 = vsel %vm2890, %v7102, %v7103
      %v7105 = vrot.slane %v5033, 2
      %v7106 = vsel %vm2890, %v7100, %v7105
      %v7107 = vrot.slane %v6976, 2
      %v7108 = vsel %vm2890, %v7103, %v7107
      %v7109 = vrot.slane %v5034, 2
      %v7110 = vrot.slane %v5035, 2
      %v7111 = vsel %vm2890, %v7109, %v7110
      %v7112 = vrot.slane %v6978, 2
      %v7113 = vrot.slane %v6980, 2
      %v7114 = vsel %vm2890, %v7112, %v7113
      %v7115 = vrot.slane %v5036, 2
      %v7116 = vsel %vm2890, %v7110, %v7115
      %v7117 = vrot.slane %v6979, 2
      %v7118 = vsel %vm2890, %v7113, %v7117
      %v7119 = vrot.slane %v5037, 2
      %v7120 = vrot.slane %v5038, 2
      %v7121 = vsel %vm2890, %v7119, %v7120
      %v7122 = vrot.slane %v6981, 2
      %v7123 = vrot.slane %v6983, 2
      %v7124 = vsel %vm2890, %v7122, %v7123
      %v7125 = vrot.slane %v5039, 2
      %v7126 = vsel %vm2890, %v7120, %v7125
      %v7127 = vrot.slane %v6982, 2
      %v7128 = vsel %vm2890, %v7123, %v7127
      %v7129 = vrot.slane %v5040, 2
      %v7130 = vrot.slane %v5041, 2
      %v7131 = vsel %vm2890, %v7129, %v7130
      %v7132 = vrot.slane %v6984, 2
      %v7133 = vrot.slane %v6986, 2
      %v7134 = vsel %vm2890, %v7132, %v7133
      %v7135 = vrot.slane %v5042, 2
      %v7136 = vsel %vm2890, %v7130, %v7135
      %v7137 = vrot.slane %v6985, 2
      %v7138 = vsel %vm2890, %v7133, %v7137
      %v7139 = vrot.slane %v5043, 2
      %v7140 = vrot.slane %v5044, 2
      %v7141 = vsel %vm2890, %v7139, %v7140
      %v7142 = vrot.slane %v6987, 2
      %v7143 = vrot.slane %v6989, 2
      %v7144 = vsel %vm2890, %v7142, %v7143
      %v7145 = vrot.slane %v5045, 2
      %v7146 = vsel %vm2890, %v7140, %v7145
      %v7147 = vrot.slane %v6988, 2
      %v7148 = vsel %vm2890, %v7143, %v7147
      %v7149 = vrot.slane %v5046, 2
      %v7150 = vrot.slane %v5047, 2
      %v7151 = vsel %vm2890, %v7149, %v7150
      %v7152 = vrot.slane %v6990, 2
      %v7153 = vrot.slane %v6992, 2
      %v7154 = vsel %vm2890, %v7152, %v7153
      %v7155 = vrot.slane %v5048, 2
      %v7156 = vsel %vm2890, %v7150, %v7155
      %v7157 = vrot.slane %v6991, 2
      %v7158 = vsel %vm2890, %v7153, %v7157
      %v7159 = vrot.slane %v5049, 2
      %v7160 = vrot.slane %v5050, 2
      %v7161 = vsel %vm2890, %v7159, %v7160
      %v7162 = vrot.slane %v6993, 2
      %v7163 = vrot.slane %v6995, 2
      %v7164 = vsel %vm2890, %v7162, %v7163
      %v7165 = vrot.slane %v5051, 2
      %v7166 = vsel %vm2890, %v7160, %v7165
      %v7167 = vrot.slane %v6994, 2
      %v7168 = vsel %vm2890, %v7163, %v7167
      %v7169 = vrot.slane %v5052, 2
      %v7170 = vrot.slane %v5053, 2
      %v7171 = vsel %vm2890, %v7169, %v7170
      %v7172 = vrot.slane %v6996, 2
      %v7173 = vrot.slane %v6998, 2
      %v7174 = vsel %vm2890, %v7172, %v7173
      %v7175 = vrot.slane %v5054, 2
      %v7176 = vsel %vm2890, %v7170, %v7175
      %v7177 = vrot.slane %v6997, 2
      %v7178 = vsel %vm2890, %v7173, %v7177
      %v7179 = vrot.slane %v5055, 2
      %v7180 = vrot.slane %v5056, 2
      %v7181 = vsel %vm2890, %v7179, %v7180
      %v7182 = vrot.slane %v6999, 2
      %v7183 = vrot.slane %v7001, 2
      %v7184 = vsel %vm2890, %v7182, %v7183
      %v7185 = vrot.slane %v5057, 2
      %v7186 = vsel %vm2890, %v7180, %v7185
      %v7187 = vrot.slane %v7000, 2
      %v7188 = vsel %vm2890, %v7183, %v7187
      %v7189 = vrot.slane %v5058, 2
      %v7190 = vrot.slane %v5059, 2
      %v7191 = vsel %vm2890, %v7189, %v7190
      %v7192 = vrot.slane %v7002, 2
      %v7193 = vrot.slane %v7004, 2
      %v7194 = vsel %vm2890, %v7192, %v7193
      %v7195 = vrot.slane %v5060, 2
      %v7196 = vsel %vm2890, %v7190, %v7195
      %v7197 = vrot.slane %v7003, 2
      %v7198 = vsel %vm2890, %v7193, %v7197
      %v7199 = vrot.slane %v5061, 2
      %v7200 = vrot.slane %v5062, 2
      %v7201 = vsel %vm2890, %v7199, %v7200
      %v7202 = vrot.slane %v7005, 2
      %v7203 = vrot.slane %v7007, 2
      %v7204 = vsel %vm2890, %v7202, %v7203
      %v7205 = vrot.slane %v5063, 2
      %v7206 = vsel %vm2890, %v7200, %v7205
      %v7207 = vrot.slane %v7006, 2
      %v7208 = vsel %vm2890, %v7203, %v7207
      %v7209 = vrot.slane %v5064, 2
      %v7210 = vrot.slane %v5065, 2
      %v7211 = vsel %vm2890, %v7209, %v7210
      %v7212 = vrot.slane %v7008, 2
      %v7213 = vrot.slane %v7010, 2
      %v7214 = vsel %vm2890, %v7212, %v7213
      %v7215 = vrot.slane %v5066, 2
      %v7216 = vsel %vm2890, %v7210, %v7215
      %v7217 = vrot.slane %v7009, 2
      %v7218 = vsel %vm2890, %v7213, %v7217
      %v7251 = vld [vmem:[%s1] sm:$0xff]
      %v7252 = vld [vmem:[%s1 + $0x8] sm:$0xff]
      %v7253 = vld [vmem:[%s1 + $0x10] sm:$0xff]
      %v7254 = vld [vmem:[%s1 + $0x18] sm:$0xff]
      %v7255 = vld [vmem:[%s1 + $0x20] sm:$0xff]
      %v7256 = vld [vmem:[%s1 + $0x28] sm:$0xff]
      %v7257 = vld [vmem:[%s1 + $0x30] sm:$0xff]
      %v7258 = vld [vmem:[%s1 + $0x38] sm:$0xff]
      %v7259 = vld [vmem:[%s1 + $0x40] sm:$0xff]
      %v7260 = vld [vmem:[%s1 + $0x48] sm:$0xff]
      %v7261 = vld [vmem:[%s1 + $0x50] sm:$0xff]
      %v7262 = vld [vmem:[%s1 + $0x58] sm:$0xff]
      %v7263 = vld [vmem:[%s1 + $0x60] sm:$0xff]
      %v7264 = vld [vmem:[%s1 + $0x68] sm:$0xff]
      %v7265 = vld [vmem:[%s1 + $0x70] sm:$0xff]
      %v7266 = vld [vmem:[%s1 + $0x78] sm:$0xff]
      %v7267 = vld [vmem:[%s1 + $0x80] sm:$0xff]
      %v7268 = vld [vmem:[%s1 + $0x88] sm:$0xff]
      %v7269 = vld [vmem:[%s1 + $0x90] sm:$0xff]
      %v7270 = vld [vmem:[%s1 + $0x98] sm:$0xff]
      %v7271 = vld [vmem:[%s1 + $0xa0] sm:$0xff]
      %v7272 = vld [vmem:[%s1 + $0xa8] sm:$0xff]
      %v7273 = vld [vmem:[%s1 + $0xb0] sm:$0xff]
      %v7274 = vld [vmem:[%s1 + $0xb8] sm:$0xff]
      %v7275 = vld [vmem:[%s1 + $0xc0] sm:$0xff]
      %v7276 = vld [vmem:[%s1 + $0xc8] sm:$0xff]
      %v7277 = vld [vmem:[%s1 + $0xd0] sm:$0xff]
      %v7278 = vsel %vm4822, %v7064, 0
      %v7280 = vsel %vm4822, %v7068, 0
      %v7282 = vsel %vm4822, %v7074, 0
      %v7284 = vsel %vm4822, %v7078, 0
      %v7286 = vsel %vm4822, %v7084, 0
      %v7288 = vsel %vm4822, %v7088, 0
      %v7290 = vsel %vm4822, %v7094, 0
      %v7292 = vsel %vm4822, %v7098, 0
      %v7294 = vsel %vm4822, %v7104, 0
      %v7296 = vsel %vm4822, %v7108, 0
      %v7298 = vsel %vm4822, %v7114, 0
      %v7300 = vsel %vm4822, %v7118, 0
      %v7302 = vsel %vm4822, %v7124, 0
      %v7304 = vsel %vm4822, %v7128, 0
      %v7306 = vsel %vm4822, %v7134, 0
      %v7308 = vsel %vm4822, %v7138, 0
      %v7310 = vsel %vm4822, %v7144, 0
      %v7312 = vsel %vm4822, %v7148, 0
      %v7314 = vsel %vm4822, %v7154, 0
      %v7316 = vsel %vm4822, %v7158, 0
      %v7318 = vsel %vm4822, %v7164, 0
      %v7320 = vsel %vm4822, %v7168, 0
      %v7322 = vsel %vm4822, %v7174, 0
      %v7324 = vsel %vm4822, %v7178, 0
      %v7326 = vsel %vm4822, %v7184, 0
      %v7328 = vsel %vm4822, %v7188, 0
      %v7330 = vsel %vm4822, %v7194, 0
      %v7332 = vsel %vm4822, %v7198, 0
      %v7334 = vsel %vm4822, %v7204, 0
      %v7336 = vsel %vm4822, %v7208, 0
      %v7338 = vsel %vm4822, %v7214, 0
      %v7340 = vsel %vm4822, %v7218, 0
      %7342 = vmatprep.subr.mxu0 0.0
      %7343 = vmatpush1.msra.mxu0 %v7251
      %7344 = vmatprep.subr.mxu0 0.0
      %7345 = vmatpush1.msra.mxu0 %v7252
      %7346 = vmatprep.subr.mxu0 0.0
      %7347 = vmatpush1.msra.mxu0 %v7253
      %7348 = vmatprep.subr.mxu0 0.0
      %7349 = vmatpush1.msra.mxu0 %v7254
      %7350 = vmatprep.subr.mxu0 0.0
      %7351 = vmatpush1.msra.mxu0 %v7255
      %7352 = vmatprep.subr.mxu0 0.0
      %7353 = vmatpush1.msra.mxu0 %v7256
      %7354 = vmatprep.subr.mxu0 0.0
      %7355 = vmatpush1.msra.mxu0 %v7257
      %7356 = vmatprep.subr.mxu0 0.0
      %7357 = vmatpush1.msra.mxu0 %v7258
      %7358 = vmatprep.subr.mxu0 0.0
      %7359 = vmatpush1.msra.mxu0 %v7259
      %7360 = vmatprep.subr.mxu0 0.0
      %7361 = vmatpush1.msra.mxu0 %v7260
      %7362 = vmatprep.subr.mxu0 0.0
      %7363 = vmatpush1.msra.mxu0 %v7261
      %7364 = vmatprep.subr.mxu0 0.0
      %7365 = vmatpush1.msra.mxu0 %v7262
      %7366 = vmatprep.subr.mxu0 0.0
      %7367 = vmatpush1.msra.mxu0 %v7263
      %7368 = vmatprep.subr.mxu0 0.0
      %7369 = vmatpush1.msra.mxu0 %v7264
      %7370 = vmatprep.subr.mxu0 0.0
      %7371 = vmatpush1.msra.mxu0 %v7265
      %7372 = vmatprep.subr.mxu0 0.0
      %7373 = vmatpush1.msra.mxu0 %v7266
      %7374 = vmatprep.subr.mxu0 0.0
      %7375 = vmatpush1.msra.mxu0 %v7267
      %7376 = vmatprep.subr.mxu0 0.0
      %7377 = vmatpush1.msra.mxu0 %v7268
      %7378 = vmatprep.subr.mxu0 0.0
      %7379 = vmatpush1.msra.mxu0 %v7269
      %7380 = vmatprep.subr.mxu0 0.0
      %7381 = vmatpush1.msra.mxu0 %v7270
      %7382 = vmatprep.subr.mxu0 0.0
      %7383 = vmatpush1.msra.mxu0 %v7271
      %7384 = vmatprep.subr.mxu0 0.0
      %7385 = vmatpush1.msra.mxu0 %v7272
      %7386 = vmatprep.subr.mxu0 0.0
      %7387 = vmatpush1.msra.mxu0 %v7273
      %7388 = vmatprep.subr.mxu0 0.0
      %7389 = vmatpush1.msra.mxu0 %v7274
      %7390 = vmatprep.subr.mxu0 0.0
      %7391 = vmatpush1.msra.mxu0 %v7275
      %7392 = vmatprep.subr.mxu0 0.0
      %7393 = vmatpush1.msra.mxu0 %v7276
      %7394 = vmatprep.subr.mxu0 0.0
      %7395 = vmatpush1.msra.mxu0 %v7277
      %7396 = vmatprep.subr.mxu0 0.0
      %7397 = vmatpush1.msra.mxu0 0.0
      %7398 = vmatprep.subr.mxu0 0.0
      %7399 = vmatpush1.msra.mxu0 0.0
      %7400 = vmatprep.subr.mxu0 0.0
      %7401 = vmatpush1.msra.mxu0 0.0
      %7402 = vmatprep.subr.mxu0 0.0
      %7403 = vmatpush1.msra.mxu0 0.0
      %7404 = vmatprep.subr.mxu0 0.0
      %7405 = vmatpush1.msra.mxu0 0.0
      %7406 = vmatprep.mubr.f32.mxu0 %v7278
      %7407 = vmatmul.mubr.f32.gmra.mrb[0].mxu0 %v7061
      %v7408 = vpop.f32.mrb[0].mxu0
      %v7409 = vadd.f32 0.0, %v7408
      %v7410 = vpop.f32.mrb[0].mxu0
      %7411 = vmatprep.mubr.f32.mxu0 %v7280
      %7412 = vmatmul.mubr.f32.gmra.mrb[0].mxu0 %v7066
      %v7413 = vpop.f32.mrb[0].mxu0
      %v7414 = vadd.f32 0.0, %v7413
      %v7415 = vpop.f32.mrb[0].mxu0
      %7416 = vmatprep.mubr.f32.mxu0 %v7282
      %7417 = vmatmul.mubr.f32.gmra.mrb[0].mxu0 %v7071
      %v7418 = vpop.f32.mrb[0].mxu0
      %v7419 = vadd.f32 0.0, %v7418
      %v7420 = vpop.f32.mrb[0].mxu0
      %7421 = vmatprep.mubr.f32.mxu0 %v7284
      %7422 = vmatmul.mubr.f32.gmra.mrb[0].mxu0 %v7076
      %v7423 = vpop.f32.mrb[0].mxu0
      %v7424 = vadd.f32 0.0, %v7423
      %v7425 = vpop.f32.mrb[0].mxu0
      %7426 = vmatprep.mubr.f32.mxu0 %v7286
      %7427 = vmatmul.mubr.f32.gmra.mrb[0].mxu0 %v7081
      %v7428 = vpop.f32.mrb[0].mxu0
      %v7429 = vadd.f32 0.0, %v7428
      %v7430 = vpop.f32.mrb[0].mxu0
      %7431 = vmatprep.mubr.f32.mxu0 %v7288
      %7432 = vmatmul.mubr.f32.gmra.mrb[0].mxu0 %v7086
      %v7433 = vpop.f32.mrb[0].mxu0
      %v7434 = vadd.f32 0.0, %v7433
      %v7435 = vpop.f32.mrb[0].mxu0
      %7436 = vmatprep.mubr.f32.mxu0 %v7290
      %7437 = vmatmul.mubr.f32.gmra.mrb[0].mxu0 %v7091
      %v7438 = vpop.f32.mrb[0].mxu0
      %v7439 = vadd.f32 0.0, %v7438
      %v7440 = vpop.f32.mrb[0].mxu0
      %7441 = vmatprep.mubr.f32.mxu0 %v7292
      %7442 = vmatmul.mubr.f32.gmra.mrb[0].mxu0 %v7096
      %v7443 = vpop.f32.mrb[0].mxu0
      %v7444 = vadd.f32 0.0, %v7443
      %v7445 = vpop.f32.mrb[0].mxu0
      %7446 = vmatprep.mubr.f32.mxu0 %v7294
      %7447 = vmatmul.mubr.f32.gmra.mrb[0].mxu0 %v7101
      %v7448 = vpop.f32.mrb[0].mxu0
      %v7449 = vadd.f32 0.0, %v7448
      %v7450 = vpop.f32.mrb[0].mxu0
      %7451 = vmatprep.mubr.f32.mxu0 %v7296
      %7452 = vmatmul.mubr.f32.gmra.mrb[0].mxu0 %v7106
      %v7453 = vpop.f32.mrb[0].mxu0
      %v7454 = vadd.f32 0.0, %v7453
      %v7455 = vpop.f32.mrb[0].mxu0
      %7456 = vmatprep.mubr.f32.mxu0 %v7298
      %7457 = vmatmul.mubr.f32.gmra.mrb[0].mxu0 %v7111
      %v7458 = vpop.f32.mrb[0].mxu0
      %v7459 = vadd.f32 0.0, %v7458
      %v7460 = vpop.f32.mrb[0].mxu0
      %7461 = vmatprep.mubr.f32.mxu0 %v7300
      %7462 = vmatmul.mubr.f32.gmra.mrb[0].mxu0 %v7116
      %v7463 = vpop.f32.mrb[0].mxu0
      %v7464 = vadd.f32 0.0, %v7463
      %v7465 = vpop.f32.mrb[0].mxu0
      %7466 = vmatprep.mubr.f32.mxu0 %v7302
      %7467 = vmatmul.mubr.f32.gmra.mrb[0].mxu0 %v7121
      %v7468 = vpop.f32.mrb[0].mxu0
      %v7469 = vadd.f32 0.0, %v7468
      %v7470 = vpop.f32.mrb[0].mxu0
      %7471 = vmatprep.mubr.f32.mxu0 %v7304
      %7472 = vmatmul.mubr.f32.gmra.mrb[0].mxu0 %v7126
      %v7473 = vpop.f32.mrb[0].mxu0
      %v7474 = vadd.f32 0.0, %v7473
      %v7475 = vpop.f32.mrb[0].mxu0
      %7476 = vmatprep.mubr.f32.mxu0 %v7306
      %7477 = vmatmul.mubr.f32.gmra.mrb[0].mxu0 %v7131
      %v7478 = vpop.f32.mrb[0].mxu0
      %v7479 = vadd.f32 0.0, %v7478
      %v7480 = vpop.f32.mrb[0].mxu0
      %7481 = vmatprep.mubr.f32.mxu0 %v7308
      %7482 = vmatmul.mubr.f32.gmra.mrb[0].mxu0 %v7136
      %v7483 = vpop.f32.mrb[0].mxu0
      %v7484 = vadd.f32 0.0, %v7483
      %v7485 = vpop.f32.mrb[0].mxu0
      %7486 = vmatprep.mubr.f32.mxu0 %v7310
      %7487 = vmatmul.mubr.f32.gmra.mrb[0].mxu0 %v7141
      %v7488 = vpop.f32.mrb[0].mxu0
      %v7489 = vadd.f32 0.0, %v7488
      %v7490 = vpop.f32.mrb[0].mxu0
      %7491 = vmatprep.mubr.f32.mxu0 %v7312
      %7492 = vmatmul.mubr.f32.gmra.mrb[0].mxu0 %v7146
      %v7493 = vpop.f32.mrb[0].mxu0
      %v7494 = vadd.f32 0.0, %v7493
      %v7495 = vpop.f32.mrb[0].mxu0
      %7496 = vmatprep.mubr.f32.mxu0 %v7314
      %7497 = vmatmul.mubr.f32.gmra.mrb[0].mxu0 %v7151
      %v7498 = vpop.f32.mrb[0].mxu0
      %v7499 = vadd.f32 0.0, %v7498
      %v7500 = vpop.f32.mrb[0].mxu0
      %7501 = vmatprep.mubr.f32.mxu0 %v7316
      %7502 = vmatmul.mubr.f32.gmra.mrb[0].mxu0 %v7156
      %v7503 = vpop.f32.mrb[0].mxu0
      %v7504 = vadd.f32 0.0, %v7503
      %v7505 = vpop.f32.mrb[0].mxu0
      %7506 = vmatprep.mubr.f32.mxu0 %v7318
      %7507 = vmatmul.mubr.f32.gmra.mrb[0].mxu0 %v7161
      %v7508 = vpop.f32.mrb[0].mxu0
      %v7509 = vadd.f32 0.0, %v7508
      %v7510 = vpop.f32.mrb[0].mxu0
      %7511 = vmatprep.mubr.f32.mxu0 %v7320
      %7512 = vmatmul.mubr.f32.gmra.mrb[0].mxu0 %v7166
      %v7513 = vpop.f32.mrb[0].mxu0
      %v7514 = vadd.f32 0.0, %v7513
      %v7515 = vpop.f32.mrb[0].mxu0
      %7516 = vmatprep.mubr.f32.mxu0 %v7322
      %7517 = vmatmul.mubr.f32.gmra.mrb[0].mxu0 %v7171
      %v7518 = vpop.f32.mrb[0].mxu0
      %v7519 = vadd.f32 0.0, %v7518
      %v7520 = vpop.f32.mrb[0].mxu0
      %7521 = vmatprep.mubr.f32.mxu0 %v7324
      %7522 = vmatmul.mubr.f32.gmra.mrb[0].mxu0 %v7176
      %v7523 = vpop.f32.mrb[0].mxu0
      %v7524 = vadd.f32 0.0, %v7523
      %v7525 = vpop.f32.mrb[0].mxu0
      %7526 = vmatprep.mubr.f32.mxu0 %v7326
      %7527 = vmatmul.mubr.f32.gmra.mrb[0].mxu0 %v7181
      %v7528 = vpop.f32.mrb[0].mxu0
      %v7529 = vadd.f32 0.0, %v7528
      %v7530 = vpop.f32.mrb[0].mxu0
      %7531 = vmatprep.mubr.f32.mxu0 %v7328
      %7532 = vmatmul.mubr.f32.gmra.mrb[0].mxu0 %v7186
      %v7533 = vpop.f32.mrb[0].mxu0
      %v7534 = vadd.f32 0.0, %v7533
      %v7535 = vpop.f32.mrb[0].mxu0
      %7536 = vmatprep.mubr.f32.mxu0 %v7330
      %7537 = vmatmul.mubr.f32.gmra.mrb[0].mxu0 %v7191
      %v7538 = vpop.f32.mrb[0].mxu0
      %v7539 = vadd.f32 0.0, %v7538
      %v7540 = vpop.f32.mrb[0].mxu0
      %7541 = vmatprep.mubr.f32.mxu0 %v7332
      %7542 = vmatmul.mubr.f32.gmra.mrb[0].mxu0 %v7196
      %v7543 = vpop.f32.mrb[0].mxu0
      %v7544 = vadd.f32 0.0, %v7543
      %v7545 = vpop.f32.mrb[0].mxu0
      %7546 = vmatprep.mubr.f32.mxu0 %v7334
      %7547 = vmatmul.mubr.f32.gmra.mrb[0].mxu0 %v7201
      %v7548 = vpop.f32.mrb[0].mxu0
      %v7549 = vadd.f32 0.0, %v7548
      %v7550 = vpop.f32.mrb[0].mxu0
      %7551 = vmatprep.mubr.f32.mxu0 %v7336
      %7552 = vmatmul.mubr.f32.gmra.mrb[0].mxu0 %v7206
      %v7553 = vpop.f32.mrb[0].mxu0
      %v7554 = vadd.f32 0.0, %v7553
      %v7555 = vpop.f32.mrb[0].mxu0
      %7556 = vmatprep.mubr.f32.mxu0 %v7338
      %7557 = vmatmul.mubr.f32.gmra.mrb[0].mxu0 %v7211
      %v7558 = vpop.f32.mrb[0].mxu0
      %v7559 = vadd.f32 0.0, %v7558
      %v7560 = vpop.f32.mrb[0].mxu0
      %7561 = vmatprep.mubr.f32.mxu0 %v7340
      %7562 = vmatmul.mubr.f32.gmra.mrb[0].mxu0 %v7216
      %v7563 = vpop.f32.mrb[0].mxu0
      %v7564 = vadd.f32 0.0, %v7563
      %v7565 = vpop.f32.mrb[0].mxu0
      %7566 = vdwg.mxu0
      %v7567 = vlaneseq
      %v7568 = vshrl.u32 %v7567, 7
      %v7569 = vsub.s32 0, %v7568
      %v7570 = vrot.slane %v1369, %v7569
      %v7571 = vadd.f32 %v7570, %v7409
      %v7572 = vadd.f32 %v7570, %v7414
      %v7573 = vadd.f32 %v7570, %v7419
      %v7574 = vadd.f32 %v7570, %v7424
      %v7575 = vadd.f32 %v7570, %v7429
      %v7576 = vadd.f32 %v7570, %v7434
      %v7577 = vadd.f32 %v7570, %v7439
      %v7578 = vadd.f32 %v7570, %v7444
      %v7579 = vadd.f32 %v7570, %v7449
      %v7580 = vadd.f32 %v7570, %v7454
      %v7581 = vadd.f32 %v7570, %v7459
      %v7582 = vadd.f32 %v7570, %v7464
      %v7583 = vadd.f32 %v7570, %v7469
      %v7584 = vadd.f32 %v7570, %v7474
      %v7585 = vadd.f32 %v7570, %v7479
      %v7586 = vadd.f32 %v7570, %v7484
      %v7587 = vadd.f32 %v7570, %v7489
      %v7588 = vadd.f32 %v7570, %v7494
      %v7589 = vadd.f32 %v7570, %v7499
      %v7590 = vadd.f32 %v7570, %v7504
      %v7591 = vadd.f32 %v7570, %v7509
      %v7592 = vadd.f32 %v7570, %v7514
      %v7593 = vadd.f32 %v7570, %v7519
      %v7594 = vadd.f32 %v7570, %v7524
      %v7595 = vadd.f32 %v7570, %v7529
      %v7596 = vadd.f32 %v7570, %v7534
      %v7597 = vadd.f32 %v7570, %v7539
      %v7598 = vadd.f32 %v7570, %v7544
      %v7599 = vadd.f32 %v7570, %v7549
      %v7600 = vadd.f32 %v7570, %v7554
      %v7601 = vadd.f32 %v7570, %v7559
      %v7602 = vadd.f32 %v7570, %v7564
      %7603 = vst.msk [vmem:[%s235] sm:$0xff] %vm242, %v7571
      %7604 = vst.msk [vmem:[%s235 + $0x8] sm:$0xff] %vm242, %v7572
      %7605 = vst.msk [vmem:[%s235 + $0x10] sm:$0xff] %vm242, %v7573
      %7606 = vst.msk [vmem:[%s235 + $0x18] sm:$0xff] %vm242, %v7574
      %7607 = vst.msk [vmem:[%s235 + $0x20] sm:$0xff] %vm242, %v7575
      %7608 = vst.msk [vmem:[%s235 + $0x28] sm:$0xff] %vm242, %v7576
      %7609 = vst.msk [vmem:[%s235 + $0x30] sm:$0xff] %vm242, %v7577
      %7610 = vst.msk [vmem:[%s235 + $0x38] sm:$0xff] %vm242, %v7578
      %7611 = vst.msk [vmem:[%s235 + $0x40] sm:$0xff] %vm242, %v7579
      %7612 = vst.msk [vmem:[%s235 + $0x48] sm:$0xff] %vm242, %v7580
      %7613 = vst.msk [vmem:[%s235 + $0x50] sm:$0xff] %vm242, %v7581
      %7614 = vst.msk [vmem:[%s235 + $0x58] sm:$0xff] %vm242, %v7582
      %7615 = vst.msk [vmem:[%s235 + $0x60] sm:$0xff] %vm242, %v7583
      %7616 = vst.msk [vmem:[%s235 + $0x68] sm:$0xff] %vm242, %v7584
      %7617 = vst.msk [vmem:[%s235 + $0x70] sm:$0xff] %vm242, %v7585
      %7618 = vst.msk [vmem:[%s235 + $0x78] sm:$0xff] %vm242, %v7586
      %7619 = vst.msk [vmem:[%s235 + $0x80] sm:$0xff] %vm242, %v7587
      %7620 = vst.msk [vmem:[%s235 + $0x88] sm:$0xff] %vm242, %v7588
      %7621 = vst.msk [vmem:[%s235 + $0x90] sm:$0xff] %vm242, %v7589
      %7622 = vst.msk [vmem:[%s235 + $0x98] sm:$0xff] %vm242, %v7590
      %7623 = vst.msk [vmem:[%s235 + $0xa0] sm:$0xff] %vm242, %v7591
      %7624 = vst.msk [vmem:[%s235 + $0xa8] sm:$0xff] %vm242, %v7592
      %7625 = vst.msk [vmem:[%s235 + $0xb0] sm:$0xff] %vm242, %v7593
      %7626 = vst.msk [vmem:[%s235 + $0xb8] sm:$0xff] %vm242, %v7594
      %7627 = vst.msk [vmem:[%s235 + $0xc0] sm:$0xff] %vm242, %v7595
      %7628 = vst.msk [vmem:[%s235 + $0xc8] sm:$0xff] %vm242, %v7596
      %7629 = vst.msk [vmem:[%s235 + $0xd0] sm:$0xff] %vm242, %v7597
      %7630 = vst.msk [vmem:[%s235 + $0xd8] sm:$0xff] %vm242, %v7598
      %7631 = vst.msk [vmem:[%s235 + $0xe0] sm:$0xff] %vm242, %v7599
      %7632 = vst.msk [vmem:[%s235 + $0xe8] sm:$0xff] %vm242, %v7600
      %7633 = vst.msk [vmem:[%s235 + $0xf0] sm:$0xff] %vm242, %v7601
      %7634 = vst.msk [vmem:[%s235 + $0xf8] sm:$0xff] %vm242, %v7602
      %v7635 = vsel %vm242, %v7571, 0.0
      %v7636 = vsel %vm242, %v7572, 0.0
      %v7637 = vadd.f32 %v7635, %v7636
      %v7638 = vsel %vm242, %v7573, 0.0
      %v7639 = vadd.f32 %v7637, %v7638
      %v7640 = vsel %vm242, %v7574, 0.0
      %v7641 = vadd.f32 %v7639, %v7640
      %v7642 = vsel %vm242, %v7575, 0.0
      %v7643 = vadd.f32 %v7641, %v7642
      %v7644 = vsel %vm242, %v7576, 0.0
      %v7645 = vadd.f32 %v7643, %v7644
      %v7646 = vsel %vm242, %v7577, 0.0
      %v7647 = vadd.f32 %v7645, %v7646
      %v7648 = vsel %vm242, %v7578, 0.0
      %v7649 = vadd.f32 %v7647, %v7648
      %v7650 = vsel %vm242, %v7579, 0.0
      %v7651 = vadd.f32 %v7649, %v7650
      %v7652 = vsel %vm242, %v7580, 0.0
      %v7653 = vadd.f32 %v7651, %v7652
      %v7654 = vsel %vm242, %v7581, 0.0
      %v7655 = vadd.f32 %v7653, %v7654
      %v7656 = vsel %vm242, %v7582, 0.0
      %v7657 = vadd.f32 %v7655, %v7656
      %v7658 = vsel %vm242, %v7583, 0.0
      %v7659 = vadd.f32 %v7657, %v7658
      %v7660 = vsel %vm242, %v7584, 0.0
      %v7661 = vadd.f32 %v7659, %v7660
      %v7662 = vsel %vm242, %v7585, 0.0
      %v7663 = vadd.f32 %v7661, %v7662
      %v7664 = vsel %vm242, %v7586, 0.0
      %v7665 = vadd.f32 %v7663, %v7664
      %v7666 = vsel %vm242, %v7587, 0.0
      %v7667 = vadd.f32 %v7665, %v7666
      %v7668 = vsel %vm242, %v7588, 0.0
      %v7669 = vadd.f32 %v7667, %v7668
      %v7670 = vsel %vm242, %v7589, 0.0
      %v7671 = vadd.f32 %v7669, %v7670
      %v7672 = vsel %vm242, %v7590, 0.0
      %v7673 = vadd.f32 %v7671, %v7672
      %v7674 = vsel %vm242, %v7591, 0.0
      %v7675 = vadd.f32 %v7673, %v7674
      %v7676 = vsel %vm242, %v7592, 0.0
      %v7677 = vadd.f32 %v7675, %v7676
      %v7678 = vsel %vm242, %v7593, 0.0
      %v7679 = vadd.f32 %v7677, %v7678
      %v7680 = vsel %vm242, %v7594, 0.0
      %v7681 = vadd.f32 %v7679, %v7680
      %v7682 = vsel %vm242, %v7595, 0.0
      %v7683 = vadd.f32 %v7681, %v7682
      %v7684 = vsel %vm242, %v7596, 0.0
      %v7685 = vadd.f32 %v7683, %v7684
      %v7686 = vsel %vm242, %v7597, 0.0
      %v7687 = vadd.f32 %v7685, %v7686
      %v7688 = vsel %vm242, %v7598, 0.0
      %v7689 = vadd.f32 %v7687, %v7688
      %v7690 = vsel %vm242, %v7599, 0.0
      %v7691 = vadd.f32 %v7689, %v7690
      %v7692 = vsel %vm242, %v7600, 0.0
      %v7693 = vadd.f32 %v7691, %v7692
      %v7694 = vsel %vm242, %v7601, 0.0
      %v7695 = vadd.f32 %v7693, %v7694
      %v7696 = vsel %vm242, %v7602, 0.0
      %v7697 = vadd.f32 %v7695, %v7696
      %v7698 = vrot.slane %v7697, 4
      %v7699 = vadd.f32 %v7697, %v7698
      %v7700 = vrot.slane %v7699, 2
      %v7701 = vadd.f32 %v7699, %v7700
      %v7702 = vrot.slane %v7701, 1
      %v7703 = vadd.f32 %v7701, %v7702
      %vm7704 = vcmask 57344
      %7705 = vst.msk [vmem:[%s238] sm:$0x1] %vm7704, %v7703
      %v7706 = vmul.f32 %v7571, %v7571
      %v7707 = vmul.f32 %v7572, %v7572
      %v7708 = vmul.f32 %v7573, %v7573
      %v7709 = vmul.f32 %v7574, %v7574
      %v7710 = vmul.f32 %v7575, %v7575
      %v7711 = vmul.f32 %v7576, %v7576
      %v7712 = vmul.f32 %v7577, %v7577
      %v7713 = vmul.f32 %v7578, %v7578
      %v7714 = vmul.f32 %v7579, %v7579
      %v7715 = vmul.f32 %v7580, %v7580
      %v7716 = vmul.f32 %v7581, %v7581
      %v7717 = vmul.f32 %v7582, %v7582
      %v7718 = vmul.f32 %v7583, %v7583
      %v7719 = vmul.f32 %v7584, %v7584
      %v7720 = vmul.f32 %v7585, %v7585
      %v7721 = vmul.f32 %v7586, %v7586
      %v7722 = vmul.f32 %v7587, %v7587
      %v7723 = vmul.f32 %v7588, %v7588
      %v7724 = vmul.f32 %v7589, %v7589
      %v7725 = vmul.f32 %v7590, %v7590
      %v7726 = vmul.f32 %v7591, %v7591
      %v7727 = vmul.f32 %v7592, %v7592
      %v7728 = vmul.f32 %v7593, %v7593
      %v7729 = vmul.f32 %v7594, %v7594
      %v7730 = vmul.f32 %v7595, %v7595
      %v7731 = vmul.f32 %v7596, %v7596
      %v7732 = vmul.f32 %v7597, %v7597
      %v7733 = vmul.f32 %v7598, %v7598
      %v7734 = vmul.f32 %v7599, %v7599
      %v7735 = vmul.f32 %v7600, %v7600
      %v7736 = vmul.f32 %v7601, %v7601
      %v7737 = vmul.f32 %v7602, %v7602
      %v7738 = vsel %vm242, %v7706, 0.0
      %v7739 = vsel %vm242, %v7707, 0.0
      %v7740 = vadd.f32 %v7738, %v7739
      %v7741 = vsel %vm242, %v7708, 0.0
      %v7742 = vadd.f32 %v7740, %v7741
      %v7743 = vsel %vm242, %v7709, 0.0
      %v7744 = vadd.f32 %v7742, %v7743
      %v7745 = vsel %vm242, %v7710, 0.0
      %v7746 = vadd.f32 %v7744, %v7745
      %v7747 = vsel %vm242, %v7711, 0.0
      %v7748 = vadd.f32 %v7746, %v7747
      %v7749 = vsel %vm242, %v7712, 0.0
      %v7750 = vadd.f32 %v7748, %v7749
      %v7751 = vsel %vm242, %v7713, 0.0
      %v7752 = vadd.f32 %v7750, %v7751
      %v7753 = vsel %vm242, %v7714, 0.0
      %v7754 = vadd.f32 %v7752, %v7753
      %v7755 = vsel %vm242, %v7715, 0.0
      %v7756 = vadd.f32 %v7754, %v7755
      %v7757 = vsel %vm242, %v7716, 0.0
      %v7758 = vadd.f32 %v7756, %v7757
      %v7759 = vsel %vm242, %v7717, 0.0
      %v7760 = vadd.f32 %v7758, %v7759
      %v7761 = vsel %vm242, %v7718, 0.0
      %v7762 = vadd.f32 %v7760, %v7761
      %v7763 = vsel %vm242, %v7719, 0.0
      %v7764 = vadd.f32 %v7762, %v7763
      %v7765 = vsel %vm242, %v7720, 0.0
      %v7766 = vadd.f32 %v7764, %v7765
      %v7767 = vsel %vm242, %v7721, 0.0
      %v7768 = vadd.f32 %v7766, %v7767
      %v7769 = vsel %vm242, %v7722, 0.0
      %v7770 = vadd.f32 %v7768, %v7769
      %v7771 = vsel %vm242, %v7723, 0.0
      %v7772 = vadd.f32 %v7770, %v7771
      %v7773 = vsel %vm242, %v7724, 0.0
      %v7774 = vadd.f32 %v7772, %v7773
      %v7775 = vsel %vm242, %v7725, 0.0
      %v7776 = vadd.f32 %v7774, %v7775
      %v7777 = vsel %vm242, %v7726, 0.0
      %v7778 = vadd.f32 %v7776, %v7777
      %v7779 = vsel %vm242, %v7727, 0.0
      %v7780 = vadd.f32 %v7778, %v7779
      %v7781 = vsel %vm242, %v7728, 0.0
      %v7782 = vadd.f32 %v7780, %v7781
      %v7783 = vsel %vm242, %v7729, 0.0
      %v7784 = vadd.f32 %v7782, %v7783
      %v7785 = vsel %vm242, %v7730, 0.0
      %v7786 = vadd.f32 %v7784, %v7785
      %v7787 = vsel %vm242, %v7731, 0.0
      %v7788 = vadd.f32 %v7786, %v7787
      %v7789 = vsel %vm242, %v7732, 0.0
      %v7790 = vadd.f32 %v7788, %v7789
      %v7791 = vsel %vm242, %v7733, 0.0
      %v7792 = vadd.f32 %v7790, %v7791
      %v7793 = vsel %vm242, %v7734, 0.0
      %v7794 = vadd.f32 %v7792, %v7793
      %v7795 = vsel %vm242, %v7735, 0.0
      %v7796 = vadd.f32 %v7794, %v7795
      %v7797 = vsel %vm242, %v7736, 0.0
      %v7798 = vadd.f32 %v7796, %v7797
      %v7799 = vsel %vm242, %v7737, 0.0
      %v7800 = vadd.f32 %v7798, %v7799
      %v7801 = vrot.slane %v7800, 4
      %v7802 = vadd.f32 %v7800, %v7801
      %v7803 = vrot.slane %v7802, 2
      %v7804 = vadd.f32 %v7802, %v7803
      %v7805 = vrot.slane %v7804, 1
      %v7806 = vadd.f32 %v7804, %v7805
      %7807 = vst.msk [vmem:[%s241] sm:$0x1] %vm7704, %v7806
      %p7808 = scmp.lt.s32.totalorder %s17, 1
      %s7809 = scalar_select %p7808, %s17, 1
      %s7810 = smul.addr %s7809, 32
      %s7811 = smul.addr %s7810, 8
      %s7812 = scalar_lea.vmem %s3, %s7811
      %p7813 = scmp.lt.s32.totalorder %s17, 1
      %s7814 = scalar_select %p7813, %s17, 1
      %s7815 = scalar_lea.vmem %s4, %s7814
      %p7816 = scmp.lt.s32.totalorder %s17, 1
      %s7817 = scalar_select %p7816, %s17, 1
      %s7818 = scalar_lea.vmem %s5, %s7817
      // Predicated region
      $region33: #{aspp_forward.2} parent=31 // pred_check
        %p7819 = pneg %p103
      $region34: #{aspp_forward.2} parent=31 // pred_check_branch
        %7821 = sbr.rel (%p7819) target = $region36
      $region35: #{aspp_forward.2} parent=31 // pred_region
        _
      $region36: #{aspp_forward.2} parent=31 // pred_fallthru
        _
      // Predicated region
      $region37: #{aspp_forward.2} parent=31 // pred_check
        %p7822 = pneg %p129
      $region38: #{aspp_forward.2} parent=31 // pred_check_branch
        %7824 = sbr.rel (%p7822) target = $region40
      $region39: #{aspp_forward.2} parent=31 // pred_region
        _
      $region40: #{aspp_forward.2} parent=31 // pred_fallthru
        _
      // Predicated region
      $region41: #{aspp_forward.2} parent=31 // pred_check
        %p7825 = pneg %p155
      $region42: #{aspp_forward.2} parent=31 // pred_check_branch
        %7827 = sbr.rel (%p7825) target = $region44
      $region43: #{aspp_forward.2} parent=31 // pred_region
        _
      $region44: #{aspp_forward.2} parent=31 // pred_fallthru
        _
    $region32: #{aspp_forward.2} parent=5 // pred_fallthru
      _
    %p7828 = scmp.le.s32.totalorder 2, %s12
    // Predicated region
    $region45: #{aspp_forward.2} parent=5 // pred_check
      %p7829 = pneg %p7828
    $region46: #{aspp_forward.2} parent=5 // pred_check_branch
      %7831 = sbr.rel (%p7829) target = $region48
    $region47: #{aspp_forward.2} parent=5 // pred_region
      %s7832 = ssub.s32 %s12, 2
      // Predicated region
      $region49: #{aspp_forward.2} parent=47 // pred_check
        %p7833 = pneg %p109
      $region50: #{aspp_forward.2} parent=47 // pred_check_branch
        %7835 = sbr.rel (%p7833) target = $region52
      $region51: #{aspp_forward.2} parent=47 // pred_region
        %p7836 = scmp.lt.s32.totalorder %s18, 1
        %s7837 = scalar_select %p7836, %s18, 1
        %s7838 = smul.addr %s7837, 32
        %s7839 = smul.addr %s7838, 8
        %s7840 = scalar_lea.vmem %s3, %s7839
      $region52: #{aspp_forward.2} parent=47 // pred_fallthru
        _
      // Predicated region
      $region53: #{aspp_forward.2} parent=47 // pred_check
        %p7841 = pneg %p135
      $region54: #{aspp_forward.2} parent=47 // pred_check_branch
        %7843 = sbr.rel (%p7841) target = $region56
      $region55: #{aspp_forward.2} parent=47 // pred_region
        %p7844 = scmp.lt.s32.totalorder %s18, 1
        %s7845 = scalar_select %p7844, %s18, 1
        %s7846 = scalar_lea.vmem %s4, %s7845
      $region56: #{aspp_forward.2} parent=47 // pred_fallthru
        _
      // Predicated region
      $region57: #{aspp_forward.2} parent=47 // pred_check
        %p7847 = pneg %p161
      $region58: #{aspp_forward.2} parent=47 // pred_check_branch
        %7849 = sbr.rel (%p7847) target = $region60
      $region59: #{aspp_forward.2} parent=47 // pred_region
        %p7850 = scmp.lt.s32.totalorder %s18, 1
        %s7851 = scalar_select %p7850, %s18, 1
        %s7852 = scalar_lea.vmem %s5, %s7851
      $region60: #{aspp_forward.2} parent=47 // pred_fallthru
        _
    $region48: #{aspp_forward.2} parent=5 // pred_fallthru
      _
  $region6: #{aspp_forward.2} parent=0 // loop_footer
    %s16 = sadd.s32 1, %s12
  $region7: #{aspp_forward.2} parent=0 // loop_footer_branch
    %11 = sbr.rel target = $region3
  $region8: #{aspp_forward.2} parent=0 // loop_exit
    _

</llo_original>
